<compile_context>
chip_gen: v7x
topology: tpu7x:2x2x1
jax: 0.10.0
libtpu: 0.0.40
codegen_flags: <defaults>
</compile_context>

<pallas_src>
import functools

import jax
import jax.numpy as jnp
from jax import lax
from jax.experimental import pallas as pl
from jax.experimental.pallas import tpu as pltpu

C_IN = 128     # block input / conv2 output channels
C_MID = 64     # conv1 output channels
NEG_SLOPE = 0.1
EPS = 1e-5

DEFAULT_TILE_PX = 8192    # target pixels per grid step (VMEM budget, v7x-safe)
DEFAULT_CHUNK_PX = 512    # target pixels per in-kernel chunk (vreg pressure)


def _leaky(v):
    return jnp.maximum(v, NEG_SLOPE * v)


def _resblock_kernel(x_ref, halo_ref, w1_ref, b1_ref, w2_ref, b2_ref, o_ref,
                     ybuf_ref, *, width, tile_h, pad, m_chunk):
    """One (image, row-tile) per grid step.

    x_ref   : (128, TH*W)   tile rows of x, NCHW flattened to (C, rows*W), f32
    halo_ref: (2, 128, W)   x row just above / below the tile (zeros at border)
    w1_ref  : (64, 128)     conv1 weight * BN1 scale   (compute dtype)
    b1_ref  : (64, 1)       folded BN1 bias, f32
    w2_ref  : (9, 128, 64)  conv2 weight [kh*3+kw, o, ci] * BN2 scale
    b2_ref  : (128, 1)      folded BN2 bias, f32
    o_ref   : (128, TH*W)   output tile
    ybuf_ref: (64, pad + (TH+2)*W + 128)  padded conv1 activation scratch
    """
    W = width
    tile_px = tile_h * W
    nchunks = tile_px // m_chunk
    cdt = ybuf_ref.dtype

    t = pl.program_id(1)
    nt = pl.num_programs(1)

    w1 = w1_ref[...]                                        # (64, 128)
    b1 = b1_ref[...]                                        # (64, 1)  f32
    b2 = b2_ref[...]                                        # (128, 1) f32
    # Hoisted bias broadcasts (JAX does not CSE broadcast_in_dim).
    b1w = jnp.broadcast_to(b1, (C_MID, W))
    b1c = jnp.broadcast_to(b1, (C_MID, m_chunk))
    b2c = jnp.broadcast_to(b2, (C_IN, m_chunk))

    # ---- phase 0: conv1 on the two halo rows.  At the image border the 3x3
    #      conv zero-pads its input y1, so the band is zeroed there instead.
    ya = _leaky(jnp.dot(w1, halo_ref[0].astype(cdt),
                        preferred_element_type=jnp.float32) + b1w)
    yb = _leaky(jnp.dot(w1, halo_ref[1].astype(cdt),
                        preferred_element_type=jnp.float32) + b1w)
    ybuf_ref[:, pad:pad + W] = jnp.where(t > 0, ya, 0.0).astype(cdt)
    lo_b = pad + (tile_h + 1) * W
    ybuf_ref[:, lo_b:lo_b + W] = jnp.where(t < nt - 1, yb, 0.0).astype(cdt)

    # ---- phase 1: 1x1 conv + BN bias + leaky on the tile's own rows ----
    for j in range(nchunks):
        s = j * m_chunk
        xc = x_ref[:, s:s + m_chunk].astype(cdt)            # (128, cm)
        y = _leaky(jnp.dot(w1, xc, preferred_element_type=jnp.float32) + b1c)
        ybuf_ref[:, pad + W + s:pad + W + s + m_chunk] = y.astype(cdt)

    # ---- phase 2: 3x3 conv as 9 accumulating K=64 matmuls on lane-shifted
    #      slices of ybuf (no im2col concat), + BN bias + leaky + residual ----
    # Chunks are whole rows, so the column-edge masks are chunk-invariant.
    wcol = lax.broadcasted_iota(jnp.int32, (1, m_chunk), 1) % W
    not_first = wcol != 0
    not_last = wcol != (W - 1)
    ztap = jnp.zeros((C_MID, m_chunk), cdt)

    for j in range(nchunks):
        s = j * m_chunk
        base = pad + W + s            # ybuf position of output pixel m == s
        acc = b2c                                           # (128, cm) f32
        for kh in range(3):
            for kw in range(3):
                d = (kh - 1) * W + (kw - 1)
                tap = ybuf_ref[:, base + d:base + d + m_chunk]   # (64, cm)
                # Row out-of-bounds taps land in the halo bands; column
                # out-of-bounds taps wrap into the neighbouring row -> mask.
                if kw == 0:
                    tap = jnp.where(not_first, tap, ztap)
                elif kw == 2:
                    tap = jnp.where(not_last, tap, ztap)
                wk = w2_ref[kh * 3 + kw]                         # (128, 64)
                acc = acc + jnp.dot(wk, tap,
                                    preferred_element_type=jnp.float32)
        y2 = _leaky(acc)                                     # (128, cm) f32
        xc = x_ref[:, s:s + m_chunk].astype(jnp.float32)
        o_ref[:, s:s + m_chunk] = (xc + y2).astype(o_ref.dtype)


def _fold_bn(gamma, beta, mean, var):
    scale = gamma / jnp.sqrt(var + EPS)
    return scale, beta - mean * scale


def prepare_params(w1_oihw, w2_oihw, bn1, bn2, compute_dtype=jnp.bfloat16):
    """Fold BN into the conv weights and lay them out for the kernel."""
    s1, c1 = _fold_bn(*bn1)
    s2, c2 = _fold_bn(*bn2)
    w1f = (w1_oihw[:, :, 0, 0] * s1[:, None]).astype(compute_dtype)   # (64,128)
    w2f = (jnp.transpose(w2_oihw, (2, 3, 0, 1)).reshape(9, C_IN, C_MID)
           * s2[None, :, None]).astype(compute_dtype)                 # (9,128,64)
    b1f = c1.reshape(C_MID, 1).astype(jnp.float32)
    b2f = c2.reshape(C_IN, 1).astype(jnp.float32)
    return w1f, b1f, w2f, b2f


def _pick_tile_h(H, W, tile_h, pix_budget):
    """Largest divisor of H whose tile is lane-aligned and under the budget."""
    def aligned(th):
        return th == H or (th * W) % 128 == 0
    if tile_h is not None:
        if H % tile_h != 0 or not aligned(tile_h):
            raise ValueError(
                f"tile_h={tile_h} must divide H={H} and satisfy "
                f"tile_h*W % 128 == 0 (or tile_h == H)")
        return tile_h
    divs = [d for d in range(1, H + 1) if H % d == 0 and aligned(d)]
    under = [d for d in divs if d * W <= pix_budget]
    return max(under) if under else min(divs)


def _pick_chunk_rows(tile_h, W, chunk_px):
    """Largest divisor of tile_h whose row-chunk stays near the pixel target."""
    target = max(chunk_px, W)
    best = 1
    for cr in range(1, tile_h + 1):
        if tile_h % cr == 0 and cr * W <= target:
            best = cr
    return best


def _default_vmem_limit():
    """Generation-aware scoped-VMEM limit (v7x: 48 MiB, v5e/v6e: 96 MiB)."""
    try:
        info = pltpu.get_tpu_info()
        cap = getattr(info, "vmem_capacity_bytes", None)
        if cap:
            return int(min(96 * 2**20, max(32 * 2**20, (cap * 3) // 4)))
    except Exception:
        pass
    return 64 * 2**20


def resblock2_child_pallas(x_nchw, w1f, b1f, w2f, b2f, *, tile_h=None,
                           pix_budget=DEFAULT_TILE_PX,
                           chunk_px=DEFAULT_CHUNK_PX, out_dtype=None):
    """x_nchw: (N, 128, H, W) float32.  Returns (N, 128, H, W)."""
    N, C, H, W = x_nchw.shape
    assert C == C_IN
    M = H * W
    out_dtype = out_dtype or x_nchw.dtype
    cdt = w1f.dtype

    TH = _pick_tile_h(H, W, tile_h, pix_budget)
    n_tiles = H // TH
    tile_px = TH * W
    m_chunk = _pick_chunk_rows(TH, W, chunk_px) * W

    x = x_nchw.reshape(N, C, M)                 # free reshape (no transpose)

    # Halo rows (one x row above / below every tile); zeros at the image
    # border are placeholders -- the kernel zeroes those y1 bands itself.
    x5 = x_nchw.reshape(N, C, n_tiles, TH, W)
    zrow = jnp.zeros((N, C, 1, W), x_nchw.dtype)
    above = jnp.concatenate([zrow, x5[:, :, :-1, TH - 1, :]], axis=2)
    below = jnp.concatenate([x5[:, :, 1:, 0, :], zrow], axis=2)
    halo = jnp.stack([above, below], axis=3)             # (N, C, nt, 2, W)
    halo = jnp.transpose(halo, (0, 2, 3, 1, 4))          # (N, nt, 2, C, W)

    # Left pad >= 1 lane, chosen so the tile's own rows start lane-aligned.
    pad = 128 - (W % 128) if (W % 128) else 128
    ybuf_w = pad + (TH + 2) * W + 128

    kernel = functools.partial(_resblock_kernel, width=W, tile_h=TH,
                               pad=pad, m_chunk=m_chunk)

    out = pl.pallas_call(
        kernel,
        out_shape=jax.ShapeDtypeStruct((N, C, M), out_dtype),
        grid_spec=pltpu.PrefetchScalarGridSpec(
            num_scalar_prefetch=0,
            grid=(N, n_tiles),
            in_specs=[
                pl.BlockSpec((None, C_IN, tile_px), lambda n, t: (n, 0, t)),
                pl.BlockSpec((None, None, 2, C_IN, W),
                             lambda n, t: (n, t, 0, 0, 0)),
                pl.BlockSpec((C_MID, C_IN), lambda n, t: (0, 0)),
                pl.BlockSpec((C_MID, 1), lambda n, t: (0, 0)),
                pl.BlockSpec((9, C_IN, C_MID), lambda n, t: (0, 0, 0)),
                pl.BlockSpec((C_IN, 1), lambda n, t: (0, 0)),
            ],
            out_specs=pl.BlockSpec((None, C_IN, tile_px), lambda n, t: (n, 0, t)),
            scratch_shapes=[pltpu.VMEM((C_MID, ybuf_w), cdt)],
        ),
        compiler_params=pltpu.CompilerParams(
            dimension_semantics=("parallel", "parallel"),
            vmem_limit_bytes=_default_vmem_limit(),
        ),
    )(x, halo, w1f, b1f, w2f, b2f)

    return out.reshape(N, C, H, W)


def _reference(x_nchw, w1_oihw, w2_oihw, bn1, bn2):
    """Pure-JAX NHWC reference (inference-mode BN)."""
    x = jnp.transpose(x_nchw, (0, 2, 3, 1))
    w1 = jnp.transpose(w1_oihw, (2, 3, 1, 0))   # HWIO (1,1,128,64)
    w2 = jnp.transpose(w2_oihw, (2, 3, 1, 0))   # HWIO (3,3,64,128)
    s1, b1 = _fold_bn(*bn1)
    s2, b2 = _fold_bn(*bn2)

    def leaky(v):
        return jnp.where(v > 0, v, NEG_SLOPE * v)

    dn = lax.conv_dimension_numbers(x.shape, w1.shape, ('NHWC', 'HWIO', 'NHWC'))
    y = lax.conv_general_dilated(x, w1, (1, 1), 'VALID', dimension_numbers=dn)
    y = leaky(y * s1 + b1)
    dn2 = lax.conv_dimension_numbers(y.shape, w2.shape, ('NHWC', 'HWIO', 'NHWC'))
    y = lax.conv_general_dilated(y, w2, (1, 1), 'SAME', dimension_numbers=dn2)
    y = leaky(y * s2 + b2)
    out = x + y
    return jnp.transpose(out, (0, 3, 1, 2))


if __name__ == "__main__":
    key = jax.random.PRNGKey(0)
    ks = jax.random.split(key, 12)

    N, H, W = 2, 16, 16
    x = jax.random.normal(ks[0], (N, C_IN, H, W), jnp.float32)

    # Conv weights in PyTorch OIHW layout.
    w1_oihw = jax.random.normal(ks[1], (C_MID, C_IN, 1, 1), jnp.float32) * 0.05
    w2_oihw = jax.random.normal(ks[2], (C_IN, C_MID, 3, 3), jnp.float32) * 0.05

    # BatchNorm parameters (inference-mode running stats).
    bn1 = (1.0 + 0.1 * jax.random.normal(ks[3], (C_MID,), jnp.float32),
           0.1 * jax.random.normal(ks[4], (C_MID,), jnp.float32),
           0.1 * jax.random.normal(ks[5], (C_MID,), jnp.float32),
           1.0 + 0.2 * jax.random.uniform(ks[6], (C_MID,), jnp.float32))
    bn2 = (1.0 + 0.1 * jax.random.normal(ks[7], (C_IN,), jnp.float32),
           0.1 * jax.random.normal(ks[8], (C_IN,), jnp.float32),
           0.1 * jax.random.normal(ks[9], (C_IN,), jnp.float32),
           1.0 + 0.2 * jax.random.uniform(ks[10], (C_IN,), jnp.float32))

    ref = jax.block_until_ready(_reference(x, w1_oihw, w2_oihw, bn1, bn2))

    # --- f32 compute path with forced row-tiling (grid (2,2)) and a small
    #     chunk target so the multi-chunk + halo code paths are exercised. ---
    p32 = prepare_params(w1_oihw, w2_oihw, bn1, bn2, compute_dtype=jnp.float32)
    run32 = jax.jit(functools.partial(resblock2_child_pallas, tile_h=8,
                                      chunk_px=64))
    out32 = jax.block_until_ready(run32(x, *p32))
    assert out32.shape == (N, C_IN, H, W)
    err32 = float(jnp.max(jnp.abs(out32 - ref)))
    if err32 > 5e-3:
        raise AssertionError(f"f32 path mismatch vs reference, max abs err = {err32}")

    # --- bf16 MXU path (perf path), default auto-picked tile (whole image). ---
    pbf = prepare_params(w1_oihw, w2_oihw, bn1, bn2, compute_dtype=jnp.bfloat16)
    runbf = jax.jit(resblock2_child_pallas)
    outbf = jax.block_until_ready(runbf(x, *pbf))
    assert outbf.shape == (N, C_IN, H, W)
    errbf = float(jnp.max(jnp.abs(outbf - ref)))
    if errbf > 5e-2:
        raise AssertionError(f"bf16 path mismatch vs reference, max abs err = {errbf}")

    # --- taller image: 4 row-tiles, interior tiles use both (non-zero) halos. ---
    x2 = jax.random.normal(ks[11], (1, C_IN, 32, 16), jnp.float32)
    ref2 = jax.block_until_ready(_reference(x2, w1_oihw, w2_oihw, bn1, bn2))
    run2 = jax.jit(functools.partial(resblock2_child_pallas, tile_h=8))
    out2 = jax.block_until_ready(run2(x2, *p32))
    assert out2.shape == (1, C_IN, 32, 16)
    err2 = float(jnp.max(jnp.abs(out2 - ref2)))
    if err2 > 5e-3:
        raise AssertionError(f"tiled f32 path mismatch vs reference, max abs err = {err2}")

    print("KERNEL_OK")
</pallas_src>

<mosaic_0001>
module attributes {stable_mosaic.version = 11 : i64} {
  func.func @_resblock_kernel(%arg0: i32, %arg1: i32, %arg2: memref<1x128x128xf32, #tpu.memory_space<vmem>>, %arg3: memref<1x1x2x128x16xf32, #tpu.memory_space<vmem>>, %arg4: memref<64x128xf32, #tpu.memory_space<vmem>>, %arg5: memref<64x1xf32, #tpu.memory_space<vmem>>, %arg6: memref<9x128x64xf32, #tpu.memory_space<vmem>>, %arg7: memref<128x1xf32, #tpu.memory_space<vmem>>, %arg8: memref<1x128x128xf32, #tpu.memory_space<vmem>>, %arg9: memref<64x400xf32, #tpu.memory_space<vmem>>) attributes {dimension_semantics = [#tpu.dimension_semantics<parallel>, #tpu.dimension_semantics<parallel>], iteration_bounds = array<i64: 2, 2>, scalar_prefetch = 0 : i64, scratch_operands = 1 : i64, tpu.core_type = #tpu.core_type<tc>, window_params = [{transform_indices = @transform_0, window_bounds = array<i64: 1, 128, 128>}, {transform_indices = @transform_1, window_bounds = array<i64: 1, 1, 2, 128, 16>}, {pipeline_mode = #tpu.pipeline_mode<synchronous>, transform_indices = @transform_2, window_bounds = array<i64: 64, 128>}, {pipeline_mode = #tpu.pipeline_mode<synchronous>, transform_indices = @transform_3, window_bounds = array<i64: 64, 1>}, {pipeline_mode = #tpu.pipeline_mode<synchronous>, transform_indices = @transform_4, window_bounds = array<i64: 9, 128, 64>}, {pipeline_mode = #tpu.pipeline_mode<synchronous>, transform_indices = @transform_5, window_bounds = array<i64: 128, 1>}, {transform_indices = @transform_6, window_bounds = array<i64: 1, 128, 128>}]} {
    %c0 = arith.constant 0 : index
    %c0_0 = arith.constant 0 : index
    %0 = vector.load %arg4[%c0, %c0_0] : memref<64x128xf32, #tpu.memory_space<vmem>>, vector<64x128xf32>
    %c0_1 = arith.constant 0 : index
    %c0_2 = arith.constant 0 : index
    %1 = vector.load %arg5[%c0_1, %c0_2] : memref<64x1xf32, #tpu.memory_space<vmem>>, vector<64x1xf32>
    %c0_3 = arith.constant 0 : index
    %c0_4 = arith.constant 0 : index
    %2 = vector.load %arg7[%c0_3, %c0_4] : memref<128x1xf32, #tpu.memory_space<vmem>>, vector<128x1xf32>
    %3 = vector.shape_cast %1 : vector<64x1xf32> to vector<64x1xf32>
    %4 = vector.broadcast %3 : vector<64x1xf32> to vector<64x16xf32>
    %5 = vector.shape_cast %1 : vector<64x1xf32> to vector<64x1xf32>
    %6 = vector.broadcast %5 : vector<64x1xf32> to vector<64x64xf32>
    %7 = vector.shape_cast %2 : vector<128x1xf32> to vector<128x1xf32>
    %8 = vector.broadcast %7 : vector<128x1xf32> to vector<128x64xf32>
    %c0_5 = arith.constant 0 : index
    %c0_6 = arith.constant 0 : index
    %c0_7 = arith.constant 0 : index
    %c0_8 = arith.constant 0 : index
    %c0_9 = arith.constant 0 : index
    %9 = vector.load %arg3[%c0_5, %c0_6, %c0_7, %c0_8, %c0_9] : memref<1x1x2x128x16xf32, #tpu.memory_space<vmem>>, vector<1x1x1x128x16xf32>
    %10 = vector.shape_cast %9 : vector<1x1x1x128x16xf32> to vector<128x16xf32>
    %cst = arith.constant dense<0.000000e+00> : vector<64x16xf32>
    %11 = tpu.matmul %0, %10, %cst {dimension_numbers = #tpu.dot_dimension_numbers<[1], [0], [0], [1], [0, 0, 1, 1], [], []>} : vector<64x128xf32>, vector<128x16xf32>, vector<64x16xf32> -> vector<64x16xf32>
    %12 = arith.addf %11, %4 : vector<64x16xf32>
    %cst_10 = arith.constant 1.000000e-01 : f32
    %13 = vector.broadcast %cst_10 : f32 to vector<64x16xf32>
    %14 = arith.mulf %13, %12 : vector<64x16xf32>
    %15 = arith.maximumf %12, %14 : vector<64x16xf32>
    %c0_11 = arith.constant 0 : index
    %c0_12 = arith.constant 0 : index
    %c1 = arith.constant 1 : index
    %c0_13 = arith.constant 0 : index
    %c0_14 = arith.constant 0 : index
    %16 = vector.load %arg3[%c0_11, %c0_12, %c1, %c0_13, %c0_14] : memref<1x1x2x128x16xf32, #tpu.memory_space<vmem>>, vector<1x1x1x128x16xf32>
    %17 = vector.shape_cast %16 : vector<1x1x1x128x16xf32> to vector<128x16xf32>
    %cst_15 = arith.constant dense<0.000000e+00> : vector<64x16xf32>
    %18 = tpu.matmul %0, %17, %cst_15 {dimension_numbers = #tpu.dot_dimension_numbers<[1], [0], [0], [1], [0, 0, 1, 1], [], []>} : vector<64x128xf32>, vector<128x16xf32>, vector<64x16xf32> -> vector<64x16xf32>
    %19 = arith.addf %18, %4 : vector<64x16xf32>
    %cst_16 = arith.constant 1.000000e-01 : f32
    %20 = vector.broadcast %cst_16 : f32 to vector<64x16xf32>
    %21 = arith.mulf %20, %19 : vector<64x16xf32>
    %22 = arith.maximumf %19, %21 : vector<64x16xf32>
    %c0_i32 = arith.constant 0 : i32
    %23 = arith.cmpi sgt, %arg1, %c0_i32 : i32
    %cst_17 = arith.constant 0.000000e+00 : f32
    %24 = vector.broadcast %cst_17 : f32 to vector<64x16xf32>
    %25 = arith.select %23, %15, %24 : vector<64x16xf32>
    %c0_18 = arith.constant 0 : index
    %c112 = arith.constant 112 : index
    %26 = vector.load %arg9[%c0_18, %c112] : memref<64x400xf32, #tpu.memory_space<vmem>>, vector<64x16xf32>
    tpu.vector_store %arg9[%c0_18, %c112], %25 {strides = array<i32>} : memref<64x400xf32, #tpu.memory_space<vmem>>, vector<64x16xf32>,
    %c1_i32 = arith.constant 1 : i32
    %27 = arith.cmpi slt, %arg1, %c1_i32 : i32
    %cst_19 = arith.constant 0.000000e+00 : f32
    %28 = vector.broadcast %cst_19 : f32 to vector<64x16xf32>
    %29 = arith.select %27, %22, %28 : vector<64x16xf32>
    %c0_20 = arith.constant 0 : index
    %c256 = arith.constant 256 : index
    %30 = vector.load %arg9[%c0_20, %c256] : memref<64x400xf32, #tpu.memory_space<vmem>>, vector<64x16xf32>
    tpu.vector_store %arg9[%c0_20, %c256], %29 {strides = array<i32>} : memref<64x400xf32, #tpu.memory_space<vmem>>, vector<64x16xf32>,
    %c0_21 = arith.constant 0 : index
    %c0_22 = arith.constant 0 : index
    %c0_23 = arith.constant 0 : index
    %31 = vector.load %arg2[%c0_21, %c0_22, %c0_23] : memref<1x128x128xf32, #tpu.memory_space<vmem>>, vector<1x128x64xf32>
    %32 = vector.shape_cast %31 : vector<1x128x64xf32> to vector<128x64xf32>
    %cst_24 = arith.constant dense<0.000000e+00> : vector<64x64xf32>
    %33 = tpu.matmul %0, %32, %cst_24 {dimension_numbers = #tpu.dot_dimension_numbers<[1], [0], [0], [1], [0, 0, 1, 1], [], []>} : vector<64x128xf32>, vector<128x64xf32>, vector<64x64xf32> -> vector<64x64xf32>
    %34 = arith.addf %33, %6 : vector<64x64xf32>
    %cst_25 = arith.constant 1.000000e-01 : f32
    %35 = vector.broadcast %cst_25 : f32 to vector<64x64xf32>
    %36 = arith.mulf %35, %34 : vector<64x64xf32>
    %37 = arith.maximumf %34, %36 : vector<64x64xf32>
    %c0_26 = arith.constant 0 : index
    %c128 = arith.constant 128 : index
    %38 = vector.load %arg9[%c0_26, %c128] : memref<64x400xf32, #tpu.memory_space<vmem>>, vector<64x64xf32>
    tpu.vector_store %arg9[%c0_26, %c128], %37 {strides = array<i32>} : memref<64x400xf32, #tpu.memory_space<vmem>>, vector<64x64xf32>,
    %c0_27 = arith.constant 0 : index
    %c0_28 = arith.constant 0 : index
    %c64 = arith.constant 64 : index
    %39 = vector.load %arg2[%c0_27, %c0_28, %c64] : memref<1x128x128xf32, #tpu.memory_space<vmem>>, vector<1x128x64xf32>
    %40 = vector.shape_cast %39 : vector<1x128x64xf32> to vector<128x64xf32>
    %cst_29 = arith.constant dense<0.000000e+00> : vector<64x64xf32>
    %41 = tpu.matmul %0, %40, %cst_29 {dimension_numbers = #tpu.dot_dimension_numbers<[1], [0], [0], [1], [0, 0, 1, 1], [], []>} : vector<64x128xf32>, vector<128x64xf32>, vector<64x64xf32> -> vector<64x64xf32>
    %42 = arith.addf %41, %6 : vector<64x64xf32>
    %cst_30 = arith.constant 1.000000e-01 : f32
    %43 = vector.broadcast %cst_30 : f32 to vector<64x64xf32>
    %44 = arith.mulf %43, %42 : vector<64x64xf32>
    %45 = arith.maximumf %42, %44 : vector<64x64xf32>
    %c0_31 = arith.constant 0 : index
    %c192 = arith.constant 192 : index
    %46 = vector.load %arg9[%c0_31, %c192] : memref<64x400xf32, #tpu.memory_space<vmem>>, vector<64x64xf32>
    tpu.vector_store %arg9[%c0_31, %c192], %45 {strides = array<i32>} : memref<64x400xf32, #tpu.memory_space<vmem>>, vector<64x64xf32>,
    %47 = tpu.iota {dimensions = array<i32: 1>} : vector<1x64xi32>
    %c16_i32 = arith.constant 16 : i32
    %c0_i32_32 = arith.constant 0 : i32
    %48 = arith.cmpi eq, %c16_i32, %c0_i32_32 : i32
    %c1_i32_33 = arith.constant 1 : i32
    %49 = arith.select %48, %c1_i32_33, %c16_i32 : i32
    %50 = vector.broadcast %49 : i32 to vector<1x64xi32>
    %51 = arith.remsi %47, %50 : vector<1x64xi32>
    %c0_i32_34 = arith.constant 0 : i32
    %52 = vector.broadcast %c0_i32_34 : i32 to vector<1x64xi32>
    %53 = arith.cmpi ne, %51, %52 : vector<1x64xi32>
    %c0_i32_35 = arith.constant 0 : i32
    %54 = vector.broadcast %c0_i32_35 : i32 to vector<1x64xi32>
    %55 = arith.cmpi slt, %51, %54 : vector<1x64xi32>
    %c0_i32_36 = arith.constant 0 : i32
    %56 = arith.cmpi slt, %49, %c0_i32_36 : i32
    %57 = vector.broadcast %56 : i1 to vector<1x64xi1>
    %58 = vector.broadcast %57 : vector<1x64xi1> to vector<1x64xi1>
    %59 = arith.xori %55, %58 : vector<1x64xi1>
    %60 = arith.andi %59, %53 : vector<1x64xi1>
    %61 = vector.broadcast %49 : i32 to vector<1x64xi32>
    %62 = arith.addi %51, %61 : vector<1x64xi32>
    %63 = arith.select %60, %62, %51 : vector<1x64xi1>, vector<1x64xi32>
    %c0_i32_37 = arith.constant 0 : i32
    %64 = vector.broadcast %c0_i32_37 : i32 to vector<1x64xi32>
    %65 = arith.cmpi ne, %63, %64 : vector<1x64xi32>
    %c15_i32 = arith.constant 15 : i32
    %66 = vector.broadcast %c15_i32 : i32 to vector<1x64xi32>
    %67 = arith.cmpi ne, %63, %66 : vector<1x64xi32>
    %cst_38 = arith.constant 0.000000e+00 : f32
    %68 = vector.broadcast %cst_38 : f32 to vector<64x64xf32>
    %c0_39 = arith.constant 0 : index
    %c111 = arith.constant 111 : index
    %69 = vector.load %arg9[%c0_39, %c111] : memref<64x400xf32, #tpu.memory_space<vmem>>, vector<64x64xf32>
    %70 = vector.shape_cast %65 : vector<1x64xi1> to vector<1x64xi1>
    %71 = vector.broadcast %70 : vector<1x64xi1> to vector<64x64xi1>
    %72 = arith.select %71, %69, %68 : vector<64x64xi1>, vector<64x64xf32>
    %c0_40 = arith.constant 0 : index
    %c0_41 = arith.constant 0 : index
    %c0_42 = arith.constant 0 : index
    %73 = vector.load %arg6[%c0_40, %c0_41, %c0_42] : memref<9x128x64xf32, #tpu.memory_space<vmem>>, vector<1x128x64xf32>
    %74 = vector.shape_cast %73 : vector<1x128x64xf32> to vector<128x64xf32>
    %cst_43 = arith.constant dense<0.000000e+00> : vector<128x64xf32>
    %75 = tpu.matmul %74, %72, %cst_43 {dimension_numbers = #tpu.dot_dimension_numbers<[1], [0], [0], [1], [0, 0, 1, 1], [], []>} : vector<128x64xf32>, vector<64x64xf32>, vector<128x64xf32> -> vector<128x64xf32>
    %76 = arith.addf %8, %75 : vector<128x64xf32>
    %c0_44 = arith.constant 0 : index
    %c112_45 = arith.constant 112 : index
    %77 = vector.load %arg9[%c0_44, %c112_45] : memref<64x400xf32, #tpu.memory_space<vmem>>, vector<64x64xf32>
    %c1_46 = arith.constant 1 : index
    %c0_47 = arith.constant 0 : index
    %c0_48 = arith.constant 0 : index
    %78 = vector.load %arg6[%c1_46, %c0_47, %c0_48] : memref<9x128x64xf32, #tpu.memory_space<vmem>>, vector<1x128x64xf32>
    %79 = vector.shape_cast %78 : vector<1x128x64xf32> to vector<128x64xf32>
    %cst_49 = arith.constant dense<0.000000e+00> : vector<128x64xf32>
    %80 = tpu.matmul %79, %77, %cst_49 {dimension_numbers = #tpu.dot_dimension_numbers<[1], [0], [0], [1], [0, 0, 1, 1], [], []>} : vector<128x64xf32>, vector<64x64xf32>, vector<128x64xf32> -> vector<128x64xf32>
    %81 = arith.addf %76, %80 : vector<128x64xf32>
    %c0_50 = arith.constant 0 : index
    %c113 = arith.constant 113 : index
    %82 = vector.load %arg9[%c0_50, %c113] : memref<64x400xf32, #tpu.memory_space<vmem>>, vector<64x64xf32>
    %83 = vector.shape_cast %67 : vector<1x64xi1> to vector<1x64xi1>
    %84 = vector.broadcast %83 : vector<1x64xi1> to vector<64x64xi1>
    %85 = arith.select %84, %82, %68 : vector<64x64xi1>, vector<64x64xf32>
    %c2 = arith.constant 2 : index
    %c0_51 = arith.constant 0 : index
    %c0_52 = arith.constant 0 : index
    %86 = vector.load %arg6[%c2, %c0_51, %c0_52] : memref<9x128x64xf32, #tpu.memory_space<vmem>>, vector<1x128x64xf32>
    %87 = vector.shape_cast %86 : vector<1x128x64xf32> to vector<128x64xf32>
    %cst_53 = arith.constant dense<0.000000e+00> : vector<128x64xf32>
    %88 = tpu.matmul %87, %85, %cst_53 {dimension_numbers = #tpu.dot_dimension_numbers<[1], [0], [0], [1], [0, 0, 1, 1], [], []>} : vector<128x64xf32>, vector<64x64xf32>, vector<128x64xf32> -> vector<128x64xf32>
    %89 = arith.addf %81, %88 : vector<128x64xf32>
    %c0_54 = arith.constant 0 : index
    %c127 = arith.constant 127 : index
    %90 = vector.load %arg9[%c0_54, %c127] : memref<64x400xf32, #tpu.memory_space<vmem>>, vector<64x64xf32>
    %91 = vector.shape_cast %65 : vector<1x64xi1> to vector<1x64xi1>
    %92 = vector.broadcast %91 : vector<1x64xi1> to vector<64x64xi1>
    %93 = arith.select %92, %90, %68 : vector<64x64xi1>, vector<64x64xf32>
    %c3 = arith.constant 3 : index
    %c0_55 = arith.constant 0 : index
    %c0_56 = arith.constant 0 : index
    %94 = vector.load %arg6[%c3, %c0_55, %c0_56] : memref<9x128x64xf32, #tpu.memory_space<vmem>>, vector<1x128x64xf32>
    %95 = vector.shape_cast %94 : vector<1x128x64xf32> to vector<128x64xf32>
    %cst_57 = arith.constant dense<0.000000e+00> : vector<128x64xf32>
    %96 = tpu.matmul %95, %93, %cst_57 {dimension_numbers = #tpu.dot_dimension_numbers<[1], [0], [0], [1], [0, 0, 1, 1], [], []>} : vector<128x64xf32>, vector<64x64xf32>, vector<128x64xf32> -> vector<128x64xf32>
    %97 = arith.addf %89, %96 : vector<128x64xf32>
    %c0_58 = arith.constant 0 : index
    %c128_59 = arith.constant 128 : index
    %98 = vector.load %arg9[%c0_58, %c128_59] : memref<64x400xf32, #tpu.memory_space<vmem>>, vector<64x64xf32>
    %c4 = arith.constant 4 : index
    %c0_60 = arith.constant 0 : index
    %c0_61 = arith.constant 0 : index
    %99 = vector.load %arg6[%c4, %c0_60, %c0_61] : memref<9x128x64xf32, #tpu.memory_space<vmem>>, vector<1x128x64xf32>
    %100 = vector.shape_cast %99 : vector<1x128x64xf32> to vector<128x64xf32>
    %cst_62 = arith.constant dense<0.000000e+00> : vector<128x64xf32>
    %101 = tpu.matmul %100, %98, %cst_62 {dimension_numbers = #tpu.dot_dimension_numbers<[1], [0], [0], [1], [0, 0, 1, 1], [], []>} : vector<128x64xf32>, vector<64x64xf32>, vector<128x64xf32> -> vector<128x64xf32>
    %102 = arith.addf %97, %101 : vector<128x64xf32>
    %c0_63 = arith.constant 0 : index
    %c129 = arith.constant 129 : index
    %103 = vector.load %arg9[%c0_63, %c129] : memref<64x400xf32, #tpu.memory_space<vmem>>, vector<64x64xf32>
    %104 = vector.shape_cast %67 : vector<1x64xi1> to vector<1x64xi1>
    %105 = vector.broadcast %104 : vector<1x64xi1> to vector<64x64xi1>
    %106 = arith.select %105, %103, %68 : vector<64x64xi1>, vector<64x64xf32>
    %c5 = arith.constant 5 : index
    %c0_64 = arith.constant 0 : index
    %c0_65 = arith.constant 0 : index
    %107 = vector.load %arg6[%c5, %c0_64, %c0_65] : memref<9x128x64xf32, #tpu.memory_space<vmem>>, vector<1x128x64xf32>
    %108 = vector.shape_cast %107 : vector<1x128x64xf32> to vector<128x64xf32>
    %cst_66 = arith.constant dense<0.000000e+00> : vector<128x64xf32>
    %109 = tpu.matmul %108, %106, %cst_66 {dimension_numbers = #tpu.dot_dimension_numbers<[1], [0], [0], [1], [0, 0, 1, 1], [], []>} : vector<128x64xf32>, vector<64x64xf32>, vector<128x64xf32> -> vector<128x64xf32>
    %110 = arith.addf %102, %109 : vector<128x64xf32>
    %c0_67 = arith.constant 0 : index
    %c143 = arith.constant 143 : index
    %111 = vector.load %arg9[%c0_67, %c143] : memref<64x400xf32, #tpu.memory_space<vmem>>, vector<64x64xf32>
    %112 = vector.shape_cast %65 : vector<1x64xi1> to vector<1x64xi1>
    %113 = vector.broadcast %112 : vector<1x64xi1> to vector<64x64xi1>
    %114 = arith.select %113, %111, %68 : vector<64x64xi1>, vector<64x64xf32>
    %c6 = arith.constant 6 : index
    %c0_68 = arith.constant 0 : index
    %c0_69 = arith.constant 0 : index
    %115 = vector.load %arg6[%c6, %c0_68, %c0_69] : memref<9x128x64xf32, #tpu.memory_space<vmem>>, vector<1x128x64xf32>
    %116 = vector.shape_cast %115 : vector<1x128x64xf32> to vector<128x64xf32>
    %cst_70 = arith.constant dense<0.000000e+00> : vector<128x64xf32>
    %117 = tpu.matmul %116, %114, %cst_70 {dimension_numbers = #tpu.dot_dimension_numbers<[1], [0], [0], [1], [0, 0, 1, 1], [], []>} : vector<128x64xf32>, vector<64x64xf32>, vector<128x64xf32> -> vector<128x64xf32>
    %118 = arith.addf %110, %117 : vector<128x64xf32>
    %c0_71 = arith.constant 0 : index
    %c144 = arith.constant 144 : index
    %119 = vector.load %arg9[%c0_71, %c144] : memref<64x400xf32, #tpu.memory_space<vmem>>, vector<64x64xf32>
    %c7 = arith.constant 7 : index
    %c0_72 = arith.constant 0 : index
    %c0_73 = arith.constant 0 : index
    %120 = vector.load %arg6[%c7, %c0_72, %c0_73] : memref<9x128x64xf32, #tpu.memory_space<vmem>>, vector<1x128x64xf32>
    %121 = vector.shape_cast %120 : vector<1x128x64xf32> to vector<128x64xf32>
    %cst_74 = arith.constant dense<0.000000e+00> : vector<128x64xf32>
    %122 = tpu.matmul %121, %119, %cst_74 {dimension_numbers = #tpu.dot_dimension_numbers<[1], [0], [0], [1], [0, 0, 1, 1], [], []>} : vector<128x64xf32>, vector<64x64xf32>, vector<128x64xf32> -> vector<128x64xf32>
    %123 = arith.addf %118, %122 : vector<128x64xf32>
    %c0_75 = arith.constant 0 : index
    %c145 = arith.constant 145 : index
    %124 = vector.load %arg9[%c0_75, %c145] : memref<64x400xf32, #tpu.memory_space<vmem>>, vector<64x64xf32>
    %125 = vector.shape_cast %67 : vector<1x64xi1> to vector<1x64xi1>
    %126 = vector.broadcast %125 : vector<1x64xi1> to vector<64x64xi1>
    %127 = arith.select %126, %124, %68 : vector<64x64xi1>, vector<64x64xf32>
    %c8 = arith.constant 8 : index
    %c0_76 = arith.constant 0 : index
    %c0_77 = arith.constant 0 : index
    %128 = vector.load %arg6[%c8, %c0_76, %c0_77] : memref<9x128x64xf32, #tpu.memory_space<vmem>>, vector<1x128x64xf32>
    %129 = vector.shape_cast %128 : vector<1x128x64xf32> to vector<128x64xf32>
    %cst_78 = arith.constant dense<0.000000e+00> : vector<128x64xf32>
    %130 = tpu.matmul %129, %127, %cst_78 {dimension_numbers = #tpu.dot_dimension_numbers<[1], [0], [0], [1], [0, 0, 1, 1], [], []>} : vector<128x64xf32>, vector<64x64xf32>, vector<128x64xf32> -> vector<128x64xf32>
    %131 = arith.addf %123, %130 : vector<128x64xf32>
    %cst_79 = arith.constant 1.000000e-01 : f32
    %132 = vector.broadcast %cst_79 : f32 to vector<128x64xf32>
    %133 = arith.mulf %132, %131 : vector<128x64xf32>
    %134 = arith.maximumf %131, %133 : vector<128x64xf32>
    %c0_80 = arith.constant 0 : index
    %c0_81 = arith.constant 0 : index
    %c0_82 = arith.constant 0 : index
    %135 = vector.load %arg2[%c0_80, %c0_81, %c0_82] : memref<1x128x128xf32, #tpu.memory_space<vmem>>, vector<1x128x64xf32>
    %136 = vector.shape_cast %135 : vector<1x128x64xf32> to vector<128x64xf32>
    %137 = arith.addf %136, %134 : vector<128x64xf32>
    %c0_83 = arith.constant 0 : index
    %c0_84 = arith.constant 0 : index
    %c0_85 = arith.constant 0 : index
    %138 = vector.load %arg8[%c0_83, %c0_84, %c0_85] : memref<1x128x128xf32, #tpu.memory_space<vmem>>, vector<1x128x64xf32>
    %139 = vector.shape_cast %138 : vector<1x128x64xf32> to vector<128x64xf32>
    %140 = vector.shape_cast %137 : vector<128x64xf32> to vector<1x128x64xf32>
    tpu.vector_store %arg8[%c0_83, %c0_84, %c0_85], %140 {strides = array<i32>} : memref<1x128x128xf32, #tpu.memory_space<vmem>>, vector<1x128x64xf32>,
    %c0_86 = arith.constant 0 : index
    %c175 = arith.constant 175 : index
    %141 = vector.load %arg9[%c0_86, %c175] : memref<64x400xf32, #tpu.memory_space<vmem>>, vector<64x64xf32>
    %142 = vector.shape_cast %65 : vector<1x64xi1> to vector<1x64xi1>
    %143 = vector.broadcast %142 : vector<1x64xi1> to vector<64x64xi1>
    %144 = arith.select %143, %141, %68 : vector<64x64xi1>, vector<64x64xf32>
    %c0_87 = arith.constant 0 : index
    %c0_88 = arith.constant 0 : index
    %c0_89 = arith.constant 0 : index
    %145 = vector.load %arg6[%c0_87, %c0_88, %c0_89] : memref<9x128x64xf32, #tpu.memory_space<vmem>>, vector<1x128x64xf32>
    %146 = vector.shape_cast %145 : vector<1x128x64xf32> to vector<128x64xf32>
    %cst_90 = arith.constant dense<0.000000e+00> : vector<128x64xf32>
    %147 = tpu.matmul %146, %144, %cst_90 {dimension_numbers = #tpu.dot_dimension_numbers<[1], [0], [0], [1], [0, 0, 1, 1], [], []>} : vector<128x64xf32>, vector<64x64xf32>, vector<128x64xf32> -> vector<128x64xf32>
    %148 = arith.addf %8, %147 : vector<128x64xf32>
    %c0_91 = arith.constant 0 : index
    %c176 = arith.constant 176 : index
    %149 = vector.load %arg9[%c0_91, %c176] : memref<64x400xf32, #tpu.memory_space<vmem>>, vector<64x64xf32>
    %c1_92 = arith.constant 1 : index
    %c0_93 = arith.constant 0 : index
    %c0_94 = arith.constant 0 : index
    %150 = vector.load %arg6[%c1_92, %c0_93, %c0_94] : memref<9x128x64xf32, #tpu.memory_space<vmem>>, vector<1x128x64xf32>
    %151 = vector.shape_cast %150 : vector<1x128x64xf32> to vector<128x64xf32>
    %cst_95 = arith.constant dense<0.000000e+00> : vector<128x64xf32>
    %152 = tpu.matmul %151, %149, %cst_95 {dimension_numbers = #tpu.dot_dimension_numbers<[1], [0], [0], [1], [0, 0, 1, 1], [], []>} : vector<128x64xf32>, vector<64x64xf32>, vector<128x64xf32> -> vector<128x64xf32>
    %153 = arith.addf %148, %152 : vector<128x64xf32>
    %c0_96 = arith.constant 0 : index
    %c177 = arith.constant 177 : index
    %154 = vector.load %arg9[%c0_96, %c177] : memref<64x400xf32, #tpu.memory_space<vmem>>, vector<64x64xf32>
    %155 = vector.shape_cast %67 : vector<1x64xi1> to vector<1x64xi1>
    %156 = vector.broadcast %155 : vector<1x64xi1> to vector<64x64xi1>
    %157 = arith.select %156, %154, %68 : vector<64x64xi1>, vector<64x64xf32>
    %c2_97 = arith.constant 2 : index
    %c0_98 = arith.constant 0 : index
    %c0_99 = arith.constant 0 : index
    %158 = vector.load %arg6[%c2_97, %c0_98, %c0_99] : memref<9x128x64xf32, #tpu.memory_space<vmem>>, vector<1x128x64xf32>
    %159 = vector.shape_cast %158 : vector<1x128x64xf32> to vector<128x64xf32>
    %cst_100 = arith.constant dense<0.000000e+00> : vector<128x64xf32>
    %160 = tpu.matmul %159, %157, %cst_100 {dimension_numbers = #tpu.dot_dimension_numbers<[1], [0], [0], [1], [0, 0, 1, 1], [], []>} : vector<128x64xf32>, vector<64x64xf32>, vector<128x64xf32> -> vector<128x64xf32>
    %161 = arith.addf %153, %160 : vector<128x64xf32>
    %c0_101 = arith.constant 0 : index
    %c191 = arith.constant 191 : index
    %162 = vector.load %arg9[%c0_101, %c191] : memref<64x400xf32, #tpu.memory_space<vmem>>, vector<64x64xf32>
    %163 = vector.shape_cast %65 : vector<1x64xi1> to vector<1x64xi1>
    %164 = vector.broadcast %163 : vector<1x64xi1> to vector<64x64xi1>
    %165 = arith.select %164, %162, %68 : vector<64x64xi1>, vector<64x64xf32>
    %c3_102 = arith.constant 3 : index
    %c0_103 = arith.constant 0 : index
    %c0_104 = arith.constant 0 : index
    %166 = vector.load %arg6[%c3_102, %c0_103, %c0_104] : memref<9x128x64xf32, #tpu.memory_space<vmem>>, vector<1x128x64xf32>
    %167 = vector.shape_cast %166 : vector<1x128x64xf32> to vector<128x64xf32>
    %cst_105 = arith.constant dense<0.000000e+00> : vector<128x64xf32>
    %168 = tpu.matmul %167, %165, %cst_105 {dimension_numbers = #tpu.dot_dimension_numbers<[1], [0], [0], [1], [0, 0, 1, 1], [], []>} : vector<128x64xf32>, vector<64x64xf32>, vector<128x64xf32> -> vector<128x64xf32>
    %169 = arith.addf %161, %168 : vector<128x64xf32>
    %c0_106 = arith.constant 0 : index
    %c192_107 = arith.constant 192 : index
    %170 = vector.load %arg9[%c0_106, %c192_107] : memref<64x400xf32, #tpu.memory_space<vmem>>, vector<64x64xf32>
    %c4_108 = arith.constant 4 : index
    %c0_109 = arith.constant 0 : index
    %c0_110 = arith.constant 0 : index
    %171 = vector.load %arg6[%c4_108, %c0_109, %c0_110] : memref<9x128x64xf32, #tpu.memory_space<vmem>>, vector<1x128x64xf32>
    %172 = vector.shape_cast %171 : vector<1x128x64xf32> to vector<128x64xf32>
    %cst_111 = arith.constant dense<0.000000e+00> : vector<128x64xf32>
    %173 = tpu.matmul %172, %170, %cst_111 {dimension_numbers = #tpu.dot_dimension_numbers<[1], [0], [0], [1], [0, 0, 1, 1], [], []>} : vector<128x64xf32>, vector<64x64xf32>, vector<128x64xf32> -> vector<128x64xf32>
    %174 = arith.addf %169, %173 : vector<128x64xf32>
    %c0_112 = arith.constant 0 : index
    %c193 = arith.constant 193 : index
    %175 = vector.load %arg9[%c0_112, %c193] : memref<64x400xf32, #tpu.memory_space<vmem>>, vector<64x64xf32>
    %176 = vector.shape_cast %67 : vector<1x64xi1> to vector<1x64xi1>
    %177 = vector.broadcast %176 : vector<1x64xi1> to vector<64x64xi1>
    %178 = arith.select %177, %175, %68 : vector<64x64xi1>, vector<64x64xf32>
    %c5_113 = arith.constant 5 : index
    %c0_114 = arith.constant 0 : index
    %c0_115 = arith.constant 0 : index
    %179 = vector.load %arg6[%c5_113, %c0_114, %c0_115] : memref<9x128x64xf32, #tpu.memory_space<vmem>>, vector<1x128x64xf32>
    %180 = vector.shape_cast %179 : vector<1x128x64xf32> to vector<128x64xf32>
    %cst_116 = arith.constant dense<0.000000e+00> : vector<128x64xf32>
    %181 = tpu.matmul %180, %178, %cst_116 {dimension_numbers = #tpu.dot_dimension_numbers<[1], [0], [0], [1], [0, 0, 1, 1], [], []>} : vector<128x64xf32>, vector<64x64xf32>, vector<128x64xf32> -> vector<128x64xf32>
    %182 = arith.addf %174, %181 : vector<128x64xf32>
    %c0_117 = arith.constant 0 : index
    %c207 = arith.constant 207 : index
    %183 = vector.load %arg9[%c0_117, %c207] : memref<64x400xf32, #tpu.memory_space<vmem>>, vector<64x64xf32>
    %184 = vector.shape_cast %65 : vector<1x64xi1> to vector<1x64xi1>
    %185 = vector.broadcast %184 : vector<1x64xi1> to vector<64x64xi1>
    %186 = arith.select %185, %183, %68 : vector<64x64xi1>, vector<64x64xf32>
    %c6_118 = arith.constant 6 : index
    %c0_119 = arith.constant 0 : index
    %c0_120 = arith.constant 0 : index
    %187 = vector.load %arg6[%c6_118, %c0_119, %c0_120] : memref<9x128x64xf32, #tpu.memory_space<vmem>>, vector<1x128x64xf32>
    %188 = vector.shape_cast %187 : vector<1x128x64xf32> to vector<128x64xf32>
    %cst_121 = arith.constant dense<0.000000e+00> : vector<128x64xf32>
    %189 = tpu.matmul %188, %186, %cst_121 {dimension_numbers = #tpu.dot_dimension_numbers<[1], [0], [0], [1], [0, 0, 1, 1], [], []>} : vector<128x64xf32>, vector<64x64xf32>, vector<128x64xf32> -> vector<128x64xf32>
    %190 = arith.addf %182, %189 : vector<128x64xf32>
    %c0_122 = arith.constant 0 : index
    %c208 = arith.constant 208 : index
    %191 = vector.load %arg9[%c0_122, %c208] : memref<64x400xf32, #tpu.memory_space<vmem>>, vector<64x64xf32>
    %c7_123 = arith.constant 7 : index
    %c0_124 = arith.constant 0 : index
    %c0_125 = arith.constant 0 : index
    %192 = vector.load %arg6[%c7_123, %c0_124, %c0_125] : memref<9x128x64xf32, #tpu.memory_space<vmem>>, vector<1x128x64xf32>
    %193 = vector.shape_cast %192 : vector<1x128x64xf32> to vector<128x64xf32>
    %cst_126 = arith.constant dense<0.000000e+00> : vector<128x64xf32>
    %194 = tpu.matmul %193, %191, %cst_126 {dimension_numbers = #tpu.dot_dimension_numbers<[1], [0], [0], [1], [0, 0, 1, 1], [], []>} : vector<128x64xf32>, vector<64x64xf32>, vector<128x64xf32> -> vector<128x64xf32>
    %195 = arith.addf %190, %194 : vector<128x64xf32>
    %c0_127 = arith.constant 0 : index
    %c209 = arith.constant 209 : index
    %196 = vector.load %arg9[%c0_127, %c209] : memref<64x400xf32, #tpu.memory_space<vmem>>, vector<64x64xf32>
    %197 = vector.shape_cast %67 : vector<1x64xi1> to vector<1x64xi1>
    %198 = vector.broadcast %197 : vector<1x64xi1> to vector<64x64xi1>
    %199 = arith.select %198, %196, %68 : vector<64x64xi1>, vector<64x64xf32>
    %c8_128 = arith.constant 8 : index
    %c0_129 = arith.constant 0 : index
    %c0_130 = arith.constant 0 : index
    %200 = vector.load %arg6[%c8_128, %c0_129, %c0_130] : memref<9x128x64xf32, #tpu.memory_space<vmem>>, vector<1x128x64xf32>
    %201 = vector.shape_cast %200 : vector<1x128x64xf32> to vector<128x64xf32>
    %cst_131 = arith.constant dense<0.000000e+00> : vector<128x64xf32>
    %202 = tpu.matmul %201, %199, %cst_131 {dimension_numbers = #tpu.dot_dimension_numbers<[1], [0], [0], [1], [0, 0, 1, 1], [], []>} : vector<128x64xf32>, vector<64x64xf32>, vector<128x64xf32> -> vector<128x64xf32>
    %203 = arith.addf %195, %202 : vector<128x64xf32>
    %cst_132 = arith.constant 1.000000e-01 : f32
    %204 = vector.broadcast %cst_132 : f32 to vector<128x64xf32>
    %205 = arith.mulf %204, %203 : vector<128x64xf32>
    %206 = arith.maximumf %203, %205 : vector<128x64xf32>
    %c0_133 = arith.constant 0 : index
    %c0_134 = arith.constant 0 : index
    %c64_135 = arith.constant 64 : index
    %207 = vector.load %arg2[%c0_133, %c0_134, %c64_135] : memref<1x128x128xf32, #tpu.memory_space<vmem>>, vector<1x128x64xf32>
    %208 = vector.shape_cast %207 : vector<1x128x64xf32> to vector<128x64xf32>
    %209 = arith.addf %208, %206 : vector<128x64xf32>
    %c0_136 = arith.constant 0 : index
    %c0_137 = arith.constant 0 : index
    %c64_138 = arith.constant 64 : index
    %210 = vector.load %arg8[%c0_136, %c0_137, %c64_138] : memref<1x128x128xf32, #tpu.memory_space<vmem>>, vector<1x128x64xf32>
    %211 = vector.shape_cast %210 : vector<1x128x64xf32> to vector<128x64xf32>
    %212 = vector.shape_cast %209 : vector<128x64xf32> to vector<1x128x64xf32>
    tpu.vector_store %arg8[%c0_136, %c0_137, %c64_138], %212 {strides = array<i32>} : memref<1x128x128xf32, #tpu.memory_space<vmem>>, vector<1x128x64xf32>,
    return
  }
  func.func @transform_0(%arg0: i32, %arg1: i32) -> (i32, i32, i32) {
    %c0_i32 = arith.constant 0 : i32
    %c0_i32_0 = arith.constant 0 : i32
    return %arg0, %c0_i32, %arg1 : i32, i32, i32
  }
  func.func @transform_1(%arg0: i32, %arg1: i32) -> (i32, i32, i32, i32, i32) {
    %c0_i32 = arith.constant 0 : i32
    %c0_i32_0 = arith.constant 0 : i32
    %c0_i32_1 = arith.constant 0 : i32
    %c0_i32_2 = arith.constant 0 : i32
    return %arg0, %arg1, %c0_i32, %c0_i32_0, %c0_i32_1 : i32, i32, i32, i32, i32
  }
  func.func @transform_2(%arg0: i32, %arg1: i32) -> (i32, i32) {
    %c0_i32 = arith.constant 0 : i32
    %c0_i32_0 = arith.constant 0 : i32
    %c0_i32_1 = arith.constant 0 : i32
    return %c0_i32, %c0_i32_0 : i32, i32
  }
  func.func @transform_3(%arg0: i32, %arg1: i32) -> (i32, i32) {
    %c0_i32 = arith.constant 0 : i32
    %c0_i32_0 = arith.constant 0 : i32
    %c0_i32_1 = arith.constant 0 : i32
    return %c0_i32, %c0_i32_0 : i32, i32
  }
  func.func @transform_4(%arg0: i32, %arg1: i32) -> (i32, i32, i32) {
    %c0_i32 = arith.constant 0 : i32
    %c0_i32_0 = arith.constant 0 : i32
    %c0_i32_1 = arith.constant 0 : i32
    %c0_i32_2 = arith.constant 0 : i32
    return %c0_i32, %c0_i32_0, %c0_i32_1 : i32, i32, i32
  }
  func.func @transform_5(%arg0: i32, %arg1: i32) -> (i32, i32) {
    %c0_i32 = arith.constant 0 : i32
    %c0_i32_0 = arith.constant 0 : i32
    %c0_i32_1 = arith.constant 0 : i32
    return %c0_i32, %c0_i32_0 : i32, i32
  }
  func.func @transform_6(%arg0: i32, %arg1: i32) -> (i32, i32, i32) {
    %c0_i32 = arith.constant 0 : i32
    %c0_i32_0 = arith.constant 0 : i32
    return %arg0, %c0_i32, %arg1 : i32, i32, i32
  }
}

</mosaic_0001>

<llo_original>
// kernel: resblock2_child_pallas.1
$region0: #{resblock2_child_pallas.1}
  #allocation0 [shape = 'u32[]', space=smem, size = 0x4, offset = 0x4, fixed_abs, tag = 'smem constant byte address 0x4 - core index']
  #allocation1 [shape = 'u32[144,128]{1,0:T(1,128)}', space=vmem, size = 0x12000, scoped, tag = 'internal scratch']
  #allocation2 [shape = 'f32[64,400]{1,0:T(8,128)}', space=vmem, size = 0x20000, scoped, tag = 'scratch operand']
  %s0 = inlined_call_operand.hbm [shape: f32[2,128,256], index: 0, kind: input, shape index: {}]
  %s1 = inlined_call_operand.hbm [shape: f32[2,2,2,128,16], index: 1, kind: input, shape index: {}]
  %s2 = inlined_call_operand.hbm [shape: f32[64,128], index: 2, kind: input, shape index: {}]
  %s3 = inlined_call_operand.hbm [shape: f32[64,1], index: 3, kind: input, shape index: {}]
  %s4 = inlined_call_operand.hbm [shape: f32[9,128,64], index: 4, kind: input, shape index: {}]
  %s5 = inlined_call_operand.hbm [shape: f32[128,1], index: 5, kind: input, shape index: {}]
  %s6 = inlined_call_operand.hbm [shape: f32[2,128,256], index: 6, kind: output, shape index: {}]
  %s7 = sld [smem:[#allocation0]]
  $region81: #{resblock2_child_pallas.1} parent=0
    _
  %s9 = ssub.s32 1, %s7
  %s10 = scalar_select 0, %s9, %s7
  $region1: #{resblock2_child_pallas.1} parent=0
    #allocation3 [shape = 'u8[131072]{0}', space=vmem, size = 0x20000, scoped, tag = 'input window, operand 0']
    #allocation4 [shape = 's32[2]{0}', space=sflag, size = 0x8, scoped, tag = 'scoped memory for resblock2_child_pallas.1']
    #allocation5 [shape = 's32[2]{0}', space=sflag, size = 0x8, scoped, tag = 'scoped memory for resblock2_child_pallas.1']
    #allocation6 [shape = 'u8[262144]{0}', space=vmem, size = 0x40000, scoped, tag = 'input window, operand 1']
    #allocation7 [shape = 's32[2]{0}', space=sflag, size = 0x8, scoped, tag = 'scoped memory for resblock2_child_pallas.1']
    #allocation8 [shape = 'u8[32768]{0}', space=vmem, size = 0x8000, scoped, tag = 'input window, operand 2, single buffered']
    #allocation9 [shape = 'u8[32768]{0}', space=vmem, size = 0x8000, scoped, tag = 'input window, operand 3, single buffered']
    #allocation10 [shape = 's32[1]{0}', space=sflag, size = 0x4, scoped, tag = 'scoped memory for resblock2_child_pallas.1']
    #allocation11 [shape = 'u8[589824]{0}', space=vmem, size = 0x90000, scoped, tag = 'input window, operand 4, single buffered']
    #allocation12 [shape = 'u8[65536]{0}', space=vmem, size = 0x10000, scoped, tag = 'input window, operand 5, single buffered']
    #allocation13 [shape = 's32[1]{0}', space=sflag, size = 0x4, scoped, tag = 'scoped memory for resblock2_child_pallas.1']
    #allocation14 [shape = 'u8[131072]{0}', space=vmem, size = 0x20000, scoped, tag = 'output window, operand 0']
    %11 = vsyncpa [#allocation4], 0
    %s12 = scalar_lea.sflag [#allocation4], 1
    %13 = vsyncpa %s12, 0
    %14 = vsyncpa [#allocation7], 0
    %s15 = scalar_lea.sflag [#allocation7], 1
    %16 = vsyncpa %s15, 0
    %17 = vsyncpa [#allocation10], 0
    %18 = vsyncpa [#allocation13], 0
    %19 = vsyncpa [#allocation5], 0
    %s20 = scalar_lea.sflag [#allocation5], 1
    %21 = vsyncpa %s20, 0
    loop: start=0, step=1, limit=6
    $region2: #{resblock2_child_pallas.1} parent=1 // loop_pre_header
      _
    $region3: #{resblock2_child_pallas.1} parent=1 // loop_header
      %s23 = sphi 0, %s27
      %p24 = scmp.ge.s32.totalorder %s23, 6
      %s30 = sphi 0, %s42
      %s31 = sphi 0, %s38
      %s32 = sphi 0, %s30
      %s33 = sphi 0, %s31
      %s34 = sphi 0, %s32
      %s35 = sphi 0, %s33
      %s47 = sphi 0, %s49
      %s50 = sphi 0, %s47
      %s51 = sphi 0, %s50
      %s67 = sphi 0, %s51
      %s75 = sphi 0, %s77
      %s78 = sphi 0, %s75
      %s79 = sphi 0, %s78
      %s95 = sphi 0, %s79
      %s99 = sphi 0, %s99
      %s101 = sphi 0, %s99
      %s102 = sphi 0, %s101
      %s116 = sphi 0, %s102
      %s120 = sphi 0, %s120
      %s122 = sphi 0, %s120
      %s123 = sphi 0, %s122
      %s137 = sphi 0, %s123
      %s141 = sphi 0, %s141
      %s143 = sphi 0, %s141
      %s144 = sphi 0, %s143
      %s158 = sphi 0, %s144
      %s162 = sphi 0, %s162
      %s164 = sphi 0, %s162
      %s165 = sphi 0, %s164
      %s179 = sphi 0, %s165
      %s187 = sphi 0, %s189
      %s190 = sphi 0, %s187
      %s191 = sphi 0, %s190
      %s207 = sphi 0, %s191
    $region4: #{resblock2_child_pallas.1} parent=1 // loop_header_branch
      %26 = sbr.rel (%p24) target = $region8
    $region5: #{resblock2_child_pallas.1} parent=1 // loop_body
      %s28 = ssub.s32 %s23, 1
      %s29 = ssub.s32 %s23, 2
      %s36 = sadd.s32 1, %s31
      %p37 = scmp.ge.s32.totalorder %s36, 2
      %s38 = scalar_select %p37, 0, %s36
      %s39 = sadd.s32 1, %s30
      %s40 = scalar_select %p37, %s39, %s30
      %p41 = scmp.ge.s32.totalorder %s40, 2
      %s42 = scalar_select %p41, 0, %s40
      %s43 = ssub.s32 %s30, %s42
      %s44 = ssub.s32 %s31, %s38
      %s45 = sor.u32 %s43, %s44
      %p46 = scmp.eq.s32.totalorder %s45, 0
      %s48 = sadd.s32 %s47, 1
      %s49 = scalar_select %p46, %s47, %s48
      %p52 = pneg %p46
      %p53 = scmp.eq.s32.totalorder %s23, 3
      %p54 = por %p52, %p53
      %p55 = scmp.ne.s32.totalorder %s47, %s50
      %p56 = scmp.eq.s32.totalorder %s23, 0
      %p57 = por %p55, %p56
      %p58 = scmp.ne.s32.totalorder %s47, %s50
      %p59 = scmp.eq.s32.totalorder %s28, 3
      %p60 = por %p58, %p59
      %p61 = scmp.ne.s32.totalorder %s50, %s51
      %p62 = scmp.eq.s32.totalorder %s28, 0
      %p63 = por %p61, %p62
      %p64 = scmp.ne.s32.totalorder %s50, %s51
      %p65 = scmp.eq.s32.totalorder %s29, 3
      %p66 = por %p64, %p65
      %p68 = scmp.ne.s32.totalorder %s51, %s67
      %p69 = scmp.eq.s32.totalorder %s29, 0
      %p70 = por %p68, %p69
      %s71 = ssub.s32 %s30, %s42
      %s72 = ssub.s32 %s31, %s38
      %s73 = sor.u32 %s71, %s72
      %p74 = scmp.eq.s32.totalorder %s73, 0
      %s76 = sadd.s32 %s75, 1
      %s77 = scalar_select %p74, %s75, %s76
      %p80 = pneg %p74
      %p81 = scmp.eq.s32.totalorder %s23, 3
      %p82 = por %p80, %p81
      %p83 = scmp.ne.s32.totalorder %s75, %s78
      %p84 = scmp.eq.s32.totalorder %s23, 0
      %p85 = por %p83, %p84
      %p86 = scmp.ne.s32.totalorder %s75, %s78
      %p87 = scmp.eq.s32.totalorder %s28, 3
      %p88 = por %p86, %p87
      %p89 = scmp.ne.s32.totalorder %s78, %s79
      %p90 = scmp.eq.s32.totalorder %s28, 0
      %p91 = por %p89, %p90
      %p92 = scmp.ne.s32.totalorder %s78, %s79
      %p93 = scmp.eq.s32.totalorder %s29, 3
      %p94 = por %p92, %p93
      %p96 = scmp.ne.s32.totalorder %s79, %s95
      %p97 = scmp.eq.s32.totalorder %s29, 0
      %p98 = por %p96, %p97
      %s100 = sadd.s32 %s99, 1
      %p103 = scmp.eq.s32.totalorder %s23, 3
      %p104 = scmp.ne.s32.totalorder %s99, %s101
      %p105 = scmp.eq.s32.totalorder %s23, 0
      %p106 = por %p104, %p105
      %p107 = scmp.ne.s32.totalorder %s99, %s101
      %p108 = scmp.eq.s32.totalorder %s28, 3
      %p109 = por %p107, %p108
      %p110 = scmp.ne.s32.totalorder %s101, %s102
      %p111 = scmp.eq.s32.totalorder %s28, 0
      %p112 = por %p110, %p111
      %p113 = scmp.ne.s32.totalorder %s101, %s102
      %p114 = scmp.eq.s32.totalorder %s29, 3
      %p115 = por %p113, %p114
      %p117 = scmp.ne.s32.totalorder %s102, %s116
      %p118 = scmp.eq.s32.totalorder %s29, 0
      %p119 = por %p117, %p118
      %s121 = sadd.s32 %s120, 1
      %p124 = scmp.eq.s32.totalorder %s23, 3
      %p125 = scmp.ne.s32.totalorder %s120, %s122
      %p126 = scmp.eq.s32.totalorder %s23, 0
      %p127 = por %p125, %p126
      %p128 = scmp.ne.s32.totalorder %s120, %s122
      %p129 = scmp.eq.s32.totalorder %s28, 3
      %p130 = por %p128, %p129
      %p131 = scmp.ne.s32.totalorder %s122, %s123
      %p132 = scmp.eq.s32.totalorder %s28, 0
      %p133 = por %p131, %p132
      %p134 = scmp.ne.s32.totalorder %s122, %s123
      %p135 = scmp.eq.s32.totalorder %s29, 3
      %p136 = por %p134, %p135
      %p138 = scmp.ne.s32.totalorder %s123, %s137
      %p139 = scmp.eq.s32.totalorder %s29, 0
      %p140 = por %p138, %p139
      %s142 = sadd.s32 %s141, 1
      %p145 = scmp.eq.s32.totalorder %s23, 3
      %p146 = scmp.ne.s32.totalorder %s141, %s143
      %p147 = scmp.eq.s32.totalorder %s23, 0
      %p148 = por %p146, %p147
      %p149 = scmp.ne.s32.totalorder %s141, %s143
      %p150 = scmp.eq.s32.totalorder %s28, 3
      %p151 = por %p149, %p150
      %p152 = scmp.ne.s32.totalorder %s143, %s144
      %p153 = scmp.eq.s32.totalorder %s28, 0
      %p154 = por %p152, %p153
      %p155 = scmp.ne.s32.totalorder %s143, %s144
      %p156 = scmp.eq.s32.totalorder %s29, 3
      %p157 = por %p155, %p156
      %p159 = scmp.ne.s32.totalorder %s144, %s158
      %p160 = scmp.eq.s32.totalorder %s29, 0
      %p161 = por %p159, %p160
      %s163 = sadd.s32 %s162, 1
      %p166 = scmp.eq.s32.totalorder %s23, 3
      %p167 = scmp.ne.s32.totalorder %s162, %s164
      %p168 = scmp.eq.s32.totalorder %s23, 0
      %p169 = por %p167, %p168
      %p170 = scmp.ne.s32.totalorder %s162, %s164
      %p171 = scmp.eq.s32.totalorder %s28, 3
      %p172 = por %p170, %p171
      %p173 = scmp.ne.s32.totalorder %s164, %s165
      %p174 = scmp.eq.s32.totalorder %s28, 0
      %p175 = por %p173, %p174
      %p176 = scmp.ne.s32.totalorder %s164, %s165
      %p177 = scmp.eq.s32.totalorder %s29, 3
      %p178 = por %p176, %p177
      %p180 = scmp.ne.s32.totalorder %s165, %s179
      %p181 = scmp.eq.s32.totalorder %s29, 0
      %p182 = por %p180, %p181
      %s183 = ssub.s32 %s30, %s42
      %s184 = ssub.s32 %s31, %s38
      %s185 = sor.u32 %s183, %s184
      %p186 = scmp.eq.s32.totalorder %s185, 0
      %s188 = sadd.s32 %s187, 1
      %s189 = scalar_select %p186, %s187, %s188
      %p192 = pneg %p186
      %p193 = scmp.eq.s32.totalorder %s23, 3
      %p194 = por %p192, %p193
      %p195 = scmp.ne.s32.totalorder %s187, %s190
      %p196 = scmp.eq.s32.totalorder %s23, 0
      %p197 = por %p195, %p196
      %p198 = scmp.ne.s32.totalorder %s187, %s190
      %p199 = scmp.eq.s32.totalorder %s28, 3
      %p200 = por %p198, %p199
      %p201 = scmp.ne.s32.totalorder %s190, %s191
      %p202 = scmp.eq.s32.totalorder %s28, 0
      %p203 = por %p201, %p202
      %p204 = scmp.ne.s32.totalorder %s190, %s191
      %p205 = scmp.eq.s32.totalorder %s29, 3
      %p206 = por %p204, %p205
      %p208 = scmp.ne.s32.totalorder %s191, %s207
      %p209 = scmp.eq.s32.totalorder %s29, 0
      %p210 = por %p208, %p209
      %p211 = scmp.le.s32.totalorder 1, %s23
      %p212 = scmp.lt.s32.totalorder %s23, 5
      %p213 = pnand %p211, %p212
      %p214 = pneg %p213
      // Predicated region
      $region9: #{resblock2_child_pallas.1} parent=5 // pred_check
        _
      $region10: #{resblock2_child_pallas.1} parent=5 // pred_check_branch
        %216 = sbr.rel (%p213) target = $region12
      $region11: #{resblock2_child_pallas.1} parent=5 // pred_region
        %s217 = ssub.s32 %s23, 1
        // Predicated region
        $region13: #{resblock2_child_pallas.1} parent=11 // pred_check
          %p218 = pneg %p112
        $region14: #{resblock2_child_pallas.1} parent=11 // pred_check_branch
          %220 = sbr.rel (%p218) target = $region16
        $region15: #{resblock2_child_pallas.1} parent=11 // pred_region
          %s222 = ssub.s32 1024, 1024
          %223 = vsyncadd [#allocation7], %s222
          %s224 = sshll.u32 [#allocation8], 4
          %s225 = int_to_ptr.vmem [resolvable:$true] %s224
          %230 = dma.hbm_to_vmem [thread:$0]  %s2, 1024, %s225, [#allocation7], 128, 128, 8
        $region16: #{resblock2_child_pallas.1} parent=11 // pred_fallthru
          _
        // Predicated region
        $region17: #{resblock2_child_pallas.1} parent=11 // pred_check
          %p231 = pneg %p133
        $region18: #{resblock2_child_pallas.1} parent=11 // pred_check_branch
          %233 = sbr.rel (%p231) target = $region20
        $region19: #{resblock2_child_pallas.1} parent=11 // pred_region
          %s235 = ssub.s32 1024, 1024
          %236 = vsyncadd [#allocation10], %s235
          %s237 = sshll.u32 [#allocation9], 4
          %s238 = int_to_ptr.vmem [resolvable:$true] %s237
          %243 = dma.hbm_to_vmem [thread:$0]  %s3, 1024, %s238, [#allocation10], 128, 128, 8
        $region20: #{resblock2_child_pallas.1} parent=11 // pred_fallthru
          _
        // Predicated region
        $region21: #{resblock2_child_pallas.1} parent=11 // pred_check
          %p244 = pneg %p154
        $region22: #{resblock2_child_pallas.1} parent=11 // pred_check_branch
          %246 = sbr.rel (%p244) target = $region24
        $region23: #{resblock2_child_pallas.1} parent=11 // pred_region
          %s248 = ssub.s32 18432, 18432
          %249 = vsyncadd [#allocation10], %s248
          %s250 = sshll.u32 [#allocation11], 4
          %s251 = int_to_ptr.vmem [resolvable:$true] %s250
          %256 = dma.hbm_to_vmem [thread:$0]  %s4, 18432, %s251, [#allocation10], 128, 128, 8
        $region24: #{resblock2_child_pallas.1} parent=11 // pred_fallthru
          _
        // Predicated region
        $region25: #{resblock2_child_pallas.1} parent=11 // pred_check
          %p257 = pneg %p175
        $region26: #{resblock2_child_pallas.1} parent=11 // pred_check_branch
          %259 = sbr.rel (%p257) target = $region28
        $region27: #{resblock2_child_pallas.1} parent=11 // pred_region
          %s261 = ssub.s32 2048, 2048
          %262 = vsyncadd [#allocation13], %s261
          %s263 = sshll.u32 [#allocation12], 4
          %s264 = int_to_ptr.vmem [resolvable:$true] %s263
          %269 = dma.hbm_to_vmem [thread:$0]  %s5, 2048, %s264, [#allocation13], 128, 128, 8
        $region28: #{resblock2_child_pallas.1} parent=11 // pred_fallthru
          _
      $region12: #{resblock2_child_pallas.1} parent=5 // pred_fallthru
        _
      %p270 = scmp.lt.s32.totalorder %s23, 4
      // Predicated region
      $region29: #{resblock2_child_pallas.1} parent=5 // pred_check
        %p271 = pneg %p270
      $region30: #{resblock2_child_pallas.1} parent=5 // pred_check_branch
        %273 = sbr.rel (%p271) target = $region32
      $region31: #{resblock2_child_pallas.1} parent=5 // pred_region
        // Predicated region
        $region33: #{resblock2_child_pallas.1} parent=31 // pred_check
          %p274 = pneg %p57
        $region34: #{resblock2_child_pallas.1} parent=31 // pred_check_branch
          %276 = sbr.rel (%p274) target = $region36
        $region35: #{resblock2_child_pallas.1} parent=31 // pred_region
          %s277 = sand.u32 %s47, 1
          %s278 = scalar_lea.sflag [#allocation4], %s277
          %s279 = sand.u32 %s47, 1
          %s280 = smul.addr %s279, 128
          %s281 = scalar_lea.vmem [#allocation3], %s280
          %s283 = ssub.s32 2048, 2048
          %284 = vsyncadd %s278, %s283
          %s285 = smul.addr %s30, 32
          %s286 = sadd.s32 %s31, %s285
          %s287 = smul.addr %s286, 128
          %s288 = scalar_lea.hbm %s0, %s287
          %s289 = sshll.u32 %s281, 4
          %s290 = int_to_ptr.vmem [resolvable:$true] %s289
          %295 = dma.hbm_to_vmem [thread:$0]  %s288, 2048, %s290, %s278, 256, 128, 8
        $region36: #{resblock2_child_pallas.1} parent=31 // pred_fallthru
          _
        // Predicated region
        $region37: #{resblock2_child_pallas.1} parent=31 // pred_check
          %p296 = pneg %p85
        $region38: #{resblock2_child_pallas.1} parent=31 // pred_check_branch
          %298 = sbr.rel (%p296) target = $region40
        $region39: #{resblock2_child_pallas.1} parent=31 // pred_region
          %s299 = sand.u32 %s23, 1
          %s300 = scalar_lea.sflag [#allocation7], %s299
          %s301 = sand.u32 %s75, 1
          %s302 = smul.addr %s301, 256
          %s303 = scalar_lea.vmem [#allocation6], %s302
          %s305 = ssub.s32 4096, 4096
          %306 = vsyncadd %s300, %s305
          %s307 = smul.addr %s31, 32
          %s308 = smul.addr %s30, 64
          %s309 = sadd.s32 %s307, %s308
          %s310 = smul.addr %s309, 128
          %s311 = scalar_lea.hbm %s1, %s310
          %s312 = sshll.u32 %s303, 4
          %s313 = int_to_ptr.vmem [resolvable:$true] %s312
          %318 = dma.hbm_to_vmem [thread:$0]  %s311, 4096, %s313, %s300, 128, 128, 8
        $region40: #{resblock2_child_pallas.1} parent=31 // pred_fallthru
          _
      $region32: #{resblock2_child_pallas.1} parent=5 // pred_fallthru
        _
      %p319 = scmp.le.s32.totalorder 1, %s23
      %p320 = scmp.lt.s32.totalorder %s23, 5
      %p321 = pnand %p319, %p320
      %p322 = pneg %p321
      // Predicated region
      $region41: #{resblock2_child_pallas.1} parent=5 // pred_check
        _
      $region42: #{resblock2_child_pallas.1} parent=5 // pred_check_branch
        %324 = sbr.rel (%p321) target = $region44
      $region43: #{resblock2_child_pallas.1} parent=5 // pred_region
        %s325 = ssub.s32 %s23, 1
        %s326 = sand.u32 %s50, 1
        %s327 = scalar_lea.sflag [#allocation4], %s326
        %s328 = sand.u32 %s50, 1
        %s329 = smul.addr %s328, 128
        %s330 = scalar_lea.vmem [#allocation3], %s329
        // Predicated region
        $region45: #{resblock2_child_pallas.1} parent=43 // pred_check
          %p331 = pneg %p63
        $region46: #{resblock2_child_pallas.1} parent=43 // pred_check_branch
          %333 = sbr.rel (%p331) target = $region48
        $region47: #{resblock2_child_pallas.1} parent=43 // pred_region
          %334 = dma.done %s327, 2048
        $region48: #{resblock2_child_pallas.1} parent=43 // pred_fallthru
          _
        %s335 = sand.u32 %s28, 1
        %s336 = scalar_lea.sflag [#allocation7], %s335
        %s337 = sand.u32 %s78, 1
        %s338 = smul.addr %s337, 256
        %s339 = scalar_lea.vmem [#allocation6], %s338
        // Predicated region
        $region49: #{resblock2_child_pallas.1} parent=43 // pred_check
          %p340 = pneg %p91
        $region50: #{resblock2_child_pallas.1} parent=43 // pred_check_branch
          %342 = sbr.rel (%p340) target = $region52
        $region51: #{resblock2_child_pallas.1} parent=43 // pred_region
          %343 = dma.done %s336, 4096
        $region52: #{resblock2_child_pallas.1} parent=43 // pred_fallthru
          _
        // Predicated region
        $region53: #{resblock2_child_pallas.1} parent=43 // pred_check
          %p344 = pneg %p112
        $region54: #{resblock2_child_pallas.1} parent=43 // pred_check_branch
          %346 = sbr.rel (%p344) target = $region56
        $region55: #{resblock2_child_pallas.1} parent=43 // pred_region
          %347 = dma.done [#allocation7], 1024
        $region56: #{resblock2_child_pallas.1} parent=43 // pred_fallthru
          _
        // Predicated region
        $region57: #{resblock2_child_pallas.1} parent=43 // pred_check
          %p348 = pneg %p133
        $region58: #{resblock2_child_pallas.1} parent=43 // pred_check_branch
          %350 = sbr.rel (%p348) target = $region60
        $region59: #{resblock2_child_pallas.1} parent=43 // pred_region
          %351 = dma.done [#allocation10], 1024
        $region60: #{resblock2_child_pallas.1} parent=43 // pred_fallthru
          _
        // Predicated region
        $region61: #{resblock2_child_pallas.1} parent=43 // pred_check
          %p352 = pneg %p154
        $region62: #{resblock2_child_pallas.1} parent=43 // pred_check_branch
          %354 = sbr.rel (%p352) target = $region64
        $region63: #{resblock2_child_pallas.1} parent=43 // pred_region
          %355 = dma.done [#allocation10], 18432
        $region64: #{resblock2_child_pallas.1} parent=43 // pred_fallthru
          _
        // Predicated region
        $region65: #{resblock2_child_pallas.1} parent=43 // pred_check
          %p356 = pneg %p175
        $region66: #{resblock2_child_pallas.1} parent=43 // pred_check_branch
          %358 = sbr.rel (%p356) target = $region68
        $region67: #{resblock2_child_pallas.1} parent=43 // pred_region
          %359 = dma.done [#allocation13], 2048
        $region68: #{resblock2_child_pallas.1} parent=43 // pred_fallthru
          _
        %s360 = sand.u32 %s50, 1
        %s361 = scalar_lea.sflag [#allocation4], %s360
        %s362 = sand.u32 %s50, 1
        %s363 = smul.addr %s362, 128
        %s364 = scalar_lea.vmem [#allocation3], %s363
        %p365 = pneg %p63
        %p366 = pneg %p60
        %s367 = sand.u32 %s28, 1
        %s368 = scalar_lea.sflag [#allocation7], %s367
        %s369 = sand.u32 %s78, 1
        %s370 = smul.addr %s369, 256
        %s371 = scalar_lea.vmem [#allocation6], %s370
        %p372 = pneg %p91
        %p373 = pneg %p88
        %p374 = pneg %p112
        %p375 = pneg %p109
        %p376 = pneg %p133
        %p377 = pneg %p130
        %p378 = pneg %p154
        %p379 = pneg %p151
        %p380 = pneg %p175
        %p381 = pneg %p172
        %p382 = pneg %p203
        %p383 = pneg %p200
        %s384 = sand.u32 %s190, 1
        %s385 = scalar_lea.sflag [#allocation5], %s384
        %s386 = sand.u32 %s190, 1
        %s387 = smul.addr %s386, 128
        %s388 = scalar_lea.vmem [#allocation14], %s387
        %v389 = vld [vmem:[#allocation8] sm:$0xff]
        %v390 = vld [vmem:[#allocation8 + $0x8] sm:$0xff]
        %v391 = vld [vmem:[#allocation8 + $0x10] sm:$0xff]
        %v392 = vld [vmem:[#allocation8 + $0x18] sm:$0xff]
        %v393 = vld [vmem:[#allocation8 + $0x20] sm:$0xff]
        %v394 = vld [vmem:[#allocation8 + $0x28] sm:$0xff]
        %v395 = vld [vmem:[#allocation8 + $0x30] sm:$0xff]
        %v396 = vld [vmem:[#allocation8 + $0x38] sm:$0xff]
        %v397 = vld [vmem:[#allocation9] sm:$0xff]
        %v398 = vld [vmem:[#allocation9 + $0x8] sm:$0xff]
        %v399 = vld [vmem:[#allocation9 + $0x10] sm:$0xff]
        %v400 = vld [vmem:[#allocation9 + $0x18] sm:$0xff]
        %v401 = vld [vmem:[#allocation9 + $0x20] sm:$0xff]
        %v402 = vld [vmem:[#allocation9 + $0x28] sm:$0xff]
        %v403 = vld [vmem:[#allocation9 + $0x30] sm:$0xff]
        %v404 = vld [vmem:[#allocation9 + $0x38] sm:$0xff]
        %v405 = vld [vmem:[#allocation12] sm:$0xff]
        %v406 = vld [vmem:[#allocation12 + $0x8] sm:$0xff]
        %v407 = vld [vmem:[#allocation12 + $0x10] sm:$0xff]
        %v408 = vld [vmem:[#allocation12 + $0x18] sm:$0xff]
        %v409 = vld [vmem:[#allocation12 + $0x20] sm:$0xff]
        %v410 = vld [vmem:[#allocation12 + $0x28] sm:$0xff]
        %v411 = vld [vmem:[#allocation12 + $0x30] sm:$0xff]
        %v412 = vld [vmem:[#allocation12 + $0x38] sm:$0xff]
        %v413 = vld [vmem:[#allocation12 + $0x40] sm:$0xff]
        %v414 = vld [vmem:[#allocation12 + $0x48] sm:$0xff]
        %v415 = vld [vmem:[#allocation12 + $0x50] sm:$0xff]
        %v416 = vld [vmem:[#allocation12 + $0x58] sm:$0xff]
        %v417 = vld [vmem:[#allocation12 + $0x60] sm:$0xff]
        %v418 = vld [vmem:[#allocation12 + $0x68] sm:$0xff]
        %v419 = vld [vmem:[#allocation12 + $0x70] sm:$0xff]
        %v420 = vld [vmem:[#allocation12 + $0x78] sm:$0xff]
        %422 = vset.pattern.permute.xlu0 0
        %423 = vperm.xlu0 %422, %v397
        %v424 = vpop.permute.xlu0 %423
        %427 = vset.pattern.permute.xlu0 0
        %428 = vperm.xlu0 %427, %v398
        %v429 = vpop.permute.xlu0 %428
        %432 = vset.pattern.permute.xlu0 0
        %433 = vperm.xlu0 %432, %v399
        %v434 = vpop.permute.xlu0 %433
        %437 = vset.pattern.permute.xlu0 0
        %438 = vperm.xlu0 %437, %v400
        %v439 = vpop.permute.xlu0 %438
        %442 = vset.pattern.permute.xlu0 0
        %443 = vperm.xlu0 %442, %v401
        %v444 = vpop.permute.xlu0 %443
        %447 = vset.pattern.permute.xlu0 0
        %448 = vperm.xlu0 %447, %v402
        %v449 = vpop.permute.xlu0 %448
        %452 = vset.pattern.permute.xlu0 0
        %453 = vperm.xlu0 %452, %v403
        %v454 = vpop.permute.xlu0 %453
        %457 = vset.pattern.permute.xlu0 0
        %458 = vperm.xlu0 %457, %v404
        %v459 = vpop.permute.xlu0 %458
        %462 = vset.pattern.permute.xlu0 0
        %463 = vperm.xlu0 %462, %v405
        %v464 = vpop.permute.xlu0 %463
        %467 = vset.pattern.permute.xlu0 0
        %468 = vperm.xlu0 %467, %v406
        %v469 = vpop.permute.xlu0 %468
        %472 = vset.pattern.permute.xlu0 0
        %473 = vperm.xlu0 %472, %v407
        %v474 = vpop.permute.xlu0 %473
        %477 = vset.pattern.permute.xlu0 0
        %478 = vperm.xlu0 %477, %v408
        %v479 = vpop.permute.xlu0 %478
        %482 = vset.pattern.permute.xlu0 0
        %483 = vperm.xlu0 %482, %v409
        %v484 = vpop.permute.xlu0 %483
        %487 = vset.pattern.permute.xlu0 0
        %488 = vperm.xlu0 %487, %v410
        %v489 = vpop.permute.xlu0 %488
        %492 = vset.pattern.permute.xlu0 0
        %493 = vperm.xlu0 %492, %v411
        %v494 = vpop.permute.xlu0 %493
        %497 = vset.pattern.permute.xlu0 0
        %498 = vperm.xlu0 %497, %v412
        %v499 = vpop.permute.xlu0 %498
        %502 = vset.pattern.permute.xlu0 0
        %503 = vperm.xlu0 %502, %v413
        %v504 = vpop.permute.xlu0 %503
        %507 = vset.pattern.permute.xlu0 0
        %508 = vperm.xlu0 %507, %v414
        %v509 = vpop.permute.xlu0 %508
        %512 = vset.pattern.permute.xlu0 0
        %513 = vperm.xlu0 %512, %v415
        %v514 = vpop.permute.xlu0 %513
        %517 = vset.pattern.permute.xlu0 0
        %518 = vperm.xlu0 %517, %v416
        %v519 = vpop.permute.xlu0 %518
        %522 = vset.pattern.permute.xlu0 0
        %523 = vperm.xlu0 %522, %v417
        %v524 = vpop.permute.xlu0 %523
        %527 = vset.pattern.permute.xlu0 0
        %528 = vperm.xlu0 %527, %v418
        %v529 = vpop.permute.xlu0 %528
        %532 = vset.pattern.permute.xlu0 0
        %533 = vperm.xlu0 %532, %v419
        %v534 = vpop.permute.xlu0 %533
        %537 = vset.pattern.permute.xlu0 0
        %538 = vperm.xlu0 %537, %v420
        %v539 = vpop.permute.xlu0 %538
        %v541 = vld [vmem:[%s339] sm:$0xff]
        %v542 = vld [vmem:[%s339 + $0x8] sm:$0xff]
        %v543 = vld [vmem:[%s339 + $0x10] sm:$0xff]
        %v544 = vld [vmem:[%s339 + $0x18] sm:$0xff]
        %v545 = vld [vmem:[%s339 + $0x20] sm:$0xff]
        %v546 = vld [vmem:[%s339 + $0x28] sm:$0xff]
        %v547 = vld [vmem:[%s339 + $0x30] sm:$0xff]
        %v548 = vld [vmem:[%s339 + $0x38] sm:$0xff]
        %v549 = vld [vmem:[%s339 + $0x40] sm:$0xff]
        %v550 = vld [vmem:[%s339 + $0x48] sm:$0xff]
        %v551 = vld [vmem:[%s339 + $0x50] sm:$0xff]
        %v552 = vld [vmem:[%s339 + $0x58] sm:$0xff]
        %v553 = vld [vmem:[%s339 + $0x60] sm:$0xff]
        %v554 = vld [vmem:[%s339 + $0x68] sm:$0xff]
        %v555 = vld [vmem:[%s339 + $0x70] sm:$0xff]
        %v556 = vld [vmem:[%s339 + $0x78] sm:$0xff]
        %557 = vmatprep.subr.mxu0 0.0
        %558 = vmatpush1.msra.mxu0 %v541
        %559 = vmatprep.subr.mxu0 0.0
        %560 = vmatpush1.msra.mxu0 %v542
        %561 = vmatprep.subr.mxu0 0.0
        %562 = vmatpush1.msra.mxu0 %v543
        %563 = vmatprep.subr.mxu0 0.0
        %564 = vmatpush1.msra.mxu0 %v544
        %565 = vmatprep.subr.mxu0 0.0
        %566 = vmatpush1.msra.mxu0 %v545
        %567 = vmatprep.subr.mxu0 0.0
        %568 = vmatpush1.msra.mxu0 %v546
        %569 = vmatprep.subr.mxu0 0.0
        %570 = vmatpush1.msra.mxu0 %v547
        %571 = vmatprep.subr.mxu0 0.0
        %572 = vmatpush1.msra.mxu0 %v548
        %573 = vmatprep.subr.mxu0 0.0
        %574 = vmatpush1.msra.mxu0 %v549
        %575 = vmatprep.subr.mxu0 0.0
        %576 = vmatpush1.msra.mxu0 %v550
        %577 = vmatprep.subr.mxu0 0.0
        %578 = vmatpush1.msra.mxu0 %v551
        %579 = vmatprep.subr.mxu0 0.0
        %580 = vmatpush1.msra.mxu0 %v552
        %581 = vmatprep.subr.mxu0 0.0
        %582 = vmatpush1.msra.mxu0 %v553
        %583 = vmatprep.subr.mxu0 0.0
        %584 = vmatpush1.msra.mxu0 %v554
        %585 = vmatprep.subr.mxu0 0.0
        %586 = vmatpush1.msra.mxu0 %v555
        %587 = vmatprep.subr.mxu0 0.0
        %588 = vmatpush1.msra.mxu0 %v556
        %589 = vmatprep.subr.mxu0 0.0
        %590 = vmatpush1.msra.mxu0 0.0
        %591 = vmatprep.subr.mxu0 0.0
        %592 = vmatpush1.msra.mxu0 0.0
        %593 = vmatprep.subr.mxu0 0.0
        %594 = vmatpush1.msra.mxu0 0.0
        %595 = vmatprep.subr.mxu0 0.0
        %596 = vmatpush1.msra.mxu0 0.0
        %597 = vmatprep.subr.mxu0 0.0
        %598 = vmatpush1.msra.mxu0 0.0
        %599 = vmatprep.subr.mxu0 0.0
        %600 = vmatpush1.msra.mxu0 0.0
        %601 = vmatprep.subr.mxu0 0.0
        %602 = vmatpush1.msra.mxu0 0.0
        %603 = vmatprep.subr.mxu0 0.0
        %604 = vmatpush1.msra.mxu0 0.0
        %605 = vmatprep.subr.mxu0 0.0
        %606 = vmatpush1.msra.mxu0 0.0
        %607 = vmatprep.subr.mxu0 0.0
        %608 = vmatpush1.msra.mxu0 0.0
        %609 = vmatprep.subr.mxu0 0.0
        %610 = vmatpush1.msra.mxu0 0.0
        %611 = vmatprep.subr.mxu0 0.0
        %612 = vmatpush1.msra.mxu0 0.0
        %613 = vmatprep.subr.mxu0 0.0
        %614 = vmatpush1.msra.mxu0 0.0
        %615 = vmatprep.subr.mxu0 0.0
        %616 = vmatpush1.msra.mxu0 0.0
        %617 = vmatprep.subr.mxu0 0.0
        %618 = vmatpush1.msra.mxu0 0.0
        %619 = vmatprep.subr.mxu0 0.0
        %620 = vmatpush1.msra.mxu0 0.0
        %621 = vmatprep.mubr.f32.mxu0 0.0
        %622 = vmatmul.mubr.f32.gmra.mrb[0].mxu0 %v389
        %v623 = vpop.f32.mrb[0].mxu0
        %v624 = vadd.f32 %v424, %v623
        %v625 = vpop.f32.mrb[0].mxu0
        %626 = vmatprep.mubr.f32.mxu0 0.0
        %627 = vmatmul.mubr.f32.gmra.mrb[0].mxu0 %v390
        %v628 = vpop.f32.mrb[0].mxu0
        %v629 = vadd.f32 %v429, %v628
        %v630 = vpop.f32.mrb[0].mxu0
        %631 = vmatprep.mubr.f32.mxu0 0.0
        %632 = vmatmul.mubr.f32.gmra.mrb[0].mxu0 %v391
        %v633 = vpop.f32.mrb[0].mxu0
        %v634 = vadd.f32 %v434, %v633
        %v635 = vpop.f32.mrb[0].mxu0
        %636 = vmatprep.mubr.f32.mxu0 0.0
        %637 = vmatmul.mubr.f32.gmra.mrb[0].mxu0 %v392
        %v638 = vpop.f32.mrb[0].mxu0
        %v639 = vadd.f32 %v439, %v638
        %v640 = vpop.f32.mrb[0].mxu0
        %641 = vmatprep.mubr.f32.mxu0 0.0
        %642 = vmatmul.mubr.f32.gmra.mrb[0].mxu0 %v393
        %v643 = vpop.f32.mrb[0].mxu0
        %v644 = vadd.f32 %v444, %v643
        %v645 = vpop.f32.mrb[0].mxu0
        %646 = vmatprep.mubr.f32.mxu0 0.0
        %647 = vmatmul.mubr.f32.gmra.mrb[0].mxu0 %v394
        %v648 = vpop.f32.mrb[0].mxu0
        %v649 = vadd.f32 %v449, %v648
        %v650 = vpop.f32.mrb[0].mxu0
        %651 = vmatprep.mubr.f32.mxu0 0.0
        %652 = vmatmul.mubr.f32.gmra.mrb[0].mxu0 %v395
        %v653 = vpop.f32.mrb[0].mxu0
        %v654 = vadd.f32 %v454, %v653
        %v655 = vpop.f32.mrb[0].mxu0
        %656 = vmatprep.mubr.f32.mxu0 0.0
        %657 = vmatmul.mubr.f32.gmra.mrb[0].mxu0 %v396
        %v658 = vpop.f32.mrb[0].mxu0
        %v659 = vadd.f32 %v459, %v658
        %v660 = vpop.f32.mrb[0].mxu0
        %661 = vdwg.mxu0
        %v662 = vmul.f32 %v624, 0.1
        %v663 = vmul.f32 %v629, 0.1
        %v664 = vmul.f32 %v634, 0.1
        %v665 = vmul.f32 %v639, 0.1
        %v666 = vmul.f32 %v644, 0.1
        %v667 = vmul.f32 %v649, 0.1
        %v668 = vmul.f32 %v654, 0.1
        %v669 = vmul.f32 %v659, 0.1
        %v670 = vmax.f32 %v624, %v662
        %v671 = vmax.f32 %v629, %v663
        %v672 = vmax.f32 %v634, %v664
        %v673 = vmax.f32 %v639, %v665
        %v674 = vmax.f32 %v644, %v666
        %v675 = vmax.f32 %v649, %v667
        %v676 = vmax.f32 %v654, %v668
        %v677 = vmax.f32 %v659, %v669
        %s678 = scalar_lea.vmem %s339, 128 [#allocation6]
        %v679 = vld [vmem:[%s678] sm:$0xff]
        %v680 = vld [vmem:[%s678 + $0x8] sm:$0xff]
        %v681 = vld [vmem:[%s678 + $0x10] sm:$0xff]
        %v682 = vld [vmem:[%s678 + $0x18] sm:$0xff]
        %v683 = vld [vmem:[%s678 + $0x20] sm:$0xff]
        %v684 = vld [vmem:[%s678 + $0x28] sm:$0xff]
        %v685 = vld [vmem:[%s678 + $0x30] sm:$0xff]
        %v686 = vld [vmem:[%s678 + $0x38] sm:$0xff]
        %v687 = vld [vmem:[%s678 + $0x40] sm:$0xff]
        %v688 = vld [vmem:[%s678 + $0x48] sm:$0xff]
        %v689 = vld [vmem:[%s678 + $0x50] sm:$0xff]
        %v690 = vld [vmem:[%s678 + $0x58] sm:$0xff]
        %v691 = vld [vmem:[%s678 + $0x60] sm:$0xff]
        %v692 = vld [vmem:[%s678 + $0x68] sm:$0xff]
        %v693 = vld [vmem:[%s678 + $0x70] sm:$0xff]
        %v694 = vld [vmem:[%s678 + $0x78] sm:$0xff]
        %695 = vmatprep.subr.mxu0 0.0
        %696 = vmatpush1.msra.mxu0 %v679
        %697 = vmatprep.subr.mxu0 0.0
        %698 = vmatpush1.msra.mxu0 %v680
        %699 = vmatprep.subr.mxu0 0.0
        %700 = vmatpush1.msra.mxu0 %v681
        %701 = vmatprep.subr.mxu0 0.0
        %702 = vmatpush1.msra.mxu0 %v682
        %703 = vmatprep.subr.mxu0 0.0
        %704 = vmatpush1.msra.mxu0 %v683
        %705 = vmatprep.subr.mxu0 0.0
        %706 = vmatpush1.msra.mxu0 %v684
        %707 = vmatprep.subr.mxu0 0.0
        %708 = vmatpush1.msra.mxu0 %v685
        %709 = vmatprep.subr.mxu0 0.0
        %710 = vmatpush1.msra.mxu0 %v686
        %711 = vmatprep.subr.mxu0 0.0
        %712 = vmatpush1.msra.mxu0 %v687
        %713 = vmatprep.subr.mxu0 0.0
        %714 = vmatpush1.msra.mxu0 %v688
        %715 = vmatprep.subr.mxu0 0.0
        %716 = vmatpush1.msra.mxu0 %v689
        %717 = vmatprep.subr.mxu0 0.0
        %718 = vmatpush1.msra.mxu0 %v690
        %719 = vmatprep.subr.mxu0 0.0
        %720 = vmatpush1.msra.mxu0 %v691
        %721 = vmatprep.subr.mxu0 0.0
        %722 = vmatpush1.msra.mxu0 %v692
        %723 = vmatprep.subr.mxu0 0.0
        %724 = vmatpush1.msra.mxu0 %v693
        %725 = vmatprep.subr.mxu0 0.0
        %726 = vmatpush1.msra.mxu0 %v694
        %727 = vmatprep.subr.mxu0 0.0
        %728 = vmatpush1.msra.mxu0 0.0
        %729 = vmatprep.subr.mxu0 0.0
        %730 = vmatpush1.msra.mxu0 0.0
        %731 = vmatprep.subr.mxu0 0.0
        %732 = vmatpush1.msra.mxu0 0.0
        %733 = vmatprep.subr.mxu0 0.0
        %734 = vmatpush1.msra.mxu0 0.0
        %735 = vmatprep.subr.mxu0 0.0
        %736 = vmatpush1.msra.mxu0 0.0
        %737 = vmatprep.subr.mxu0 0.0
        %738 = vmatpush1.msra.mxu0 0.0
        %739 = vmatprep.subr.mxu0 0.0
        %740 = vmatpush1.msra.mxu0 0.0
        %741 = vmatprep.subr.mxu0 0.0
        %742 = vmatpush1.msra.mxu0 0.0
        %743 = vmatprep.subr.mxu0 0.0
        %744 = vmatpush1.msra.mxu0 0.0
        %745 = vmatprep.subr.mxu0 0.0
        %746 = vmatpush1.msra.mxu0 0.0
        %747 = vmatprep.subr.mxu0 0.0
        %748 = vmatpush1.msra.mxu0 0.0
        %749 = vmatprep.subr.mxu0 0.0
        %750 = vmatpush1.msra.mxu0 0.0
        %751 = vmatprep.subr.mxu0 0.0
        %752 = vmatpush1.msra.mxu0 0.0
        %753 = vmatprep.subr.mxu0 0.0
        %754 = vmatpush1.msra.mxu0 0.0
        %755 = vmatprep.subr.mxu0 0.0
        %756 = vmatpush1.msra.mxu0 0.0
        %757 = vmatprep.subr.mxu0 0.0
        %758 = vmatpush1.msra.mxu0 0.0
        %759 = vmatprep.mubr.f32.mxu0 0.0
        %760 = vmatmul.mubr.f32.gmra.mrb[0].mxu0 %v389
        %v761 = vpop.f32.mrb[0].mxu0
        %v762 = vadd.f32 %v424, %v761
        %v763 = vpop.f32.mrb[0].mxu0
        %764 = vmatprep.mubr.f32.mxu0 0.0
        %765 = vmatmul.mubr.f32.gmra.mrb[0].mxu0 %v390
        %v766 = vpop.f32.mrb[0].mxu0
        %v767 = vadd.f32 %v429, %v766
        %v768 = vpop.f32.mrb[0].mxu0
        %769 = vmatprep.mubr.f32.mxu0 0.0
        %770 = vmatmul.mubr.f32.gmra.mrb[0].mxu0 %v391
        %v771 = vpop.f32.mrb[0].mxu0
        %v772 = vadd.f32 %v434, %v771
        %v773 = vpop.f32.mrb[0].mxu0
        %774 = vmatprep.mubr.f32.mxu0 0.0
        %775 = vmatmul.mubr.f32.gmra.mrb[0].mxu0 %v392
        %v776 = vpop.f32.mrb[0].mxu0
        %v777 = vadd.f32 %v439, %v776
        %v778 = vpop.f32.mrb[0].mxu0
        %779 = vmatprep.mubr.f32.mxu0 0.0
        %780 = vmatmul.mubr.f32.gmra.mrb[0].mxu0 %v393
        %v781 = vpop.f32.mrb[0].mxu0
        %v782 = vadd.f32 %v444, %v781
        %v783 = vpop.f32.mrb[0].mxu0
        %784 = vmatprep.mubr.f32.mxu0 0.0
        %785 = vmatmul.mubr.f32.gmra.mrb[0].mxu0 %v394
        %v786 = vpop.f32.mrb[0].mxu0
        %v787 = vadd.f32 %v449, %v786
        %v788 = vpop.f32.mrb[0].mxu0
        %789 = vmatprep.mubr.f32.mxu0 0.0
        %790 = vmatmul.mubr.f32.gmra.mrb[0].mxu0 %v395
        %v791 = vpop.f32.mrb[0].mxu0
        %v792 = vadd.f32 %v454, %v791
        %v793 = vpop.f32.mrb[0].mxu0
        %794 = vmatprep.mubr.f32.mxu0 0.0
        %795 = vmatmul.mubr.f32.gmra.mrb[0].mxu0 %v396
        %v796 = vpop.f32.mrb[0].mxu0
        %v797 = vadd.f32 %v459, %v796
        %v798 = vpop.f32.mrb[0].mxu0
        %799 = vdwg.mxu0
        %v800 = vmul.f32 %v762, 0.1
        %v801 = vmul.f32 %v767, 0.1
        %v802 = vmul.f32 %v772, 0.1
        %v803 = vmul.f32 %v777, 0.1
        %v804 = vmul.f32 %v782, 0.1
        %v805 = vmul.f32 %v787, 0.1
        %v806 = vmul.f32 %v792, 0.1
        %v807 = vmul.f32 %v797, 0.1
        %v808 = vmax.f32 %v762, %v800
        %v809 = vmax.f32 %v767, %v801
        %v810 = vmax.f32 %v772, %v802
        %v811 = vmax.f32 %v777, %v803
        %v812 = vmax.f32 %v782, %v804
        %v813 = vmax.f32 %v787, %v805
        %v814 = vmax.f32 %v792, %v806
        %v815 = vmax.f32 %v797, %v807
        %p816 = scmp.gt.s32.totalorder %s33, 0
        %s817 = scalar_select %p816, 1, 0
        %v818 = vstv %s817
        %vm819 = vcmp.eq.s32.totalorder %v818, 1
        %v820 = vsel %vm819, %v670, 0.0
        %v821 = vsel %vm819, %v671, 0.0
        %v822 = vsel %vm819, %v672, 0.0
        %v823 = vsel %vm819, %v673, 0.0
        %v824 = vsel %vm819, %v674, 0.0
        %v825 = vsel %vm819, %v675, 0.0
        %v826 = vsel %vm819, %v676, 0.0
        %v827 = vsel %vm819, %v677, 0.0
        %836 = vrot.lane.b32.xlu0 %v820, 112
        %v837 = vpop.permute.xlu0 %836
        %838 = vrot.lane.b32.xlu0 %v821, 112
        %v839 = vpop.permute.xlu0 %838
        %840 = vrot.lane.b32.xlu0 %v822, 112
        %v841 = vpop.permute.xlu0 %840
        %842 = vrot.lane.b32.xlu0 %v823, 112
        %v843 = vpop.permute.xlu0 %842
        %844 = vrot.lane.b32.xlu0 %v824, 112
        %v845 = vpop.permute.xlu0 %844
        %846 = vrot.lane.b32.xlu0 %v825, 112
        %v847 = vpop.permute.xlu0 %846
        %848 = vrot.lane.b32.xlu0 %v826, 112
        %v849 = vpop.permute.xlu0 %848
        %850 = vrot.lane.b32.xlu0 %v827, 112
        %v851 = vpop.permute.xlu0 %850
        %vm860 = vcmask 1048448
        %861 = vst.msk [vmem:[#allocation2] sm:$0xff] %vm860, %v837
        %862 = vst.msk [vmem:[#allocation2 + $0x20] sm:$0xff] %vm860, %v839
        %863 = vst.msk [vmem:[#allocation2 + $0x40] sm:$0xff] %vm860, %v841
        %864 = vst.msk [vmem:[#allocation2 + $0x60] sm:$0xff] %vm860, %v843
        %865 = vst.msk [vmem:[#allocation2 + $0x80] sm:$0xff] %vm860, %v845
        %866 = vst.msk [vmem:[#allocation2 + $0xa0] sm:$0xff] %vm860, %v847
        %867 = vst.msk [vmem:[#allocation2 + $0xc0] sm:$0xff] %vm860, %v849
        %868 = vst.msk [vmem:[#allocation2 + $0xe0] sm:$0xff] %vm860, %v851
        %p869 = scmp.lt.s32.totalorder %s33, 1
        %s870 = scalar_select %p869, 1, 0
        %v871 = vstv %s870
        %vm872 = vcmp.eq.s32.totalorder %v871, 1
        %v873 = vsel %vm872, %v808, 0.0
        %v874 = vsel %vm872, %v809, 0.0
        %v875 = vsel %vm872, %v810, 0.0
        %v876 = vsel %vm872, %v811, 0.0
        %v877 = vsel %vm872, %v812, 0.0
        %v878 = vsel %vm872, %v813, 0.0
        %v879 = vsel %vm872, %v814, 0.0
        %v880 = vsel %vm872, %v815, 0.0
        %vm881 = vcmask 130048
        %882 = vst.msk [vmem:[#allocation2 + $0x10] sm:$0xff] %vm881, %v873
        %883 = vst.msk [vmem:[#allocation2 + $0x30] sm:$0xff] %vm881, %v874
        %884 = vst.msk [vmem:[#allocation2 + $0x50] sm:$0xff] %vm881, %v875
        %885 = vst.msk [vmem:[#allocation2 + $0x70] sm:$0xff] %vm881, %v876
        %886 = vst.msk [vmem:[#allocation2 + $0x90] sm:$0xff] %vm881, %v877
        %887 = vst.msk [vmem:[#allocation2 + $0xb0] sm:$0xff] %vm881, %v878
        %888 = vst.msk [vmem:[#allocation2 + $0xd0] sm:$0xff] %vm881, %v879
        %889 = vst.msk [vmem:[#allocation2 + $0xf0] sm:$0xff] %vm881, %v880
        %v890 = vld [vmem:[%s330] sm:$0xff]
        %v891 = vld [vmem:[%s330 + $0x8] sm:$0xff]
        %v892 = vld [vmem:[%s330 + $0x10] sm:$0xff]
        %v893 = vld [vmem:[%s330 + $0x18] sm:$0xff]
        %v894 = vld [vmem:[%s330 + $0x20] sm:$0xff]
        %v895 = vld [vmem:[%s330 + $0x28] sm:$0xff]
        %v896 = vld [vmem:[%s330 + $0x30] sm:$0xff]
        %v897 = vld [vmem:[%s330 + $0x38] sm:$0xff]
        %v898 = vld [vmem:[%s330 + $0x40] sm:$0xff]
        %v899 = vld [vmem:[%s330 + $0x48] sm:$0xff]
        %v900 = vld [vmem:[%s330 + $0x50] sm:$0xff]
        %v901 = vld [vmem:[%s330 + $0x58] sm:$0xff]
        %v902 = vld [vmem:[%s330 + $0x60] sm:$0xff]
        %v903 = vld [vmem:[%s330 + $0x68] sm:$0xff]
        %v904 = vld [vmem:[%s330 + $0x70] sm:$0xff]
        %v905 = vld [vmem:[%s330 + $0x78] sm:$0xff]
        %906 = vmatprep.subr.mxu0 0.0
        %907 = vmatpush1.msra.mxu0 %v890
        %908 = vmatprep.subr.mxu0 0.0
        %909 = vmatpush1.msra.mxu0 %v891
        %910 = vmatprep.subr.mxu0 0.0
        %911 = vmatpush1.msra.mxu0 %v892
        %912 = vmatprep.subr.mxu0 0.0
        %913 = vmatpush1.msra.mxu0 %v893
        %914 = vmatprep.subr.mxu0 0.0
        %915 = vmatpush1.msra.mxu0 %v894
        %916 = vmatprep.subr.mxu0 0.0
        %917 = vmatpush1.msra.mxu0 %v895
        %918 = vmatprep.subr.mxu0 0.0
        %919 = vmatpush1.msra.mxu0 %v896
        %920 = vmatprep.subr.mxu0 0.0
        %921 = vmatpush1.msra.mxu0 %v897
        %922 = vmatprep.subr.mxu0 0.0
        %923 = vmatpush1.msra.mxu0 %v898
        %924 = vmatprep.subr.mxu0 0.0
        %925 = vmatpush1.msra.mxu0 %v899
        %926 = vmatprep.subr.mxu0 0.0
        %927 = vmatpush1.msra.mxu0 %v900
        %928 = vmatprep.subr.mxu0 0.0
        %929 = vmatpush1.msra.mxu0 %v901
        %930 = vmatprep.subr.mxu0 0.0
        %931 = vmatpush1.msra.mxu0 %v902
        %932 = vmatprep.subr.mxu0 0.0
        %933 = vmatpush1.msra.mxu0 %v903
        %934 = vmatprep.subr.mxu0 0.0
        %935 = vmatpush1.msra.mxu0 %v904
        %936 = vmatprep.subr.mxu0 0.0
        %937 = vmatpush1.msra.mxu0 %v905
        %938 = vmatprep.subr.mxu0 0.0
        %939 = vmatpush1.msra.mxu0 0.0
        %940 = vmatprep.subr.mxu0 0.0
        %941 = vmatpush1.msra.mxu0 0.0
        %942 = vmatprep.subr.mxu0 0.0
        %943 = vmatpush1.msra.mxu0 0.0
        %944 = vmatprep.subr.mxu0 0.0
        %945 = vmatpush1.msra.mxu0 0.0
        %946 = vmatprep.subr.mxu0 0.0
        %947 = vmatpush1.msra.mxu0 0.0
        %948 = vmatprep.subr.mxu0 0.0
        %949 = vmatpush1.msra.mxu0 0.0
        %950 = vmatprep.subr.mxu0 0.0
        %951 = vmatpush1.msra.mxu0 0.0
        %952 = vmatprep.subr.mxu0 0.0
        %953 = vmatpush1.msra.mxu0 0.0
        %954 = vmatprep.subr.mxu0 0.0
        %955 = vmatpush1.msra.mxu0 0.0
        %956 = vmatprep.subr.mxu0 0.0
        %957 = vmatpush1.msra.mxu0 0.0
        %958 = vmatprep.subr.mxu0 0.0
        %959 = vmatpush1.msra.mxu0 0.0
        %960 = vmatprep.subr.mxu0 0.0
        %961 = vmatpush1.msra.mxu0 0.0
        %962 = vmatprep.subr.mxu0 0.0
        %963 = vmatpush1.msra.mxu0 0.0
        %964 = vmatprep.subr.mxu0 0.0
        %965 = vmatpush1.msra.mxu0 0.0
        %966 = vmatprep.subr.mxu0 0.0
        %967 = vmatpush1.msra.mxu0 0.0
        %968 = vmatprep.subr.mxu0 0.0
        %969 = vmatpush1.msra.mxu0 0.0
        %970 = vmatprep.mubr.f32.mxu0 0.0
        %971 = vmatmul.mubr.f32.gmra.mrb[0].mxu0 %v389
        %v972 = vpop.f32.mrb[0].mxu0
        %v973 = vadd.f32 %v424, %v972
        %v974 = vpop.f32.mrb[0].mxu0
        %975 = vmatprep.mubr.f32.mxu0 0.0
        %976 = vmatmul.mubr.f32.gmra.mrb[0].mxu0 %v390
        %v977 = vpop.f32.mrb[0].mxu0
        %v978 = vadd.f32 %v429, %v977
        %v979 = vpop.f32.mrb[0].mxu0
        %980 = vmatprep.mubr.f32.mxu0 0.0
        %981 = vmatmul.mubr.f32.gmra.mrb[0].mxu0 %v391
        %v982 = vpop.f32.mrb[0].mxu0
        %v983 = vadd.f32 %v434, %v982
        %v984 = vpop.f32.mrb[0].mxu0
        %985 = vmatprep.mubr.f32.mxu0 0.0
        %986 = vmatmul.mubr.f32.gmra.mrb[0].mxu0 %v392
        %v987 = vpop.f32.mrb[0].mxu0
        %v988 = vadd.f32 %v439, %v987
        %v989 = vpop.f32.mrb[0].mxu0
        %990 = vmatprep.mubr.f32.mxu0 0.0
        %991 = vmatmul.mubr.f32.gmra.mrb[0].mxu0 %v393
        %v992 = vpop.f32.mrb[0].mxu0
        %v993 = vadd.f32 %v444, %v992
        %v994 = vpop.f32.mrb[0].mxu0
        %995 = vmatprep.mubr.f32.mxu0 0.0
        %996 = vmatmul.mubr.f32.gmra.mrb[0].mxu0 %v394
        %v997 = vpop.f32.mrb[0].mxu0
        %v998 = vadd.f32 %v449, %v997
        %v999 = vpop.f32.mrb[0].mxu0
        %1000 = vmatprep.mubr.f32.mxu0 0.0
        %1001 = vmatmul.mubr.f32.gmra.mrb[0].mxu0 %v395
        %v1002 = vpop.f32.mrb[0].mxu0
        %v1003 = vadd.f32 %v454, %v1002
        %v1004 = vpop.f32.mrb[0].mxu0
        %1005 = vmatprep.mubr.f32.mxu0 0.0
        %1006 = vmatmul.mubr.f32.gmra.mrb[0].mxu0 %v396
        %v1007 = vpop.f32.mrb[0].mxu0
        %v1008 = vadd.f32 %v459, %v1007
        %v1009 = vpop.f32.mrb[0].mxu0
        %1010 = vdwg.mxu0
        %v1011 = vmul.f32 %v973, 0.1
        %v1012 = vmul.f32 %v978, 0.1
        %v1013 = vmul.f32 %v983, 0.1
        %v1014 = vmul.f32 %v988, 0.1
        %v1015 = vmul.f32 %v993, 0.1
        %v1016 = vmul.f32 %v998, 0.1
        %v1017 = vmul.f32 %v1003, 0.1
        %v1018 = vmul.f32 %v1008, 0.1
        %v1019 = vmax.f32 %v973, %v1011
        %v1020 = vmax.f32 %v978, %v1012
        %v1021 = vmax.f32 %v983, %v1013
        %v1022 = vmax.f32 %v988, %v1014
        %v1023 = vmax.f32 %v993, %v1015
        %v1024 = vmax.f32 %v998, %v1016
        %v1025 = vmax.f32 %v1003, %v1017
        %v1026 = vmax.f32 %v1008, %v1018
        %vm1027 = vcmask 523264
        %1028 = vst.msk [vmem:[#allocation2 + $0x8] sm:$0xff] %vm1027, %v1019
        %1029 = vst.msk [vmem:[#allocation2 + $0x28] sm:$0xff] %vm1027, %v1020
        %1030 = vst.msk [vmem:[#allocation2 + $0x48] sm:$0xff] %vm1027, %v1021
        %1031 = vst.msk [vmem:[#allocation2 + $0x68] sm:$0xff] %vm1027, %v1022
        %1032 = vst.msk [vmem:[#allocation2 + $0x88] sm:$0xff] %vm1027, %v1023
        %1033 = vst.msk [vmem:[#allocation2 + $0xa8] sm:$0xff] %vm1027, %v1024
        %1034 = vst.msk [vmem:[#allocation2 + $0xc8] sm:$0xff] %vm1027, %v1025
        %1035 = vst.msk [vmem:[#allocation2 + $0xe8] sm:$0xff] %vm1027, %v1026
        %v1036 = vld [vmem:[%s330] sm:$0xff]
        %v1037 = vld [vmem:[%s330 + $0x8] sm:$0xff]
        %v1038 = vld [vmem:[%s330 + $0x10] sm:$0xff]
        %v1039 = vld [vmem:[%s330 + $0x18] sm:$0xff]
        %v1040 = vld [vmem:[%s330 + $0x20] sm:$0xff]
        %v1041 = vld [vmem:[%s330 + $0x28] sm:$0xff]
        %v1042 = vld [vmem:[%s330 + $0x30] sm:$0xff]
        %v1043 = vld [vmem:[%s330 + $0x38] sm:$0xff]
        %v1044 = vld [vmem:[%s330 + $0x40] sm:$0xff]
        %v1045 = vld [vmem:[%s330 + $0x48] sm:$0xff]
        %v1046 = vld [vmem:[%s330 + $0x50] sm:$0xff]
        %v1047 = vld [vmem:[%s330 + $0x58] sm:$0xff]
        %v1048 = vld [vmem:[%s330 + $0x60] sm:$0xff]
        %v1049 = vld [vmem:[%s330 + $0x68] sm:$0xff]
        %v1050 = vld [vmem:[%s330 + $0x70] sm:$0xff]
        %v1051 = vld [vmem:[%s330 + $0x78] sm:$0xff]
        %1068 = vrot.lane.b32.xlu0 %v1036, 64
        %v1069 = vpop.permute.xlu0 %1068
        %1070 = vrot.lane.b32.xlu0 %v1037, 64
        %v1071 = vpop.permute.xlu0 %1070
        %1072 = vrot.lane.b32.xlu0 %v1038, 64
        %v1073 = vpop.permute.xlu0 %1072
        %1074 = vrot.lane.b32.xlu0 %v1039, 64
        %v1075 = vpop.permute.xlu0 %1074
        %1076 = vrot.lane.b32.xlu0 %v1040, 64
        %v1077 = vpop.permute.xlu0 %1076
        %1078 = vrot.lane.b32.xlu0 %v1041, 64
        %v1079 = vpop.permute.xlu0 %1078
        %1080 = vrot.lane.b32.xlu0 %v1042, 64
        %v1081 = vpop.permute.xlu0 %1080
        %1082 = vrot.lane.b32.xlu0 %v1043, 64
        %v1083 = vpop.permute.xlu0 %1082
        %1084 = vrot.lane.b32.xlu0 %v1044, 64
        %v1085 = vpop.permute.xlu0 %1084
        %1086 = vrot.lane.b32.xlu0 %v1045, 64
        %v1087 = vpop.permute.xlu0 %1086
        %1088 = vrot.lane.b32.xlu0 %v1046, 64
        %v1089 = vpop.permute.xlu0 %1088
        %1090 = vrot.lane.b32.xlu0 %v1047, 64
        %v1091 = vpop.permute.xlu0 %1090
        %1092 = vrot.lane.b32.xlu0 %v1048, 64
        %v1093 = vpop.permute.xlu0 %1092
        %1094 = vrot.lane.b32.xlu0 %v1049, 64
        %v1095 = vpop.permute.xlu0 %1094
        %1096 = vrot.lane.b32.xlu0 %v1050, 64
        %v1097 = vpop.permute.xlu0 %1096
        %1098 = vrot.lane.b32.xlu0 %v1051, 64
        %v1099 = vpop.permute.xlu0 %1098
        %1116 = vmatprep.subr.mxu0 0.0
        %1117 = vmatpush1.msra.mxu0 %v1069
        %1118 = vmatprep.subr.mxu0 0.0
        %1119 = vmatpush1.msra.mxu0 %v1071
        %1120 = vmatprep.subr.mxu0 0.0
        %1121 = vmatpush1.msra.mxu0 %v1073
        %1122 = vmatprep.subr.mxu0 0.0
        %1123 = vmatpush1.msra.mxu0 %v1075
        %1124 = vmatprep.subr.mxu0 0.0
        %1125 = vmatpush1.msra.mxu0 %v1077
        %1126 = vmatprep.subr.mxu0 0.0
        %1127 = vmatpush1.msra.mxu0 %v1079
        %1128 = vmatprep.subr.mxu0 0.0
        %1129 = vmatpush1.msra.mxu0 %v1081
        %1130 = vmatprep.subr.mxu0 0.0
        %1131 = vmatpush1.msra.mxu0 %v1083
        %1132 = vmatprep.subr.mxu0 0.0
        %1133 = vmatpush1.msra.mxu0 %v1085
        %1134 = vmatprep.subr.mxu0 0.0
        %1135 = vmatpush1.msra.mxu0 %v1087
        %1136 = vmatprep.subr.mxu0 0.0
        %1137 = vmatpush1.msra.mxu0 %v1089
        %1138 = vmatprep.subr.mxu0 0.0
        %1139 = vmatpush1.msra.mxu0 %v1091
        %1140 = vmatprep.subr.mxu0 0.0
        %1141 = vmatpush1.msra.mxu0 %v1093
        %1142 = vmatprep.subr.mxu0 0.0
        %1143 = vmatpush1.msra.mxu0 %v1095
        %1144 = vmatprep.subr.mxu0 0.0
        %1145 = vmatpush1.msra.mxu0 %v1097
        %1146 = vmatprep.subr.mxu0 0.0
        %1147 = vmatpush1.msra.mxu0 %v1099
        %1148 = vmatprep.subr.mxu0 0.0
        %1149 = vmatpush1.msra.mxu0 0.0
        %1150 = vmatprep.subr.mxu0 0.0
        %1151 = vmatpush1.msra.mxu0 0.0
        %1152 = vmatprep.subr.mxu0 0.0
        %1153 = vmatpush1.msra.mxu0 0.0
        %1154 = vmatprep.subr.mxu0 0.0
        %1155 = vmatpush1.msra.mxu0 0.0
        %1156 = vmatprep.subr.mxu0 0.0
        %1157 = vmatpush1.msra.mxu0 0.0
        %1158 = vmatprep.subr.mxu0 0.0
        %1159 = vmatpush1.msra.mxu0 0.0
        %1160 = vmatprep.subr.mxu0 0.0
        %1161 = vmatpush1.msra.mxu0 0.0
        %1162 = vmatprep.subr.mxu0 0.0
        %1163 = vmatpush1.msra.mxu0 0.0
        %1164 = vmatprep.subr.mxu0 0.0
        %1165 = vmatpush1.msra.mxu0 0.0
        %1166 = vmatprep.subr.mxu0 0.0
        %1167 = vmatpush1.msra.mxu0 0.0
        %1168 = vmatprep.subr.mxu0 0.0
        %1169 = vmatpush1.msra.mxu0 0.0
        %1170 = vmatprep.subr.mxu0 0.0
        %1171 = vmatpush1.msra.mxu0 0.0
        %1172 = vmatprep.subr.mxu0 0.0
        %1173 = vmatpush1.msra.mxu0 0.0
        %1174 = vmatprep.subr.mxu0 0.0
        %1175 = vmatpush1.msra.mxu0 0.0
        %1176 = vmatprep.subr.mxu0 0.0
        %1177 = vmatpush1.msra.mxu0 0.0
        %1178 = vmatprep.subr.mxu0 0.0
        %1179 = vmatpush1.msra.mxu0 0.0
        %1180 = vmatprep.mubr.f32.mxu0 0.0
        %1181 = vmatmul.mubr.f32.gmra.mrb[0].mxu0 %v389
        %v1182 = vpop.f32.mrb[0].mxu0
        %v1183 = vadd.f32 %v424, %v1182
        %v1184 = vpop.f32.mrb[0].mxu0
        %1185 = vmatprep.mubr.f32.mxu0 0.0
        %1186 = vmatmul.mubr.f32.gmra.mrb[0].mxu0 %v390
        %v1187 = vpop.f32.mrb[0].mxu0
        %v1188 = vadd.f32 %v429, %v1187
        %v1189 = vpop.f32.mrb[0].mxu0
        %1190 = vmatprep.mubr.f32.mxu0 0.0
        %1191 = vmatmul.mubr.f32.gmra.mrb[0].mxu0 %v391
        %v1192 = vpop.f32.mrb[0].mxu0
        %v1193 = vadd.f32 %v434, %v1192
        %v1194 = vpop.f32.mrb[0].mxu0
        %1195 = vmatprep.mubr.f32.mxu0 0.0
        %1196 = vmatmul.mubr.f32.gmra.mrb[0].mxu0 %v392
        %v1197 = vpop.f32.mrb[0].mxu0
        %v1198 = vadd.f32 %v439, %v1197
        %v1199 = vpop.f32.mrb[0].mxu0
        %1200 = vmatprep.mubr.f32.mxu0 0.0
        %1201 = vmatmul.mubr.f32.gmra.mrb[0].mxu0 %v393
        %v1202 = vpop.f32.mrb[0].mxu0
        %v1203 = vadd.f32 %v444, %v1202
        %v1204 = vpop.f32.mrb[0].mxu0
        %1205 = vmatprep.mubr.f32.mxu0 0.0
        %1206 = vmatmul.mubr.f32.gmra.mrb[0].mxu0 %v394
        %v1207 = vpop.f32.mrb[0].mxu0
        %v1208 = vadd.f32 %v449, %v1207
        %v1209 = vpop.f32.mrb[0].mxu0
        %1210 = vmatprep.mubr.f32.mxu0 0.0
        %1211 = vmatmul.mubr.f32.gmra.mrb[0].mxu0 %v395
        %v1212 = vpop.f32.mrb[0].mxu0
        %v1213 = vadd.f32 %v454, %v1212
        %v1214 = vpop.f32.mrb[0].mxu0
        %1215 = vmatprep.mubr.f32.mxu0 0.0
        %1216 = vmatmul.mubr.f32.gmra.mrb[0].mxu0 %v396
        %v1217 = vpop.f32.mrb[0].mxu0
        %v1218 = vadd.f32 %v459, %v1217
        %v1219 = vpop.f32.mrb[0].mxu0
        %1220 = vdwg.mxu0
        %v1221 = vmul.f32 %v1183, 0.1
        %v1222 = vmul.f32 %v1188, 0.1
        %v1223 = vmul.f32 %v1193, 0.1
        %v1224 = vmul.f32 %v1198, 0.1
        %v1225 = vmul.f32 %v1203, 0.1
        %v1226 = vmul.f32 %v1208, 0.1
        %v1227 = vmul.f32 %v1213, 0.1
        %v1228 = vmul.f32 %v1218, 0.1
        %v1229 = vmax.f32 %v1183, %v1221
        %v1230 = vmax.f32 %v1188, %v1222
        %v1231 = vmax.f32 %v1193, %v1223
        %v1232 = vmax.f32 %v1198, %v1224
        %v1233 = vmax.f32 %v1203, %v1225
        %v1234 = vmax.f32 %v1208, %v1226
        %v1235 = vmax.f32 %v1213, %v1227
        %v1236 = vmax.f32 %v1218, %v1228
        %1245 = vrot.lane.b32.xlu0 %v1229, 64
        %v1246 = vpop.permute.xlu0 %1245
        %1247 = vrot.lane.b32.xlu0 %v1230, 64
        %v1248 = vpop.permute.xlu0 %1247
        %1249 = vrot.lane.b32.xlu0 %v1231, 64
        %v1250 = vpop.permute.xlu0 %1249
        %1251 = vrot.lane.b32.xlu0 %v1232, 64
        %v1252 = vpop.permute.xlu0 %1251
        %1253 = vrot.lane.b32.xlu0 %v1233, 64
        %v1254 = vpop.permute.xlu0 %1253
        %1255 = vrot.lane.b32.xlu0 %v1234, 64
        %v1256 = vpop.permute.xlu0 %1255
        %1257 = vrot.lane.b32.xlu0 %v1235, 64
        %v1258 = vpop.permute.xlu0 %1257
        %1259 = vrot.lane.b32.xlu0 %v1236, 64
        %v1260 = vpop.permute.xlu0 %1259
        %vm1269 = vcmask 1048064
        %1270 = vst.msk [vmem:[#allocation2 + $0x8] sm:$0xff] %vm1269, %v1246
        %1271 = vst.msk [vmem:[#allocation2 + $0x28] sm:$0xff] %vm1269, %v1248
        %1272 = vst.msk [vmem:[#allocation2 + $0x48] sm:$0xff] %vm1269, %v1250
        %1273 = vst.msk [vmem:[#allocation2 + $0x68] sm:$0xff] %vm1269, %v1252
        %1274 = vst.msk [vmem:[#allocation2 + $0x88] sm:$0xff] %vm1269, %v1254
        %1275 = vst.msk [vmem:[#allocation2 + $0xa8] sm:$0xff] %vm1269, %v1256
        %1276 = vst.msk [vmem:[#allocation2 + $0xc8] sm:$0xff] %vm1269, %v1258
        %1277 = vst.msk [vmem:[#allocation2 + $0xe8] sm:$0xff] %vm1269, %v1260
        %v1278 = vlaneseq
        %v1279 = vand.u32 %v1278, 127
        %vm1280 = vcmp.lt.s32.totalorder %v1279, 0
        %v1281 = vsub.s32 0, %v1279
        %v1282 = vsel %vm1280, %v1281, %v1279
        %v1283 = vshrl.u32 %v1282, 4
        %v1284 = vand.u32 %v1282, 15
        %v1285 = vsub.s32 0, %v1284
        %v1286 = vsel %vm1280, %v1285, %v1284
        %vm1287 = vcmp.ne.s32.totalorder %v1286, 0
        %vm1288 = vcmp.lt.s32.totalorder %v1286, 0
        %vm1289 = vmand %vm1288, %vm1287
        %v1290 = vadd.s32 %v1286, 16
        %v1291 = vsel %vm1289, %v1290, %v1286
        %vm1292 = vcmp.ne.s32.totalorder %v1291, 0
        %vm1293 = vcmp.ne.s32.totalorder %v1291, 15
        %v1294 = vld [vmem:[#allocation2] sm:$0xff]
        %v1295 = vld [vmem:[#allocation2 + $0x8] sm:$0xff]
        %v1296 = vld [vmem:[#allocation2 + $0x20] sm:$0xff]
        %v1297 = vld [vmem:[#allocation2 + $0x28] sm:$0xff]
        %v1298 = vld [vmem:[#allocation2 + $0x40] sm:$0xff]
        %v1299 = vld [vmem:[#allocation2 + $0x48] sm:$0xff]
        %v1300 = vld [vmem:[#allocation2 + $0x60] sm:$0xff]
        %v1301 = vld [vmem:[#allocation2 + $0x68] sm:$0xff]
        %v1302 = vld [vmem:[#allocation2 + $0x80] sm:$0xff]
        %v1303 = vld [vmem:[#allocation2 + $0x88] sm:$0xff]
        %v1304 = vld [vmem:[#allocation2 + $0xa0] sm:$0xff]
        %v1305 = vld [vmem:[#allocation2 + $0xa8] sm:$0xff]
        %v1306 = vld [vmem:[#allocation2 + $0xc0] sm:$0xff]
        %v1307 = vld [vmem:[#allocation2 + $0xc8] sm:$0xff]
        %v1308 = vld [vmem:[#allocation2 + $0xe0] sm:$0xff]
        %v1309 = vld [vmem:[#allocation2 + $0xe8] sm:$0xff]
        %v1310 = vsel %vm1292, 1, 0
        %vm1311 = vcmp.eq.s32.totalorder %v1310, 1
        %1328 = vrot.lane.b32.xlu0 %v1294, 17
        %v1329 = vpop.permute.xlu0 %1328
        %1330 = vrot.lane.b32.xlu0 %v1295, 17
        %v1331 = vpop.permute.xlu0 %1330
        %1332 = vrot.lane.b32.xlu0 %v1296, 17
        %v1333 = vpop.permute.xlu0 %1332
        %1334 = vrot.lane.b32.xlu0 %v1297, 17
        %v1335 = vpop.permute.xlu0 %1334
        %1336 = vrot.lane.b32.xlu0 %v1298, 17
        %v1337 = vpop.permute.xlu0 %1336
        %1338 = vrot.lane.b32.xlu0 %v1299, 17
        %v1339 = vpop.permute.xlu0 %1338
        %1340 = vrot.lane.b32.xlu0 %v1300, 17
        %v1341 = vpop.permute.xlu0 %1340
        %1342 = vrot.lane.b32.xlu0 %v1301, 17
        %v1343 = vpop.permute.xlu0 %1342
        %1344 = vrot.lane.b32.xlu0 %v1302, 17
        %v1345 = vpop.permute.xlu0 %1344
        %1346 = vrot.lane.b32.xlu0 %v1303, 17
        %v1347 = vpop.permute.xlu0 %1346
        %1348 = vrot.lane.b32.xlu0 %v1304, 17
        %v1349 = vpop.permute.xlu0 %1348
        %1350 = vrot.lane.b32.xlu0 %v1305, 17
        %v1351 = vpop.permute.xlu0 %1350
        %1352 = vrot.lane.b32.xlu0 %v1306, 17
        %v1353 = vpop.permute.xlu0 %1352
        %1354 = vrot.lane.b32.xlu0 %v1307, 17
        %v1355 = vpop.permute.xlu0 %1354
        %1356 = vrot.lane.b32.xlu0 %v1308, 17
        %v1357 = vpop.permute.xlu0 %1356
        %1358 = vrot.lane.b32.xlu0 %v1309, 17
        %v1359 = vpop.permute.xlu0 %1358
        %vm1360 = vcmask 138240
        %v1361 = vsel %vm1360, %v1329, %v1331
        %v1362 = vsel %vm1360, %v1333, %v1335
        %v1363 = vsel %vm1360, %v1337, %v1339
        %v1364 = vsel %vm1360, %v1341, %v1343
        %v1365 = vsel %vm1360, %v1345, %v1347
        %v1366 = vsel %vm1360, %v1349, %v1351
        %v1367 = vsel %vm1360, %v1353, %v1355
        %v1368 = vsel %vm1360, %v1357, %v1359
        %v1377 = vsel %vm1311, %v1361, 0.0
        %v1378 = vsel %vm1311, %v1362, 0.0
        %v1379 = vsel %vm1311, %v1363, 0.0
        %v1380 = vsel %vm1311, %v1364, 0.0
        %v1381 = vsel %vm1311, %v1365, 0.0
        %v1382 = vsel %vm1311, %v1366, 0.0
        %v1383 = vsel %vm1311, %v1367, 0.0
        %v1384 = vsel %vm1311, %v1368, 0.0
        %v1385 = vld [vmem:[#allocation11] sm:$0xff]
        %v1386 = vld [vmem:[#allocation11 + $0x8] sm:$0xff]
        %v1387 = vld [vmem:[#allocation11 + $0x10] sm:$0xff]
        %v1388 = vld [vmem:[#allocation11 + $0x18] sm:$0xff]
        %v1389 = vld [vmem:[#allocation11 + $0x20] sm:$0xff]
        %v1390 = vld [vmem:[#allocation11 + $0x28] sm:$0xff]
        %v1391 = vld [vmem:[#allocation11 + $0x30] sm:$0xff]
        %v1392 = vld [vmem:[#allocation11 + $0x38] sm:$0xff]
        %v1393 = vld [vmem:[#allocation11 + $0x40] sm:$0xff]
        %v1394 = vld [vmem:[#allocation11 + $0x48] sm:$0xff]
        %v1395 = vld [vmem:[#allocation11 + $0x50] sm:$0xff]
        %v1396 = vld [vmem:[#allocation11 + $0x58] sm:$0xff]
        %v1397 = vld [vmem:[#allocation11 + $0x60] sm:$0xff]
        %v1398 = vld [vmem:[#allocation11 + $0x68] sm:$0xff]
        %v1399 = vld [vmem:[#allocation11 + $0x70] sm:$0xff]
        %v1400 = vld [vmem:[#allocation11 + $0x78] sm:$0xff]
        %v1402 = vsel %vm1027, %v1385, 0
        %v1405 = vsel %vm1027, %v1386, 0
        %v1408 = vsel %vm1027, %v1387, 0
        %v1411 = vsel %vm1027, %v1388, 0
        %v1414 = vsel %vm1027, %v1389, 0
        %v1417 = vsel %vm1027, %v1390, 0
        %v1420 = vsel %vm1027, %v1391, 0
        %v1423 = vsel %vm1027, %v1392, 0
        %v1426 = vsel %vm1027, %v1393, 0
        %v1429 = vsel %vm1027, %v1394, 0
        %v1432 = vsel %vm1027, %v1395, 0
        %v1435 = vsel %vm1027, %v1396, 0
        %v1438 = vsel %vm1027, %v1397, 0
        %v1441 = vsel %vm1027, %v1398, 0
        %v1444 = vsel %vm1027, %v1399, 0
        %v1447 = vsel %vm1027, %v1400, 0
        %1449 = vmatprep.subr.mxu0 0.0
        %1450 = vmatpush1.msra.mxu0 %v1377
        %1451 = vmatprep.subr.mxu0 0.0
        %1452 = vmatpush1.msra.mxu0 %v1378
        %1453 = vmatprep.subr.mxu0 0.0
        %1454 = vmatpush1.msra.mxu0 %v1379
        %1455 = vmatprep.subr.mxu0 0.0
        %1456 = vmatpush1.msra.mxu0 %v1380
        %1457 = vmatprep.subr.mxu0 0.0
        %1458 = vmatpush1.msra.mxu0 %v1381
        %1459 = vmatprep.subr.mxu0 0.0
        %1460 = vmatpush1.msra.mxu0 %v1382
        %1461 = vmatprep.subr.mxu0 0.0
        %1462 = vmatpush1.msra.mxu0 %v1383
        %1463 = vmatprep.subr.mxu0 0.0
        %1464 = vmatpush1.msra.mxu0 %v1384
        %1465 = vmatprep.subr.mxu0 0.0
        %1466 = vmatpush1.msra.mxu0 0.0
        %1467 = vmatprep.subr.mxu0 0.0
        %1468 = vmatpush1.msra.mxu0 0.0
        %1469 = vmatprep.subr.mxu0 0.0
        %1470 = vmatpush1.msra.mxu0 0.0
        %1471 = vmatprep.subr.mxu0 0.0
        %1472 = vmatpush1.msra.mxu0 0.0
        %1473 = vmatprep.subr.mxu0 0.0
        %1474 = vmatpush1.msra.mxu0 0.0
        %1475 = vmatprep.subr.mxu0 0.0
        %1476 = vmatpush1.msra.mxu0 0.0
        %1477 = vmatprep.subr.mxu0 0.0
        %1478 = vmatpush1.msra.mxu0 0.0
        %1479 = vmatprep.subr.mxu0 0.0
        %1480 = vmatpush1.msra.mxu0 0.0
        %1481 = vmatprep.subr.mxu0 0.0
        %1482 = vmatpush1.msra.mxu0 0.0
        %1483 = vmatprep.subr.mxu0 0.0
        %1484 = vmatpush1.msra.mxu0 0.0
        %1485 = vmatprep.subr.mxu0 0.0
        %1486 = vmatpush1.msra.mxu0 0.0
        %1487 = vmatprep.subr.mxu0 0.0
        %1488 = vmatpush1.msra.mxu0 0.0
        %1489 = vmatprep.subr.mxu0 0.0
        %1490 = vmatpush1.msra.mxu0 0.0
        %1491 = vmatprep.subr.mxu0 0.0
        %1492 = vmatpush1.msra.mxu0 0.0
        %1493 = vmatprep.subr.mxu0 0.0
        %1494 = vmatpush1.msra.mxu0 0.0
        %1495 = vmatprep.subr.mxu0 0.0
        %1496 = vmatpush1.msra.mxu0 0.0
        %1497 = vmatprep.subr.mxu0 0.0
        %1498 = vmatpush1.msra.mxu0 0.0
        %1499 = vmatprep.subr.mxu0 0.0
        %1500 = vmatpush1.msra.mxu0 0.0
        %1501 = vmatprep.subr.mxu0 0.0
        %1502 = vmatpush1.msra.mxu0 0.0
        %1503 = vmatprep.subr.mxu0 0.0
        %1504 = vmatpush1.msra.mxu0 0.0
        %1505 = vmatprep.subr.mxu0 0.0
        %1506 = vmatpush1.msra.mxu0 0.0
        %1507 = vmatprep.subr.mxu0 0.0
        %1508 = vmatpush1.msra.mxu0 0.0
        %1509 = vmatprep.subr.mxu0 0.0
        %1510 = vmatpush1.msra.mxu0 0.0
        %1511 = vmatprep.subr.mxu0 0.0
        %1512 = vmatpush1.msra.mxu0 0.0
        %1513 = vmatprep.mubr.f32.mxu0 0.0
        %1514 = vmatmul.mubr.f32.gmra.mrb[0].mxu0 %v1402
        %v1515 = vpop.f32.mrb[0].mxu0
        %v1516 = vadd.f32 0.0, %v1515
        %v1517 = vpop.f32.mrb[0].mxu0
        %1518 = vmatprep.mubr.f32.mxu0 0.0
        %1519 = vmatmul.mubr.f32.gmra.mrb[0].mxu0 %v1405
        %v1520 = vpop.f32.mrb[0].mxu0
        %v1521 = vadd.f32 0.0, %v1520
        %v1522 = vpop.f32.mrb[0].mxu0
        %1523 = vmatprep.mubr.f32.mxu0 0.0
        %1524 = vmatmul.mubr.f32.gmra.mrb[0].mxu0 %v1408
        %v1525 = vpop.f32.mrb[0].mxu0
        %v1526 = vadd.f32 0.0, %v1525
        %v1527 = vpop.f32.mrb[0].mxu0
        %1528 = vmatprep.mubr.f32.mxu0 0.0
        %1529 = vmatmul.mubr.f32.gmra.mrb[0].mxu0 %v1411
        %v1530 = vpop.f32.mrb[0].mxu0
        %v1531 = vadd.f32 0.0, %v1530
        %v1532 = vpop.f32.mrb[0].mxu0
        %1533 = vmatprep.mubr.f32.mxu0 0.0
        %1534 = vmatmul.mubr.f32.gmra.mrb[0].mxu0 %v1414
        %v1535 = vpop.f32.mrb[0].mxu0
        %v1536 = vadd.f32 0.0, %v1535
        %v1537 = vpop.f32.mrb[0].mxu0
        %1538 = vmatprep.mubr.f32.mxu0 0.0
        %1539 = vmatmul.mubr.f32.gmra.mrb[0].mxu0 %v1417
        %v1540 = vpop.f32.mrb[0].mxu0
        %v1541 = vadd.f32 0.0, %v1540
        %v1542 = vpop.f32.mrb[0].mxu0
        %1543 = vmatprep.mubr.f32.mxu0 0.0
        %1544 = vmatmul.mubr.f32.gmra.mrb[0].mxu0 %v1420
        %v1545 = vpop.f32.mrb[0].mxu0
        %v1546 = vadd.f32 0.0, %v1545
        %v1547 = vpop.f32.mrb[0].mxu0
        %1548 = vmatprep.mubr.f32.mxu0 0.0
        %1549 = vmatmul.mubr.f32.gmra.mrb[0].mxu0 %v1423
        %v1550 = vpop.f32.mrb[0].mxu0
        %v1551 = vadd.f32 0.0, %v1550
        %v1552 = vpop.f32.mrb[0].mxu0
        %1553 = vmatprep.mubr.f32.mxu0 0.0
        %1554 = vmatmul.mubr.f32.gmra.mrb[0].mxu0 %v1426
        %v1555 = vpop.f32.mrb[0].mxu0
        %v1556 = vadd.f32 0.0, %v1555
        %v1557 = vpop.f32.mrb[0].mxu0
        %1558 = vmatprep.mubr.f32.mxu0 0.0
        %1559 = vmatmul.mubr.f32.gmra.mrb[0].mxu0 %v1429
        %v1560 = vpop.f32.mrb[0].mxu0
        %v1561 = vadd.f32 0.0, %v1560
        %v1562 = vpop.f32.mrb[0].mxu0
        %1563 = vmatprep.mubr.f32.mxu0 0.0
        %1564 = vmatmul.mubr.f32.gmra.mrb[0].mxu0 %v1432
        %v1565 = vpop.f32.mrb[0].mxu0
        %v1566 = vadd.f32 0.0, %v1565
        %v1567 = vpop.f32.mrb[0].mxu0
        %1568 = vmatprep.mubr.f32.mxu0 0.0
        %1569 = vmatmul.mubr.f32.gmra.mrb[0].mxu0 %v1435
        %v1570 = vpop.f32.mrb[0].mxu0
        %v1571 = vadd.f32 0.0, %v1570
        %v1572 = vpop.f32.mrb[0].mxu0
        %1573 = vmatprep.mubr.f32.mxu0 0.0
        %1574 = vmatmul.mubr.f32.gmra.mrb[0].mxu0 %v1438
        %v1575 = vpop.f32.mrb[0].mxu0
        %v1576 = vadd.f32 0.0, %v1575
        %v1577 = vpop.f32.mrb[0].mxu0
        %1578 = vmatprep.mubr.f32.mxu0 0.0
        %1579 = vmatmul.mubr.f32.gmra.mrb[0].mxu0 %v1441
        %v1580 = vpop.f32.mrb[0].mxu0
        %v1581 = vadd.f32 0.0, %v1580
        %v1582 = vpop.f32.mrb[0].mxu0
        %1583 = vmatprep.mubr.f32.mxu0 0.0
        %1584 = vmatmul.mubr.f32.gmra.mrb[0].mxu0 %v1444
        %v1585 = vpop.f32.mrb[0].mxu0
        %v1586 = vadd.f32 0.0, %v1585
        %v1587 = vpop.f32.mrb[0].mxu0
        %1588 = vmatprep.mubr.f32.mxu0 0.0
        %1589 = vmatmul.mubr.f32.gmra.mrb[0].mxu0 %v1447
        %v1590 = vpop.f32.mrb[0].mxu0
        %v1591 = vadd.f32 0.0, %v1590
        %v1592 = vpop.f32.mrb[0].mxu0
        %1593 = vdwg.mxu0
        %v1594 = vadd.f32 %v464, %v1516
        %v1595 = vadd.f32 %v469, %v1521
        %v1596 = vadd.f32 %v474, %v1526
        %v1597 = vadd.f32 %v479, %v1531
        %v1598 = vadd.f32 %v484, %v1536
        %v1599 = vadd.f32 %v489, %v1541
        %v1600 = vadd.f32 %v494, %v1546
        %v1601 = vadd.f32 %v499, %v1551
        %v1602 = vadd.f32 %v504, %v1556
        %v1603 = vadd.f32 %v509, %v1561
        %v1604 = vadd.f32 %v514, %v1566
        %v1605 = vadd.f32 %v519, %v1571
        %v1606 = vadd.f32 %v524, %v1576
        %v1607 = vadd.f32 %v529, %v1581
        %v1608 = vadd.f32 %v534, %v1586
        %v1609 = vadd.f32 %v539, %v1591
        %s1610 = scalar_lea.vmem [#allocation11], 128
        %v1611 = vld [vmem:[%s1610] sm:$0xff]
        %v1612 = vld [vmem:[%s1610 + $0x8] sm:$0xff]
        %v1613 = vld [vmem:[%s1610 + $0x10] sm:$0xff]
        %v1614 = vld [vmem:[%s1610 + $0x18] sm:$0xff]
        %v1615 = vld [vmem:[%s1610 + $0x20] sm:$0xff]
        %v1616 = vld [vmem:[%s1610 + $0x28] sm:$0xff]
        %v1617 = vld [vmem:[%s1610 + $0x30] sm:$0xff]
        %v1618 = vld [vmem:[%s1610 + $0x38] sm:$0xff]
        %v1619 = vld [vmem:[%s1610 + $0x40] sm:$0xff]
        %v1620 = vld [vmem:[%s1610 + $0x48] sm:$0xff]
        %v1621 = vld [vmem:[%s1610 + $0x50] sm:$0xff]
        %v1622 = vld [vmem:[%s1610 + $0x58] sm:$0xff]
        %v1623 = vld [vmem:[%s1610 + $0x60] sm:$0xff]
        %v1624 = vld [vmem:[%s1610 + $0x68] sm:$0xff]
        %v1625 = vld [vmem:[%s1610 + $0x70] sm:$0xff]
        %v1626 = vld [vmem:[%s1610 + $0x78] sm:$0xff]
        %1627 = vrot.lane.b32.xlu0 %v1294, 16
        %v1628 = vpop.permute.xlu0 %1627
        %1629 = vrot.lane.b32.xlu0 %v1295, 16
        %v1630 = vpop.permute.xlu0 %1629
        %1631 = vrot.lane.b32.xlu0 %v1296, 16
        %v1632 = vpop.permute.xlu0 %1631
        %1633 = vrot.lane.b32.xlu0 %v1297, 16
        %v1634 = vpop.permute.xlu0 %1633
        %1635 = vrot.lane.b32.xlu0 %v1298, 16
        %v1636 = vpop.permute.xlu0 %1635
        %1637 = vrot.lane.b32.xlu0 %v1299, 16
        %v1638 = vpop.permute.xlu0 %1637
        %1639 = vrot.lane.b32.xlu0 %v1300, 16
        %v1640 = vpop.permute.xlu0 %1639
        %1641 = vrot.lane.b32.xlu0 %v1301, 16
        %v1642 = vpop.permute.xlu0 %1641
        %1643 = vrot.lane.b32.xlu0 %v1302, 16
        %v1644 = vpop.permute.xlu0 %1643
        %1645 = vrot.lane.b32.xlu0 %v1303, 16
        %v1646 = vpop.permute.xlu0 %1645
        %1647 = vrot.lane.b32.xlu0 %v1304, 16
        %v1648 = vpop.permute.xlu0 %1647
        %1649 = vrot.lane.b32.xlu0 %v1305, 16
        %v1650 = vpop.permute.xlu0 %1649
        %1651 = vrot.lane.b32.xlu0 %v1306, 16
        %v1652 = vpop.permute.xlu0 %1651
        %1653 = vrot.lane.b32.xlu0 %v1307, 16
        %v1654 = vpop.permute.xlu0 %1653
        %1655 = vrot.lane.b32.xlu0 %v1308, 16
        %v1656 = vpop.permute.xlu0 %1655
        %1657 = vrot.lane.b32.xlu0 %v1309, 16
        %v1658 = vpop.permute.xlu0 %1657
        %v1659 = vsel %vm881, %v1628, %v1630
        %v1660 = vsel %vm881, %v1632, %v1634
        %v1661 = vsel %vm881, %v1636, %v1638
        %v1662 = vsel %vm881, %v1640, %v1642
        %v1663 = vsel %vm881, %v1644, %v1646
        %v1664 = vsel %vm881, %v1648, %v1650
        %v1665 = vsel %vm881, %v1652, %v1654
        %v1666 = vsel %vm881, %v1656, %v1658
        %v1676 = vsel %vm1027, %v1611, 0
        %v1679 = vsel %vm1027, %v1612, 0
        %v1682 = vsel %vm1027, %v1613, 0
        %v1685 = vsel %vm1027, %v1614, 0
        %v1688 = vsel %vm1027, %v1615, 0
        %v1691 = vsel %vm1027, %v1616, 0
        %v1694 = vsel %vm1027, %v1617, 0
        %v1697 = vsel %vm1027, %v1618, 0
        %v1700 = vsel %vm1027, %v1619, 0
        %v1703 = vsel %vm1027, %v1620, 0
        %v1706 = vsel %vm1027, %v1621, 0
        %v1709 = vsel %vm1027, %v1622, 0
        %v1712 = vsel %vm1027, %v1623, 0
        %v1715 = vsel %vm1027, %v1624, 0
        %v1718 = vsel %vm1027, %v1625, 0
        %v1721 = vsel %vm1027, %v1626, 0
        %1723 = vmatprep.subr.mxu0 0.0
        %1724 = vmatpush1.msra.mxu0 %v1659
        %1725 = vmatprep.subr.mxu0 0.0
        %1726 = vmatpush1.msra.mxu0 %v1660
        %1727 = vmatprep.subr.mxu0 0.0
        %1728 = vmatpush1.msra.mxu0 %v1661
        %1729 = vmatprep.subr.mxu0 0.0
        %1730 = vmatpush1.msra.mxu0 %v1662
        %1731 = vmatprep.subr.mxu0 0.0
        %1732 = vmatpush1.msra.mxu0 %v1663
        %1733 = vmatprep.subr.mxu0 0.0
        %1734 = vmatpush1.msra.mxu0 %v1664
        %1735 = vmatprep.subr.mxu0 0.0
        %1736 = vmatpush1.msra.mxu0 %v1665
        %1737 = vmatprep.subr.mxu0 0.0
        %1738 = vmatpush1.msra.mxu0 %v1666
        %1739 = vmatprep.subr.mxu0 0.0
        %1740 = vmatpush1.msra.mxu0 0.0
        %1741 = vmatprep.subr.mxu0 0.0
        %1742 = vmatpush1.msra.mxu0 0.0
        %1743 = vmatprep.subr.mxu0 0.0
        %1744 = vmatpush1.msra.mxu0 0.0
        %1745 = vmatprep.subr.mxu0 0.0
        %1746 = vmatpush1.msra.mxu0 0.0
        %1747 = vmatprep.subr.mxu0 0.0
        %1748 = vmatpush1.msra.mxu0 0.0
        %1749 = vmatprep.subr.mxu0 0.0
        %1750 = vmatpush1.msra.mxu0 0.0
        %1751 = vmatprep.subr.mxu0 0.0
        %1752 = vmatpush1.msra.mxu0 0.0
        %1753 = vmatprep.subr.mxu0 0.0
        %1754 = vmatpush1.msra.mxu0 0.0
        %1755 = vmatprep.subr.mxu0 0.0
        %1756 = vmatpush1.msra.mxu0 0.0
        %1757 = vmatprep.subr.mxu0 0.0
        %1758 = vmatpush1.msra.mxu0 0.0
        %1759 = vmatprep.subr.mxu0 0.0
        %1760 = vmatpush1.msra.mxu0 0.0
        %1761 = vmatprep.subr.mxu0 0.0
        %1762 = vmatpush1.msra.mxu0 0.0
        %1763 = vmatprep.subr.mxu0 0.0
        %1764 = vmatpush1.msra.mxu0 0.0
        %1765 = vmatprep.subr.mxu0 0.0
        %1766 = vmatpush1.msra.mxu0 0.0
        %1767 = vmatprep.subr.mxu0 0.0
        %1768 = vmatpush1.msra.mxu0 0.0
        %1769 = vmatprep.subr.mxu0 0.0
        %1770 = vmatpush1.msra.mxu0 0.0
        %1771 = vmatprep.subr.mxu0 0.0
        %1772 = vmatpush1.msra.mxu0 0.0
        %1773 = vmatprep.subr.mxu0 0.0
        %1774 = vmatpush1.msra.mxu0 0.0
        %1775 = vmatprep.subr.mxu0 0.0
        %1776 = vmatpush1.msra.mxu0 0.0
        %1777 = vmatprep.subr.mxu0 0.0
        %1778 = vmatpush1.msra.mxu0 0.0
        %1779 = vmatprep.subr.mxu0 0.0
        %1780 = vmatpush1.msra.mxu0 0.0
        %1781 = vmatprep.subr.mxu0 0.0
        %1782 = vmatpush1.msra.mxu0 0.0
        %1783 = vmatprep.subr.mxu0 0.0
        %1784 = vmatpush1.msra.mxu0 0.0
        %1785 = vmatprep.subr.mxu0 0.0
        %1786 = vmatpush1.msra.mxu0 0.0
        %1787 = vmatprep.mubr.f32.mxu0 0.0
        %1788 = vmatmul.mubr.f32.gmra.mrb[0].mxu0 %v1676
        %v1789 = vpop.f32.mrb[0].mxu0
        %v1790 = vadd.f32 0.0, %v1789
        %v1791 = vpop.f32.mrb[0].mxu0
        %1792 = vmatprep.mubr.f32.mxu0 0.0
        %1793 = vmatmul.mubr.f32.gmra.mrb[0].mxu0 %v1679
        %v1794 = vpop.f32.mrb[0].mxu0
        %v1795 = vadd.f32 0.0, %v1794
        %v1796 = vpop.f32.mrb[0].mxu0
        %1797 = vmatprep.mubr.f32.mxu0 0.0
        %1798 = vmatmul.mubr.f32.gmra.mrb[0].mxu0 %v1682
        %v1799 = vpop.f32.mrb[0].mxu0
        %v1800 = vadd.f32 0.0, %v1799
        %v1801 = vpop.f32.mrb[0].mxu0
        %1802 = vmatprep.mubr.f32.mxu0 0.0
        %1803 = vmatmul.mubr.f32.gmra.mrb[0].mxu0 %v1685
        %v1804 = vpop.f32.mrb[0].mxu0
        %v1805 = vadd.f32 0.0, %v1804
        %v1806 = vpop.f32.mrb[0].mxu0
        %1807 = vmatprep.mubr.f32.mxu0 0.0
        %1808 = vmatmul.mubr.f32.gmra.mrb[0].mxu0 %v1688
        %v1809 = vpop.f32.mrb[0].mxu0
        %v1810 = vadd.f32 0.0, %v1809
        %v1811 = vpop.f32.mrb[0].mxu0
        %1812 = vmatprep.mubr.f32.mxu0 0.0
        %1813 = vmatmul.mubr.f32.gmra.mrb[0].mxu0 %v1691
        %v1814 = vpop.f32.mrb[0].mxu0
        %v1815 = vadd.f32 0.0, %v1814
        %v1816 = vpop.f32.mrb[0].mxu0
        %1817 = vmatprep.mubr.f32.mxu0 0.0
        %1818 = vmatmul.mubr.f32.gmra.mrb[0].mxu0 %v1694
        %v1819 = vpop.f32.mrb[0].mxu0
        %v1820 = vadd.f32 0.0, %v1819
        %v1821 = vpop.f32.mrb[0].mxu0
        %1822 = vmatprep.mubr.f32.mxu0 0.0
        %1823 = vmatmul.mubr.f32.gmra.mrb[0].mxu0 %v1697
        %v1824 = vpop.f32.mrb[0].mxu0
        %v1825 = vadd.f32 0.0, %v1824
        %v1826 = vpop.f32.mrb[0].mxu0
        %1827 = vmatprep.mubr.f32.mxu0 0.0
        %1828 = vmatmul.mubr.f32.gmra.mrb[0].mxu0 %v1700
        %v1829 = vpop.f32.mrb[0].mxu0
        %v1830 = vadd.f32 0.0, %v1829
        %v1831 = vpop.f32.mrb[0].mxu0
        %1832 = vmatprep.mubr.f32.mxu0 0.0
        %1833 = vmatmul.mubr.f32.gmra.mrb[0].mxu0 %v1703
        %v1834 = vpop.f32.mrb[0].mxu0
        %v1835 = vadd.f32 0.0, %v1834
        %v1836 = vpop.f32.mrb[0].mxu0
        %1837 = vmatprep.mubr.f32.mxu0 0.0
        %1838 = vmatmul.mubr.f32.gmra.mrb[0].mxu0 %v1706
        %v1839 = vpop.f32.mrb[0].mxu0
        %v1840 = vadd.f32 0.0, %v1839
        %v1841 = vpop.f32.mrb[0].mxu0
        %1842 = vmatprep.mubr.f32.mxu0 0.0
        %1843 = vmatmul.mubr.f32.gmra.mrb[0].mxu0 %v1709
        %v1844 = vpop.f32.mrb[0].mxu0
        %v1845 = vadd.f32 0.0, %v1844
        %v1846 = vpop.f32.mrb[0].mxu0
        %1847 = vmatprep.mubr.f32.mxu0 0.0
        %1848 = vmatmul.mubr.f32.gmra.mrb[0].mxu0 %v1712
        %v1849 = vpop.f32.mrb[0].mxu0
        %v1850 = vadd.f32 0.0, %v1849
        %v1851 = vpop.f32.mrb[0].mxu0
        %1852 = vmatprep.mubr.f32.mxu0 0.0
        %1853 = vmatmul.mubr.f32.gmra.mrb[0].mxu0 %v1715
        %v1854 = vpop.f32.mrb[0].mxu0
        %v1855 = vadd.f32 0.0, %v1854
        %v1856 = vpop.f32.mrb[0].mxu0
        %1857 = vmatprep.mubr.f32.mxu0 0.0
        %1858 = vmatmul.mubr.f32.gmra.mrb[0].mxu0 %v1718
        %v1859 = vpop.f32.mrb[0].mxu0
        %v1860 = vadd.f32 0.0, %v1859
        %v1861 = vpop.f32.mrb[0].mxu0
        %1862 = vmatprep.mubr.f32.mxu0 0.0
        %1863 = vmatmul.mubr.f32.gmra.mrb[0].mxu0 %v1721
        %v1864 = vpop.f32.mrb[0].mxu0
        %v1865 = vadd.f32 0.0, %v1864
        %v1866 = vpop.f32.mrb[0].mxu0
        %1867 = vdwg.mxu0
        %v1868 = vadd.f32 %v1594, %v1790
        %v1869 = vadd.f32 %v1595, %v1795
        %v1870 = vadd.f32 %v1596, %v1800
        %v1871 = vadd.f32 %v1597, %v1805
        %v1872 = vadd.f32 %v1598, %v1810
        %v1873 = vadd.f32 %v1599, %v1815
        %v1874 = vadd.f32 %v1600, %v1820
        %v1875 = vadd.f32 %v1601, %v1825
        %v1876 = vadd.f32 %v1602, %v1830
        %v1877 = vadd.f32 %v1603, %v1835
        %v1878 = vadd.f32 %v1604, %v1840
        %v1879 = vadd.f32 %v1605, %v1845
        %v1880 = vadd.f32 %v1606, %v1850
        %v1881 = vadd.f32 %v1607, %v1855
        %v1882 = vadd.f32 %v1608, %v1860
        %v1883 = vadd.f32 %v1609, %v1865
        %v1884 = vsel %vm1293, 1, 0
        %vm1885 = vcmp.eq.s32.totalorder %v1884, 1
        %1886 = vrot.lane.b32.xlu0 %v1294, 15
        %v1887 = vpop.permute.xlu0 %1886
        %1888 = vrot.lane.b32.xlu0 %v1295, 15
        %v1889 = vpop.permute.xlu0 %1888
        %1890 = vrot.lane.b32.xlu0 %v1296, 15
        %v1891 = vpop.permute.xlu0 %1890
        %1892 = vrot.lane.b32.xlu0 %v1297, 15
        %v1893 = vpop.permute.xlu0 %1892
        %1894 = vrot.lane.b32.xlu0 %v1298, 15
        %v1895 = vpop.permute.xlu0 %1894
        %1896 = vrot.lane.b32.xlu0 %v1299, 15
        %v1897 = vpop.permute.xlu0 %1896
        %1898 = vrot.lane.b32.xlu0 %v1300, 15
        %v1899 = vpop.permute.xlu0 %1898
        %1900 = vrot.lane.b32.xlu0 %v1301, 15
        %v1901 = vpop.permute.xlu0 %1900
        %1902 = vrot.lane.b32.xlu0 %v1302, 15
        %v1903 = vpop.permute.xlu0 %1902
        %1904 = vrot.lane.b32.xlu0 %v1303, 15
        %v1905 = vpop.permute.xlu0 %1904
        %1906 = vrot.lane.b32.xlu0 %v1304, 15
        %v1907 = vpop.permute.xlu0 %1906
        %1908 = vrot.lane.b32.xlu0 %v1305, 15
        %v1909 = vpop.permute.xlu0 %1908
        %1910 = vrot.lane.b32.xlu0 %v1306, 15
        %v1911 = vpop.permute.xlu0 %1910
        %1912 = vrot.lane.b32.xlu0 %v1307, 15
        %v1913 = vpop.permute.xlu0 %1912
        %1914 = vrot.lane.b32.xlu0 %v1308, 15
        %v1915 = vpop.permute.xlu0 %1914
        %1916 = vrot.lane.b32.xlu0 %v1309, 15
        %v1917 = vpop.permute.xlu0 %1916
        %vm1918 = vcmask 121856
        %v1919 = vsel %vm1918, %v1887, %v1889
        %v1920 = vsel %vm1918, %v1891, %v1893
        %v1921 = vsel %vm1918, %v1895, %v1897
        %v1922 = vsel %vm1918, %v1899, %v1901
        %v1923 = vsel %vm1918, %v1903, %v1905
        %v1924 = vsel %vm1918, %v1907, %v1909
        %v1925 = vsel %vm1918, %v1911, %v1913
        %v1926 = vsel %vm1918, %v1915, %v1917
        %v1935 = vsel %vm1885, %v1919, 0.0
        %v1936 = vsel %vm1885, %v1920, 0.0
        %v1937 = vsel %vm1885, %v1921, 0.0
        %v1938 = vsel %vm1885, %v1922, 0.0
        %v1939 = vsel %vm1885, %v1923, 0.0
        %v1940 = vsel %vm1885, %v1924, 0.0
        %v1941 = vsel %vm1885, %v1925, 0.0
        %v1942 = vsel %vm1885, %v1926, 0.0
        %s1943 = scalar_lea.vmem [#allocation11], 256
        %v1944 = vld [vmem:[%s1943] sm:$0xff]
        %v1945 = vld [vmem:[%s1943 + $0x8] sm:$0xff]
        %v1946 = vld [vmem:[%s1943 + $0x10] sm:$0xff]
        %v1947 = vld [vmem:[%s1943 + $0x18] sm:$0xff]
        %v1948 = vld [vmem:[%s1943 + $0x20] sm:$0xff]
        %v1949 = vld [vmem:[%s1943 + $0x28] sm:$0xff]
        %v1950 = vld [vmem:[%s1943 + $0x30] sm:$0xff]
        %v1951 = vld [vmem:[%s1943 + $0x38] sm:$0xff]
        %v1952 = vld [vmem:[%s1943 + $0x40] sm:$0xff]
        %v1953 = vld [vmem:[%s1943 + $0x48] sm:$0xff]
        %v1954 = vld [vmem:[%s1943 + $0x50] sm:$0xff]
        %v1955 = vld [vmem:[%s1943 + $0x58] sm:$0xff]
        %v1956 = vld [vmem:[%s1943 + $0x60] sm:$0xff]
        %v1957 = vld [vmem:[%s1943 + $0x68] sm:$0xff]
        %v1958 = vld [vmem:[%s1943 + $0x70] sm:$0xff]
        %v1959 = vld [vmem:[%s1943 + $0x78] sm:$0xff]
        %v1961 = vsel %vm1027, %v1944, 0
        %v1964 = vsel %vm1027, %v1945, 0
        %v1967 = vsel %vm1027, %v1946, 0
        %v1970 = vsel %vm1027, %v1947, 0
        %v1973 = vsel %vm1027, %v1948, 0
        %v1976 = vsel %vm1027, %v1949, 0
        %v1979 = vsel %vm1027, %v1950, 0
        %v1982 = vsel %vm1027, %v1951, 0
        %v1985 = vsel %vm1027, %v1952, 0
        %v1988 = vsel %vm1027, %v1953, 0
        %v1991 = vsel %vm1027, %v1954, 0
        %v1994 = vsel %vm1027, %v1955, 0
        %v1997 = vsel %vm1027, %v1956, 0
        %v2000 = vsel %vm1027, %v1957, 0
        %v2003 = vsel %vm1027, %v1958, 0
        %v2006 = vsel %vm1027, %v1959, 0
        %2008 = vmatprep.subr.mxu0 0.0
        %2009 = vmatpush1.msra.mxu0 %v1935
        %2010 = vmatprep.subr.mxu0 0.0
        %2011 = vmatpush1.msra.mxu0 %v1936
        %2012 = vmatprep.subr.mxu0 0.0
        %2013 = vmatpush1.msra.mxu0 %v1937
        %2014 = vmatprep.subr.mxu0 0.0
        %2015 = vmatpush1.msra.mxu0 %v1938
        %2016 = vmatprep.subr.mxu0 0.0
        %2017 = vmatpush1.msra.mxu0 %v1939
        %2018 = vmatprep.subr.mxu0 0.0
        %2019 = vmatpush1.msra.mxu0 %v1940
        %2020 = vmatprep.subr.mxu0 0.0
        %2021 = vmatpush1.msra.mxu0 %v1941
        %2022 = vmatprep.subr.mxu0 0.0
        %2023 = vmatpush1.msra.mxu0 %v1942
        %2024 = vmatprep.subr.mxu0 0.0
        %2025 = vmatpush1.msra.mxu0 0.0
        %2026 = vmatprep.subr.mxu0 0.0
        %2027 = vmatpush1.msra.mxu0 0.0
        %2028 = vmatprep.subr.mxu0 0.0
        %2029 = vmatpush1.msra.mxu0 0.0
        %2030 = vmatprep.subr.mxu0 0.0
        %2031 = vmatpush1.msra.mxu0 0.0
        %2032 = vmatprep.subr.mxu0 0.0
        %2033 = vmatpush1.msra.mxu0 0.0
        %2034 = vmatprep.subr.mxu0 0.0
        %2035 = vmatpush1.msra.mxu0 0.0
        %2036 = vmatprep.subr.mxu0 0.0
        %2037 = vmatpush1.msra.mxu0 0.0
        %2038 = vmatprep.subr.mxu0 0.0
        %2039 = vmatpush1.msra.mxu0 0.0
        %2040 = vmatprep.subr.mxu0 0.0
        %2041 = vmatpush1.msra.mxu0 0.0
        %2042 = vmatprep.subr.mxu0 0.0
        %2043 = vmatpush1.msra.mxu0 0.0
        %2044 = vmatprep.subr.mxu0 0.0
        %2045 = vmatpush1.msra.mxu0 0.0
        %2046 = vmatprep.subr.mxu0 0.0
        %2047 = vmatpush1.msra.mxu0 0.0
        %2048 = vmatprep.subr.mxu0 0.0
        %2049 = vmatpush1.msra.mxu0 0.0
        %2050 = vmatprep.subr.mxu0 0.0
        %2051 = vmatpush1.msra.mxu0 0.0
        %2052 = vmatprep.subr.mxu0 0.0
        %2053 = vmatpush1.msra.mxu0 0.0
        %2054 = vmatprep.subr.mxu0 0.0
        %2055 = vmatpush1.msra.mxu0 0.0
        %2056 = vmatprep.subr.mxu0 0.0
        %2057 = vmatpush1.msra.mxu0 0.0
        %2058 = vmatprep.subr.mxu0 0.0
        %2059 = vmatpush1.msra.mxu0 0.0
        %2060 = vmatprep.subr.mxu0 0.0
        %2061 = vmatpush1.msra.mxu0 0.0
        %2062 = vmatprep.subr.mxu0 0.0
        %2063 = vmatpush1.msra.mxu0 0.0
        %2064 = vmatprep.subr.mxu0 0.0
        %2065 = vmatpush1.msra.mxu0 0.0
        %2066 = vmatprep.subr.mxu0 0.0
        %2067 = vmatpush1.msra.mxu0 0.0
        %2068 = vmatprep.subr.mxu0 0.0
        %2069 = vmatpush1.msra.mxu0 0.0
        %2070 = vmatprep.subr.mxu0 0.0
        %2071 = vmatpush1.msra.mxu0 0.0
        %2072 = vmatprep.mubr.f32.mxu0 0.0
        %2073 = vmatmul.mubr.f32.gmra.mrb[0].mxu0 %v1961
        %v2074 = vpop.f32.mrb[0].mxu0
        %v2075 = vadd.f32 0.0, %v2074
        %v2076 = vpop.f32.mrb[0].mxu0
        %2077 = vmatprep.mubr.f32.mxu0 0.0
        %2078 = vmatmul.mubr.f32.gmra.mrb[0].mxu0 %v1964
        %v2079 = vpop.f32.mrb[0].mxu0
        %v2080 = vadd.f32 0.0, %v2079
        %v2081 = vpop.f32.mrb[0].mxu0
        %2082 = vmatprep.mubr.f32.mxu0 0.0
        %2083 = vmatmul.mubr.f32.gmra.mrb[0].mxu0 %v1967
        %v2084 = vpop.f32.mrb[0].mxu0
        %v2085 = vadd.f32 0.0, %v2084
        %v2086 = vpop.f32.mrb[0].mxu0
        %2087 = vmatprep.mubr.f32.mxu0 0.0
        %2088 = vmatmul.mubr.f32.gmra.mrb[0].mxu0 %v1970
        %v2089 = vpop.f32.mrb[0].mxu0
        %v2090 = vadd.f32 0.0, %v2089
        %v2091 = vpop.f32.mrb[0].mxu0
        %2092 = vmatprep.mubr.f32.mxu0 0.0
        %2093 = vmatmul.mubr.f32.gmra.mrb[0].mxu0 %v1973
        %v2094 = vpop.f32.mrb[0].mxu0
        %v2095 = vadd.f32 0.0, %v2094
        %v2096 = vpop.f32.mrb[0].mxu0
        %2097 = vmatprep.mubr.f32.mxu0 0.0
        %2098 = vmatmul.mubr.f32.gmra.mrb[0].mxu0 %v1976
        %v2099 = vpop.f32.mrb[0].mxu0
        %v2100 = vadd.f32 0.0, %v2099
        %v2101 = vpop.f32.mrb[0].mxu0
        %2102 = vmatprep.mubr.f32.mxu0 0.0
        %2103 = vmatmul.mubr.f32.gmra.mrb[0].mxu0 %v1979
        %v2104 = vpop.f32.mrb[0].mxu0
        %v2105 = vadd.f32 0.0, %v2104
        %v2106 = vpop.f32.mrb[0].mxu0
        %2107 = vmatprep.mubr.f32.mxu0 0.0
        %2108 = vmatmul.mubr.f32.gmra.mrb[0].mxu0 %v1982
        %v2109 = vpop.f32.mrb[0].mxu0
        %v2110 = vadd.f32 0.0, %v2109
        %v2111 = vpop.f32.mrb[0].mxu0
        %2112 = vmatprep.mubr.f32.mxu0 0.0
        %2113 = vmatmul.mubr.f32.gmra.mrb[0].mxu0 %v1985
        %v2114 = vpop.f32.mrb[0].mxu0
        %v2115 = vadd.f32 0.0, %v2114
        %v2116 = vpop.f32.mrb[0].mxu0
        %2117 = vmatprep.mubr.f32.mxu0 0.0
        %2118 = vmatmul.mubr.f32.gmra.mrb[0].mxu0 %v1988
        %v2119 = vpop.f32.mrb[0].mxu0
        %v2120 = vadd.f32 0.0, %v2119
        %v2121 = vpop.f32.mrb[0].mxu0
        %2122 = vmatprep.mubr.f32.mxu0 0.0
        %2123 = vmatmul.mubr.f32.gmra.mrb[0].mxu0 %v1991
        %v2124 = vpop.f32.mrb[0].mxu0
        %v2125 = vadd.f32 0.0, %v2124
        %v2126 = vpop.f32.mrb[0].mxu0
        %2127 = vmatprep.mubr.f32.mxu0 0.0
        %2128 = vmatmul.mubr.f32.gmra.mrb[0].mxu0 %v1994
        %v2129 = vpop.f32.mrb[0].mxu0
        %v2130 = vadd.f32 0.0, %v2129
        %v2131 = vpop.f32.mrb[0].mxu0
        %2132 = vmatprep.mubr.f32.mxu0 0.0
        %2133 = vmatmul.mubr.f32.gmra.mrb[0].mxu0 %v1997
        %v2134 = vpop.f32.mrb[0].mxu0
        %v2135 = vadd.f32 0.0, %v2134
        %v2136 = vpop.f32.mrb[0].mxu0
        %2137 = vmatprep.mubr.f32.mxu0 0.0
        %2138 = vmatmul.mubr.f32.gmra.mrb[0].mxu0 %v2000
        %v2139 = vpop.f32.mrb[0].mxu0
        %v2140 = vadd.f32 0.0, %v2139
        %v2141 = vpop.f32.mrb[0].mxu0
        %2142 = vmatprep.mubr.f32.mxu0 0.0
        %2143 = vmatmul.mubr.f32.gmra.mrb[0].mxu0 %v2003
        %v2144 = vpop.f32.mrb[0].mxu0
        %v2145 = vadd.f32 0.0, %v2144
        %v2146 = vpop.f32.mrb[0].mxu0
        %2147 = vmatprep.mubr.f32.mxu0 0.0
        %2148 = vmatmul.mubr.f32.gmra.mrb[0].mxu0 %v2006
        %v2149 = vpop.f32.mrb[0].mxu0
        %v2150 = vadd.f32 0.0, %v2149
        %v2151 = vpop.f32.mrb[0].mxu0
        %2152 = vdwg.mxu0
        %v2153 = vadd.f32 %v1868, %v2075
        %v2154 = vadd.f32 %v1869, %v2080
        %v2155 = vadd.f32 %v1870, %v2085
        %v2156 = vadd.f32 %v1871, %v2090
        %v2157 = vadd.f32 %v1872, %v2095
        %v2158 = vadd.f32 %v1873, %v2100
        %v2159 = vadd.f32 %v1874, %v2105
        %v2160 = vadd.f32 %v1875, %v2110
        %v2161 = vadd.f32 %v1876, %v2115
        %v2162 = vadd.f32 %v1877, %v2120
        %v2163 = vadd.f32 %v1878, %v2125
        %v2164 = vadd.f32 %v1879, %v2130
        %v2165 = vadd.f32 %v1880, %v2135
        %v2166 = vadd.f32 %v1881, %v2140
        %v2167 = vadd.f32 %v1882, %v2145
        %v2168 = vadd.f32 %v1883, %v2150
        %2169 = vrot.lane.b32.xlu0 %v1294, 1
        %v2170 = vpop.permute.xlu0 %2169
        %2171 = vrot.lane.b32.xlu0 %v1295, 1
        %v2172 = vpop.permute.xlu0 %2171
        %2173 = vrot.lane.b32.xlu0 %v1296, 1
        %v2174 = vpop.permute.xlu0 %2173
        %2175 = vrot.lane.b32.xlu0 %v1297, 1
        %v2176 = vpop.permute.xlu0 %2175
        %2177 = vrot.lane.b32.xlu0 %v1298, 1
        %v2178 = vpop.permute.xlu0 %2177
        %2179 = vrot.lane.b32.xlu0 %v1299, 1
        %v2180 = vpop.permute.xlu0 %2179
        %2181 = vrot.lane.b32.xlu0 %v1300, 1
        %v2182 = vpop.permute.xlu0 %2181
        %2183 = vrot.lane.b32.xlu0 %v1301, 1
        %v2184 = vpop.permute.xlu0 %2183
        %2185 = vrot.lane.b32.xlu0 %v1302, 1
        %v2186 = vpop.permute.xlu0 %2185
        %2187 = vrot.lane.b32.xlu0 %v1303, 1
        %v2188 = vpop.permute.xlu0 %2187
        %2189 = vrot.lane.b32.xlu0 %v1304, 1
        %v2190 = vpop.permute.xlu0 %2189
        %2191 = vrot.lane.b32.xlu0 %v1305, 1
        %v2192 = vpop.permute.xlu0 %2191
        %2193 = vrot.lane.b32.xlu0 %v1306, 1
        %v2194 = vpop.permute.xlu0 %2193
        %2195 = vrot.lane.b32.xlu0 %v1307, 1
        %v2196 = vpop.permute.xlu0 %2195
        %2197 = vrot.lane.b32.xlu0 %v1308, 1
        %v2198 = vpop.permute.xlu0 %2197
        %2199 = vrot.lane.b32.xlu0 %v1309, 1
        %v2200 = vpop.permute.xlu0 %2199
        %vm2201 = vcmask 7168
        %v2202 = vsel %vm2201, %v2170, %v2172
        %v2203 = vsel %vm2201, %v2174, %v2176
        %v2204 = vsel %vm2201, %v2178, %v2180
        %v2205 = vsel %vm2201, %v2182, %v2184
        %v2206 = vsel %vm2201, %v2186, %v2188
        %v2207 = vsel %vm2201, %v2190, %v2192
        %v2208 = vsel %vm2201, %v2194, %v2196
        %v2209 = vsel %vm2201, %v2198, %v2200
        %v2218 = vsel %vm1311, %v2202, 0.0
        %v2219 = vsel %vm1311, %v2203, 0.0
        %v2220 = vsel %vm1311, %v2204, 0.0
        %v2221 = vsel %vm1311, %v2205, 0.0
        %v2222 = vsel %vm1311, %v2206, 0.0
        %v2223 = vsel %vm1311, %v2207, 0.0
        %v2224 = vsel %vm1311, %v2208, 0.0
        %v2225 = vsel %vm1311, %v2209, 0.0
        %s2226 = scalar_lea.vmem [#allocation11], 384
        %v2227 = vld [vmem:[%s2226] sm:$0xff]
        %v2228 = vld [vmem:[%s2226 + $0x8] sm:$0xff]
        %v2229 = vld [vmem:[%s2226 + $0x10] sm:$0xff]
        %v2230 = vld [vmem:[%s2226 + $0x18] sm:$0xff]
        %v2231 = vld [vmem:[%s2226 + $0x20] sm:$0xff]
        %v2232 = vld [vmem:[%s2226 + $0x28] sm:$0xff]
        %v2233 = vld [vmem:[%s2226 + $0x30] sm:$0xff]
        %v2234 = vld [vmem:[%s2226 + $0x38] sm:$0xff]
        %v2235 = vld [vmem:[%s2226 + $0x40] sm:$0xff]
        %v2236 = vld [vmem:[%s2226 + $0x48] sm:$0xff]
        %v2237 = vld [vmem:[%s2226 + $0x50] sm:$0xff]
        %v2238 = vld [vmem:[%s2226 + $0x58] sm:$0xff]
        %v2239 = vld [vmem:[%s2226 + $0x60] sm:$0xff]
        %v2240 = vld [vmem:[%s2226 + $0x68] sm:$0xff]
        %v2241 = vld [vmem:[%s2226 + $0x70] sm:$0xff]
        %v2242 = vld [vmem:[%s2226 + $0x78] sm:$0xff]
        %v2244 = vsel %vm1027, %v2227, 0
        %v2247 = vsel %vm1027, %v2228, 0
        %v2250 = vsel %vm1027, %v2229, 0
        %v2253 = vsel %vm1027, %v2230, 0
        %v2256 = vsel %vm1027, %v2231, 0
        %v2259 = vsel %vm1027, %v2232, 0
        %v2262 = vsel %vm1027, %v2233, 0
        %v2265 = vsel %vm1027, %v2234, 0
        %v2268 = vsel %vm1027, %v2235, 0
        %v2271 = vsel %vm1027, %v2236, 0
        %v2274 = vsel %vm1027, %v2237, 0
        %v2277 = vsel %vm1027, %v2238, 0
        %v2280 = vsel %vm1027, %v2239, 0
        %v2283 = vsel %vm1027, %v2240, 0
        %v2286 = vsel %vm1027, %v2241, 0
        %v2289 = vsel %vm1027, %v2242, 0
        %2291 = vmatprep.subr.mxu0 0.0
        %2292 = vmatpush1.msra.mxu0 %v2218
        %2293 = vmatprep.subr.mxu0 0.0
        %2294 = vmatpush1.msra.mxu0 %v2219
        %2295 = vmatprep.subr.mxu0 0.0
        %2296 = vmatpush1.msra.mxu0 %v2220
        %2297 = vmatprep.subr.mxu0 0.0
        %2298 = vmatpush1.msra.mxu0 %v2221
        %2299 = vmatprep.subr.mxu0 0.0
        %2300 = vmatpush1.msra.mxu0 %v2222
        %2301 = vmatprep.subr.mxu0 0.0
        %2302 = vmatpush1.msra.mxu0 %v2223
        %2303 = vmatprep.subr.mxu0 0.0
        %2304 = vmatpush1.msra.mxu0 %v2224
        %2305 = vmatprep.subr.mxu0 0.0
        %2306 = vmatpush1.msra.mxu0 %v2225
        %2307 = vmatprep.subr.mxu0 0.0
        %2308 = vmatpush1.msra.mxu0 0.0
        %2309 = vmatprep.subr.mxu0 0.0
        %2310 = vmatpush1.msra.mxu0 0.0
        %2311 = vmatprep.subr.mxu0 0.0
        %2312 = vmatpush1.msra.mxu0 0.0
        %2313 = vmatprep.subr.mxu0 0.0
        %2314 = vmatpush1.msra.mxu0 0.0
        %2315 = vmatprep.subr.mxu0 0.0
        %2316 = vmatpush1.msra.mxu0 0.0
        %2317 = vmatprep.subr.mxu0 0.0
        %2318 = vmatpush1.msra.mxu0 0.0
        %2319 = vmatprep.subr.mxu0 0.0
        %2320 = vmatpush1.msra.mxu0 0.0
        %2321 = vmatprep.subr.mxu0 0.0
        %2322 = vmatpush1.msra.mxu0 0.0
        %2323 = vmatprep.subr.mxu0 0.0
        %2324 = vmatpush1.msra.mxu0 0.0
        %2325 = vmatprep.subr.mxu0 0.0
        %2326 = vmatpush1.msra.mxu0 0.0
        %2327 = vmatprep.subr.mxu0 0.0
        %2328 = vmatpush1.msra.mxu0 0.0
        %2329 = vmatprep.subr.mxu0 0.0
        %2330 = vmatpush1.msra.mxu0 0.0
        %2331 = vmatprep.subr.mxu0 0.0
        %2332 = vmatpush1.msra.mxu0 0.0
        %2333 = vmatprep.subr.mxu0 0.0
        %2334 = vmatpush1.msra.mxu0 0.0
        %2335 = vmatprep.subr.mxu0 0.0
        %2336 = vmatpush1.msra.mxu0 0.0
        %2337 = vmatprep.subr.mxu0 0.0
        %2338 = vmatpush1.msra.mxu0 0.0
        %2339 = vmatprep.subr.mxu0 0.0
        %2340 = vmatpush1.msra.mxu0 0.0
        %2341 = vmatprep.subr.mxu0 0.0
        %2342 = vmatpush1.msra.mxu0 0.0
        %2343 = vmatprep.subr.mxu0 0.0
        %2344 = vmatpush1.msra.mxu0 0.0
        %2345 = vmatprep.subr.mxu0 0.0
        %2346 = vmatpush1.msra.mxu0 0.0
        %2347 = vmatprep.subr.mxu0 0.0
        %2348 = vmatpush1.msra.mxu0 0.0
        %2349 = vmatprep.subr.mxu0 0.0
        %2350 = vmatpush1.msra.mxu0 0.0
        %2351 = vmatprep.subr.mxu0 0.0
        %2352 = vmatpush1.msra.mxu0 0.0
        %2353 = vmatprep.subr.mxu0 0.0
        %2354 = vmatpush1.msra.mxu0 0.0
        %2355 = vmatprep.mubr.f32.mxu0 0.0
        %2356 = vmatmul.mubr.f32.gmra.mrb[0].mxu0 %v2244
        %v2357 = vpop.f32.mrb[0].mxu0
        %v2358 = vadd.f32 0.0, %v2357
        %v2359 = vpop.f32.mrb[0].mxu0
        %2360 = vmatprep.mubr.f32.mxu0 0.0
        %2361 = vmatmul.mubr.f32.gmra.mrb[0].mxu0 %v2247
        %v2362 = vpop.f32.mrb[0].mxu0
        %v2363 = vadd.f32 0.0, %v2362
        %v2364 = vpop.f32.mrb[0].mxu0
        %2365 = vmatprep.mubr.f32.mxu0 0.0
        %2366 = vmatmul.mubr.f32.gmra.mrb[0].mxu0 %v2250
        %v2367 = vpop.f32.mrb[0].mxu0
        %v2368 = vadd.f32 0.0, %v2367
        %v2369 = vpop.f32.mrb[0].mxu0
        %2370 = vmatprep.mubr.f32.mxu0 0.0
        %2371 = vmatmul.mubr.f32.gmra.mrb[0].mxu0 %v2253
        %v2372 = vpop.f32.mrb[0].mxu0
        %v2373 = vadd.f32 0.0, %v2372
        %v2374 = vpop.f32.mrb[0].mxu0
        %2375 = vmatprep.mubr.f32.mxu0 0.0
        %2376 = vmatmul.mubr.f32.gmra.mrb[0].mxu0 %v2256
        %v2377 = vpop.f32.mrb[0].mxu0
        %v2378 = vadd.f32 0.0, %v2377
        %v2379 = vpop.f32.mrb[0].mxu0
        %2380 = vmatprep.mubr.f32.mxu0 0.0
        %2381 = vmatmul.mubr.f32.gmra.mrb[0].mxu0 %v2259
        %v2382 = vpop.f32.mrb[0].mxu0
        %v2383 = vadd.f32 0.0, %v2382
        %v2384 = vpop.f32.mrb[0].mxu0
        %2385 = vmatprep.mubr.f32.mxu0 0.0
        %2386 = vmatmul.mubr.f32.gmra.mrb[0].mxu0 %v2262
        %v2387 = vpop.f32.mrb[0].mxu0
        %v2388 = vadd.f32 0.0, %v2387
        %v2389 = vpop.f32.mrb[0].mxu0
        %2390 = vmatprep.mubr.f32.mxu0 0.0
        %2391 = vmatmul.mubr.f32.gmra.mrb[0].mxu0 %v2265
        %v2392 = vpop.f32.mrb[0].mxu0
        %v2393 = vadd.f32 0.0, %v2392
        %v2394 = vpop.f32.mrb[0].mxu0
        %2395 = vmatprep.mubr.f32.mxu0 0.0
        %2396 = vmatmul.mubr.f32.gmra.mrb[0].mxu0 %v2268
        %v2397 = vpop.f32.mrb[0].mxu0
        %v2398 = vadd.f32 0.0, %v2397
        %v2399 = vpop.f32.mrb[0].mxu0
        %2400 = vmatprep.mubr.f32.mxu0 0.0
        %2401 = vmatmul.mubr.f32.gmra.mrb[0].mxu0 %v2271
        %v2402 = vpop.f32.mrb[0].mxu0
        %v2403 = vadd.f32 0.0, %v2402
        %v2404 = vpop.f32.mrb[0].mxu0
        %2405 = vmatprep.mubr.f32.mxu0 0.0
        %2406 = vmatmul.mubr.f32.gmra.mrb[0].mxu0 %v2274
        %v2407 = vpop.f32.mrb[0].mxu0
        %v2408 = vadd.f32 0.0, %v2407
        %v2409 = vpop.f32.mrb[0].mxu0
        %2410 = vmatprep.mubr.f32.mxu0 0.0
        %2411 = vmatmul.mubr.f32.gmra.mrb[0].mxu0 %v2277
        %v2412 = vpop.f32.mrb[0].mxu0
        %v2413 = vadd.f32 0.0, %v2412
        %v2414 = vpop.f32.mrb[0].mxu0
        %2415 = vmatprep.mubr.f32.mxu0 0.0
        %2416 = vmatmul.mubr.f32.gmra.mrb[0].mxu0 %v2280
        %v2417 = vpop.f32.mrb[0].mxu0
        %v2418 = vadd.f32 0.0, %v2417
        %v2419 = vpop.f32.mrb[0].mxu0
        %2420 = vmatprep.mubr.f32.mxu0 0.0
        %2421 = vmatmul.mubr.f32.gmra.mrb[0].mxu0 %v2283
        %v2422 = vpop.f32.mrb[0].mxu0
        %v2423 = vadd.f32 0.0, %v2422
        %v2424 = vpop.f32.mrb[0].mxu0
        %2425 = vmatprep.mubr.f32.mxu0 0.0
        %2426 = vmatmul.mubr.f32.gmra.mrb[0].mxu0 %v2286
        %v2427 = vpop.f32.mrb[0].mxu0
        %v2428 = vadd.f32 0.0, %v2427
        %v2429 = vpop.f32.mrb[0].mxu0
        %2430 = vmatprep.mubr.f32.mxu0 0.0
        %2431 = vmatmul.mubr.f32.gmra.mrb[0].mxu0 %v2289
        %v2432 = vpop.f32.mrb[0].mxu0
        %v2433 = vadd.f32 0.0, %v2432
        %v2434 = vpop.f32.mrb[0].mxu0
        %2435 = vdwg.mxu0
        %v2436 = vadd.f32 %v2153, %v2358
        %v2437 = vadd.f32 %v2154, %v2363
        %v2438 = vadd.f32 %v2155, %v2368
        %v2439 = vadd.f32 %v2156, %v2373
        %v2440 = vadd.f32 %v2157, %v2378
        %v2441 = vadd.f32 %v2158, %v2383
        %v2442 = vadd.f32 %v2159, %v2388
        %v2443 = vadd.f32 %v2160, %v2393
        %v2444 = vadd.f32 %v2161, %v2398
        %v2445 = vadd.f32 %v2162, %v2403
        %v2446 = vadd.f32 %v2163, %v2408
        %v2447 = vadd.f32 %v2164, %v2413
        %v2448 = vadd.f32 %v2165, %v2418
        %v2449 = vadd.f32 %v2166, %v2423
        %v2450 = vadd.f32 %v2167, %v2428
        %v2451 = vadd.f32 %v2168, %v2433
        %s2452 = scalar_lea.vmem [#allocation11], 512
        %v2453 = vld [vmem:[%s2452] sm:$0xff]
        %v2454 = vld [vmem:[%s2452 + $0x8] sm:$0xff]
        %v2455 = vld [vmem:[%s2452 + $0x10] sm:$0xff]
        %v2456 = vld [vmem:[%s2452 + $0x18] sm:$0xff]
        %v2457 = vld [vmem:[%s2452 + $0x20] sm:$0xff]
        %v2458 = vld [vmem:[%s2452 + $0x28] sm:$0xff]
        %v2459 = vld [vmem:[%s2452 + $0x30] sm:$0xff]
        %v2460 = vld [vmem:[%s2452 + $0x38] sm:$0xff]
        %v2461 = vld [vmem:[%s2452 + $0x40] sm:$0xff]
        %v2462 = vld [vmem:[%s2452 + $0x48] sm:$0xff]
        %v2463 = vld [vmem:[%s2452 + $0x50] sm:$0xff]
        %v2464 = vld [vmem:[%s2452 + $0x58] sm:$0xff]
        %v2465 = vld [vmem:[%s2452 + $0x60] sm:$0xff]
        %v2466 = vld [vmem:[%s2452 + $0x68] sm:$0xff]
        %v2467 = vld [vmem:[%s2452 + $0x70] sm:$0xff]
        %v2468 = vld [vmem:[%s2452 + $0x78] sm:$0xff]
        %v2470 = vsel %vm1027, %v2453, 0
        %v2473 = vsel %vm1027, %v2454, 0
        %v2476 = vsel %vm1027, %v2455, 0
        %v2479 = vsel %vm1027, %v2456, 0
        %v2482 = vsel %vm1027, %v2457, 0
        %v2485 = vsel %vm1027, %v2458, 0
        %v2488 = vsel %vm1027, %v2459, 0
        %v2491 = vsel %vm1027, %v2460, 0
        %v2494 = vsel %vm1027, %v2461, 0
        %v2497 = vsel %vm1027, %v2462, 0
        %v2500 = vsel %vm1027, %v2463, 0
        %v2503 = vsel %vm1027, %v2464, 0
        %v2506 = vsel %vm1027, %v2465, 0
        %v2509 = vsel %vm1027, %v2466, 0
        %v2512 = vsel %vm1027, %v2467, 0
        %v2515 = vsel %vm1027, %v2468, 0
        %2517 = vmatprep.subr.mxu0 0.0
        %2518 = vmatpush1.msra.mxu0 %v1295
        %2519 = vmatprep.subr.mxu0 0.0
        %2520 = vmatpush1.msra.mxu0 %v1297
        %2521 = vmatprep.subr.mxu0 0.0
        %2522 = vmatpush1.msra.mxu0 %v1299
        %2523 = vmatprep.subr.mxu0 0.0
        %2524 = vmatpush1.msra.mxu0 %v1301
        %2525 = vmatprep.subr.mxu0 0.0
        %2526 = vmatpush1.msra.mxu0 %v1303
        %2527 = vmatprep.subr.mxu0 0.0
        %2528 = vmatpush1.msra.mxu0 %v1305
        %2529 = vmatprep.subr.mxu0 0.0
        %2530 = vmatpush1.msra.mxu0 %v1307
        %2531 = vmatprep.subr.mxu0 0.0
        %2532 = vmatpush1.msra.mxu0 %v1309
        %2533 = vmatprep.subr.mxu0 0.0
        %2534 = vmatpush1.msra.mxu0 0.0
        %2535 = vmatprep.subr.mxu0 0.0
        %2536 = vmatpush1.msra.mxu0 0.0
        %2537 = vmatprep.subr.mxu0 0.0
        %2538 = vmatpush1.msra.mxu0 0.0
        %2539 = vmatprep.subr.mxu0 0.0
        %2540 = vmatpush1.msra.mxu0 0.0
        %2541 = vmatprep.subr.mxu0 0.0
        %2542 = vmatpush1.msra.mxu0 0.0
        %2543 = vmatprep.subr.mxu0 0.0
        %2544 = vmatpush1.msra.mxu0 0.0
        %2545 = vmatprep.subr.mxu0 0.0
        %2546 = vmatpush1.msra.mxu0 0.0
        %2547 = vmatprep.subr.mxu0 0.0
        %2548 = vmatpush1.msra.mxu0 0.0
        %2549 = vmatprep.subr.mxu0 0.0
        %2550 = vmatpush1.msra.mxu0 0.0
        %2551 = vmatprep.subr.mxu0 0.0
        %2552 = vmatpush1.msra.mxu0 0.0
        %2553 = vmatprep.subr.mxu0 0.0
        %2554 = vmatpush1.msra.mxu0 0.0
        %2555 = vmatprep.subr.mxu0 0.0
        %2556 = vmatpush1.msra.mxu0 0.0
        %2557 = vmatprep.subr.mxu0 0.0
        %2558 = vmatpush1.msra.mxu0 0.0
        %2559 = vmatprep.subr.mxu0 0.0
        %2560 = vmatpush1.msra.mxu0 0.0
        %2561 = vmatprep.subr.mxu0 0.0
        %2562 = vmatpush1.msra.mxu0 0.0
        %2563 = vmatprep.subr.mxu0 0.0
        %2564 = vmatpush1.msra.mxu0 0.0
        %2565 = vmatprep.subr.mxu0 0.0
        %2566 = vmatpush1.msra.mxu0 0.0
        %2567 = vmatprep.subr.mxu0 0.0
        %2568 = vmatpush1.msra.mxu0 0.0
        %2569 = vmatprep.subr.mxu0 0.0
        %2570 = vmatpush1.msra.mxu0 0.0
        %2571 = vmatprep.subr.mxu0 0.0
        %2572 = vmatpush1.msra.mxu0 0.0
        %2573 = vmatprep.subr.mxu0 0.0
        %2574 = vmatpush1.msra.mxu0 0.0
        %2575 = vmatprep.subr.mxu0 0.0
        %2576 = vmatpush1.msra.mxu0 0.0
        %2577 = vmatprep.subr.mxu0 0.0
        %2578 = vmatpush1.msra.mxu0 0.0
        %2579 = vmatprep.subr.mxu0 0.0
        %2580 = vmatpush1.msra.mxu0 0.0
        %2581 = vmatprep.mubr.f32.mxu0 0.0
        %2582 = vmatmul.mubr.f32.gmra.mrb[0].mxu0 %v2470
        %v2583 = vpop.f32.mrb[0].mxu0
        %v2584 = vadd.f32 0.0, %v2583
        %v2585 = vpop.f32.mrb[0].mxu0
        %2586 = vmatprep.mubr.f32.mxu0 0.0
        %2587 = vmatmul.mubr.f32.gmra.mrb[0].mxu0 %v2473
        %v2588 = vpop.f32.mrb[0].mxu0
        %v2589 = vadd.f32 0.0, %v2588
        %v2590 = vpop.f32.mrb[0].mxu0
        %2591 = vmatprep.mubr.f32.mxu0 0.0
        %2592 = vmatmul.mubr.f32.gmra.mrb[0].mxu0 %v2476
        %v2593 = vpop.f32.mrb[0].mxu0
        %v2594 = vadd.f32 0.0, %v2593
        %v2595 = vpop.f32.mrb[0].mxu0
        %2596 = vmatprep.mubr.f32.mxu0 0.0
        %2597 = vmatmul.mubr.f32.gmra.mrb[0].mxu0 %v2479
        %v2598 = vpop.f32.mrb[0].mxu0
        %v2599 = vadd.f32 0.0, %v2598
        %v2600 = vpop.f32.mrb[0].mxu0
        %2601 = vmatprep.mubr.f32.mxu0 0.0
        %2602 = vmatmul.mubr.f32.gmra.mrb[0].mxu0 %v2482
        %v2603 = vpop.f32.mrb[0].mxu0
        %v2604 = vadd.f32 0.0, %v2603
        %v2605 = vpop.f32.mrb[0].mxu0
        %2606 = vmatprep.mubr.f32.mxu0 0.0
        %2607 = vmatmul.mubr.f32.gmra.mrb[0].mxu0 %v2485
        %v2608 = vpop.f32.mrb[0].mxu0
        %v2609 = vadd.f32 0.0, %v2608
        %v2610 = vpop.f32.mrb[0].mxu0
        %2611 = vmatprep.mubr.f32.mxu0 0.0
        %2612 = vmatmul.mubr.f32.gmra.mrb[0].mxu0 %v2488
        %v2613 = vpop.f32.mrb[0].mxu0
        %v2614 = vadd.f32 0.0, %v2613
        %v2615 = vpop.f32.mrb[0].mxu0
        %2616 = vmatprep.mubr.f32.mxu0 0.0
        %2617 = vmatmul.mubr.f32.gmra.mrb[0].mxu0 %v2491
        %v2618 = vpop.f32.mrb[0].mxu0
        %v2619 = vadd.f32 0.0, %v2618
        %v2620 = vpop.f32.mrb[0].mxu0
        %2621 = vmatprep.mubr.f32.mxu0 0.0
        %2622 = vmatmul.mubr.f32.gmra.mrb[0].mxu0 %v2494
        %v2623 = vpop.f32.mrb[0].mxu0
        %v2624 = vadd.f32 0.0, %v2623
        %v2625 = vpop.f32.mrb[0].mxu0
        %2626 = vmatprep.mubr.f32.mxu0 0.0
        %2627 = vmatmul.mubr.f32.gmra.mrb[0].mxu0 %v2497
        %v2628 = vpop.f32.mrb[0].mxu0
        %v2629 = vadd.f32 0.0, %v2628
        %v2630 = vpop.f32.mrb[0].mxu0
        %2631 = vmatprep.mubr.f32.mxu0 0.0
        %2632 = vmatmul.mubr.f32.gmra.mrb[0].mxu0 %v2500
        %v2633 = vpop.f32.mrb[0].mxu0
        %v2634 = vadd.f32 0.0, %v2633
        %v2635 = vpop.f32.mrb[0].mxu0
        %2636 = vmatprep.mubr.f32.mxu0 0.0
        %2637 = vmatmul.mubr.f32.gmra.mrb[0].mxu0 %v2503
        %v2638 = vpop.f32.mrb[0].mxu0
        %v2639 = vadd.f32 0.0, %v2638
        %v2640 = vpop.f32.mrb[0].mxu0
        %2641 = vmatprep.mubr.f32.mxu0 0.0
        %2642 = vmatmul.mubr.f32.gmra.mrb[0].mxu0 %v2506
        %v2643 = vpop.f32.mrb[0].mxu0
        %v2644 = vadd.f32 0.0, %v2643
        %v2645 = vpop.f32.mrb[0].mxu0
        %2646 = vmatprep.mubr.f32.mxu0 0.0
        %2647 = vmatmul.mubr.f32.gmra.mrb[0].mxu0 %v2509
        %v2648 = vpop.f32.mrb[0].mxu0
        %v2649 = vadd.f32 0.0, %v2648
        %v2650 = vpop.f32.mrb[0].mxu0
        %2651 = vmatprep.mubr.f32.mxu0 0.0
        %2652 = vmatmul.mubr.f32.gmra.mrb[0].mxu0 %v2512
        %v2653 = vpop.f32.mrb[0].mxu0
        %v2654 = vadd.f32 0.0, %v2653
        %v2655 = vpop.f32.mrb[0].mxu0
        %2656 = vmatprep.mubr.f32.mxu0 0.0
        %2657 = vmatmul.mubr.f32.gmra.mrb[0].mxu0 %v2515
        %v2658 = vpop.f32.mrb[0].mxu0
        %v2659 = vadd.f32 0.0, %v2658
        %v2660 = vpop.f32.mrb[0].mxu0
        %2661 = vdwg.mxu0
        %v2662 = vadd.f32 %v2436, %v2584
        %v2663 = vadd.f32 %v2437, %v2589
        %v2664 = vadd.f32 %v2438, %v2594
        %v2665 = vadd.f32 %v2439, %v2599
        %v2666 = vadd.f32 %v2440, %v2604
        %v2667 = vadd.f32 %v2441, %v2609
        %v2668 = vadd.f32 %v2442, %v2614
        %v2669 = vadd.f32 %v2443, %v2619
        %v2670 = vadd.f32 %v2444, %v2624
        %v2671 = vadd.f32 %v2445, %v2629
        %v2672 = vadd.f32 %v2446, %v2634
        %v2673 = vadd.f32 %v2447, %v2639
        %v2674 = vadd.f32 %v2448, %v2644
        %v2675 = vadd.f32 %v2449, %v2649
        %v2676 = vadd.f32 %v2450, %v2654
        %v2677 = vadd.f32 %v2451, %v2659
        %2678 = vrot.lane.b32.xlu0 %v1295, 127
        %v2679 = vpop.permute.xlu0 %2678
        %2680 = vrot.lane.b32.xlu0 %v1297, 127
        %v2681 = vpop.permute.xlu0 %2680
        %2682 = vrot.lane.b32.xlu0 %v1299, 127
        %v2683 = vpop.permute.xlu0 %2682
        %2684 = vrot.lane.b32.xlu0 %v1301, 127
        %v2685 = vpop.permute.xlu0 %2684
        %2686 = vrot.lane.b32.xlu0 %v1303, 127
        %v2687 = vpop.permute.xlu0 %2686
        %2688 = vrot.lane.b32.xlu0 %v1305, 127
        %v2689 = vpop.permute.xlu0 %2688
        %2690 = vrot.lane.b32.xlu0 %v1307, 127
        %v2691 = vpop.permute.xlu0 %2690
        %2692 = vrot.lane.b32.xlu0 %v1309, 127
        %v2693 = vpop.permute.xlu0 %2692
        %v2702 = vsel %vm1885, %v2679, 0.0
        %v2703 = vsel %vm1885, %v2681, 0.0
        %v2704 = vsel %vm1885, %v2683, 0.0
        %v2705 = vsel %vm1885, %v2685, 0.0
        %v2706 = vsel %vm1885, %v2687, 0.0
        %v2707 = vsel %vm1885, %v2689, 0.0
        %v2708 = vsel %vm1885, %v2691, 0.0
        %v2709 = vsel %vm1885, %v2693, 0.0
        %s2710 = scalar_lea.vmem [#allocation11], 640
        %v2711 = vld [vmem:[%s2710] sm:$0xff]
        %v2712 = vld [vmem:[%s2710 + $0x8] sm:$0xff]
        %v2713 = vld [vmem:[%s2710 + $0x10] sm:$0xff]
        %v2714 = vld [vmem:[%s2710 + $0x18] sm:$0xff]
        %v2715 = vld [vmem:[%s2710 + $0x20] sm:$0xff]
        %v2716 = vld [vmem:[%s2710 + $0x28] sm:$0xff]
        %v2717 = vld [vmem:[%s2710 + $0x30] sm:$0xff]
        %v2718 = vld [vmem:[%s2710 + $0x38] sm:$0xff]
        %v2719 = vld [vmem:[%s2710 + $0x40] sm:$0xff]
        %v2720 = vld [vmem:[%s2710 + $0x48] sm:$0xff]
        %v2721 = vld [vmem:[%s2710 + $0x50] sm:$0xff]
        %v2722 = vld [vmem:[%s2710 + $0x58] sm:$0xff]
        %v2723 = vld [vmem:[%s2710 + $0x60] sm:$0xff]
        %v2724 = vld [vmem:[%s2710 + $0x68] sm:$0xff]
        %v2725 = vld [vmem:[%s2710 + $0x70] sm:$0xff]
        %v2726 = vld [vmem:[%s2710 + $0x78] sm:$0xff]
        %v2728 = vsel %vm1027, %v2711, 0
        %v2731 = vsel %vm1027, %v2712, 0
        %v2734 = vsel %vm1027, %v2713, 0
        %v2737 = vsel %vm1027, %v2714, 0
        %v2740 = vsel %vm1027, %v2715, 0
        %v2743 = vsel %vm1027, %v2716, 0
        %v2746 = vsel %vm1027, %v2717, 0
        %v2749 = vsel %vm1027, %v2718, 0
        %v2752 = vsel %vm1027, %v2719, 0
        %v2755 = vsel %vm1027, %v2720, 0
        %v2758 = vsel %vm1027, %v2721, 0
        %v2761 = vsel %vm1027, %v2722, 0
        %v2764 = vsel %vm1027, %v2723, 0
        %v2767 = vsel %vm1027, %v2724, 0
        %v2770 = vsel %vm1027, %v2725, 0
        %v2773 = vsel %vm1027, %v2726, 0
        %2775 = vmatprep.subr.mxu0 0.0
        %2776 = vmatpush1.msra.mxu0 %v2702
        %2777 = vmatprep.subr.mxu0 0.0
        %2778 = vmatpush1.msra.mxu0 %v2703
        %2779 = vmatprep.subr.mxu0 0.0
        %2780 = vmatpush1.msra.mxu0 %v2704
        %2781 = vmatprep.subr.mxu0 0.0
        %2782 = vmatpush1.msra.mxu0 %v2705
        %2783 = vmatprep.subr.mxu0 0.0
        %2784 = vmatpush1.msra.mxu0 %v2706
        %2785 = vmatprep.subr.mxu0 0.0
        %2786 = vmatpush1.msra.mxu0 %v2707
        %2787 = vmatprep.subr.mxu0 0.0
        %2788 = vmatpush1.msra.mxu0 %v2708
        %2789 = vmatprep.subr.mxu0 0.0
        %2790 = vmatpush1.msra.mxu0 %v2709
        %2791 = vmatprep.subr.mxu0 0.0
        %2792 = vmatpush1.msra.mxu0 0.0
        %2793 = vmatprep.subr.mxu0 0.0
        %2794 = vmatpush1.msra.mxu0 0.0
        %2795 = vmatprep.subr.mxu0 0.0
        %2796 = vmatpush1.msra.mxu0 0.0
        %2797 = vmatprep.subr.mxu0 0.0
        %2798 = vmatpush1.msra.mxu0 0.0
        %2799 = vmatprep.subr.mxu0 0.0
        %2800 = vmatpush1.msra.mxu0 0.0
        %2801 = vmatprep.subr.mxu0 0.0
        %2802 = vmatpush1.msra.mxu0 0.0
        %2803 = vmatprep.subr.mxu0 0.0
        %2804 = vmatpush1.msra.mxu0 0.0
        %2805 = vmatprep.subr.mxu0 0.0
        %2806 = vmatpush1.msra.mxu0 0.0
        %2807 = vmatprep.subr.mxu0 0.0
        %2808 = vmatpush1.msra.mxu0 0.0
        %2809 = vmatprep.subr.mxu0 0.0
        %2810 = vmatpush1.msra.mxu0 0.0
        %2811 = vmatprep.subr.mxu0 0.0
        %2812 = vmatpush1.msra.mxu0 0.0
        %2813 = vmatprep.subr.mxu0 0.0
        %2814 = vmatpush1.msra.mxu0 0.0
        %2815 = vmatprep.subr.mxu0 0.0
        %2816 = vmatpush1.msra.mxu0 0.0
        %2817 = vmatprep.subr.mxu0 0.0
        %2818 = vmatpush1.msra.mxu0 0.0
        %2819 = vmatprep.subr.mxu0 0.0
        %2820 = vmatpush1.msra.mxu0 0.0
        %2821 = vmatprep.subr.mxu0 0.0
        %2822 = vmatpush1.msra.mxu0 0.0
        %2823 = vmatprep.subr.mxu0 0.0
        %2824 = vmatpush1.msra.mxu0 0.0
        %2825 = vmatprep.subr.mxu0 0.0
        %2826 = vmatpush1.msra.mxu0 0.0
        %2827 = vmatprep.subr.mxu0 0.0
        %2828 = vmatpush1.msra.mxu0 0.0
        %2829 = vmatprep.subr.mxu0 0.0
        %2830 = vmatpush1.msra.mxu0 0.0
        %2831 = vmatprep.subr.mxu0 0.0
        %2832 = vmatpush1.msra.mxu0 0.0
        %2833 = vmatprep.subr.mxu0 0.0
        %2834 = vmatpush1.msra.mxu0 0.0
        %2835 = vmatprep.subr.mxu0 0.0
        %2836 = vmatpush1.msra.mxu0 0.0
        %2837 = vmatprep.subr.mxu0 0.0
        %2838 = vmatpush1.msra.mxu0 0.0
        %2839 = vmatprep.mubr.f32.mxu0 0.0
        %2840 = vmatmul.mubr.f32.gmra.mrb[0].mxu0 %v2728
        %v2841 = vpop.f32.mrb[0].mxu0
        %v2842 = vadd.f32 0.0, %v2841
        %v2843 = vpop.f32.mrb[0].mxu0
        %2844 = vmatprep.mubr.f32.mxu0 0.0
        %2845 = vmatmul.mubr.f32.gmra.mrb[0].mxu0 %v2731
        %v2846 = vpop.f32.mrb[0].mxu0
        %v2847 = vadd.f32 0.0, %v2846
        %v2848 = vpop.f32.mrb[0].mxu0
        %2849 = vmatprep.mubr.f32.mxu0 0.0
        %2850 = vmatmul.mubr.f32.gmra.mrb[0].mxu0 %v2734
        %v2851 = vpop.f32.mrb[0].mxu0
        %v2852 = vadd.f32 0.0, %v2851
        %v2853 = vpop.f32.mrb[0].mxu0
        %2854 = vmatprep.mubr.f32.mxu0 0.0
        %2855 = vmatmul.mubr.f32.gmra.mrb[0].mxu0 %v2737
        %v2856 = vpop.f32.mrb[0].mxu0
        %v2857 = vadd.f32 0.0, %v2856
        %v2858 = vpop.f32.mrb[0].mxu0
        %2859 = vmatprep.mubr.f32.mxu0 0.0
        %2860 = vmatmul.mubr.f32.gmra.mrb[0].mxu0 %v2740
        %v2861 = vpop.f32.mrb[0].mxu0
        %v2862 = vadd.f32 0.0, %v2861
        %v2863 = vpop.f32.mrb[0].mxu0
        %2864 = vmatprep.mubr.f32.mxu0 0.0
        %2865 = vmatmul.mubr.f32.gmra.mrb[0].mxu0 %v2743
        %v2866 = vpop.f32.mrb[0].mxu0
        %v2867 = vadd.f32 0.0, %v2866
        %v2868 = vpop.f32.mrb[0].mxu0
        %2869 = vmatprep.mubr.f32.mxu0 0.0
        %2870 = vmatmul.mubr.f32.gmra.mrb[0].mxu0 %v2746
        %v2871 = vpop.f32.mrb[0].mxu0
        %v2872 = vadd.f32 0.0, %v2871
        %v2873 = vpop.f32.mrb[0].mxu0
        %2874 = vmatprep.mubr.f32.mxu0 0.0
        %2875 = vmatmul.mubr.f32.gmra.mrb[0].mxu0 %v2749
        %v2876 = vpop.f32.mrb[0].mxu0
        %v2877 = vadd.f32 0.0, %v2876
        %v2878 = vpop.f32.mrb[0].mxu0
        %2879 = vmatprep.mubr.f32.mxu0 0.0
        %2880 = vmatmul.mubr.f32.gmra.mrb[0].mxu0 %v2752
        %v2881 = vpop.f32.mrb[0].mxu0
        %v2882 = vadd.f32 0.0, %v2881
        %v2883 = vpop.f32.mrb[0].mxu0
        %2884 = vmatprep.mubr.f32.mxu0 0.0
        %2885 = vmatmul.mubr.f32.gmra.mrb[0].mxu0 %v2755
        %v2886 = vpop.f32.mrb[0].mxu0
        %v2887 = vadd.f32 0.0, %v2886
        %v2888 = vpop.f32.mrb[0].mxu0
        %2889 = vmatprep.mubr.f32.mxu0 0.0
        %2890 = vmatmul.mubr.f32.gmra.mrb[0].mxu0 %v2758
        %v2891 = vpop.f32.mrb[0].mxu0
        %v2892 = vadd.f32 0.0, %v2891
        %v2893 = vpop.f32.mrb[0].mxu0
        %2894 = vmatprep.mubr.f32.mxu0 0.0
        %2895 = vmatmul.mubr.f32.gmra.mrb[0].mxu0 %v2761
        %v2896 = vpop.f32.mrb[0].mxu0
        %v2897 = vadd.f32 0.0, %v2896
        %v2898 = vpop.f32.mrb[0].mxu0
        %2899 = vmatprep.mubr.f32.mxu0 0.0
        %2900 = vmatmul.mubr.f32.gmra.mrb[0].mxu0 %v2764
        %v2901 = vpop.f32.mrb[0].mxu0
        %v2902 = vadd.f32 0.0, %v2901
        %v2903 = vpop.f32.mrb[0].mxu0
        %2904 = vmatprep.mubr.f32.mxu0 0.0
        %2905 = vmatmul.mubr.f32.gmra.mrb[0].mxu0 %v2767
        %v2906 = vpop.f32.mrb[0].mxu0
        %v2907 = vadd.f32 0.0, %v2906
        %v2908 = vpop.f32.mrb[0].mxu0
        %2909 = vmatprep.mubr.f32.mxu0 0.0
        %2910 = vmatmul.mubr.f32.gmra.mrb[0].mxu0 %v2770
        %v2911 = vpop.f32.mrb[0].mxu0
        %v2912 = vadd.f32 0.0, %v2911
        %v2913 = vpop.f32.mrb[0].mxu0
        %2914 = vmatprep.mubr.f32.mxu0 0.0
        %2915 = vmatmul.mubr.f32.gmra.mrb[0].mxu0 %v2773
        %v2916 = vpop.f32.mrb[0].mxu0
        %v2917 = vadd.f32 0.0, %v2916
        %v2918 = vpop.f32.mrb[0].mxu0
        %2919 = vdwg.mxu0
        %v2920 = vadd.f32 %v2662, %v2842
        %v2921 = vadd.f32 %v2663, %v2847
        %v2922 = vadd.f32 %v2664, %v2852
        %v2923 = vadd.f32 %v2665, %v2857
        %v2924 = vadd.f32 %v2666, %v2862
        %v2925 = vadd.f32 %v2667, %v2867
        %v2926 = vadd.f32 %v2668, %v2872
        %v2927 = vadd.f32 %v2669, %v2877
        %v2928 = vadd.f32 %v2670, %v2882
        %v2929 = vadd.f32 %v2671, %v2887
        %v2930 = vadd.f32 %v2672, %v2892
        %v2931 = vadd.f32 %v2673, %v2897
        %v2932 = vadd.f32 %v2674, %v2902
        %v2933 = vadd.f32 %v2675, %v2907
        %v2934 = vadd.f32 %v2676, %v2912
        %v2935 = vadd.f32 %v2677, %v2917
        %2936 = vrot.lane.b32.xlu0 %v1295, 113
        %v2937 = vpop.permute.xlu0 %2936
        %2938 = vrot.lane.b32.xlu0 %v1297, 113
        %v2939 = vpop.permute.xlu0 %2938
        %2940 = vrot.lane.b32.xlu0 %v1299, 113
        %v2941 = vpop.permute.xlu0 %2940
        %2942 = vrot.lane.b32.xlu0 %v1301, 113
        %v2943 = vpop.permute.xlu0 %2942
        %2944 = vrot.lane.b32.xlu0 %v1303, 113
        %v2945 = vpop.permute.xlu0 %2944
        %2946 = vrot.lane.b32.xlu0 %v1305, 113
        %v2947 = vpop.permute.xlu0 %2946
        %2948 = vrot.lane.b32.xlu0 %v1307, 113
        %v2949 = vpop.permute.xlu0 %2948
        %2950 = vrot.lane.b32.xlu0 %v1309, 113
        %v2951 = vpop.permute.xlu0 %2950
        %v2960 = vsel %vm1311, %v2937, 0.0
        %v2961 = vsel %vm1311, %v2939, 0.0
        %v2962 = vsel %vm1311, %v2941, 0.0
        %v2963 = vsel %vm1311, %v2943, 0.0
        %v2964 = vsel %vm1311, %v2945, 0.0
        %v2965 = vsel %vm1311, %v2947, 0.0
        %v2966 = vsel %vm1311, %v2949, 0.0
        %v2967 = vsel %vm1311, %v2951, 0.0
        %s2968 = scalar_lea.vmem [#allocation11], 768
        %v2969 = vld [vmem:[%s2968] sm:$0xff]
        %v2970 = vld [vmem:[%s2968 + $0x8] sm:$0xff]
        %v2971 = vld [vmem:[%s2968 + $0x10] sm:$0xff]
        %v2972 = vld [vmem:[%s2968 + $0x18] sm:$0xff]
        %v2973 = vld [vmem:[%s2968 + $0x20] sm:$0xff]
        %v2974 = vld [vmem:[%s2968 + $0x28] sm:$0xff]
        %v2975 = vld [vmem:[%s2968 + $0x30] sm:$0xff]
        %v2976 = vld [vmem:[%s2968 + $0x38] sm:$0xff]
        %v2977 = vld [vmem:[%s2968 + $0x40] sm:$0xff]
        %v2978 = vld [vmem:[%s2968 + $0x48] sm:$0xff]
        %v2979 = vld [vmem:[%s2968 + $0x50] sm:$0xff]
        %v2980 = vld [vmem:[%s2968 + $0x58] sm:$0xff]
        %v2981 = vld [vmem:[%s2968 + $0x60] sm:$0xff]
        %v2982 = vld [vmem:[%s2968 + $0x68] sm:$0xff]
        %v2983 = vld [vmem:[%s2968 + $0x70] sm:$0xff]
        %v2984 = vld [vmem:[%s2968 + $0x78] sm:$0xff]
        %v2986 = vsel %vm1027, %v2969, 0
        %v2989 = vsel %vm1027, %v2970, 0
        %v2992 = vsel %vm1027, %v2971, 0
        %v2995 = vsel %vm1027, %v2972, 0
        %v2998 = vsel %vm1027, %v2973, 0
        %v3001 = vsel %vm1027, %v2974, 0
        %v3004 = vsel %vm1027, %v2975, 0
        %v3007 = vsel %vm1027, %v2976, 0
        %v3010 = vsel %vm1027, %v2977, 0
        %v3013 = vsel %vm1027, %v2978, 0
        %v3016 = vsel %vm1027, %v2979, 0
        %v3019 = vsel %vm1027, %v2980, 0
        %v3022 = vsel %vm1027, %v2981, 0
        %v3025 = vsel %vm1027, %v2982, 0
        %v3028 = vsel %vm1027, %v2983, 0
        %v3031 = vsel %vm1027, %v2984, 0
        %3033 = vmatprep.subr.mxu0 0.0
        %3034 = vmatpush1.msra.mxu0 %v2960
        %3035 = vmatprep.subr.mxu0 0.0
        %3036 = vmatpush1.msra.mxu0 %v2961
        %3037 = vmatprep.subr.mxu0 0.0
        %3038 = vmatpush1.msra.mxu0 %v2962
        %3039 = vmatprep.subr.mxu0 0.0
        %3040 = vmatpush1.msra.mxu0 %v2963
        %3041 = vmatprep.subr.mxu0 0.0
        %3042 = vmatpush1.msra.mxu0 %v2964
        %3043 = vmatprep.subr.mxu0 0.0
        %3044 = vmatpush1.msra.mxu0 %v2965
        %3045 = vmatprep.subr.mxu0 0.0
        %3046 = vmatpush1.msra.mxu0 %v2966
        %3047 = vmatprep.subr.mxu0 0.0
        %3048 = vmatpush1.msra.mxu0 %v2967
        %3049 = vmatprep.subr.mxu0 0.0
        %3050 = vmatpush1.msra.mxu0 0.0
        %3051 = vmatprep.subr.mxu0 0.0
        %3052 = vmatpush1.msra.mxu0 0.0
        %3053 = vmatprep.subr.mxu0 0.0
        %3054 = vmatpush1.msra.mxu0 0.0
        %3055 = vmatprep.subr.mxu0 0.0
        %3056 = vmatpush1.msra.mxu0 0.0
        %3057 = vmatprep.subr.mxu0 0.0
        %3058 = vmatpush1.msra.mxu0 0.0
        %3059 = vmatprep.subr.mxu0 0.0
        %3060 = vmatpush1.msra.mxu0 0.0
        %3061 = vmatprep.subr.mxu0 0.0
        %3062 = vmatpush1.msra.mxu0 0.0
        %3063 = vmatprep.subr.mxu0 0.0
        %3064 = vmatpush1.msra.mxu0 0.0
        %3065 = vmatprep.subr.mxu0 0.0
        %3066 = vmatpush1.msra.mxu0 0.0
        %3067 = vmatprep.subr.mxu0 0.0
        %3068 = vmatpush1.msra.mxu0 0.0
        %3069 = vmatprep.subr.mxu0 0.0
        %3070 = vmatpush1.msra.mxu0 0.0
        %3071 = vmatprep.subr.mxu0 0.0
        %3072 = vmatpush1.msra.mxu0 0.0
        %3073 = vmatprep.subr.mxu0 0.0
        %3074 = vmatpush1.msra.mxu0 0.0
        %3075 = vmatprep.subr.mxu0 0.0
        %3076 = vmatpush1.msra.mxu0 0.0
        %3077 = vmatprep.subr.mxu0 0.0
        %3078 = vmatpush1.msra.mxu0 0.0
        %3079 = vmatprep.subr.mxu0 0.0
        %3080 = vmatpush1.msra.mxu0 0.0
        %3081 = vmatprep.subr.mxu0 0.0
        %3082 = vmatpush1.msra.mxu0 0.0
        %3083 = vmatprep.subr.mxu0 0.0
        %3084 = vmatpush1.msra.mxu0 0.0
        %3085 = vmatprep.subr.mxu0 0.0
        %3086 = vmatpush1.msra.mxu0 0.0
        %3087 = vmatprep.subr.mxu0 0.0
        %3088 = vmatpush1.msra.mxu0 0.0
        %3089 = vmatprep.subr.mxu0 0.0
        %3090 = vmatpush1.msra.mxu0 0.0
        %3091 = vmatprep.subr.mxu0 0.0
        %3092 = vmatpush1.msra.mxu0 0.0
        %3093 = vmatprep.subr.mxu0 0.0
        %3094 = vmatpush1.msra.mxu0 0.0
        %3095 = vmatprep.subr.mxu0 0.0
        %3096 = vmatpush1.msra.mxu0 0.0
        %3097 = vmatprep.mubr.f32.mxu0 0.0
        %3098 = vmatmul.mubr.f32.gmra.mrb[0].mxu0 %v2986
        %v3099 = vpop.f32.mrb[0].mxu0
        %v3100 = vadd.f32 0.0, %v3099
        %v3101 = vpop.f32.mrb[0].mxu0
        %3102 = vmatprep.mubr.f32.mxu0 0.0
        %3103 = vmatmul.mubr.f32.gmra.mrb[0].mxu0 %v2989
        %v3104 = vpop.f32.mrb[0].mxu0
        %v3105 = vadd.f32 0.0, %v3104
        %v3106 = vpop.f32.mrb[0].mxu0
        %3107 = vmatprep.mubr.f32.mxu0 0.0
        %3108 = vmatmul.mubr.f32.gmra.mrb[0].mxu0 %v2992
        %v3109 = vpop.f32.mrb[0].mxu0
        %v3110 = vadd.f32 0.0, %v3109
        %v3111 = vpop.f32.mrb[0].mxu0
        %3112 = vmatprep.mubr.f32.mxu0 0.0
        %3113 = vmatmul.mubr.f32.gmra.mrb[0].mxu0 %v2995
        %v3114 = vpop.f32.mrb[0].mxu0
        %v3115 = vadd.f32 0.0, %v3114
        %v3116 = vpop.f32.mrb[0].mxu0
        %3117 = vmatprep.mubr.f32.mxu0 0.0
        %3118 = vmatmul.mubr.f32.gmra.mrb[0].mxu0 %v2998
        %v3119 = vpop.f32.mrb[0].mxu0
        %v3120 = vadd.f32 0.0, %v3119
        %v3121 = vpop.f32.mrb[0].mxu0
        %3122 = vmatprep.mubr.f32.mxu0 0.0
        %3123 = vmatmul.mubr.f32.gmra.mrb[0].mxu0 %v3001
        %v3124 = vpop.f32.mrb[0].mxu0
        %v3125 = vadd.f32 0.0, %v3124
        %v3126 = vpop.f32.mrb[0].mxu0
        %3127 = vmatprep.mubr.f32.mxu0 0.0
        %3128 = vmatmul.mubr.f32.gmra.mrb[0].mxu0 %v3004
        %v3129 = vpop.f32.mrb[0].mxu0
        %v3130 = vadd.f32 0.0, %v3129
        %v3131 = vpop.f32.mrb[0].mxu0
        %3132 = vmatprep.mubr.f32.mxu0 0.0
        %3133 = vmatmul.mubr.f32.gmra.mrb[0].mxu0 %v3007
        %v3134 = vpop.f32.mrb[0].mxu0
        %v3135 = vadd.f32 0.0, %v3134
        %v3136 = vpop.f32.mrb[0].mxu0
        %3137 = vmatprep.mubr.f32.mxu0 0.0
        %3138 = vmatmul.mubr.f32.gmra.mrb[0].mxu0 %v3010
        %v3139 = vpop.f32.mrb[0].mxu0
        %v3140 = vadd.f32 0.0, %v3139
        %v3141 = vpop.f32.mrb[0].mxu0
        %3142 = vmatprep.mubr.f32.mxu0 0.0
        %3143 = vmatmul.mubr.f32.gmra.mrb[0].mxu0 %v3013
        %v3144 = vpop.f32.mrb[0].mxu0
        %v3145 = vadd.f32 0.0, %v3144
        %v3146 = vpop.f32.mrb[0].mxu0
        %3147 = vmatprep.mubr.f32.mxu0 0.0
        %3148 = vmatmul.mubr.f32.gmra.mrb[0].mxu0 %v3016
        %v3149 = vpop.f32.mrb[0].mxu0
        %v3150 = vadd.f32 0.0, %v3149
        %v3151 = vpop.f32.mrb[0].mxu0
        %3152 = vmatprep.mubr.f32.mxu0 0.0
        %3153 = vmatmul.mubr.f32.gmra.mrb[0].mxu0 %v3019
        %v3154 = vpop.f32.mrb[0].mxu0
        %v3155 = vadd.f32 0.0, %v3154
        %v3156 = vpop.f32.mrb[0].mxu0
        %3157 = vmatprep.mubr.f32.mxu0 0.0
        %3158 = vmatmul.mubr.f32.gmra.mrb[0].mxu0 %v3022
        %v3159 = vpop.f32.mrb[0].mxu0
        %v3160 = vadd.f32 0.0, %v3159
        %v3161 = vpop.f32.mrb[0].mxu0
        %3162 = vmatprep.mubr.f32.mxu0 0.0
        %3163 = vmatmul.mubr.f32.gmra.mrb[0].mxu0 %v3025
        %v3164 = vpop.f32.mrb[0].mxu0
        %v3165 = vadd.f32 0.0, %v3164
        %v3166 = vpop.f32.mrb[0].mxu0
        %3167 = vmatprep.mubr.f32.mxu0 0.0
        %3168 = vmatmul.mubr.f32.gmra.mrb[0].mxu0 %v3028
        %v3169 = vpop.f32.mrb[0].mxu0
        %v3170 = vadd.f32 0.0, %v3169
        %v3171 = vpop.f32.mrb[0].mxu0
        %3172 = vmatprep.mubr.f32.mxu0 0.0
        %3173 = vmatmul.mubr.f32.gmra.mrb[0].mxu0 %v3031
        %v3174 = vpop.f32.mrb[0].mxu0
        %v3175 = vadd.f32 0.0, %v3174
        %v3176 = vpop.f32.mrb[0].mxu0
        %3177 = vdwg.mxu0
        %v3178 = vadd.f32 %v2920, %v3100
        %v3179 = vadd.f32 %v2921, %v3105
        %v3180 = vadd.f32 %v2922, %v3110
        %v3181 = vadd.f32 %v2923, %v3115
        %v3182 = vadd.f32 %v2924, %v3120
        %v3183 = vadd.f32 %v2925, %v3125
        %v3184 = vadd.f32 %v2926, %v3130
        %v3185 = vadd.f32 %v2927, %v3135
        %v3186 = vadd.f32 %v2928, %v3140
        %v3187 = vadd.f32 %v2929, %v3145
        %v3188 = vadd.f32 %v2930, %v3150
        %v3189 = vadd.f32 %v2931, %v3155
        %v3190 = vadd.f32 %v2932, %v3160
        %v3191 = vadd.f32 %v2933, %v3165
        %v3192 = vadd.f32 %v2934, %v3170
        %v3193 = vadd.f32 %v2935, %v3175
        %s3194 = scalar_lea.vmem [#allocation11], 896
        %v3195 = vld [vmem:[%s3194] sm:$0xff]
        %v3196 = vld [vmem:[%s3194 + $0x8] sm:$0xff]
        %v3197 = vld [vmem:[%s3194 + $0x10] sm:$0xff]
        %v3198 = vld [vmem:[%s3194 + $0x18] sm:$0xff]
        %v3199 = vld [vmem:[%s3194 + $0x20] sm:$0xff]
        %v3200 = vld [vmem:[%s3194 + $0x28] sm:$0xff]
        %v3201 = vld [vmem:[%s3194 + $0x30] sm:$0xff]
        %v3202 = vld [vmem:[%s3194 + $0x38] sm:$0xff]
        %v3203 = vld [vmem:[%s3194 + $0x40] sm:$0xff]
        %v3204 = vld [vmem:[%s3194 + $0x48] sm:$0xff]
        %v3205 = vld [vmem:[%s3194 + $0x50] sm:$0xff]
        %v3206 = vld [vmem:[%s3194 + $0x58] sm:$0xff]
        %v3207 = vld [vmem:[%s3194 + $0x60] sm:$0xff]
        %v3208 = vld [vmem:[%s3194 + $0x68] sm:$0xff]
        %v3209 = vld [vmem:[%s3194 + $0x70] sm:$0xff]
        %v3210 = vld [vmem:[%s3194 + $0x78] sm:$0xff]
        %3211 = vrot.lane.b32.xlu0 %v1295, 112
        %v3212 = vpop.permute.xlu0 %3211
        %3213 = vrot.lane.b32.xlu0 %v1297, 112
        %v3214 = vpop.permute.xlu0 %3213
        %3215 = vrot.lane.b32.xlu0 %v1299, 112
        %v3216 = vpop.permute.xlu0 %3215
        %3217 = vrot.lane.b32.xlu0 %v1301, 112
        %v3218 = vpop.permute.xlu0 %3217
        %3219 = vrot.lane.b32.xlu0 %v1303, 112
        %v3220 = vpop.permute.xlu0 %3219
        %3221 = vrot.lane.b32.xlu0 %v1305, 112
        %v3222 = vpop.permute.xlu0 %3221
        %3223 = vrot.lane.b32.xlu0 %v1307, 112
        %v3224 = vpop.permute.xlu0 %3223
        %3225 = vrot.lane.b32.xlu0 %v1309, 112
        %v3226 = vpop.permute.xlu0 %3225
        %v3236 = vsel %vm1027, %v3195, 0
        %v3239 = vsel %vm1027, %v3196, 0
        %v3242 = vsel %vm1027, %v3197, 0
        %v3245 = vsel %vm1027, %v3198, 0
        %v3248 = vsel %vm1027, %v3199, 0
        %v3251 = vsel %vm1027, %v3200, 0
        %v3254 = vsel %vm1027, %v3201, 0
        %v3257 = vsel %vm1027, %v3202, 0
        %v3260 = vsel %vm1027, %v3203, 0
        %v3263 = vsel %vm1027, %v3204, 0
        %v3266 = vsel %vm1027, %v3205, 0
        %v3269 = vsel %vm1027, %v3206, 0
        %v3272 = vsel %vm1027, %v3207, 0
        %v3275 = vsel %vm1027, %v3208, 0
        %v3278 = vsel %vm1027, %v3209, 0
        %v3281 = vsel %vm1027, %v3210, 0
        %3283 = vmatprep.subr.mxu0 0.0
        %3284 = vmatpush1.msra.mxu0 %v3212
        %3285 = vmatprep.subr.mxu0 0.0
        %3286 = vmatpush1.msra.mxu0 %v3214
        %3287 = vmatprep.subr.mxu0 0.0
        %3288 = vmatpush1.msra.mxu0 %v3216
        %3289 = vmatprep.subr.mxu0 0.0
        %3290 = vmatpush1.msra.mxu0 %v3218
        %3291 = vmatprep.subr.mxu0 0.0
        %3292 = vmatpush1.msra.mxu0 %v3220
        %3293 = vmatprep.subr.mxu0 0.0
        %3294 = vmatpush1.msra.mxu0 %v3222
        %3295 = vmatprep.subr.mxu0 0.0
        %3296 = vmatpush1.msra.mxu0 %v3224
        %3297 = vmatprep.subr.mxu0 0.0
        %3298 = vmatpush1.msra.mxu0 %v3226
        %3299 = vmatprep.subr.mxu0 0.0
        %3300 = vmatpush1.msra.mxu0 0.0
        %3301 = vmatprep.subr.mxu0 0.0
        %3302 = vmatpush1.msra.mxu0 0.0
        %3303 = vmatprep.subr.mxu0 0.0
        %3304 = vmatpush1.msra.mxu0 0.0
        %3305 = vmatprep.subr.mxu0 0.0
        %3306 = vmatpush1.msra.mxu0 0.0
        %3307 = vmatprep.subr.mxu0 0.0
        %3308 = vmatpush1.msra.mxu0 0.0
        %3309 = vmatprep.subr.mxu0 0.0
        %3310 = vmatpush1.msra.mxu0 0.0
        %3311 = vmatprep.subr.mxu0 0.0
        %3312 = vmatpush1.msra.mxu0 0.0
        %3313 = vmatprep.subr.mxu0 0.0
        %3314 = vmatpush1.msra.mxu0 0.0
        %3315 = vmatprep.subr.mxu0 0.0
        %3316 = vmatpush1.msra.mxu0 0.0
        %3317 = vmatprep.subr.mxu0 0.0
        %3318 = vmatpush1.msra.mxu0 0.0
        %3319 = vmatprep.subr.mxu0 0.0
        %3320 = vmatpush1.msra.mxu0 0.0
        %3321 = vmatprep.subr.mxu0 0.0
        %3322 = vmatpush1.msra.mxu0 0.0
        %3323 = vmatprep.subr.mxu0 0.0
        %3324 = vmatpush1.msra.mxu0 0.0
        %3325 = vmatprep.subr.mxu0 0.0
        %3326 = vmatpush1.msra.mxu0 0.0
        %3327 = vmatprep.subr.mxu0 0.0
        %3328 = vmatpush1.msra.mxu0 0.0
        %3329 = vmatprep.subr.mxu0 0.0
        %3330 = vmatpush1.msra.mxu0 0.0
        %3331 = vmatprep.subr.mxu0 0.0
        %3332 = vmatpush1.msra.mxu0 0.0
        %3333 = vmatprep.subr.mxu0 0.0
        %3334 = vmatpush1.msra.mxu0 0.0
        %3335 = vmatprep.subr.mxu0 0.0
        %3336 = vmatpush1.msra.mxu0 0.0
        %3337 = vmatprep.subr.mxu0 0.0
        %3338 = vmatpush1.msra.mxu0 0.0
        %3339 = vmatprep.subr.mxu0 0.0
        %3340 = vmatpush1.msra.mxu0 0.0
        %3341 = vmatprep.subr.mxu0 0.0
        %3342 = vmatpush1.msra.mxu0 0.0
        %3343 = vmatprep.subr.mxu0 0.0
        %3344 = vmatpush1.msra.mxu0 0.0
        %3345 = vmatprep.subr.mxu0 0.0
        %3346 = vmatpush1.msra.mxu0 0.0
        %3347 = vmatprep.mubr.f32.mxu0 0.0
        %3348 = vmatmul.mubr.f32.gmra.mrb[0].mxu0 %v3236
        %v3349 = vpop.f32.mrb[0].mxu0
        %v3350 = vadd.f32 0.0, %v3349
        %v3351 = vpop.f32.mrb[0].mxu0
        %3352 = vmatprep.mubr.f32.mxu0 0.0
        %3353 = vmatmul.mubr.f32.gmra.mrb[0].mxu0 %v3239
        %v3354 = vpop.f32.mrb[0].mxu0
        %v3355 = vadd.f32 0.0, %v3354
        %v3356 = vpop.f32.mrb[0].mxu0
        %3357 = vmatprep.mubr.f32.mxu0 0.0
        %3358 = vmatmul.mubr.f32.gmra.mrb[0].mxu0 %v3242
        %v3359 = vpop.f32.mrb[0].mxu0
        %v3360 = vadd.f32 0.0, %v3359
        %v3361 = vpop.f32.mrb[0].mxu0
        %3362 = vmatprep.mubr.f32.mxu0 0.0
        %3363 = vmatmul.mubr.f32.gmra.mrb[0].mxu0 %v3245
        %v3364 = vpop.f32.mrb[0].mxu0
        %v3365 = vadd.f32 0.0, %v3364
        %v3366 = vpop.f32.mrb[0].mxu0
        %3367 = vmatprep.mubr.f32.mxu0 0.0
        %3368 = vmatmul.mubr.f32.gmra.mrb[0].mxu0 %v3248
        %v3369 = vpop.f32.mrb[0].mxu0
        %v3370 = vadd.f32 0.0, %v3369
        %v3371 = vpop.f32.mrb[0].mxu0
        %3372 = vmatprep.mubr.f32.mxu0 0.0
        %3373 = vmatmul.mubr.f32.gmra.mrb[0].mxu0 %v3251
        %v3374 = vpop.f32.mrb[0].mxu0
        %v3375 = vadd.f32 0.0, %v3374
        %v3376 = vpop.f32.mrb[0].mxu0
        %3377 = vmatprep.mubr.f32.mxu0 0.0
        %3378 = vmatmul.mubr.f32.gmra.mrb[0].mxu0 %v3254
        %v3379 = vpop.f32.mrb[0].mxu0
        %v3380 = vadd.f32 0.0, %v3379
        %v3381 = vpop.f32.mrb[0].mxu0
        %3382 = vmatprep.mubr.f32.mxu0 0.0
        %3383 = vmatmul.mubr.f32.gmra.mrb[0].mxu0 %v3257
        %v3384 = vpop.f32.mrb[0].mxu0
        %v3385 = vadd.f32 0.0, %v3384
        %v3386 = vpop.f32.mrb[0].mxu0
        %3387 = vmatprep.mubr.f32.mxu0 0.0
        %3388 = vmatmul.mubr.f32.gmra.mrb[0].mxu0 %v3260
        %v3389 = vpop.f32.mrb[0].mxu0
        %v3390 = vadd.f32 0.0, %v3389
        %v3391 = vpop.f32.mrb[0].mxu0
        %3392 = vmatprep.mubr.f32.mxu0 0.0
        %3393 = vmatmul.mubr.f32.gmra.mrb[0].mxu0 %v3263
        %v3394 = vpop.f32.mrb[0].mxu0
        %v3395 = vadd.f32 0.0, %v3394
        %v3396 = vpop.f32.mrb[0].mxu0
        %3397 = vmatprep.mubr.f32.mxu0 0.0
        %3398 = vmatmul.mubr.f32.gmra.mrb[0].mxu0 %v3266
        %v3399 = vpop.f32.mrb[0].mxu0
        %v3400 = vadd.f32 0.0, %v3399
        %v3401 = vpop.f32.mrb[0].mxu0
        %3402 = vmatprep.mubr.f32.mxu0 0.0
        %3403 = vmatmul.mubr.f32.gmra.mrb[0].mxu0 %v3269
        %v3404 = vpop.f32.mrb[0].mxu0
        %v3405 = vadd.f32 0.0, %v3404
        %v3406 = vpop.f32.mrb[0].mxu0
        %3407 = vmatprep.mubr.f32.mxu0 0.0
        %3408 = vmatmul.mubr.f32.gmra.mrb[0].mxu0 %v3272
        %v3409 = vpop.f32.mrb[0].mxu0
        %v3410 = vadd.f32 0.0, %v3409
        %v3411 = vpop.f32.mrb[0].mxu0
        %3412 = vmatprep.mubr.f32.mxu0 0.0
        %3413 = vmatmul.mubr.f32.gmra.mrb[0].mxu0 %v3275
        %v3414 = vpop.f32.mrb[0].mxu0
        %v3415 = vadd.f32 0.0, %v3414
        %v3416 = vpop.f32.mrb[0].mxu0
        %3417 = vmatprep.mubr.f32.mxu0 0.0
        %3418 = vmatmul.mubr.f32.gmra.mrb[0].mxu0 %v3278
        %v3419 = vpop.f32.mrb[0].mxu0
        %v3420 = vadd.f32 0.0, %v3419
        %v3421 = vpop.f32.mrb[0].mxu0
        %3422 = vmatprep.mubr.f32.mxu0 0.0
        %3423 = vmatmul.mubr.f32.gmra.mrb[0].mxu0 %v3281
        %v3424 = vpop.f32.mrb[0].mxu0
        %v3425 = vadd.f32 0.0, %v3424
        %v3426 = vpop.f32.mrb[0].mxu0
        %3427 = vdwg.mxu0
        %v3428 = vadd.f32 %v3178, %v3350
        %v3429 = vadd.f32 %v3179, %v3355
        %v3430 = vadd.f32 %v3180, %v3360
        %v3431 = vadd.f32 %v3181, %v3365
        %v3432 = vadd.f32 %v3182, %v3370
        %v3433 = vadd.f32 %v3183, %v3375
        %v3434 = vadd.f32 %v3184, %v3380
        %v3435 = vadd.f32 %v3185, %v3385
        %v3436 = vadd.f32 %v3186, %v3390
        %v3437 = vadd.f32 %v3187, %v3395
        %v3438 = vadd.f32 %v3188, %v3400
        %v3439 = vadd.f32 %v3189, %v3405
        %v3440 = vadd.f32 %v3190, %v3410
        %v3441 = vadd.f32 %v3191, %v3415
        %v3442 = vadd.f32 %v3192, %v3420
        %v3443 = vadd.f32 %v3193, %v3425
        %3444 = vrot.lane.b32.xlu0 %v1295, 111
        %v3445 = vpop.permute.xlu0 %3444
        %3446 = vrot.lane.b32.xlu0 %v1297, 111
        %v3447 = vpop.permute.xlu0 %3446
        %3448 = vrot.lane.b32.xlu0 %v1299, 111
        %v3449 = vpop.permute.xlu0 %3448
        %3450 = vrot.lane.b32.xlu0 %v1301, 111
        %v3451 = vpop.permute.xlu0 %3450
        %3452 = vrot.lane.b32.xlu0 %v1303, 111
        %v3453 = vpop.permute.xlu0 %3452
        %3454 = vrot.lane.b32.xlu0 %v1305, 111
        %v3455 = vpop.permute.xlu0 %3454
        %3456 = vrot.lane.b32.xlu0 %v1307, 111
        %v3457 = vpop.permute.xlu0 %3456
        %3458 = vrot.lane.b32.xlu0 %v1309, 111
        %v3459 = vpop.permute.xlu0 %3458
        %v3468 = vsel %vm1885, %v3445, 0.0
        %v3469 = vsel %vm1885, %v3447, 0.0
        %v3470 = vsel %vm1885, %v3449, 0.0
        %v3471 = vsel %vm1885, %v3451, 0.0
        %v3472 = vsel %vm1885, %v3453, 0.0
        %v3473 = vsel %vm1885, %v3455, 0.0
        %v3474 = vsel %vm1885, %v3457, 0.0
        %v3475 = vsel %vm1885, %v3459, 0.0
        %s3476 = scalar_lea.vmem [#allocation11], 1024
        %v3477 = vld [vmem:[%s3476] sm:$0xff]
        %v3478 = vld [vmem:[%s3476 + $0x8] sm:$0xff]
        %v3479 = vld [vmem:[%s3476 + $0x10] sm:$0xff]
        %v3480 = vld [vmem:[%s3476 + $0x18] sm:$0xff]
        %v3481 = vld [vmem:[%s3476 + $0x20] sm:$0xff]
        %v3482 = vld [vmem:[%s3476 + $0x28] sm:$0xff]
        %v3483 = vld [vmem:[%s3476 + $0x30] sm:$0xff]
        %v3484 = vld [vmem:[%s3476 + $0x38] sm:$0xff]
        %v3485 = vld [vmem:[%s3476 + $0x40] sm:$0xff]
        %v3486 = vld [vmem:[%s3476 + $0x48] sm:$0xff]
        %v3487 = vld [vmem:[%s3476 + $0x50] sm:$0xff]
        %v3488 = vld [vmem:[%s3476 + $0x58] sm:$0xff]
        %v3489 = vld [vmem:[%s3476 + $0x60] sm:$0xff]
        %v3490 = vld [vmem:[%s3476 + $0x68] sm:$0xff]
        %v3491 = vld [vmem:[%s3476 + $0x70] sm:$0xff]
        %v3492 = vld [vmem:[%s3476 + $0x78] sm:$0xff]
        %v3494 = vsel %vm1027, %v3477, 0
        %v3497 = vsel %vm1027, %v3478, 0
        %v3500 = vsel %vm1027, %v3479, 0
        %v3503 = vsel %vm1027, %v3480, 0
        %v3506 = vsel %vm1027, %v3481, 0
        %v3509 = vsel %vm1027, %v3482, 0
        %v3512 = vsel %vm1027, %v3483, 0
        %v3515 = vsel %vm1027, %v3484, 0
        %v3518 = vsel %vm1027, %v3485, 0
        %v3521 = vsel %vm1027, %v3486, 0
        %v3524 = vsel %vm1027, %v3487, 0
        %v3527 = vsel %vm1027, %v3488, 0
        %v3530 = vsel %vm1027, %v3489, 0
        %v3533 = vsel %vm1027, %v3490, 0
        %v3536 = vsel %vm1027, %v3491, 0
        %v3539 = vsel %vm1027, %v3492, 0
        %3541 = vmatprep.subr.mxu0 0.0
        %3542 = vmatpush1.msra.mxu0 %v3468
        %3543 = vmatprep.subr.mxu0 0.0
        %3544 = vmatpush1.msra.mxu0 %v3469
        %3545 = vmatprep.subr.mxu0 0.0
        %3546 = vmatpush1.msra.mxu0 %v3470
        %3547 = vmatprep.subr.mxu0 0.0
        %3548 = vmatpush1.msra.mxu0 %v3471
        %3549 = vmatprep.subr.mxu0 0.0
        %3550 = vmatpush1.msra.mxu0 %v3472
        %3551 = vmatprep.subr.mxu0 0.0
        %3552 = vmatpush1.msra.mxu0 %v3473
        %3553 = vmatprep.subr.mxu0 0.0
        %3554 = vmatpush1.msra.mxu0 %v3474
        %3555 = vmatprep.subr.mxu0 0.0
        %3556 = vmatpush1.msra.mxu0 %v3475
        %3557 = vmatprep.subr.mxu0 0.0
        %3558 = vmatpush1.msra.mxu0 0.0
        %3559 = vmatprep.subr.mxu0 0.0
        %3560 = vmatpush1.msra.mxu0 0.0
        %3561 = vmatprep.subr.mxu0 0.0
        %3562 = vmatpush1.msra.mxu0 0.0
        %3563 = vmatprep.subr.mxu0 0.0
        %3564 = vmatpush1.msra.mxu0 0.0
        %3565 = vmatprep.subr.mxu0 0.0
        %3566 = vmatpush1.msra.mxu0 0.0
        %3567 = vmatprep.subr.mxu0 0.0
        %3568 = vmatpush1.msra.mxu0 0.0
        %3569 = vmatprep.subr.mxu0 0.0
        %3570 = vmatpush1.msra.mxu0 0.0
        %3571 = vmatprep.subr.mxu0 0.0
        %3572 = vmatpush1.msra.mxu0 0.0
        %3573 = vmatprep.subr.mxu0 0.0
        %3574 = vmatpush1.msra.mxu0 0.0
        %3575 = vmatprep.subr.mxu0 0.0
        %3576 = vmatpush1.msra.mxu0 0.0
        %3577 = vmatprep.subr.mxu0 0.0
        %3578 = vmatpush1.msra.mxu0 0.0
        %3579 = vmatprep.subr.mxu0 0.0
        %3580 = vmatpush1.msra.mxu0 0.0
        %3581 = vmatprep.subr.mxu0 0.0
        %3582 = vmatpush1.msra.mxu0 0.0
        %3583 = vmatprep.subr.mxu0 0.0
        %3584 = vmatpush1.msra.mxu0 0.0
        %3585 = vmatprep.subr.mxu0 0.0
        %3586 = vmatpush1.msra.mxu0 0.0
        %3587 = vmatprep.subr.mxu0 0.0
        %3588 = vmatpush1.msra.mxu0 0.0
        %3589 = vmatprep.subr.mxu0 0.0
        %3590 = vmatpush1.msra.mxu0 0.0
        %3591 = vmatprep.subr.mxu0 0.0
        %3592 = vmatpush1.msra.mxu0 0.0
        %3593 = vmatprep.subr.mxu0 0.0
        %3594 = vmatpush1.msra.mxu0 0.0
        %3595 = vmatprep.subr.mxu0 0.0
        %3596 = vmatpush1.msra.mxu0 0.0
        %3597 = vmatprep.subr.mxu0 0.0
        %3598 = vmatpush1.msra.mxu0 0.0
        %3599 = vmatprep.subr.mxu0 0.0
        %3600 = vmatpush1.msra.mxu0 0.0
        %3601 = vmatprep.subr.mxu0 0.0
        %3602 = vmatpush1.msra.mxu0 0.0
        %3603 = vmatprep.subr.mxu0 0.0
        %3604 = vmatpush1.msra.mxu0 0.0
        %3605 = vmatprep.mubr.f32.mxu0 0.0
        %3606 = vmatmul.mubr.f32.gmra.mrb[0].mxu0 %v3494
        %v3607 = vpop.f32.mrb[0].mxu0
        %v3608 = vadd.f32 0.0, %v3607
        %v3609 = vpop.f32.mrb[0].mxu0
        %3610 = vmatprep.mubr.f32.mxu0 0.0
        %3611 = vmatmul.mubr.f32.gmra.mrb[0].mxu0 %v3497
        %v3612 = vpop.f32.mrb[0].mxu0
        %v3613 = vadd.f32 0.0, %v3612
        %v3614 = vpop.f32.mrb[0].mxu0
        %3615 = vmatprep.mubr.f32.mxu0 0.0
        %3616 = vmatmul.mubr.f32.gmra.mrb[0].mxu0 %v3500
        %v3617 = vpop.f32.mrb[0].mxu0
        %v3618 = vadd.f32 0.0, %v3617
        %v3619 = vpop.f32.mrb[0].mxu0
        %3620 = vmatprep.mubr.f32.mxu0 0.0
        %3621 = vmatmul.mubr.f32.gmra.mrb[0].mxu0 %v3503
        %v3622 = vpop.f32.mrb[0].mxu0
        %v3623 = vadd.f32 0.0, %v3622
        %v3624 = vpop.f32.mrb[0].mxu0
        %3625 = vmatprep.mubr.f32.mxu0 0.0
        %3626 = vmatmul.mubr.f32.gmra.mrb[0].mxu0 %v3506
        %v3627 = vpop.f32.mrb[0].mxu0
        %v3628 = vadd.f32 0.0, %v3627
        %v3629 = vpop.f32.mrb[0].mxu0
        %3630 = vmatprep.mubr.f32.mxu0 0.0
        %3631 = vmatmul.mubr.f32.gmra.mrb[0].mxu0 %v3509
        %v3632 = vpop.f32.mrb[0].mxu0
        %v3633 = vadd.f32 0.0, %v3632
        %v3634 = vpop.f32.mrb[0].mxu0
        %3635 = vmatprep.mubr.f32.mxu0 0.0
        %3636 = vmatmul.mubr.f32.gmra.mrb[0].mxu0 %v3512
        %v3637 = vpop.f32.mrb[0].mxu0
        %v3638 = vadd.f32 0.0, %v3637
        %v3639 = vpop.f32.mrb[0].mxu0
        %3640 = vmatprep.mubr.f32.mxu0 0.0
        %3641 = vmatmul.mubr.f32.gmra.mrb[0].mxu0 %v3515
        %v3642 = vpop.f32.mrb[0].mxu0
        %v3643 = vadd.f32 0.0, %v3642
        %v3644 = vpop.f32.mrb[0].mxu0
        %3645 = vmatprep.mubr.f32.mxu0 0.0
        %3646 = vmatmul.mubr.f32.gmra.mrb[0].mxu0 %v3518
        %v3647 = vpop.f32.mrb[0].mxu0
        %v3648 = vadd.f32 0.0, %v3647
        %v3649 = vpop.f32.mrb[0].mxu0
        %3650 = vmatprep.mubr.f32.mxu0 0.0
        %3651 = vmatmul.mubr.f32.gmra.mrb[0].mxu0 %v3521
        %v3652 = vpop.f32.mrb[0].mxu0
        %v3653 = vadd.f32 0.0, %v3652
        %v3654 = vpop.f32.mrb[0].mxu0
        %3655 = vmatprep.mubr.f32.mxu0 0.0
        %3656 = vmatmul.mubr.f32.gmra.mrb[0].mxu0 %v3524
        %v3657 = vpop.f32.mrb[0].mxu0
        %v3658 = vadd.f32 0.0, %v3657
        %v3659 = vpop.f32.mrb[0].mxu0
        %3660 = vmatprep.mubr.f32.mxu0 0.0
        %3661 = vmatmul.mubr.f32.gmra.mrb[0].mxu0 %v3527
        %v3662 = vpop.f32.mrb[0].mxu0
        %v3663 = vadd.f32 0.0, %v3662
        %v3664 = vpop.f32.mrb[0].mxu0
        %3665 = vmatprep.mubr.f32.mxu0 0.0
        %3666 = vmatmul.mubr.f32.gmra.mrb[0].mxu0 %v3530
        %v3667 = vpop.f32.mrb[0].mxu0
        %v3668 = vadd.f32 0.0, %v3667
        %v3669 = vpop.f32.mrb[0].mxu0
        %3670 = vmatprep.mubr.f32.mxu0 0.0
        %3671 = vmatmul.mubr.f32.gmra.mrb[0].mxu0 %v3533
        %v3672 = vpop.f32.mrb[0].mxu0
        %v3673 = vadd.f32 0.0, %v3672
        %v3674 = vpop.f32.mrb[0].mxu0
        %3675 = vmatprep.mubr.f32.mxu0 0.0
        %3676 = vmatmul.mubr.f32.gmra.mrb[0].mxu0 %v3536
        %v3677 = vpop.f32.mrb[0].mxu0
        %v3678 = vadd.f32 0.0, %v3677
        %v3679 = vpop.f32.mrb[0].mxu0
        %3680 = vmatprep.mubr.f32.mxu0 0.0
        %3681 = vmatmul.mubr.f32.gmra.mrb[0].mxu0 %v3539
        %v3682 = vpop.f32.mrb[0].mxu0
        %v3683 = vadd.f32 0.0, %v3682
        %v3684 = vpop.f32.mrb[0].mxu0
        %3685 = vdwg.mxu0
        %v3686 = vadd.f32 %v3428, %v3608
        %v3687 = vadd.f32 %v3429, %v3613
        %v3688 = vadd.f32 %v3430, %v3618
        %v3689 = vadd.f32 %v3431, %v3623
        %v3690 = vadd.f32 %v3432, %v3628
        %v3691 = vadd.f32 %v3433, %v3633
        %v3692 = vadd.f32 %v3434, %v3638
        %v3693 = vadd.f32 %v3435, %v3643
        %v3694 = vadd.f32 %v3436, %v3648
        %v3695 = vadd.f32 %v3437, %v3653
        %v3696 = vadd.f32 %v3438, %v3658
        %v3697 = vadd.f32 %v3439, %v3663
        %v3698 = vadd.f32 %v3440, %v3668
        %v3699 = vadd.f32 %v3441, %v3673
        %v3700 = vadd.f32 %v3442, %v3678
        %v3701 = vadd.f32 %v3443, %v3683
        %v3702 = vmul.f32 %v3686, 0.1
        %v3703 = vmul.f32 %v3687, 0.1
        %v3704 = vmul.f32 %v3688, 0.1
        %v3705 = vmul.f32 %v3689, 0.1
        %v3706 = vmul.f32 %v3690, 0.1
        %v3707 = vmul.f32 %v3691, 0.1
        %v3708 = vmul.f32 %v3692, 0.1
        %v3709 = vmul.f32 %v3693, 0.1
        %v3710 = vmul.f32 %v3694, 0.1
        %v3711 = vmul.f32 %v3695, 0.1
        %v3712 = vmul.f32 %v3696, 0.1
        %v3713 = vmul.f32 %v3697, 0.1
        %v3714 = vmul.f32 %v3698, 0.1
        %v3715 = vmul.f32 %v3699, 0.1
        %v3716 = vmul.f32 %v3700, 0.1
        %v3717 = vmul.f32 %v3701, 0.1
        %v3718 = vmax.f32 %v3686, %v3702
        %v3719 = vmax.f32 %v3687, %v3703
        %v3720 = vmax.f32 %v3688, %v3704
        %v3721 = vmax.f32 %v3689, %v3705
        %v3722 = vmax.f32 %v3690, %v3706
        %v3723 = vmax.f32 %v3691, %v3707
        %v3724 = vmax.f32 %v3692, %v3708
        %v3725 = vmax.f32 %v3693, %v3709
        %v3726 = vmax.f32 %v3694, %v3710
        %v3727 = vmax.f32 %v3695, %v3711
        %v3728 = vmax.f32 %v3696, %v3712
        %v3729 = vmax.f32 %v3697, %v3713
        %v3730 = vmax.f32 %v3698, %v3714
        %v3731 = vmax.f32 %v3699, %v3715
        %v3732 = vmax.f32 %v3700, %v3716
        %v3733 = vmax.f32 %v3701, %v3717
        %v3734 = vld [vmem:[%s330] sm:$0xff]
        %v3735 = vld [vmem:[%s330 + $0x8] sm:$0xff]
        %v3736 = vld [vmem:[%s330 + $0x10] sm:$0xff]
        %v3737 = vld [vmem:[%s330 + $0x18] sm:$0xff]
        %v3738 = vld [vmem:[%s330 + $0x20] sm:$0xff]
        %v3739 = vld [vmem:[%s330 + $0x28] sm:$0xff]
        %v3740 = vld [vmem:[%s330 + $0x30] sm:$0xff]
        %v3741 = vld [vmem:[%s330 + $0x38] sm:$0xff]
        %v3742 = vld [vmem:[%s330 + $0x40] sm:$0xff]
        %v3743 = vld [vmem:[%s330 + $0x48] sm:$0xff]
        %v3744 = vld [vmem:[%s330 + $0x50] sm:$0xff]
        %v3745 = vld [vmem:[%s330 + $0x58] sm:$0xff]
        %v3746 = vld [vmem:[%s330 + $0x60] sm:$0xff]
        %v3747 = vld [vmem:[%s330 + $0x68] sm:$0xff]
        %v3748 = vld [vmem:[%s330 + $0x70] sm:$0xff]
        %v3749 = vld [vmem:[%s330 + $0x78] sm:$0xff]
        %v3750 = vadd.f32 %v3734, %v3718
        %v3751 = vadd.f32 %v3735, %v3719
        %v3752 = vadd.f32 %v3736, %v3720
        %v3753 = vadd.f32 %v3737, %v3721
        %v3754 = vadd.f32 %v3738, %v3722
        %v3755 = vadd.f32 %v3739, %v3723
        %v3756 = vadd.f32 %v3740, %v3724
        %v3757 = vadd.f32 %v3741, %v3725
        %v3758 = vadd.f32 %v3742, %v3726
        %v3759 = vadd.f32 %v3743, %v3727
        %v3760 = vadd.f32 %v3744, %v3728
        %v3761 = vadd.f32 %v3745, %v3729
        %v3762 = vadd.f32 %v3746, %v3730
        %v3763 = vadd.f32 %v3747, %v3731
        %v3764 = vadd.f32 %v3748, %v3732
        %v3765 = vadd.f32 %v3749, %v3733
        %3766 = vst.msk [vmem:[%s388] sm:$0xff] %vm1027, %v3750
        %3767 = vst.msk [vmem:[%s388 + $0x8] sm:$0xff] %vm1027, %v3751
        %3768 = vst.msk [vmem:[%s388 + $0x10] sm:$0xff] %vm1027, %v3752
        %3769 = vst.msk [vmem:[%s388 + $0x18] sm:$0xff] %vm1027, %v3753
        %3770 = vst.msk [vmem:[%s388 + $0x20] sm:$0xff] %vm1027, %v3754
        %3771 = vst.msk [vmem:[%s388 + $0x28] sm:$0xff] %vm1027, %v3755
        %3772 = vst.msk [vmem:[%s388 + $0x30] sm:$0xff] %vm1027, %v3756
        %3773 = vst.msk [vmem:[%s388 + $0x38] sm:$0xff] %vm1027, %v3757
        %3774 = vst.msk [vmem:[%s388 + $0x40] sm:$0xff] %vm1027, %v3758
        %3775 = vst.msk [vmem:[%s388 + $0x48] sm:$0xff] %vm1027, %v3759
        %3776 = vst.msk [vmem:[%s388 + $0x50] sm:$0xff] %vm1027, %v3760
        %3777 = vst.msk [vmem:[%s388 + $0x58] sm:$0xff] %vm1027, %v3761
        %3778 = vst.msk [vmem:[%s388 + $0x60] sm:$0xff] %vm1027, %v3762
        %3779 = vst.msk [vmem:[%s388 + $0x68] sm:$0xff] %vm1027, %v3763
        %3780 = vst.msk [vmem:[%s388 + $0x70] sm:$0xff] %vm1027, %v3764
        %3781 = vst.msk [vmem:[%s388 + $0x78] sm:$0xff] %vm1027, %v3765
        %v3782 = vld [vmem:[#allocation2 + $0x8] sm:$0xff]
        %v3783 = vld [vmem:[#allocation2 + $0x28] sm:$0xff]
        %v3784 = vld [vmem:[#allocation2 + $0x48] sm:$0xff]
        %v3785 = vld [vmem:[#allocation2 + $0x68] sm:$0xff]
        %v3786 = vld [vmem:[#allocation2 + $0x88] sm:$0xff]
        %v3787 = vld [vmem:[#allocation2 + $0xa8] sm:$0xff]
        %v3788 = vld [vmem:[#allocation2 + $0xc8] sm:$0xff]
        %v3789 = vld [vmem:[#allocation2 + $0xe8] sm:$0xff]
        %3798 = vrot.lane.b32.xlu0 %v3782, 81
        %v3799 = vpop.permute.xlu0 %3798
        %3800 = vrot.lane.b32.xlu0 %v3783, 81
        %v3801 = vpop.permute.xlu0 %3800
        %3802 = vrot.lane.b32.xlu0 %v3784, 81
        %v3803 = vpop.permute.xlu0 %3802
        %3804 = vrot.lane.b32.xlu0 %v3785, 81
        %v3805 = vpop.permute.xlu0 %3804
        %3806 = vrot.lane.b32.xlu0 %v3786, 81
        %v3807 = vpop.permute.xlu0 %3806
        %3808 = vrot.lane.b32.xlu0 %v3787, 81
        %v3809 = vpop.permute.xlu0 %3808
        %3810 = vrot.lane.b32.xlu0 %v3788, 81
        %v3811 = vpop.permute.xlu0 %3810
        %3812 = vrot.lane.b32.xlu0 %v3789, 81
        %v3813 = vpop.permute.xlu0 %3812
        %v3822 = vsel %vm1311, %v3799, 0.0
        %v3823 = vsel %vm1311, %v3801, 0.0
        %v3824 = vsel %vm1311, %v3803, 0.0
        %v3825 = vsel %vm1311, %v3805, 0.0
        %v3826 = vsel %vm1311, %v3807, 0.0
        %v3827 = vsel %vm1311, %v3809, 0.0
        %v3828 = vsel %vm1311, %v3811, 0.0
        %v3829 = vsel %vm1311, %v3813, 0.0
        %v3830 = vld [vmem:[#allocation11] sm:$0xff]
        %v3831 = vld [vmem:[#allocation11 + $0x8] sm:$0xff]
        %v3832 = vld [vmem:[#allocation11 + $0x10] sm:$0xff]
        %v3833 = vld [vmem:[#allocation11 + $0x18] sm:$0xff]
        %v3834 = vld [vmem:[#allocation11 + $0x20] sm:$0xff]
        %v3835 = vld [vmem:[#allocation11 + $0x28] sm:$0xff]
        %v3836 = vld [vmem:[#allocation11 + $0x30] sm:$0xff]
        %v3837 = vld [vmem:[#allocation11 + $0x38] sm:$0xff]
        %v3838 = vld [vmem:[#allocation11 + $0x40] sm:$0xff]
        %v3839 = vld [vmem:[#allocation11 + $0x48] sm:$0xff]
        %v3840 = vld [vmem:[#allocation11 + $0x50] sm:$0xff]
        %v3841 = vld [vmem:[#allocation11 + $0x58] sm:$0xff]
        %v3842 = vld [vmem:[#allocation11 + $0x60] sm:$0xff]
        %v3843 = vld [vmem:[#allocation11 + $0x68] sm:$0xff]
        %v3844 = vld [vmem:[#allocation11 + $0x70] sm:$0xff]
        %v3845 = vld [vmem:[#allocation11 + $0x78] sm:$0xff]
        %v3847 = vsel %vm1027, %v3830, 0
        %v3850 = vsel %vm1027, %v3831, 0
        %v3853 = vsel %vm1027, %v3832, 0
        %v3856 = vsel %vm1027, %v3833, 0
        %v3859 = vsel %vm1027, %v3834, 0
        %v3862 = vsel %vm1027, %v3835, 0
        %v3865 = vsel %vm1027, %v3836, 0
        %v3868 = vsel %vm1027, %v3837, 0
        %v3871 = vsel %vm1027, %v3838, 0
        %v3874 = vsel %vm1027, %v3839, 0
        %v3877 = vsel %vm1027, %v3840, 0
        %v3880 = vsel %vm1027, %v3841, 0
        %v3883 = vsel %vm1027, %v3842, 0
        %v3886 = vsel %vm1027, %v3843, 0
        %v3889 = vsel %vm1027, %v3844, 0
        %v3892 = vsel %vm1027, %v3845, 0
        %3894 = vmatprep.subr.mxu0 0.0
        %3895 = vmatpush1.msra.mxu0 %v3822
        %3896 = vmatprep.subr.mxu0 0.0
        %3897 = vmatpush1.msra.mxu0 %v3823
        %3898 = vmatprep.subr.mxu0 0.0
        %3899 = vmatpush1.msra.mxu0 %v3824
        %3900 = vmatprep.subr.mxu0 0.0
        %3901 = vmatpush1.msra.mxu0 %v3825
        %3902 = vmatprep.subr.mxu0 0.0
        %3903 = vmatpush1.msra.mxu0 %v3826
        %3904 = vmatprep.subr.mxu0 0.0
        %3905 = vmatpush1.msra.mxu0 %v3827
        %3906 = vmatprep.subr.mxu0 0.0
        %3907 = vmatpush1.msra.mxu0 %v3828
        %3908 = vmatprep.subr.mxu0 0.0
        %3909 = vmatpush1.msra.mxu0 %v3829
        %3910 = vmatprep.subr.mxu0 0.0
        %3911 = vmatpush1.msra.mxu0 0.0
        %3912 = vmatprep.subr.mxu0 0.0
        %3913 = vmatpush1.msra.mxu0 0.0
        %3914 = vmatprep.subr.mxu0 0.0
        %3915 = vmatpush1.msra.mxu0 0.0
        %3916 = vmatprep.subr.mxu0 0.0
        %3917 = vmatpush1.msra.mxu0 0.0
        %3918 = vmatprep.subr.mxu0 0.0
        %3919 = vmatpush1.msra.mxu0 0.0
        %3920 = vmatprep.subr.mxu0 0.0
        %3921 = vmatpush1.msra.mxu0 0.0
        %3922 = vmatprep.subr.mxu0 0.0
        %3923 = vmatpush1.msra.mxu0 0.0
        %3924 = vmatprep.subr.mxu0 0.0
        %3925 = vmatpush1.msra.mxu0 0.0
        %3926 = vmatprep.subr.mxu0 0.0
        %3927 = vmatpush1.msra.mxu0 0.0
        %3928 = vmatprep.subr.mxu0 0.0
        %3929 = vmatpush1.msra.mxu0 0.0
        %3930 = vmatprep.subr.mxu0 0.0
        %3931 = vmatpush1.msra.mxu0 0.0
        %3932 = vmatprep.subr.mxu0 0.0
        %3933 = vmatpush1.msra.mxu0 0.0
        %3934 = vmatprep.subr.mxu0 0.0
        %3935 = vmatpush1.msra.mxu0 0.0
        %3936 = vmatprep.subr.mxu0 0.0
        %3937 = vmatpush1.msra.mxu0 0.0
        %3938 = vmatprep.subr.mxu0 0.0
        %3939 = vmatpush1.msra.mxu0 0.0
        %3940 = vmatprep.subr.mxu0 0.0
        %3941 = vmatpush1.msra.mxu0 0.0
        %3942 = vmatprep.subr.mxu0 0.0
        %3943 = vmatpush1.msra.mxu0 0.0
        %3944 = vmatprep.subr.mxu0 0.0
        %3945 = vmatpush1.msra.mxu0 0.0
        %3946 = vmatprep.subr.mxu0 0.0
        %3947 = vmatpush1.msra.mxu0 0.0
        %3948 = vmatprep.subr.mxu0 0.0
        %3949 = vmatpush1.msra.mxu0 0.0
        %3950 = vmatprep.subr.mxu0 0.0
        %3951 = vmatpush1.msra.mxu0 0.0
        %3952 = vmatprep.subr.mxu0 0.0
        %3953 = vmatpush1.msra.mxu0 0.0
        %3954 = vmatprep.subr.mxu0 0.0
        %3955 = vmatpush1.msra.mxu0 0.0
        %3956 = vmatprep.subr.mxu0 0.0
        %3957 = vmatpush1.msra.mxu0 0.0
        %3958 = vmatprep.mubr.f32.mxu0 0.0
        %3959 = vmatmul.mubr.f32.gmra.mrb[0].mxu0 %v3847
        %v3960 = vpop.f32.mrb[0].mxu0
        %v3961 = vadd.f32 0.0, %v3960
        %v3962 = vpop.f32.mrb[0].mxu0
        %3963 = vmatprep.mubr.f32.mxu0 0.0
        %3964 = vmatmul.mubr.f32.gmra.mrb[0].mxu0 %v3850
        %v3965 = vpop.f32.mrb[0].mxu0
        %v3966 = vadd.f32 0.0, %v3965
        %v3967 = vpop.f32.mrb[0].mxu0
        %3968 = vmatprep.mubr.f32.mxu0 0.0
        %3969 = vmatmul.mubr.f32.gmra.mrb[0].mxu0 %v3853
        %v3970 = vpop.f32.mrb[0].mxu0
        %v3971 = vadd.f32 0.0, %v3970
        %v3972 = vpop.f32.mrb[0].mxu0
        %3973 = vmatprep.mubr.f32.mxu0 0.0
        %3974 = vmatmul.mubr.f32.gmra.mrb[0].mxu0 %v3856
        %v3975 = vpop.f32.mrb[0].mxu0
        %v3976 = vadd.f32 0.0, %v3975
        %v3977 = vpop.f32.mrb[0].mxu0
        %3978 = vmatprep.mubr.f32.mxu0 0.0
        %3979 = vmatmul.mubr.f32.gmra.mrb[0].mxu0 %v3859
        %v3980 = vpop.f32.mrb[0].mxu0
        %v3981 = vadd.f32 0.0, %v3980
        %v3982 = vpop.f32.mrb[0].mxu0
        %3983 = vmatprep.mubr.f32.mxu0 0.0
        %3984 = vmatmul.mubr.f32.gmra.mrb[0].mxu0 %v3862
        %v3985 = vpop.f32.mrb[0].mxu0
        %v3986 = vadd.f32 0.0, %v3985
        %v3987 = vpop.f32.mrb[0].mxu0
        %3988 = vmatprep.mubr.f32.mxu0 0.0
        %3989 = vmatmul.mubr.f32.gmra.mrb[0].mxu0 %v3865
        %v3990 = vpop.f32.mrb[0].mxu0
        %v3991 = vadd.f32 0.0, %v3990
        %v3992 = vpop.f32.mrb[0].mxu0
        %3993 = vmatprep.mubr.f32.mxu0 0.0
        %3994 = vmatmul.mubr.f32.gmra.mrb[0].mxu0 %v3868
        %v3995 = vpop.f32.mrb[0].mxu0
        %v3996 = vadd.f32 0.0, %v3995
        %v3997 = vpop.f32.mrb[0].mxu0
        %3998 = vmatprep.mubr.f32.mxu0 0.0
        %3999 = vmatmul.mubr.f32.gmra.mrb[0].mxu0 %v3871
        %v4000 = vpop.f32.mrb[0].mxu0
        %v4001 = vadd.f32 0.0, %v4000
        %v4002 = vpop.f32.mrb[0].mxu0
        %4003 = vmatprep.mubr.f32.mxu0 0.0
        %4004 = vmatmul.mubr.f32.gmra.mrb[0].mxu0 %v3874
        %v4005 = vpop.f32.mrb[0].mxu0
        %v4006 = vadd.f32 0.0, %v4005
        %v4007 = vpop.f32.mrb[0].mxu0
        %4008 = vmatprep.mubr.f32.mxu0 0.0
        %4009 = vmatmul.mubr.f32.gmra.mrb[0].mxu0 %v3877
        %v4010 = vpop.f32.mrb[0].mxu0
        %v4011 = vadd.f32 0.0, %v4010
        %v4012 = vpop.f32.mrb[0].mxu0
        %4013 = vmatprep.mubr.f32.mxu0 0.0
        %4014 = vmatmul.mubr.f32.gmra.mrb[0].mxu0 %v3880
        %v4015 = vpop.f32.mrb[0].mxu0
        %v4016 = vadd.f32 0.0, %v4015
        %v4017 = vpop.f32.mrb[0].mxu0
        %4018 = vmatprep.mubr.f32.mxu0 0.0
        %4019 = vmatmul.mubr.f32.gmra.mrb[0].mxu0 %v3883
        %v4020 = vpop.f32.mrb[0].mxu0
        %v4021 = vadd.f32 0.0, %v4020
        %v4022 = vpop.f32.mrb[0].mxu0
        %4023 = vmatprep.mubr.f32.mxu0 0.0
        %4024 = vmatmul.mubr.f32.gmra.mrb[0].mxu0 %v3886
        %v4025 = vpop.f32.mrb[0].mxu0
        %v4026 = vadd.f32 0.0, %v4025
        %v4027 = vpop.f32.mrb[0].mxu0
        %4028 = vmatprep.mubr.f32.mxu0 0.0
        %4029 = vmatmul.mubr.f32.gmra.mrb[0].mxu0 %v3889
        %v4030 = vpop.f32.mrb[0].mxu0
        %v4031 = vadd.f32 0.0, %v4030
        %v4032 = vpop.f32.mrb[0].mxu0
        %4033 = vmatprep.mubr.f32.mxu0 0.0
        %4034 = vmatmul.mubr.f32.gmra.mrb[0].mxu0 %v3892
        %v4035 = vpop.f32.mrb[0].mxu0
        %v4036 = vadd.f32 0.0, %v4035
        %v4037 = vpop.f32.mrb[0].mxu0
        %4038 = vdwg.mxu0
        %v4039 = vadd.f32 %v464, %v3961
        %v4040 = vadd.f32 %v469, %v3966
        %v4041 = vadd.f32 %v474, %v3971
        %v4042 = vadd.f32 %v479, %v3976
        %v4043 = vadd.f32 %v484, %v3981
        %v4044 = vadd.f32 %v489, %v3986
        %v4045 = vadd.f32 %v494, %v3991
        %v4046 = vadd.f32 %v499, %v3996
        %v4047 = vadd.f32 %v504, %v4001
        %v4048 = vadd.f32 %v509, %v4006
        %v4049 = vadd.f32 %v514, %v4011
        %v4050 = vadd.f32 %v519, %v4016
        %v4051 = vadd.f32 %v524, %v4021
        %v4052 = vadd.f32 %v529, %v4026
        %v4053 = vadd.f32 %v534, %v4031
        %v4054 = vadd.f32 %v539, %v4036
        %v4055 = vld [vmem:[%s1610] sm:$0xff]
        %v4056 = vld [vmem:[%s1610 + $0x8] sm:$0xff]
        %v4057 = vld [vmem:[%s1610 + $0x10] sm:$0xff]
        %v4058 = vld [vmem:[%s1610 + $0x18] sm:$0xff]
        %v4059 = vld [vmem:[%s1610 + $0x20] sm:$0xff]
        %v4060 = vld [vmem:[%s1610 + $0x28] sm:$0xff]
        %v4061 = vld [vmem:[%s1610 + $0x30] sm:$0xff]
        %v4062 = vld [vmem:[%s1610 + $0x38] sm:$0xff]
        %v4063 = vld [vmem:[%s1610 + $0x40] sm:$0xff]
        %v4064 = vld [vmem:[%s1610 + $0x48] sm:$0xff]
        %v4065 = vld [vmem:[%s1610 + $0x50] sm:$0xff]
        %v4066 = vld [vmem:[%s1610 + $0x58] sm:$0xff]
        %v4067 = vld [vmem:[%s1610 + $0x60] sm:$0xff]
        %v4068 = vld [vmem:[%s1610 + $0x68] sm:$0xff]
        %v4069 = vld [vmem:[%s1610 + $0x70] sm:$0xff]
        %v4070 = vld [vmem:[%s1610 + $0x78] sm:$0xff]
        %4071 = vrot.lane.b32.xlu0 %v3782, 80
        %v4072 = vpop.permute.xlu0 %4071
        %4073 = vrot.lane.b32.xlu0 %v3783, 80
        %v4074 = vpop.permute.xlu0 %4073
        %4075 = vrot.lane.b32.xlu0 %v3784, 80
        %v4076 = vpop.permute.xlu0 %4075
        %4077 = vrot.lane.b32.xlu0 %v3785, 80
        %v4078 = vpop.permute.xlu0 %4077
        %4079 = vrot.lane.b32.xlu0 %v3786, 80
        %v4080 = vpop.permute.xlu0 %4079
        %4081 = vrot.lane.b32.xlu0 %v3787, 80
        %v4082 = vpop.permute.xlu0 %4081
        %4083 = vrot.lane.b32.xlu0 %v3788, 80
        %v4084 = vpop.permute.xlu0 %4083
        %4085 = vrot.lane.b32.xlu0 %v3789, 80
        %v4086 = vpop.permute.xlu0 %4085
        %v4096 = vsel %vm1027, %v4055, 0
        %v4099 = vsel %vm1027, %v4056, 0
        %v4102 = vsel %vm1027, %v4057, 0
        %v4105 = vsel %vm1027, %v4058, 0
        %v4108 = vsel %vm1027, %v4059, 0
        %v4111 = vsel %vm1027, %v4060, 0
        %v4114 = vsel %vm1027, %v4061, 0
        %v4117 = vsel %vm1027, %v4062, 0
        %v4120 = vsel %vm1027, %v4063, 0
        %v4123 = vsel %vm1027, %v4064, 0
        %v4126 = vsel %vm1027, %v4065, 0
        %v4129 = vsel %vm1027, %v4066, 0
        %v4132 = vsel %vm1027, %v4067, 0
        %v4135 = vsel %vm1027, %v4068, 0
        %v4138 = vsel %vm1027, %v4069, 0
        %v4141 = vsel %vm1027, %v4070, 0
        %4143 = vmatprep.subr.mxu0 0.0
        %4144 = vmatpush1.msra.mxu0 %v4072
        %4145 = vmatprep.subr.mxu0 0.0
        %4146 = vmatpush1.msra.mxu0 %v4074
        %4147 = vmatprep.subr.mxu0 0.0
        %4148 = vmatpush1.msra.mxu0 %v4076
        %4149 = vmatprep.subr.mxu0 0.0
        %4150 = vmatpush1.msra.mxu0 %v4078
        %4151 = vmatprep.subr.mxu0 0.0
        %4152 = vmatpush1.msra.mxu0 %v4080
        %4153 = vmatprep.subr.mxu0 0.0
        %4154 = vmatpush1.msra.mxu0 %v4082
        %4155 = vmatprep.subr.mxu0 0.0
        %4156 = vmatpush1.msra.mxu0 %v4084
        %4157 = vmatprep.subr.mxu0 0.0
        %4158 = vmatpush1.msra.mxu0 %v4086
        %4159 = vmatprep.subr.mxu0 0.0
        %4160 = vmatpush1.msra.mxu0 0.0
        %4161 = vmatprep.subr.mxu0 0.0
        %4162 = vmatpush1.msra.mxu0 0.0
        %4163 = vmatprep.subr.mxu0 0.0
        %4164 = vmatpush1.msra.mxu0 0.0
        %4165 = vmatprep.subr.mxu0 0.0
        %4166 = vmatpush1.msra.mxu0 0.0
        %4167 = vmatprep.subr.mxu0 0.0
        %4168 = vmatpush1.msra.mxu0 0.0
        %4169 = vmatprep.subr.mxu0 0.0
        %4170 = vmatpush1.msra.mxu0 0.0
        %4171 = vmatprep.subr.mxu0 0.0
        %4172 = vmatpush1.msra.mxu0 0.0
        %4173 = vmatprep.subr.mxu0 0.0
        %4174 = vmatpush1.msra.mxu0 0.0
        %4175 = vmatprep.subr.mxu0 0.0
        %4176 = vmatpush1.msra.mxu0 0.0
        %4177 = vmatprep.subr.mxu0 0.0
        %4178 = vmatpush1.msra.mxu0 0.0
        %4179 = vmatprep.subr.mxu0 0.0
        %4180 = vmatpush1.msra.mxu0 0.0
        %4181 = vmatprep.subr.mxu0 0.0
        %4182 = vmatpush1.msra.mxu0 0.0
        %4183 = vmatprep.subr.mxu0 0.0
        %4184 = vmatpush1.msra.mxu0 0.0
        %4185 = vmatprep.subr.mxu0 0.0
        %4186 = vmatpush1.msra.mxu0 0.0
        %4187 = vmatprep.subr.mxu0 0.0
        %4188 = vmatpush1.msra.mxu0 0.0
        %4189 = vmatprep.subr.mxu0 0.0
        %4190 = vmatpush1.msra.mxu0 0.0
        %4191 = vmatprep.subr.mxu0 0.0
        %4192 = vmatpush1.msra.mxu0 0.0
        %4193 = vmatprep.subr.mxu0 0.0
        %4194 = vmatpush1.msra.mxu0 0.0
        %4195 = vmatprep.subr.mxu0 0.0
        %4196 = vmatpush1.msra.mxu0 0.0
        %4197 = vmatprep.subr.mxu0 0.0
        %4198 = vmatpush1.msra.mxu0 0.0
        %4199 = vmatprep.subr.mxu0 0.0
        %4200 = vmatpush1.msra.mxu0 0.0
        %4201 = vmatprep.subr.mxu0 0.0
        %4202 = vmatpush1.msra.mxu0 0.0
        %4203 = vmatprep.subr.mxu0 0.0
        %4204 = vmatpush1.msra.mxu0 0.0
        %4205 = vmatprep.subr.mxu0 0.0
        %4206 = vmatpush1.msra.mxu0 0.0
        %4207 = vmatprep.mubr.f32.mxu0 0.0
        %4208 = vmatmul.mubr.f32.gmra.mrb[0].mxu0 %v4096
        %v4209 = vpop.f32.mrb[0].mxu0
        %v4210 = vadd.f32 0.0, %v4209
        %v4211 = vpop.f32.mrb[0].mxu0
        %4212 = vmatprep.mubr.f32.mxu0 0.0
        %4213 = vmatmul.mubr.f32.gmra.mrb[0].mxu0 %v4099
        %v4214 = vpop.f32.mrb[0].mxu0
        %v4215 = vadd.f32 0.0, %v4214
        %v4216 = vpop.f32.mrb[0].mxu0
        %4217 = vmatprep.mubr.f32.mxu0 0.0
        %4218 = vmatmul.mubr.f32.gmra.mrb[0].mxu0 %v4102
        %v4219 = vpop.f32.mrb[0].mxu0
        %v4220 = vadd.f32 0.0, %v4219
        %v4221 = vpop.f32.mrb[0].mxu0
        %4222 = vmatprep.mubr.f32.mxu0 0.0
        %4223 = vmatmul.mubr.f32.gmra.mrb[0].mxu0 %v4105
        %v4224 = vpop.f32.mrb[0].mxu0
        %v4225 = vadd.f32 0.0, %v4224
        %v4226 = vpop.f32.mrb[0].mxu0
        %4227 = vmatprep.mubr.f32.mxu0 0.0
        %4228 = vmatmul.mubr.f32.gmra.mrb[0].mxu0 %v4108
        %v4229 = vpop.f32.mrb[0].mxu0
        %v4230 = vadd.f32 0.0, %v4229
        %v4231 = vpop.f32.mrb[0].mxu0
        %4232 = vmatprep.mubr.f32.mxu0 0.0
        %4233 = vmatmul.mubr.f32.gmra.mrb[0].mxu0 %v4111
        %v4234 = vpop.f32.mrb[0].mxu0
        %v4235 = vadd.f32 0.0, %v4234
        %v4236 = vpop.f32.mrb[0].mxu0
        %4237 = vmatprep.mubr.f32.mxu0 0.0
        %4238 = vmatmul.mubr.f32.gmra.mrb[0].mxu0 %v4114
        %v4239 = vpop.f32.mrb[0].mxu0
        %v4240 = vadd.f32 0.0, %v4239
        %v4241 = vpop.f32.mrb[0].mxu0
        %4242 = vmatprep.mubr.f32.mxu0 0.0
        %4243 = vmatmul.mubr.f32.gmra.mrb[0].mxu0 %v4117
        %v4244 = vpop.f32.mrb[0].mxu0
        %v4245 = vadd.f32 0.0, %v4244
        %v4246 = vpop.f32.mrb[0].mxu0
        %4247 = vmatprep.mubr.f32.mxu0 0.0
        %4248 = vmatmul.mubr.f32.gmra.mrb[0].mxu0 %v4120
        %v4249 = vpop.f32.mrb[0].mxu0
        %v4250 = vadd.f32 0.0, %v4249
        %v4251 = vpop.f32.mrb[0].mxu0
        %4252 = vmatprep.mubr.f32.mxu0 0.0
        %4253 = vmatmul.mubr.f32.gmra.mrb[0].mxu0 %v4123
        %v4254 = vpop.f32.mrb[0].mxu0
        %v4255 = vadd.f32 0.0, %v4254
        %v4256 = vpop.f32.mrb[0].mxu0
        %4257 = vmatprep.mubr.f32.mxu0 0.0
        %4258 = vmatmul.mubr.f32.gmra.mrb[0].mxu0 %v4126
        %v4259 = vpop.f32.mrb[0].mxu0
        %v4260 = vadd.f32 0.0, %v4259
        %v4261 = vpop.f32.mrb[0].mxu0
        %4262 = vmatprep.mubr.f32.mxu0 0.0
        %4263 = vmatmul.mubr.f32.gmra.mrb[0].mxu0 %v4129
        %v4264 = vpop.f32.mrb[0].mxu0
        %v4265 = vadd.f32 0.0, %v4264
        %v4266 = vpop.f32.mrb[0].mxu0
        %4267 = vmatprep.mubr.f32.mxu0 0.0
        %4268 = vmatmul.mubr.f32.gmra.mrb[0].mxu0 %v4132
        %v4269 = vpop.f32.mrb[0].mxu0
        %v4270 = vadd.f32 0.0, %v4269
        %v4271 = vpop.f32.mrb[0].mxu0
        %4272 = vmatprep.mubr.f32.mxu0 0.0
        %4273 = vmatmul.mubr.f32.gmra.mrb[0].mxu0 %v4135
        %v4274 = vpop.f32.mrb[0].mxu0
        %v4275 = vadd.f32 0.0, %v4274
        %v4276 = vpop.f32.mrb[0].mxu0
        %4277 = vmatprep.mubr.f32.mxu0 0.0
        %4278 = vmatmul.mubr.f32.gmra.mrb[0].mxu0 %v4138
        %v4279 = vpop.f32.mrb[0].mxu0
        %v4280 = vadd.f32 0.0, %v4279
        %v4281 = vpop.f32.mrb[0].mxu0
        %4282 = vmatprep.mubr.f32.mxu0 0.0
        %4283 = vmatmul.mubr.f32.gmra.mrb[0].mxu0 %v4141
        %v4284 = vpop.f32.mrb[0].mxu0
        %v4285 = vadd.f32 0.0, %v4284
        %v4286 = vpop.f32.mrb[0].mxu0
        %4287 = vdwg.mxu0
        %v4288 = vadd.f32 %v4039, %v4210
        %v4289 = vadd.f32 %v4040, %v4215
        %v4290 = vadd.f32 %v4041, %v4220
        %v4291 = vadd.f32 %v4042, %v4225
        %v4292 = vadd.f32 %v4043, %v4230
        %v4293 = vadd.f32 %v4044, %v4235
        %v4294 = vadd.f32 %v4045, %v4240
        %v4295 = vadd.f32 %v4046, %v4245
        %v4296 = vadd.f32 %v4047, %v4250
        %v4297 = vadd.f32 %v4048, %v4255
        %v4298 = vadd.f32 %v4049, %v4260
        %v4299 = vadd.f32 %v4050, %v4265
        %v4300 = vadd.f32 %v4051, %v4270
        %v4301 = vadd.f32 %v4052, %v4275
        %v4302 = vadd.f32 %v4053, %v4280
        %v4303 = vadd.f32 %v4054, %v4285
        %4304 = vrot.lane.b32.xlu0 %v3782, 79
        %v4305 = vpop.permute.xlu0 %4304
        %4306 = vrot.lane.b32.xlu0 %v3783, 79
        %v4307 = vpop.permute.xlu0 %4306
        %4308 = vrot.lane.b32.xlu0 %v3784, 79
        %v4309 = vpop.permute.xlu0 %4308
        %4310 = vrot.lane.b32.xlu0 %v3785, 79
        %v4311 = vpop.permute.xlu0 %4310
        %4312 = vrot.lane.b32.xlu0 %v3786, 79
        %v4313 = vpop.permute.xlu0 %4312
        %4314 = vrot.lane.b32.xlu0 %v3787, 79
        %v4315 = vpop.permute.xlu0 %4314
        %4316 = vrot.lane.b32.xlu0 %v3788, 79
        %v4317 = vpop.permute.xlu0 %4316
        %4318 = vrot.lane.b32.xlu0 %v3789, 79
        %v4319 = vpop.permute.xlu0 %4318
        %v4328 = vsel %vm1885, %v4305, 0.0
        %v4329 = vsel %vm1885, %v4307, 0.0
        %v4330 = vsel %vm1885, %v4309, 0.0
        %v4331 = vsel %vm1885, %v4311, 0.0
        %v4332 = vsel %vm1885, %v4313, 0.0
        %v4333 = vsel %vm1885, %v4315, 0.0
        %v4334 = vsel %vm1885, %v4317, 0.0
        %v4335 = vsel %vm1885, %v4319, 0.0
        %v4336 = vld [vmem:[%s1943] sm:$0xff]
        %v4337 = vld [vmem:[%s1943 + $0x8] sm:$0xff]
        %v4338 = vld [vmem:[%s1943 + $0x10] sm:$0xff]
        %v4339 = vld [vmem:[%s1943 + $0x18] sm:$0xff]
        %v4340 = vld [vmem:[%s1943 + $0x20] sm:$0xff]
        %v4341 = vld [vmem:[%s1943 + $0x28] sm:$0xff]
        %v4342 = vld [vmem:[%s1943 + $0x30] sm:$0xff]
        %v4343 = vld [vmem:[%s1943 + $0x38] sm:$0xff]
        %v4344 = vld [vmem:[%s1943 + $0x40] sm:$0xff]
        %v4345 = vld [vmem:[%s1943 + $0x48] sm:$0xff]
        %v4346 = vld [vmem:[%s1943 + $0x50] sm:$0xff]
        %v4347 = vld [vmem:[%s1943 + $0x58] sm:$0xff]
        %v4348 = vld [vmem:[%s1943 + $0x60] sm:$0xff]
        %v4349 = vld [vmem:[%s1943 + $0x68] sm:$0xff]
        %v4350 = vld [vmem:[%s1943 + $0x70] sm:$0xff]
        %v4351 = vld [vmem:[%s1943 + $0x78] sm:$0xff]
        %v4353 = vsel %vm1027, %v4336, 0
        %v4356 = vsel %vm1027, %v4337, 0
        %v4359 = vsel %vm1027, %v4338, 0
        %v4362 = vsel %vm1027, %v4339, 0
        %v4365 = vsel %vm1027, %v4340, 0
        %v4368 = vsel %vm1027, %v4341, 0
        %v4371 = vsel %vm1027, %v4342, 0
        %v4374 = vsel %vm1027, %v4343, 0
        %v4377 = vsel %vm1027, %v4344, 0
        %v4380 = vsel %vm1027, %v4345, 0
        %v4383 = vsel %vm1027, %v4346, 0
        %v4386 = vsel %vm1027, %v4347, 0
        %v4389 = vsel %vm1027, %v4348, 0
        %v4392 = vsel %vm1027, %v4349, 0
        %v4395 = vsel %vm1027, %v4350, 0
        %v4398 = vsel %vm1027, %v4351, 0
        %4400 = vmatprep.subr.mxu0 0.0
        %4401 = vmatpush1.msra.mxu0 %v4328
        %4402 = vmatprep.subr.mxu0 0.0
        %4403 = vmatpush1.msra.mxu0 %v4329
        %4404 = vmatprep.subr.mxu0 0.0
        %4405 = vmatpush1.msra.mxu0 %v4330
        %4406 = vmatprep.subr.mxu0 0.0
        %4407 = vmatpush1.msra.mxu0 %v4331
        %4408 = vmatprep.subr.mxu0 0.0
        %4409 = vmatpush1.msra.mxu0 %v4332
        %4410 = vmatprep.subr.mxu0 0.0
        %4411 = vmatpush1.msra.mxu0 %v4333
        %4412 = vmatprep.subr.mxu0 0.0
        %4413 = vmatpush1.msra.mxu0 %v4334
        %4414 = vmatprep.subr.mxu0 0.0
        %4415 = vmatpush1.msra.mxu0 %v4335
        %4416 = vmatprep.subr.mxu0 0.0
        %4417 = vmatpush1.msra.mxu0 0.0
        %4418 = vmatprep.subr.mxu0 0.0
        %4419 = vmatpush1.msra.mxu0 0.0
        %4420 = vmatprep.subr.mxu0 0.0
        %4421 = vmatpush1.msra.mxu0 0.0
        %4422 = vmatprep.subr.mxu0 0.0
        %4423 = vmatpush1.msra.mxu0 0.0
        %4424 = vmatprep.subr.mxu0 0.0
        %4425 = vmatpush1.msra.mxu0 0.0
        %4426 = vmatprep.subr.mxu0 0.0
        %4427 = vmatpush1.msra.mxu0 0.0
        %4428 = vmatprep.subr.mxu0 0.0
        %4429 = vmatpush1.msra.mxu0 0.0
        %4430 = vmatprep.subr.mxu0 0.0
        %4431 = vmatpush1.msra.mxu0 0.0
        %4432 = vmatprep.subr.mxu0 0.0
        %4433 = vmatpush1.msra.mxu0 0.0
        %4434 = vmatprep.subr.mxu0 0.0
        %4435 = vmatpush1.msra.mxu0 0.0
        %4436 = vmatprep.subr.mxu0 0.0
        %4437 = vmatpush1.msra.mxu0 0.0
        %4438 = vmatprep.subr.mxu0 0.0
        %4439 = vmatpush1.msra.mxu0 0.0
        %4440 = vmatprep.subr.mxu0 0.0
        %4441 = vmatpush1.msra.mxu0 0.0
        %4442 = vmatprep.subr.mxu0 0.0
        %4443 = vmatpush1.msra.mxu0 0.0
        %4444 = vmatprep.subr.mxu0 0.0
        %4445 = vmatpush1.msra.mxu0 0.0
        %4446 = vmatprep.subr.mxu0 0.0
        %4447 = vmatpush1.msra.mxu0 0.0
        %4448 = vmatprep.subr.mxu0 0.0
        %4449 = vmatpush1.msra.mxu0 0.0
        %4450 = vmatprep.subr.mxu0 0.0
        %4451 = vmatpush1.msra.mxu0 0.0
        %4452 = vmatprep.subr.mxu0 0.0
        %4453 = vmatpush1.msra.mxu0 0.0
        %4454 = vmatprep.subr.mxu0 0.0
        %4455 = vmatpush1.msra.mxu0 0.0
        %4456 = vmatprep.subr.mxu0 0.0
        %4457 = vmatpush1.msra.mxu0 0.0
        %4458 = vmatprep.subr.mxu0 0.0
        %4459 = vmatpush1.msra.mxu0 0.0
        %4460 = vmatprep.subr.mxu0 0.0
        %4461 = vmatpush1.msra.mxu0 0.0
        %4462 = vmatprep.subr.mxu0 0.0
        %4463 = vmatpush1.msra.mxu0 0.0
        %4464 = vmatprep.mubr.f32.mxu0 0.0
        %4465 = vmatmul.mubr.f32.gmra.mrb[0].mxu0 %v4353
        %v4466 = vpop.f32.mrb[0].mxu0
        %v4467 = vadd.f32 0.0, %v4466
        %v4468 = vpop.f32.mrb[0].mxu0
        %4469 = vmatprep.mubr.f32.mxu0 0.0
        %4470 = vmatmul.mubr.f32.gmra.mrb[0].mxu0 %v4356
        %v4471 = vpop.f32.mrb[0].mxu0
        %v4472 = vadd.f32 0.0, %v4471
        %v4473 = vpop.f32.mrb[0].mxu0
        %4474 = vmatprep.mubr.f32.mxu0 0.0
        %4475 = vmatmul.mubr.f32.gmra.mrb[0].mxu0 %v4359
        %v4476 = vpop.f32.mrb[0].mxu0
        %v4477 = vadd.f32 0.0, %v4476
        %v4478 = vpop.f32.mrb[0].mxu0
        %4479 = vmatprep.mubr.f32.mxu0 0.0
        %4480 = vmatmul.mubr.f32.gmra.mrb[0].mxu0 %v4362
        %v4481 = vpop.f32.mrb[0].mxu0
        %v4482 = vadd.f32 0.0, %v4481
        %v4483 = vpop.f32.mrb[0].mxu0
        %4484 = vmatprep.mubr.f32.mxu0 0.0
        %4485 = vmatmul.mubr.f32.gmra.mrb[0].mxu0 %v4365
        %v4486 = vpop.f32.mrb[0].mxu0
        %v4487 = vadd.f32 0.0, %v4486
        %v4488 = vpop.f32.mrb[0].mxu0
        %4489 = vmatprep.mubr.f32.mxu0 0.0
        %4490 = vmatmul.mubr.f32.gmra.mrb[0].mxu0 %v4368
        %v4491 = vpop.f32.mrb[0].mxu0
        %v4492 = vadd.f32 0.0, %v4491
        %v4493 = vpop.f32.mrb[0].mxu0
        %4494 = vmatprep.mubr.f32.mxu0 0.0
        %4495 = vmatmul.mubr.f32.gmra.mrb[0].mxu0 %v4371
        %v4496 = vpop.f32.mrb[0].mxu0
        %v4497 = vadd.f32 0.0, %v4496
        %v4498 = vpop.f32.mrb[0].mxu0
        %4499 = vmatprep.mubr.f32.mxu0 0.0
        %4500 = vmatmul.mubr.f32.gmra.mrb[0].mxu0 %v4374
        %v4501 = vpop.f32.mrb[0].mxu0
        %v4502 = vadd.f32 0.0, %v4501
        %v4503 = vpop.f32.mrb[0].mxu0
        %4504 = vmatprep.mubr.f32.mxu0 0.0
        %4505 = vmatmul.mubr.f32.gmra.mrb[0].mxu0 %v4377
        %v4506 = vpop.f32.mrb[0].mxu0
        %v4507 = vadd.f32 0.0, %v4506
        %v4508 = vpop.f32.mrb[0].mxu0
        %4509 = vmatprep.mubr.f32.mxu0 0.0
        %4510 = vmatmul.mubr.f32.gmra.mrb[0].mxu0 %v4380
        %v4511 = vpop.f32.mrb[0].mxu0
        %v4512 = vadd.f32 0.0, %v4511
        %v4513 = vpop.f32.mrb[0].mxu0
        %4514 = vmatprep.mubr.f32.mxu0 0.0
        %4515 = vmatmul.mubr.f32.gmra.mrb[0].mxu0 %v4383
        %v4516 = vpop.f32.mrb[0].mxu0
        %v4517 = vadd.f32 0.0, %v4516
        %v4518 = vpop.f32.mrb[0].mxu0
        %4519 = vmatprep.mubr.f32.mxu0 0.0
        %4520 = vmatmul.mubr.f32.gmra.mrb[0].mxu0 %v4386
        %v4521 = vpop.f32.mrb[0].mxu0
        %v4522 = vadd.f32 0.0, %v4521
        %v4523 = vpop.f32.mrb[0].mxu0
        %4524 = vmatprep.mubr.f32.mxu0 0.0
        %4525 = vmatmul.mubr.f32.gmra.mrb[0].mxu0 %v4389
        %v4526 = vpop.f32.mrb[0].mxu0
        %v4527 = vadd.f32 0.0, %v4526
        %v4528 = vpop.f32.mrb[0].mxu0
        %4529 = vmatprep.mubr.f32.mxu0 0.0
        %4530 = vmatmul.mubr.f32.gmra.mrb[0].mxu0 %v4392
        %v4531 = vpop.f32.mrb[0].mxu0
        %v4532 = vadd.f32 0.0, %v4531
        %v4533 = vpop.f32.mrb[0].mxu0
        %4534 = vmatprep.mubr.f32.mxu0 0.0
        %4535 = vmatmul.mubr.f32.gmra.mrb[0].mxu0 %v4395
        %v4536 = vpop.f32.mrb[0].mxu0
        %v4537 = vadd.f32 0.0, %v4536
        %v4538 = vpop.f32.mrb[0].mxu0
        %4539 = vmatprep.mubr.f32.mxu0 0.0
        %4540 = vmatmul.mubr.f32.gmra.mrb[0].mxu0 %v4398
        %v4541 = vpop.f32.mrb[0].mxu0
        %v4542 = vadd.f32 0.0, %v4541
        %v4543 = vpop.f32.mrb[0].mxu0
        %4544 = vdwg.mxu0
        %v4545 = vadd.f32 %v4288, %v4467
        %v4546 = vadd.f32 %v4289, %v4472
        %v4547 = vadd.f32 %v4290, %v4477
        %v4548 = vadd.f32 %v4291, %v4482
        %v4549 = vadd.f32 %v4292, %v4487
        %v4550 = vadd.f32 %v4293, %v4492
        %v4551 = vadd.f32 %v4294, %v4497
        %v4552 = vadd.f32 %v4295, %v4502
        %v4553 = vadd.f32 %v4296, %v4507
        %v4554 = vadd.f32 %v4297, %v4512
        %v4555 = vadd.f32 %v4298, %v4517
        %v4556 = vadd.f32 %v4299, %v4522
        %v4557 = vadd.f32 %v4300, %v4527
        %v4558 = vadd.f32 %v4301, %v4532
        %v4559 = vadd.f32 %v4302, %v4537
        %v4560 = vadd.f32 %v4303, %v4542
        %4561 = vrot.lane.b32.xlu0 %v3782, 65
        %v4562 = vpop.permute.xlu0 %4561
        %4563 = vrot.lane.b32.xlu0 %v3783, 65
        %v4564 = vpop.permute.xlu0 %4563
        %4565 = vrot.lane.b32.xlu0 %v3784, 65
        %v4566 = vpop.permute.xlu0 %4565
        %4567 = vrot.lane.b32.xlu0 %v3785, 65
        %v4568 = vpop.permute.xlu0 %4567
        %4569 = vrot.lane.b32.xlu0 %v3786, 65
        %v4570 = vpop.permute.xlu0 %4569
        %4571 = vrot.lane.b32.xlu0 %v3787, 65
        %v4572 = vpop.permute.xlu0 %4571
        %4573 = vrot.lane.b32.xlu0 %v3788, 65
        %v4574 = vpop.permute.xlu0 %4573
        %4575 = vrot.lane.b32.xlu0 %v3789, 65
        %v4576 = vpop.permute.xlu0 %4575
        %v4585 = vsel %vm1311, %v4562, 0.0
        %v4586 = vsel %vm1311, %v4564, 0.0
        %v4587 = vsel %vm1311, %v4566, 0.0
        %v4588 = vsel %vm1311, %v4568, 0.0
        %v4589 = vsel %vm1311, %v4570, 0.0
        %v4590 = vsel %vm1311, %v4572, 0.0
        %v4591 = vsel %vm1311, %v4574, 0.0
        %v4592 = vsel %vm1311, %v4576, 0.0
        %v4593 = vld [vmem:[%s2226] sm:$0xff]
        %v4594 = vld [vmem:[%s2226 + $0x8] sm:$0xff]
        %v4595 = vld [vmem:[%s2226 + $0x10] sm:$0xff]
        %v4596 = vld [vmem:[%s2226 + $0x18] sm:$0xff]
        %v4597 = vld [vmem:[%s2226 + $0x20] sm:$0xff]
        %v4598 = vld [vmem:[%s2226 + $0x28] sm:$0xff]
        %v4599 = vld [vmem:[%s2226 + $0x30] sm:$0xff]
        %v4600 = vld [vmem:[%s2226 + $0x38] sm:$0xff]
        %v4601 = vld [vmem:[%s2226 + $0x40] sm:$0xff]
        %v4602 = vld [vmem:[%s2226 + $0x48] sm:$0xff]
        %v4603 = vld [vmem:[%s2226 + $0x50] sm:$0xff]
        %v4604 = vld [vmem:[%s2226 + $0x58] sm:$0xff]
        %v4605 = vld [vmem:[%s2226 + $0x60] sm:$0xff]
        %v4606 = vld [vmem:[%s2226 + $0x68] sm:$0xff]
        %v4607 = vld [vmem:[%s2226 + $0x70] sm:$0xff]
        %v4608 = vld [vmem:[%s2226 + $0x78] sm:$0xff]
        %v4610 = vsel %vm1027, %v4593, 0
        %v4613 = vsel %vm1027, %v4594, 0
        %v4616 = vsel %vm1027, %v4595, 0
        %v4619 = vsel %vm1027, %v4596, 0
        %v4622 = vsel %vm1027, %v4597, 0
        %v4625 = vsel %vm1027, %v4598, 0
        %v4628 = vsel %vm1027, %v4599, 0
        %v4631 = vsel %vm1027, %v4600, 0
        %v4634 = vsel %vm1027, %v4601, 0
        %v4637 = vsel %vm1027, %v4602, 0
        %v4640 = vsel %vm1027, %v4603, 0
        %v4643 = vsel %vm1027, %v4604, 0
        %v4646 = vsel %vm1027, %v4605, 0
        %v4649 = vsel %vm1027, %v4606, 0
        %v4652 = vsel %vm1027, %v4607, 0
        %v4655 = vsel %vm1027, %v4608, 0
        %4657 = vmatprep.subr.mxu0 0.0
        %4658 = vmatpush1.msra.mxu0 %v4585
        %4659 = vmatprep.subr.mxu0 0.0
        %4660 = vmatpush1.msra.mxu0 %v4586
        %4661 = vmatprep.subr.mxu0 0.0
        %4662 = vmatpush1.msra.mxu0 %v4587
        %4663 = vmatprep.subr.mxu0 0.0
        %4664 = vmatpush1.msra.mxu0 %v4588
        %4665 = vmatprep.subr.mxu0 0.0
        %4666 = vmatpush1.msra.mxu0 %v4589
        %4667 = vmatprep.subr.mxu0 0.0
        %4668 = vmatpush1.msra.mxu0 %v4590
        %4669 = vmatprep.subr.mxu0 0.0
        %4670 = vmatpush1.msra.mxu0 %v4591
        %4671 = vmatprep.subr.mxu0 0.0
        %4672 = vmatpush1.msra.mxu0 %v4592
        %4673 = vmatprep.subr.mxu0 0.0
        %4674 = vmatpush1.msra.mxu0 0.0
        %4675 = vmatprep.subr.mxu0 0.0
        %4676 = vmatpush1.msra.mxu0 0.0
        %4677 = vmatprep.subr.mxu0 0.0
        %4678 = vmatpush1.msra.mxu0 0.0
        %4679 = vmatprep.subr.mxu0 0.0
        %4680 = vmatpush1.msra.mxu0 0.0
        %4681 = vmatprep.subr.mxu0 0.0
        %4682 = vmatpush1.msra.mxu0 0.0
        %4683 = vmatprep.subr.mxu0 0.0
        %4684 = vmatpush1.msra.mxu0 0.0
        %4685 = vmatprep.subr.mxu0 0.0
        %4686 = vmatpush1.msra.mxu0 0.0
        %4687 = vmatprep.subr.mxu0 0.0
        %4688 = vmatpush1.msra.mxu0 0.0
        %4689 = vmatprep.subr.mxu0 0.0
        %4690 = vmatpush1.msra.mxu0 0.0
        %4691 = vmatprep.subr.mxu0 0.0
        %4692 = vmatpush1.msra.mxu0 0.0
        %4693 = vmatprep.subr.mxu0 0.0
        %4694 = vmatpush1.msra.mxu0 0.0
        %4695 = vmatprep.subr.mxu0 0.0
        %4696 = vmatpush1.msra.mxu0 0.0
        %4697 = vmatprep.subr.mxu0 0.0
        %4698 = vmatpush1.msra.mxu0 0.0
        %4699 = vmatprep.subr.mxu0 0.0
        %4700 = vmatpush1.msra.mxu0 0.0
        %4701 = vmatprep.subr.mxu0 0.0
        %4702 = vmatpush1.msra.mxu0 0.0
        %4703 = vmatprep.subr.mxu0 0.0
        %4704 = vmatpush1.msra.mxu0 0.0
        %4705 = vmatprep.subr.mxu0 0.0
        %4706 = vmatpush1.msra.mxu0 0.0
        %4707 = vmatprep.subr.mxu0 0.0
        %4708 = vmatpush1.msra.mxu0 0.0
        %4709 = vmatprep.subr.mxu0 0.0
        %4710 = vmatpush1.msra.mxu0 0.0
        %4711 = vmatprep.subr.mxu0 0.0
        %4712 = vmatpush1.msra.mxu0 0.0
        %4713 = vmatprep.subr.mxu0 0.0
        %4714 = vmatpush1.msra.mxu0 0.0
        %4715 = vmatprep.subr.mxu0 0.0
        %4716 = vmatpush1.msra.mxu0 0.0
        %4717 = vmatprep.subr.mxu0 0.0
        %4718 = vmatpush1.msra.mxu0 0.0
        %4719 = vmatprep.subr.mxu0 0.0
        %4720 = vmatpush1.msra.mxu0 0.0
        %4721 = vmatprep.mubr.f32.mxu0 0.0
        %4722 = vmatmul.mubr.f32.gmra.mrb[0].mxu0 %v4610
        %v4723 = vpop.f32.mrb[0].mxu0
        %v4724 = vadd.f32 0.0, %v4723
        %v4725 = vpop.f32.mrb[0].mxu0
        %4726 = vmatprep.mubr.f32.mxu0 0.0
        %4727 = vmatmul.mubr.f32.gmra.mrb[0].mxu0 %v4613
        %v4728 = vpop.f32.mrb[0].mxu0
        %v4729 = vadd.f32 0.0, %v4728
        %v4730 = vpop.f32.mrb[0].mxu0
        %4731 = vmatprep.mubr.f32.mxu0 0.0
        %4732 = vmatmul.mubr.f32.gmra.mrb[0].mxu0 %v4616
        %v4733 = vpop.f32.mrb[0].mxu0
        %v4734 = vadd.f32 0.0, %v4733
        %v4735 = vpop.f32.mrb[0].mxu0
        %4736 = vmatprep.mubr.f32.mxu0 0.0
        %4737 = vmatmul.mubr.f32.gmra.mrb[0].mxu0 %v4619
        %v4738 = vpop.f32.mrb[0].mxu0
        %v4739 = vadd.f32 0.0, %v4738
        %v4740 = vpop.f32.mrb[0].mxu0
        %4741 = vmatprep.mubr.f32.mxu0 0.0
        %4742 = vmatmul.mubr.f32.gmra.mrb[0].mxu0 %v4622
        %v4743 = vpop.f32.mrb[0].mxu0
        %v4744 = vadd.f32 0.0, %v4743
        %v4745 = vpop.f32.mrb[0].mxu0
        %4746 = vmatprep.mubr.f32.mxu0 0.0
        %4747 = vmatmul.mubr.f32.gmra.mrb[0].mxu0 %v4625
        %v4748 = vpop.f32.mrb[0].mxu0
        %v4749 = vadd.f32 0.0, %v4748
        %v4750 = vpop.f32.mrb[0].mxu0
        %4751 = vmatprep.mubr.f32.mxu0 0.0
        %4752 = vmatmul.mubr.f32.gmra.mrb[0].mxu0 %v4628
        %v4753 = vpop.f32.mrb[0].mxu0
        %v4754 = vadd.f32 0.0, %v4753
        %v4755 = vpop.f32.mrb[0].mxu0
        %4756 = vmatprep.mubr.f32.mxu0 0.0
        %4757 = vmatmul.mubr.f32.gmra.mrb[0].mxu0 %v4631
        %v4758 = vpop.f32.mrb[0].mxu0
        %v4759 = vadd.f32 0.0, %v4758
        %v4760 = vpop.f32.mrb[0].mxu0
        %4761 = vmatprep.mubr.f32.mxu0 0.0
        %4762 = vmatmul.mubr.f32.gmra.mrb[0].mxu0 %v4634
        %v4763 = vpop.f32.mrb[0].mxu0
        %v4764 = vadd.f32 0.0, %v4763
        %v4765 = vpop.f32.mrb[0].mxu0
        %4766 = vmatprep.mubr.f32.mxu0 0.0
        %4767 = vmatmul.mubr.f32.gmra.mrb[0].mxu0 %v4637
        %v4768 = vpop.f32.mrb[0].mxu0
        %v4769 = vadd.f32 0.0, %v4768
        %v4770 = vpop.f32.mrb[0].mxu0
        %4771 = vmatprep.mubr.f32.mxu0 0.0
        %4772 = vmatmul.mubr.f32.gmra.mrb[0].mxu0 %v4640
        %v4773 = vpop.f32.mrb[0].mxu0
        %v4774 = vadd.f32 0.0, %v4773
        %v4775 = vpop.f32.mrb[0].mxu0
        %4776 = vmatprep.mubr.f32.mxu0 0.0
        %4777 = vmatmul.mubr.f32.gmra.mrb[0].mxu0 %v4643
        %v4778 = vpop.f32.mrb[0].mxu0
        %v4779 = vadd.f32 0.0, %v4778
        %v4780 = vpop.f32.mrb[0].mxu0
        %4781 = vmatprep.mubr.f32.mxu0 0.0
        %4782 = vmatmul.mubr.f32.gmra.mrb[0].mxu0 %v4646
        %v4783 = vpop.f32.mrb[0].mxu0
        %v4784 = vadd.f32 0.0, %v4783
        %v4785 = vpop.f32.mrb[0].mxu0
        %4786 = vmatprep.mubr.f32.mxu0 0.0
        %4787 = vmatmul.mubr.f32.gmra.mrb[0].mxu0 %v4649
        %v4788 = vpop.f32.mrb[0].mxu0
        %v4789 = vadd.f32 0.0, %v4788
        %v4790 = vpop.f32.mrb[0].mxu0
        %4791 = vmatprep.mubr.f32.mxu0 0.0
        %4792 = vmatmul.mubr.f32.gmra.mrb[0].mxu0 %v4652
        %v4793 = vpop.f32.mrb[0].mxu0
        %v4794 = vadd.f32 0.0, %v4793
        %v4795 = vpop.f32.mrb[0].mxu0
        %4796 = vmatprep.mubr.f32.mxu0 0.0
        %4797 = vmatmul.mubr.f32.gmra.mrb[0].mxu0 %v4655
        %v4798 = vpop.f32.mrb[0].mxu0
        %v4799 = vadd.f32 0.0, %v4798
        %v4800 = vpop.f32.mrb[0].mxu0
        %4801 = vdwg.mxu0
        %v4802 = vadd.f32 %v4545, %v4724
        %v4803 = vadd.f32 %v4546, %v4729
        %v4804 = vadd.f32 %v4547, %v4734
        %v4805 = vadd.f32 %v4548, %v4739
        %v4806 = vadd.f32 %v4549, %v4744
        %v4807 = vadd.f32 %v4550, %v4749
        %v4808 = vadd.f32 %v4551, %v4754
        %v4809 = vadd.f32 %v4552, %v4759
        %v4810 = vadd.f32 %v4553, %v4764
        %v4811 = vadd.f32 %v4554, %v4769
        %v4812 = vadd.f32 %v4555, %v4774
        %v4813 = vadd.f32 %v4556, %v4779
        %v4814 = vadd.f32 %v4557, %v4784
        %v4815 = vadd.f32 %v4558, %v4789
        %v4816 = vadd.f32 %v4559, %v4794
        %v4817 = vadd.f32 %v4560, %v4799
        %v4818 = vld [vmem:[%s2452] sm:$0xff]
        %v4819 = vld [vmem:[%s2452 + $0x8] sm:$0xff]
        %v4820 = vld [vmem:[%s2452 + $0x10] sm:$0xff]
        %v4821 = vld [vmem:[%s2452 + $0x18] sm:$0xff]
        %v4822 = vld [vmem:[%s2452 + $0x20] sm:$0xff]
        %v4823 = vld [vmem:[%s2452 + $0x28] sm:$0xff]
        %v4824 = vld [vmem:[%s2452 + $0x30] sm:$0xff]
        %v4825 = vld [vmem:[%s2452 + $0x38] sm:$0xff]
        %v4826 = vld [vmem:[%s2452 + $0x40] sm:$0xff]
        %v4827 = vld [vmem:[%s2452 + $0x48] sm:$0xff]
        %v4828 = vld [vmem:[%s2452 + $0x50] sm:$0xff]
        %v4829 = vld [vmem:[%s2452 + $0x58] sm:$0xff]
        %v4830 = vld [vmem:[%s2452 + $0x60] sm:$0xff]
        %v4831 = vld [vmem:[%s2452 + $0x68] sm:$0xff]
        %v4832 = vld [vmem:[%s2452 + $0x70] sm:$0xff]
        %v4833 = vld [vmem:[%s2452 + $0x78] sm:$0xff]
        %4834 = vrot.lane.b32.xlu0 %v3782, 64
        %v4835 = vpop.permute.xlu0 %4834
        %4836 = vrot.lane.b32.xlu0 %v3783, 64
        %v4837 = vpop.permute.xlu0 %4836
        %4838 = vrot.lane.b32.xlu0 %v3784, 64
        %v4839 = vpop.permute.xlu0 %4838
        %4840 = vrot.lane.b32.xlu0 %v3785, 64
        %v4841 = vpop.permute.xlu0 %4840
        %4842 = vrot.lane.b32.xlu0 %v3786, 64
        %v4843 = vpop.permute.xlu0 %4842
        %4844 = vrot.lane.b32.xlu0 %v3787, 64
        %v4845 = vpop.permute.xlu0 %4844
        %4846 = vrot.lane.b32.xlu0 %v3788, 64
        %v4847 = vpop.permute.xlu0 %4846
        %4848 = vrot.lane.b32.xlu0 %v3789, 64
        %v4849 = vpop.permute.xlu0 %4848
        %v4859 = vsel %vm1027, %v4818, 0
        %v4862 = vsel %vm1027, %v4819, 0
        %v4865 = vsel %vm1027, %v4820, 0
        %v4868 = vsel %vm1027, %v4821, 0
        %v4871 = vsel %vm1027, %v4822, 0
        %v4874 = vsel %vm1027, %v4823, 0
        %v4877 = vsel %vm1027, %v4824, 0
        %v4880 = vsel %vm1027, %v4825, 0
        %v4883 = vsel %vm1027, %v4826, 0
        %v4886 = vsel %vm1027, %v4827, 0
        %v4889 = vsel %vm1027, %v4828, 0
        %v4892 = vsel %vm1027, %v4829, 0
        %v4895 = vsel %vm1027, %v4830, 0
        %v4898 = vsel %vm1027, %v4831, 0
        %v4901 = vsel %vm1027, %v4832, 0
        %v4904 = vsel %vm1027, %v4833, 0
        %4906 = vmatprep.subr.mxu0 0.0
        %4907 = vmatpush1.msra.mxu0 %v4835
        %4908 = vmatprep.subr.mxu0 0.0
        %4909 = vmatpush1.msra.mxu0 %v4837
        %4910 = vmatprep.subr.mxu0 0.0
        %4911 = vmatpush1.msra.mxu0 %v4839
        %4912 = vmatprep.subr.mxu0 0.0
        %4913 = vmatpush1.msra.mxu0 %v4841
        %4914 = vmatprep.subr.mxu0 0.0
        %4915 = vmatpush1.msra.mxu0 %v4843
        %4916 = vmatprep.subr.mxu0 0.0
        %4917 = vmatpush1.msra.mxu0 %v4845
        %4918 = vmatprep.subr.mxu0 0.0
        %4919 = vmatpush1.msra.mxu0 %v4847
        %4920 = vmatprep.subr.mxu0 0.0
        %4921 = vmatpush1.msra.mxu0 %v4849
        %4922 = vmatprep.subr.mxu0 0.0
        %4923 = vmatpush1.msra.mxu0 0.0
        %4924 = vmatprep.subr.mxu0 0.0
        %4925 = vmatpush1.msra.mxu0 0.0
        %4926 = vmatprep.subr.mxu0 0.0
        %4927 = vmatpush1.msra.mxu0 0.0
        %4928 = vmatprep.subr.mxu0 0.0
        %4929 = vmatpush1.msra.mxu0 0.0
        %4930 = vmatprep.subr.mxu0 0.0
        %4931 = vmatpush1.msra.mxu0 0.0
        %4932 = vmatprep.subr.mxu0 0.0
        %4933 = vmatpush1.msra.mxu0 0.0
        %4934 = vmatprep.subr.mxu0 0.0
        %4935 = vmatpush1.msra.mxu0 0.0
        %4936 = vmatprep.subr.mxu0 0.0
        %4937 = vmatpush1.msra.mxu0 0.0
        %4938 = vmatprep.subr.mxu0 0.0
        %4939 = vmatpush1.msra.mxu0 0.0
        %4940 = vmatprep.subr.mxu0 0.0
        %4941 = vmatpush1.msra.mxu0 0.0
        %4942 = vmatprep.subr.mxu0 0.0
        %4943 = vmatpush1.msra.mxu0 0.0
        %4944 = vmatprep.subr.mxu0 0.0
        %4945 = vmatpush1.msra.mxu0 0.0
        %4946 = vmatprep.subr.mxu0 0.0
        %4947 = vmatpush1.msra.mxu0 0.0
        %4948 = vmatprep.subr.mxu0 0.0
        %4949 = vmatpush1.msra.mxu0 0.0
        %4950 = vmatprep.subr.mxu0 0.0
        %4951 = vmatpush1.msra.mxu0 0.0
        %4952 = vmatprep.subr.mxu0 0.0
        %4953 = vmatpush1.msra.mxu0 0.0
        %4954 = vmatprep.subr.mxu0 0.0
        %4955 = vmatpush1.msra.mxu0 0.0
        %4956 = vmatprep.subr.mxu0 0.0
        %4957 = vmatpush1.msra.mxu0 0.0
        %4958 = vmatprep.subr.mxu0 0.0
        %4959 = vmatpush1.msra.mxu0 0.0
        %4960 = vmatprep.subr.mxu0 0.0
        %4961 = vmatpush1.msra.mxu0 0.0
        %4962 = vmatprep.subr.mxu0 0.0
        %4963 = vmatpush1.msra.mxu0 0.0
        %4964 = vmatprep.subr.mxu0 0.0
        %4965 = vmatpush1.msra.mxu0 0.0
        %4966 = vmatprep.subr.mxu0 0.0
        %4967 = vmatpush1.msra.mxu0 0.0
        %4968 = vmatprep.subr.mxu0 0.0
        %4969 = vmatpush1.msra.mxu0 0.0
        %4970 = vmatprep.mubr.f32.mxu0 0.0
        %4971 = vmatmul.mubr.f32.gmra.mrb[0].mxu0 %v4859
        %v4972 = vpop.f32.mrb[0].mxu0
        %v4973 = vadd.f32 0.0, %v4972
        %v4974 = vpop.f32.mrb[0].mxu0
        %4975 = vmatprep.mubr.f32.mxu0 0.0
        %4976 = vmatmul.mubr.f32.gmra.mrb[0].mxu0 %v4862
        %v4977 = vpop.f32.mrb[0].mxu0
        %v4978 = vadd.f32 0.0, %v4977
        %v4979 = vpop.f32.mrb[0].mxu0
        %4980 = vmatprep.mubr.f32.mxu0 0.0
        %4981 = vmatmul.mubr.f32.gmra.mrb[0].mxu0 %v4865
        %v4982 = vpop.f32.mrb[0].mxu0
        %v4983 = vadd.f32 0.0, %v4982
        %v4984 = vpop.f32.mrb[0].mxu0
        %4985 = vmatprep.mubr.f32.mxu0 0.0
        %4986 = vmatmul.mubr.f32.gmra.mrb[0].mxu0 %v4868
        %v4987 = vpop.f32.mrb[0].mxu0
        %v4988 = vadd.f32 0.0, %v4987
        %v4989 = vpop.f32.mrb[0].mxu0
        %4990 = vmatprep.mubr.f32.mxu0 0.0
        %4991 = vmatmul.mubr.f32.gmra.mrb[0].mxu0 %v4871
        %v4992 = vpop.f32.mrb[0].mxu0
        %v4993 = vadd.f32 0.0, %v4992
        %v4994 = vpop.f32.mrb[0].mxu0
        %4995 = vmatprep.mubr.f32.mxu0 0.0
        %4996 = vmatmul.mubr.f32.gmra.mrb[0].mxu0 %v4874
        %v4997 = vpop.f32.mrb[0].mxu0
        %v4998 = vadd.f32 0.0, %v4997
        %v4999 = vpop.f32.mrb[0].mxu0
        %5000 = vmatprep.mubr.f32.mxu0 0.0
        %5001 = vmatmul.mubr.f32.gmra.mrb[0].mxu0 %v4877
        %v5002 = vpop.f32.mrb[0].mxu0
        %v5003 = vadd.f32 0.0, %v5002
        %v5004 = vpop.f32.mrb[0].mxu0
        %5005 = vmatprep.mubr.f32.mxu0 0.0
        %5006 = vmatmul.mubr.f32.gmra.mrb[0].mxu0 %v4880
        %v5007 = vpop.f32.mrb[0].mxu0
        %v5008 = vadd.f32 0.0, %v5007
        %v5009 = vpop.f32.mrb[0].mxu0
        %5010 = vmatprep.mubr.f32.mxu0 0.0
        %5011 = vmatmul.mubr.f32.gmra.mrb[0].mxu0 %v4883
        %v5012 = vpop.f32.mrb[0].mxu0
        %v5013 = vadd.f32 0.0, %v5012
        %v5014 = vpop.f32.mrb[0].mxu0
        %5015 = vmatprep.mubr.f32.mxu0 0.0
        %5016 = vmatmul.mubr.f32.gmra.mrb[0].mxu0 %v4886
        %v5017 = vpop.f32.mrb[0].mxu0
        %v5018 = vadd.f32 0.0, %v5017
        %v5019 = vpop.f32.mrb[0].mxu0
        %5020 = vmatprep.mubr.f32.mxu0 0.0
        %5021 = vmatmul.mubr.f32.gmra.mrb[0].mxu0 %v4889
        %v5022 = vpop.f32.mrb[0].mxu0
        %v5023 = vadd.f32 0.0, %v5022
        %v5024 = vpop.f32.mrb[0].mxu0
        %5025 = vmatprep.mubr.f32.mxu0 0.0
        %5026 = vmatmul.mubr.f32.gmra.mrb[0].mxu0 %v4892
        %v5027 = vpop.f32.mrb[0].mxu0
        %v5028 = vadd.f32 0.0, %v5027
        %v5029 = vpop.f32.mrb[0].mxu0
        %5030 = vmatprep.mubr.f32.mxu0 0.0
        %5031 = vmatmul.mubr.f32.gmra.mrb[0].mxu0 %v4895
        %v5032 = vpop.f32.mrb[0].mxu0
        %v5033 = vadd.f32 0.0, %v5032
        %v5034 = vpop.f32.mrb[0].mxu0
        %5035 = vmatprep.mubr.f32.mxu0 0.0
        %5036 = vmatmul.mubr.f32.gmra.mrb[0].mxu0 %v4898
        %v5037 = vpop.f32.mrb[0].mxu0
        %v5038 = vadd.f32 0.0, %v5037
        %v5039 = vpop.f32.mrb[0].mxu0
        %5040 = vmatprep.mubr.f32.mxu0 0.0
        %5041 = vmatmul.mubr.f32.gmra.mrb[0].mxu0 %v4901
        %v5042 = vpop.f32.mrb[0].mxu0
        %v5043 = vadd.f32 0.0, %v5042
        %v5044 = vpop.f32.mrb[0].mxu0
        %5045 = vmatprep.mubr.f32.mxu0 0.0
        %5046 = vmatmul.mubr.f32.gmra.mrb[0].mxu0 %v4904
        %v5047 = vpop.f32.mrb[0].mxu0
        %v5048 = vadd.f32 0.0, %v5047
        %v5049 = vpop.f32.mrb[0].mxu0
        %5050 = vdwg.mxu0
        %v5051 = vadd.f32 %v4802, %v4973
        %v5052 = vadd.f32 %v4803, %v4978
        %v5053 = vadd.f32 %v4804, %v4983
        %v5054 = vadd.f32 %v4805, %v4988
        %v5055 = vadd.f32 %v4806, %v4993
        %v5056 = vadd.f32 %v4807, %v4998
        %v5057 = vadd.f32 %v4808, %v5003
        %v5058 = vadd.f32 %v4809, %v5008
        %v5059 = vadd.f32 %v4810, %v5013
        %v5060 = vadd.f32 %v4811, %v5018
        %v5061 = vadd.f32 %v4812, %v5023
        %v5062 = vadd.f32 %v4813, %v5028
        %v5063 = vadd.f32 %v4814, %v5033
        %v5064 = vadd.f32 %v4815, %v5038
        %v5065 = vadd.f32 %v4816, %v5043
        %v5066 = vadd.f32 %v4817, %v5048
        %v5067 = vld [vmem:[#allocation2 + $0x8] sm:$0xff]
        %v5068 = vld [vmem:[#allocation2 + $0x10] sm:$0xff]
        %v5069 = vld [vmem:[#allocation2 + $0x28] sm:$0xff]
        %v5070 = vld [vmem:[#allocation2 + $0x30] sm:$0xff]
        %v5071 = vld [vmem:[#allocation2 + $0x48] sm:$0xff]
        %v5072 = vld [vmem:[#allocation2 + $0x50] sm:$0xff]
        %v5073 = vld [vmem:[#allocation2 + $0x68] sm:$0xff]
        %v5074 = vld [vmem:[#allocation2 + $0x70] sm:$0xff]
        %v5075 = vld [vmem:[#allocation2 + $0x88] sm:$0xff]
        %v5076 = vld [vmem:[#allocation2 + $0x90] sm:$0xff]
        %v5077 = vld [vmem:[#allocation2 + $0xa8] sm:$0xff]
        %v5078 = vld [vmem:[#allocation2 + $0xb0] sm:$0xff]
        %v5079 = vld [vmem:[#allocation2 + $0xc8] sm:$0xff]
        %v5080 = vld [vmem:[#allocation2 + $0xd0] sm:$0xff]
        %v5081 = vld [vmem:[#allocation2 + $0xe8] sm:$0xff]
        %v5082 = vld [vmem:[#allocation2 + $0xf0] sm:$0xff]
        %5099 = vrot.lane.b32.xlu0 %v5067, 63
        %v5100 = vpop.permute.xlu0 %5099
        %5101 = vrot.lane.b32.xlu0 %v5068, 63
        %v5102 = vpop.permute.xlu0 %5101
        %5103 = vrot.lane.b32.xlu0 %v5069, 63
        %v5104 = vpop.permute.xlu0 %5103
        %5105 = vrot.lane.b32.xlu0 %v5070, 63
        %v5106 = vpop.permute.xlu0 %5105
        %5107 = vrot.lane.b32.xlu0 %v5071, 63
        %v5108 = vpop.permute.xlu0 %5107
        %5109 = vrot.lane.b32.xlu0 %v5072, 63
        %v5110 = vpop.permute.xlu0 %5109
        %5111 = vrot.lane.b32.xlu0 %v5073, 63
        %v5112 = vpop.permute.xlu0 %5111
        %5113 = vrot.lane.b32.xlu0 %v5074, 63
        %v5114 = vpop.permute.xlu0 %5113
        %5115 = vrot.lane.b32.xlu0 %v5075, 63
        %v5116 = vpop.permute.xlu0 %5115
        %5117 = vrot.lane.b32.xlu0 %v5076, 63
        %v5118 = vpop.permute.xlu0 %5117
        %5119 = vrot.lane.b32.xlu0 %v5077, 63
        %v5120 = vpop.permute.xlu0 %5119
        %5121 = vrot.lane.b32.xlu0 %v5078, 63
        %v5122 = vpop.permute.xlu0 %5121
        %5123 = vrot.lane.b32.xlu0 %v5079, 63
        %v5124 = vpop.permute.xlu0 %5123
        %5125 = vrot.lane.b32.xlu0 %v5080, 63
        %v5126 = vpop.permute.xlu0 %5125
        %5127 = vrot.lane.b32.xlu0 %v5081, 63
        %v5128 = vpop.permute.xlu0 %5127
        %5129 = vrot.lane.b32.xlu0 %v5082, 63
        %v5130 = vpop.permute.xlu0 %5129
        %vm5131 = vcmask 515072
        %v5132 = vsel %vm5131, %v5100, %v5102
        %v5133 = vsel %vm5131, %v5104, %v5106
        %v5134 = vsel %vm5131, %v5108, %v5110
        %v5135 = vsel %vm5131, %v5112, %v5114
        %v5136 = vsel %vm5131, %v5116, %v5118
        %v5137 = vsel %vm5131, %v5120, %v5122
        %v5138 = vsel %vm5131, %v5124, %v5126
        %v5139 = vsel %vm5131, %v5128, %v5130
        %v5148 = vsel %vm1885, %v5132, 0.0
        %v5149 = vsel %vm1885, %v5133, 0.0
        %v5150 = vsel %vm1885, %v5134, 0.0
        %v5151 = vsel %vm1885, %v5135, 0.0
        %v5152 = vsel %vm1885, %v5136, 0.0
        %v5153 = vsel %vm1885, %v5137, 0.0
        %v5154 = vsel %vm1885, %v5138, 0.0
        %v5155 = vsel %vm1885, %v5139, 0.0
        %v5156 = vld [vmem:[%s2710] sm:$0xff]
        %v5157 = vld [vmem:[%s2710 + $0x8] sm:$0xff]
        %v5158 = vld [vmem:[%s2710 + $0x10] sm:$0xff]
        %v5159 = vld [vmem:[%s2710 + $0x18] sm:$0xff]
        %v5160 = vld [vmem:[%s2710 + $0x20] sm:$0xff]
        %v5161 = vld [vmem:[%s2710 + $0x28] sm:$0xff]
        %v5162 = vld [vmem:[%s2710 + $0x30] sm:$0xff]
        %v5163 = vld [vmem:[%s2710 + $0x38] sm:$0xff]
        %v5164 = vld [vmem:[%s2710 + $0x40] sm:$0xff]
        %v5165 = vld [vmem:[%s2710 + $0x48] sm:$0xff]
        %v5166 = vld [vmem:[%s2710 + $0x50] sm:$0xff]
        %v5167 = vld [vmem:[%s2710 + $0x58] sm:$0xff]
        %v5168 = vld [vmem:[%s2710 + $0x60] sm:$0xff]
        %v5169 = vld [vmem:[%s2710 + $0x68] sm:$0xff]
        %v5170 = vld [vmem:[%s2710 + $0x70] sm:$0xff]
        %v5171 = vld [vmem:[%s2710 + $0x78] sm:$0xff]
        %v5173 = vsel %vm1027, %v5156, 0
        %v5176 = vsel %vm1027, %v5157, 0
        %v5179 = vsel %vm1027, %v5158, 0
        %v5182 = vsel %vm1027, %v5159, 0
        %v5185 = vsel %vm1027, %v5160, 0
        %v5188 = vsel %vm1027, %v5161, 0
        %v5191 = vsel %vm1027, %v5162, 0
        %v5194 = vsel %vm1027, %v5163, 0
        %v5197 = vsel %vm1027, %v5164, 0
        %v5200 = vsel %vm1027, %v5165, 0
        %v5203 = vsel %vm1027, %v5166, 0
        %v5206 = vsel %vm1027, %v5167, 0
        %v5209 = vsel %vm1027, %v5168, 0
        %v5212 = vsel %vm1027, %v5169, 0
        %v5215 = vsel %vm1027, %v5170, 0
        %v5218 = vsel %vm1027, %v5171, 0
        %5220 = vmatprep.subr.mxu0 0.0
        %5221 = vmatpush1.msra.mxu0 %v5148
        %5222 = vmatprep.subr.mxu0 0.0
        %5223 = vmatpush1.msra.mxu0 %v5149
        %5224 = vmatprep.subr.mxu0 0.0
        %5225 = vmatpush1.msra.mxu0 %v5150
        %5226 = vmatprep.subr.mxu0 0.0
        %5227 = vmatpush1.msra.mxu0 %v5151
        %5228 = vmatprep.subr.mxu0 0.0
        %5229 = vmatpush1.msra.mxu0 %v5152
        %5230 = vmatprep.subr.mxu0 0.0
        %5231 = vmatpush1.msra.mxu0 %v5153
        %5232 = vmatprep.subr.mxu0 0.0
        %5233 = vmatpush1.msra.mxu0 %v5154
        %5234 = vmatprep.subr.mxu0 0.0
        %5235 = vmatpush1.msra.mxu0 %v5155
        %5236 = vmatprep.subr.mxu0 0.0
        %5237 = vmatpush1.msra.mxu0 0.0
        %5238 = vmatprep.subr.mxu0 0.0
        %5239 = vmatpush1.msra.mxu0 0.0
        %5240 = vmatprep.subr.mxu0 0.0
        %5241 = vmatpush1.msra.mxu0 0.0
        %5242 = vmatprep.subr.mxu0 0.0
        %5243 = vmatpush1.msra.mxu0 0.0
        %5244 = vmatprep.subr.mxu0 0.0
        %5245 = vmatpush1.msra.mxu0 0.0
        %5246 = vmatprep.subr.mxu0 0.0
        %5247 = vmatpush1.msra.mxu0 0.0
        %5248 = vmatprep.subr.mxu0 0.0
        %5249 = vmatpush1.msra.mxu0 0.0
        %5250 = vmatprep.subr.mxu0 0.0
        %5251 = vmatpush1.msra.mxu0 0.0
        %5252 = vmatprep.subr.mxu0 0.0
        %5253 = vmatpush1.msra.mxu0 0.0
        %5254 = vmatprep.subr.mxu0 0.0
        %5255 = vmatpush1.msra.mxu0 0.0
        %5256 = vmatprep.subr.mxu0 0.0
        %5257 = vmatpush1.msra.mxu0 0.0
        %5258 = vmatprep.subr.mxu0 0.0
        %5259 = vmatpush1.msra.mxu0 0.0
        %5260 = vmatprep.subr.mxu0 0.0
        %5261 = vmatpush1.msra.mxu0 0.0
        %5262 = vmatprep.subr.mxu0 0.0
        %5263 = vmatpush1.msra.mxu0 0.0
        %5264 = vmatprep.subr.mxu0 0.0
        %5265 = vmatpush1.msra.mxu0 0.0
        %5266 = vmatprep.subr.mxu0 0.0
        %5267 = vmatpush1.msra.mxu0 0.0
        %5268 = vmatprep.subr.mxu0 0.0
        %5269 = vmatpush1.msra.mxu0 0.0
        %5270 = vmatprep.subr.mxu0 0.0
        %5271 = vmatpush1.msra.mxu0 0.0
        %5272 = vmatprep.subr.mxu0 0.0
        %5273 = vmatpush1.msra.mxu0 0.0
        %5274 = vmatprep.subr.mxu0 0.0
        %5275 = vmatpush1.msra.mxu0 0.0
        %5276 = vmatprep.subr.mxu0 0.0
        %5277 = vmatpush1.msra.mxu0 0.0
        %5278 = vmatprep.subr.mxu0 0.0
        %5279 = vmatpush1.msra.mxu0 0.0
        %5280 = vmatprep.subr.mxu0 0.0
        %5281 = vmatpush1.msra.mxu0 0.0
        %5282 = vmatprep.subr.mxu0 0.0
        %5283 = vmatpush1.msra.mxu0 0.0
        %5284 = vmatprep.mubr.f32.mxu0 0.0
        %5285 = vmatmul.mubr.f32.gmra.mrb[0].mxu0 %v5173
        %v5286 = vpop.f32.mrb[0].mxu0
        %v5287 = vadd.f32 0.0, %v5286
        %v5288 = vpop.f32.mrb[0].mxu0
        %5289 = vmatprep.mubr.f32.mxu0 0.0
        %5290 = vmatmul.mubr.f32.gmra.mrb[0].mxu0 %v5176
        %v5291 = vpop.f32.mrb[0].mxu0
        %v5292 = vadd.f32 0.0, %v5291
        %v5293 = vpop.f32.mrb[0].mxu0
        %5294 = vmatprep.mubr.f32.mxu0 0.0
        %5295 = vmatmul.mubr.f32.gmra.mrb[0].mxu0 %v5179
        %v5296 = vpop.f32.mrb[0].mxu0
        %v5297 = vadd.f32 0.0, %v5296
        %v5298 = vpop.f32.mrb[0].mxu0
        %5299 = vmatprep.mubr.f32.mxu0 0.0
        %5300 = vmatmul.mubr.f32.gmra.mrb[0].mxu0 %v5182
        %v5301 = vpop.f32.mrb[0].mxu0
        %v5302 = vadd.f32 0.0, %v5301
        %v5303 = vpop.f32.mrb[0].mxu0
        %5304 = vmatprep.mubr.f32.mxu0 0.0
        %5305 = vmatmul.mubr.f32.gmra.mrb[0].mxu0 %v5185
        %v5306 = vpop.f32.mrb[0].mxu0
        %v5307 = vadd.f32 0.0, %v5306
        %v5308 = vpop.f32.mrb[0].mxu0
        %5309 = vmatprep.mubr.f32.mxu0 0.0
        %5310 = vmatmul.mubr.f32.gmra.mrb[0].mxu0 %v5188
        %v5311 = vpop.f32.mrb[0].mxu0
        %v5312 = vadd.f32 0.0, %v5311
        %v5313 = vpop.f32.mrb[0].mxu0
        %5314 = vmatprep.mubr.f32.mxu0 0.0
        %5315 = vmatmul.mubr.f32.gmra.mrb[0].mxu0 %v5191
        %v5316 = vpop.f32.mrb[0].mxu0
        %v5317 = vadd.f32 0.0, %v5316
        %v5318 = vpop.f32.mrb[0].mxu0
        %5319 = vmatprep.mubr.f32.mxu0 0.0
        %5320 = vmatmul.mubr.f32.gmra.mrb[0].mxu0 %v5194
        %v5321 = vpop.f32.mrb[0].mxu0
        %v5322 = vadd.f32 0.0, %v5321
        %v5323 = vpop.f32.mrb[0].mxu0
        %5324 = vmatprep.mubr.f32.mxu0 0.0
        %5325 = vmatmul.mubr.f32.gmra.mrb[0].mxu0 %v5197
        %v5326 = vpop.f32.mrb[0].mxu0
        %v5327 = vadd.f32 0.0, %v5326
        %v5328 = vpop.f32.mrb[0].mxu0
        %5329 = vmatprep.mubr.f32.mxu0 0.0
        %5330 = vmatmul.mubr.f32.gmra.mrb[0].mxu0 %v5200
        %v5331 = vpop.f32.mrb[0].mxu0
        %v5332 = vadd.f32 0.0, %v5331
        %v5333 = vpop.f32.mrb[0].mxu0
        %5334 = vmatprep.mubr.f32.mxu0 0.0
        %5335 = vmatmul.mubr.f32.gmra.mrb[0].mxu0 %v5203
        %v5336 = vpop.f32.mrb[0].mxu0
        %v5337 = vadd.f32 0.0, %v5336
        %v5338 = vpop.f32.mrb[0].mxu0
        %5339 = vmatprep.mubr.f32.mxu0 0.0
        %5340 = vmatmul.mubr.f32.gmra.mrb[0].mxu0 %v5206
        %v5341 = vpop.f32.mrb[0].mxu0
        %v5342 = vadd.f32 0.0, %v5341
        %v5343 = vpop.f32.mrb[0].mxu0
        %5344 = vmatprep.mubr.f32.mxu0 0.0
        %5345 = vmatmul.mubr.f32.gmra.mrb[0].mxu0 %v5209
        %v5346 = vpop.f32.mrb[0].mxu0
        %v5347 = vadd.f32 0.0, %v5346
        %v5348 = vpop.f32.mrb[0].mxu0
        %5349 = vmatprep.mubr.f32.mxu0 0.0
        %5350 = vmatmul.mubr.f32.gmra.mrb[0].mxu0 %v5212
        %v5351 = vpop.f32.mrb[0].mxu0
        %v5352 = vadd.f32 0.0, %v5351
        %v5353 = vpop.f32.mrb[0].mxu0
        %5354 = vmatprep.mubr.f32.mxu0 0.0
        %5355 = vmatmul.mubr.f32.gmra.mrb[0].mxu0 %v5215
        %v5356 = vpop.f32.mrb[0].mxu0
        %v5357 = vadd.f32 0.0, %v5356
        %v5358 = vpop.f32.mrb[0].mxu0
        %5359 = vmatprep.mubr.f32.mxu0 0.0
        %5360 = vmatmul.mubr.f32.gmra.mrb[0].mxu0 %v5218
        %v5361 = vpop.f32.mrb[0].mxu0
        %v5362 = vadd.f32 0.0, %v5361
        %v5363 = vpop.f32.mrb[0].mxu0
        %5364 = vdwg.mxu0
        %v5365 = vadd.f32 %v5051, %v5287
        %v5366 = vadd.f32 %v5052, %v5292
        %v5367 = vadd.f32 %v5053, %v5297
        %v5368 = vadd.f32 %v5054, %v5302
        %v5369 = vadd.f32 %v5055, %v5307
        %v5370 = vadd.f32 %v5056, %v5312
        %v5371 = vadd.f32 %v5057, %v5317
        %v5372 = vadd.f32 %v5058, %v5322
        %v5373 = vadd.f32 %v5059, %v5327
        %v5374 = vadd.f32 %v5060, %v5332
        %v5375 = vadd.f32 %v5061, %v5337
        %v5376 = vadd.f32 %v5062, %v5342
        %v5377 = vadd.f32 %v5063, %v5347
        %v5378 = vadd.f32 %v5064, %v5352
        %v5379 = vadd.f32 %v5065, %v5357
        %v5380 = vadd.f32 %v5066, %v5362
        %5381 = vrot.lane.b32.xlu0 %v5067, 49
        %v5382 = vpop.permute.xlu0 %5381
        %5383 = vrot.lane.b32.xlu0 %v5068, 49
        %v5384 = vpop.permute.xlu0 %5383
        %5385 = vrot.lane.b32.xlu0 %v5069, 49
        %v5386 = vpop.permute.xlu0 %5385
        %5387 = vrot.lane.b32.xlu0 %v5070, 49
        %v5388 = vpop.permute.xlu0 %5387
        %5389 = vrot.lane.b32.xlu0 %v5071, 49
        %v5390 = vpop.permute.xlu0 %5389
        %5391 = vrot.lane.b32.xlu0 %v5072, 49
        %v5392 = vpop.permute.xlu0 %5391
        %5393 = vrot.lane.b32.xlu0 %v5073, 49
        %v5394 = vpop.permute.xlu0 %5393
        %5395 = vrot.lane.b32.xlu0 %v5074, 49
        %v5396 = vpop.permute.xlu0 %5395
        %5397 = vrot.lane.b32.xlu0 %v5075, 49
        %v5398 = vpop.permute.xlu0 %5397
        %5399 = vrot.lane.b32.xlu0 %v5076, 49
        %v5400 = vpop.permute.xlu0 %5399
        %5401 = vrot.lane.b32.xlu0 %v5077, 49
        %v5402 = vpop.permute.xlu0 %5401
        %5403 = vrot.lane.b32.xlu0 %v5078, 49
        %v5404 = vpop.permute.xlu0 %5403
        %5405 = vrot.lane.b32.xlu0 %v5079, 49
        %v5406 = vpop.permute.xlu0 %5405
        %5407 = vrot.lane.b32.xlu0 %v5080, 49
        %v5408 = vpop.permute.xlu0 %5407
        %5409 = vrot.lane.b32.xlu0 %v5081, 49
        %v5410 = vpop.permute.xlu0 %5409
        %5411 = vrot.lane.b32.xlu0 %v5082, 49
        %v5412 = vpop.permute.xlu0 %5411
        %vm5413 = vcmask 400384
        %v5414 = vsel %vm5413, %v5382, %v5384
        %v5415 = vsel %vm5413, %v5386, %v5388
        %v5416 = vsel %vm5413, %v5390, %v5392
        %v5417 = vsel %vm5413, %v5394, %v5396
        %v5418 = vsel %vm5413, %v5398, %v5400
        %v5419 = vsel %vm5413, %v5402, %v5404
        %v5420 = vsel %vm5413, %v5406, %v5408
        %v5421 = vsel %vm5413, %v5410, %v5412
        %v5430 = vsel %vm1311, %v5414, 0.0
        %v5431 = vsel %vm1311, %v5415, 0.0
        %v5432 = vsel %vm1311, %v5416, 0.0
        %v5433 = vsel %vm1311, %v5417, 0.0
        %v5434 = vsel %vm1311, %v5418, 0.0
        %v5435 = vsel %vm1311, %v5419, 0.0
        %v5436 = vsel %vm1311, %v5420, 0.0
        %v5437 = vsel %vm1311, %v5421, 0.0
        %v5438 = vld [vmem:[%s2968] sm:$0xff]
        %v5439 = vld [vmem:[%s2968 + $0x8] sm:$0xff]
        %v5440 = vld [vmem:[%s2968 + $0x10] sm:$0xff]
        %v5441 = vld [vmem:[%s2968 + $0x18] sm:$0xff]
        %v5442 = vld [vmem:[%s2968 + $0x20] sm:$0xff]
        %v5443 = vld [vmem:[%s2968 + $0x28] sm:$0xff]
        %v5444 = vld [vmem:[%s2968 + $0x30] sm:$0xff]
        %v5445 = vld [vmem:[%s2968 + $0x38] sm:$0xff]
        %v5446 = vld [vmem:[%s2968 + $0x40] sm:$0xff]
        %v5447 = vld [vmem:[%s2968 + $0x48] sm:$0xff]
        %v5448 = vld [vmem:[%s2968 + $0x50] sm:$0xff]
        %v5449 = vld [vmem:[%s2968 + $0x58] sm:$0xff]
        %v5450 = vld [vmem:[%s2968 + $0x60] sm:$0xff]
        %v5451 = vld [vmem:[%s2968 + $0x68] sm:$0xff]
        %v5452 = vld [vmem:[%s2968 + $0x70] sm:$0xff]
        %v5453 = vld [vmem:[%s2968 + $0x78] sm:$0xff]
        %v5455 = vsel %vm1027, %v5438, 0
        %v5458 = vsel %vm1027, %v5439, 0
        %v5461 = vsel %vm1027, %v5440, 0
        %v5464 = vsel %vm1027, %v5441, 0
        %v5467 = vsel %vm1027, %v5442, 0
        %v5470 = vsel %vm1027, %v5443, 0
        %v5473 = vsel %vm1027, %v5444, 0
        %v5476 = vsel %vm1027, %v5445, 0
        %v5479 = vsel %vm1027, %v5446, 0
        %v5482 = vsel %vm1027, %v5447, 0
        %v5485 = vsel %vm1027, %v5448, 0
        %v5488 = vsel %vm1027, %v5449, 0
        %v5491 = vsel %vm1027, %v5450, 0
        %v5494 = vsel %vm1027, %v5451, 0
        %v5497 = vsel %vm1027, %v5452, 0
        %v5500 = vsel %vm1027, %v5453, 0
        %5502 = vmatprep.subr.mxu0 0.0
        %5503 = vmatpush1.msra.mxu0 %v5430
        %5504 = vmatprep.subr.mxu0 0.0
        %5505 = vmatpush1.msra.mxu0 %v5431
        %5506 = vmatprep.subr.mxu0 0.0
        %5507 = vmatpush1.msra.mxu0 %v5432
        %5508 = vmatprep.subr.mxu0 0.0
        %5509 = vmatpush1.msra.mxu0 %v5433
        %5510 = vmatprep.subr.mxu0 0.0
        %5511 = vmatpush1.msra.mxu0 %v5434
        %5512 = vmatprep.subr.mxu0 0.0
        %5513 = vmatpush1.msra.mxu0 %v5435
        %5514 = vmatprep.subr.mxu0 0.0
        %5515 = vmatpush1.msra.mxu0 %v5436
        %5516 = vmatprep.subr.mxu0 0.0
        %5517 = vmatpush1.msra.mxu0 %v5437
        %5518 = vmatprep.subr.mxu0 0.0
        %5519 = vmatpush1.msra.mxu0 0.0
        %5520 = vmatprep.subr.mxu0 0.0
        %5521 = vmatpush1.msra.mxu0 0.0
        %5522 = vmatprep.subr.mxu0 0.0
        %5523 = vmatpush1.msra.mxu0 0.0
        %5524 = vmatprep.subr.mxu0 0.0
        %5525 = vmatpush1.msra.mxu0 0.0
        %5526 = vmatprep.subr.mxu0 0.0
        %5527 = vmatpush1.msra.mxu0 0.0
        %5528 = vmatprep.subr.mxu0 0.0
        %5529 = vmatpush1.msra.mxu0 0.0
        %5530 = vmatprep.subr.mxu0 0.0
        %5531 = vmatpush1.msra.mxu0 0.0
        %5532 = vmatprep.subr.mxu0 0.0
        %5533 = vmatpush1.msra.mxu0 0.0
        %5534 = vmatprep.subr.mxu0 0.0
        %5535 = vmatpush1.msra.mxu0 0.0
        %5536 = vmatprep.subr.mxu0 0.0
        %5537 = vmatpush1.msra.mxu0 0.0
        %5538 = vmatprep.subr.mxu0 0.0
        %5539 = vmatpush1.msra.mxu0 0.0
        %5540 = vmatprep.subr.mxu0 0.0
        %5541 = vmatpush1.msra.mxu0 0.0
        %5542 = vmatprep.subr.mxu0 0.0
        %5543 = vmatpush1.msra.mxu0 0.0
        %5544 = vmatprep.subr.mxu0 0.0
        %5545 = vmatpush1.msra.mxu0 0.0
        %5546 = vmatprep.subr.mxu0 0.0
        %5547 = vmatpush1.msra.mxu0 0.0
        %5548 = vmatprep.subr.mxu0 0.0
        %5549 = vmatpush1.msra.mxu0 0.0
        %5550 = vmatprep.subr.mxu0 0.0
        %5551 = vmatpush1.msra.mxu0 0.0
        %5552 = vmatprep.subr.mxu0 0.0
        %5553 = vmatpush1.msra.mxu0 0.0
        %5554 = vmatprep.subr.mxu0 0.0
        %5555 = vmatpush1.msra.mxu0 0.0
        %5556 = vmatprep.subr.mxu0 0.0
        %5557 = vmatpush1.msra.mxu0 0.0
        %5558 = vmatprep.subr.mxu0 0.0
        %5559 = vmatpush1.msra.mxu0 0.0
        %5560 = vmatprep.subr.mxu0 0.0
        %5561 = vmatpush1.msra.mxu0 0.0
        %5562 = vmatprep.subr.mxu0 0.0
        %5563 = vmatpush1.msra.mxu0 0.0
        %5564 = vmatprep.subr.mxu0 0.0
        %5565 = vmatpush1.msra.mxu0 0.0
        %5566 = vmatprep.mubr.f32.mxu0 0.0
        %5567 = vmatmul.mubr.f32.gmra.mrb[0].mxu0 %v5455
        %v5568 = vpop.f32.mrb[0].mxu0
        %v5569 = vadd.f32 0.0, %v5568
        %v5570 = vpop.f32.mrb[0].mxu0
        %5571 = vmatprep.mubr.f32.mxu0 0.0
        %5572 = vmatmul.mubr.f32.gmra.mrb[0].mxu0 %v5458
        %v5573 = vpop.f32.mrb[0].mxu0
        %v5574 = vadd.f32 0.0, %v5573
        %v5575 = vpop.f32.mrb[0].mxu0
        %5576 = vmatprep.mubr.f32.mxu0 0.0
        %5577 = vmatmul.mubr.f32.gmra.mrb[0].mxu0 %v5461
        %v5578 = vpop.f32.mrb[0].mxu0
        %v5579 = vadd.f32 0.0, %v5578
        %v5580 = vpop.f32.mrb[0].mxu0
        %5581 = vmatprep.mubr.f32.mxu0 0.0
        %5582 = vmatmul.mubr.f32.gmra.mrb[0].mxu0 %v5464
        %v5583 = vpop.f32.mrb[0].mxu0
        %v5584 = vadd.f32 0.0, %v5583
        %v5585 = vpop.f32.mrb[0].mxu0
        %5586 = vmatprep.mubr.f32.mxu0 0.0
        %5587 = vmatmul.mubr.f32.gmra.mrb[0].mxu0 %v5467
        %v5588 = vpop.f32.mrb[0].mxu0
        %v5589 = vadd.f32 0.0, %v5588
        %v5590 = vpop.f32.mrb[0].mxu0
        %5591 = vmatprep.mubr.f32.mxu0 0.0
        %5592 = vmatmul.mubr.f32.gmra.mrb[0].mxu0 %v5470
        %v5593 = vpop.f32.mrb[0].mxu0
        %v5594 = vadd.f32 0.0, %v5593
        %v5595 = vpop.f32.mrb[0].mxu0
        %5596 = vmatprep.mubr.f32.mxu0 0.0
        %5597 = vmatmul.mubr.f32.gmra.mrb[0].mxu0 %v5473
        %v5598 = vpop.f32.mrb[0].mxu0
        %v5599 = vadd.f32 0.0, %v5598
        %v5600 = vpop.f32.mrb[0].mxu0
        %5601 = vmatprep.mubr.f32.mxu0 0.0
        %5602 = vmatmul.mubr.f32.gmra.mrb[0].mxu0 %v5476
        %v5603 = vpop.f32.mrb[0].mxu0
        %v5604 = vadd.f32 0.0, %v5603
        %v5605 = vpop.f32.mrb[0].mxu0
        %5606 = vmatprep.mubr.f32.mxu0 0.0
        %5607 = vmatmul.mubr.f32.gmra.mrb[0].mxu0 %v5479
        %v5608 = vpop.f32.mrb[0].mxu0
        %v5609 = vadd.f32 0.0, %v5608
        %v5610 = vpop.f32.mrb[0].mxu0
        %5611 = vmatprep.mubr.f32.mxu0 0.0
        %5612 = vmatmul.mubr.f32.gmra.mrb[0].mxu0 %v5482
        %v5613 = vpop.f32.mrb[0].mxu0
        %v5614 = vadd.f32 0.0, %v5613
        %v5615 = vpop.f32.mrb[0].mxu0
        %5616 = vmatprep.mubr.f32.mxu0 0.0
        %5617 = vmatmul.mubr.f32.gmra.mrb[0].mxu0 %v5485
        %v5618 = vpop.f32.mrb[0].mxu0
        %v5619 = vadd.f32 0.0, %v5618
        %v5620 = vpop.f32.mrb[0].mxu0
        %5621 = vmatprep.mubr.f32.mxu0 0.0
        %5622 = vmatmul.mubr.f32.gmra.mrb[0].mxu0 %v5488
        %v5623 = vpop.f32.mrb[0].mxu0
        %v5624 = vadd.f32 0.0, %v5623
        %v5625 = vpop.f32.mrb[0].mxu0
        %5626 = vmatprep.mubr.f32.mxu0 0.0
        %5627 = vmatmul.mubr.f32.gmra.mrb[0].mxu0 %v5491
        %v5628 = vpop.f32.mrb[0].mxu0
        %v5629 = vadd.f32 0.0, %v5628
        %v5630 = vpop.f32.mrb[0].mxu0
        %5631 = vmatprep.mubr.f32.mxu0 0.0
        %5632 = vmatmul.mubr.f32.gmra.mrb[0].mxu0 %v5494
        %v5633 = vpop.f32.mrb[0].mxu0
        %v5634 = vadd.f32 0.0, %v5633
        %v5635 = vpop.f32.mrb[0].mxu0
        %5636 = vmatprep.mubr.f32.mxu0 0.0
        %5637 = vmatmul.mubr.f32.gmra.mrb[0].mxu0 %v5497
        %v5638 = vpop.f32.mrb[0].mxu0
        %v5639 = vadd.f32 0.0, %v5638
        %v5640 = vpop.f32.mrb[0].mxu0
        %5641 = vmatprep.mubr.f32.mxu0 0.0
        %5642 = vmatmul.mubr.f32.gmra.mrb[0].mxu0 %v5500
        %v5643 = vpop.f32.mrb[0].mxu0
        %v5644 = vadd.f32 0.0, %v5643
        %v5645 = vpop.f32.mrb[0].mxu0
        %5646 = vdwg.mxu0
        %v5647 = vadd.f32 %v5365, %v5569
        %v5648 = vadd.f32 %v5366, %v5574
        %v5649 = vadd.f32 %v5367, %v5579
        %v5650 = vadd.f32 %v5368, %v5584
        %v5651 = vadd.f32 %v5369, %v5589
        %v5652 = vadd.f32 %v5370, %v5594
        %v5653 = vadd.f32 %v5371, %v5599
        %v5654 = vadd.f32 %v5372, %v5604
        %v5655 = vadd.f32 %v5373, %v5609
        %v5656 = vadd.f32 %v5374, %v5614
        %v5657 = vadd.f32 %v5375, %v5619
        %v5658 = vadd.f32 %v5376, %v5624
        %v5659 = vadd.f32 %v5377, %v5629
        %v5660 = vadd.f32 %v5378, %v5634
        %v5661 = vadd.f32 %v5379, %v5639
        %v5662 = vadd.f32 %v5380, %v5644
        %v5663 = vld [vmem:[%s3194] sm:$0xff]
        %v5664 = vld [vmem:[%s3194 + $0x8] sm:$0xff]
        %v5665 = vld [vmem:[%s3194 + $0x10] sm:$0xff]
        %v5666 = vld [vmem:[%s3194 + $0x18] sm:$0xff]
        %v5667 = vld [vmem:[%s3194 + $0x20] sm:$0xff]
        %v5668 = vld [vmem:[%s3194 + $0x28] sm:$0xff]
        %v5669 = vld [vmem:[%s3194 + $0x30] sm:$0xff]
        %v5670 = vld [vmem:[%s3194 + $0x38] sm:$0xff]
        %v5671 = vld [vmem:[%s3194 + $0x40] sm:$0xff]
        %v5672 = vld [vmem:[%s3194 + $0x48] sm:$0xff]
        %v5673 = vld [vmem:[%s3194 + $0x50] sm:$0xff]
        %v5674 = vld [vmem:[%s3194 + $0x58] sm:$0xff]
        %v5675 = vld [vmem:[%s3194 + $0x60] sm:$0xff]
        %v5676 = vld [vmem:[%s3194 + $0x68] sm:$0xff]
        %v5677 = vld [vmem:[%s3194 + $0x70] sm:$0xff]
        %v5678 = vld [vmem:[%s3194 + $0x78] sm:$0xff]
        %5679 = vrot.lane.b32.xlu0 %v5067, 48
        %v5680 = vpop.permute.xlu0 %5679
        %5681 = vrot.lane.b32.xlu0 %v5068, 48
        %v5682 = vpop.permute.xlu0 %5681
        %5683 = vrot.lane.b32.xlu0 %v5069, 48
        %v5684 = vpop.permute.xlu0 %5683
        %5685 = vrot.lane.b32.xlu0 %v5070, 48
        %v5686 = vpop.permute.xlu0 %5685
        %5687 = vrot.lane.b32.xlu0 %v5071, 48
        %v5688 = vpop.permute.xlu0 %5687
        %5689 = vrot.lane.b32.xlu0 %v5072, 48
        %v5690 = vpop.permute.xlu0 %5689
        %5691 = vrot.lane.b32.xlu0 %v5073, 48
        %v5692 = vpop.permute.xlu0 %5691
        %5693 = vrot.lane.b32.xlu0 %v5074, 48
        %v5694 = vpop.permute.xlu0 %5693
        %5695 = vrot.lane.b32.xlu0 %v5075, 48
        %v5696 = vpop.permute.xlu0 %5695
        %5697 = vrot.lane.b32.xlu0 %v5076, 48
        %v5698 = vpop.permute.xlu0 %5697
        %5699 = vrot.lane.b32.xlu0 %v5077, 48
        %v5700 = vpop.permute.xlu0 %5699
        %5701 = vrot.lane.b32.xlu0 %v5078, 48
        %v5702 = vpop.permute.xlu0 %5701
        %5703 = vrot.lane.b32.xlu0 %v5079, 48
        %v5704 = vpop.permute.xlu0 %5703
        %5705 = vrot.lane.b32.xlu0 %v5080, 48
        %v5706 = vpop.permute.xlu0 %5705
        %5707 = vrot.lane.b32.xlu0 %v5081, 48
        %v5708 = vpop.permute.xlu0 %5707
        %5709 = vrot.lane.b32.xlu0 %v5082, 48
        %v5710 = vpop.permute.xlu0 %5709
        %vm5711 = vcmask 392192
        %v5712 = vsel %vm5711, %v5680, %v5682
        %v5713 = vsel %vm5711, %v5684, %v5686
        %v5714 = vsel %vm5711, %v5688, %v5690
        %v5715 = vsel %vm5711, %v5692, %v5694
        %v5716 = vsel %vm5711, %v5696, %v5698
        %v5717 = vsel %vm5711, %v5700, %v5702
        %v5718 = vsel %vm5711, %v5704, %v5706
        %v5719 = vsel %vm5711, %v5708, %v5710
        %v5729 = vsel %vm1027, %v5663, 0
        %v5732 = vsel %vm1027, %v5664, 0
        %v5735 = vsel %vm1027, %v5665, 0
        %v5738 = vsel %vm1027, %v5666, 0
        %v5741 = vsel %vm1027, %v5667, 0
        %v5744 = vsel %vm1027, %v5668, 0
        %v5747 = vsel %vm1027, %v5669, 0
        %v5750 = vsel %vm1027, %v5670, 0
        %v5753 = vsel %vm1027, %v5671, 0
        %v5756 = vsel %vm1027, %v5672, 0
        %v5759 = vsel %vm1027, %v5673, 0
        %v5762 = vsel %vm1027, %v5674, 0
        %v5765 = vsel %vm1027, %v5675, 0
        %v5768 = vsel %vm1027, %v5676, 0
        %v5771 = vsel %vm1027, %v5677, 0
        %v5774 = vsel %vm1027, %v5678, 0
        %5776 = vmatprep.subr.mxu0 0.0
        %5777 = vmatpush1.msra.mxu0 %v5712
        %5778 = vmatprep.subr.mxu0 0.0
        %5779 = vmatpush1.msra.mxu0 %v5713
        %5780 = vmatprep.subr.mxu0 0.0
        %5781 = vmatpush1.msra.mxu0 %v5714
        %5782 = vmatprep.subr.mxu0 0.0
        %5783 = vmatpush1.msra.mxu0 %v5715
        %5784 = vmatprep.subr.mxu0 0.0
        %5785 = vmatpush1.msra.mxu0 %v5716
        %5786 = vmatprep.subr.mxu0 0.0
        %5787 = vmatpush1.msra.mxu0 %v5717
        %5788 = vmatprep.subr.mxu0 0.0
        %5789 = vmatpush1.msra.mxu0 %v5718
        %5790 = vmatprep.subr.mxu0 0.0
        %5791 = vmatpush1.msra.mxu0 %v5719
        %5792 = vmatprep.subr.mxu0 0.0
        %5793 = vmatpush1.msra.mxu0 0.0
        %5794 = vmatprep.subr.mxu0 0.0
        %5795 = vmatpush1.msra.mxu0 0.0
        %5796 = vmatprep.subr.mxu0 0.0
        %5797 = vmatpush1.msra.mxu0 0.0
        %5798 = vmatprep.subr.mxu0 0.0
        %5799 = vmatpush1.msra.mxu0 0.0
        %5800 = vmatprep.subr.mxu0 0.0
        %5801 = vmatpush1.msra.mxu0 0.0
        %5802 = vmatprep.subr.mxu0 0.0
        %5803 = vmatpush1.msra.mxu0 0.0
        %5804 = vmatprep.subr.mxu0 0.0
        %5805 = vmatpush1.msra.mxu0 0.0
        %5806 = vmatprep.subr.mxu0 0.0
        %5807 = vmatpush1.msra.mxu0 0.0
        %5808 = vmatprep.subr.mxu0 0.0
        %5809 = vmatpush1.msra.mxu0 0.0
        %5810 = vmatprep.subr.mxu0 0.0
        %5811 = vmatpush1.msra.mxu0 0.0
        %5812 = vmatprep.subr.mxu0 0.0
        %5813 = vmatpush1.msra.mxu0 0.0
        %5814 = vmatprep.subr.mxu0 0.0
        %5815 = vmatpush1.msra.mxu0 0.0
        %5816 = vmatprep.subr.mxu0 0.0
        %5817 = vmatpush1.msra.mxu0 0.0
        %5818 = vmatprep.subr.mxu0 0.0
        %5819 = vmatpush1.msra.mxu0 0.0
        %5820 = vmatprep.subr.mxu0 0.0
        %5821 = vmatpush1.msra.mxu0 0.0
        %5822 = vmatprep.subr.mxu0 0.0
        %5823 = vmatpush1.msra.mxu0 0.0
        %5824 = vmatprep.subr.mxu0 0.0
        %5825 = vmatpush1.msra.mxu0 0.0
        %5826 = vmatprep.subr.mxu0 0.0
        %5827 = vmatpush1.msra.mxu0 0.0
        %5828 = vmatprep.subr.mxu0 0.0
        %5829 = vmatpush1.msra.mxu0 0.0
        %5830 = vmatprep.subr.mxu0 0.0
        %5831 = vmatpush1.msra.mxu0 0.0
        %5832 = vmatprep.subr.mxu0 0.0
        %5833 = vmatpush1.msra.mxu0 0.0
        %5834 = vmatprep.subr.mxu0 0.0
        %5835 = vmatpush1.msra.mxu0 0.0
        %5836 = vmatprep.subr.mxu0 0.0
        %5837 = vmatpush1.msra.mxu0 0.0
        %5838 = vmatprep.subr.mxu0 0.0
        %5839 = vmatpush1.msra.mxu0 0.0
        %5840 = vmatprep.mubr.f32.mxu0 0.0
        %5841 = vmatmul.mubr.f32.gmra.mrb[0].mxu0 %v5729
        %v5842 = vpop.f32.mrb[0].mxu0
        %v5843 = vadd.f32 0.0, %v5842
        %v5844 = vpop.f32.mrb[0].mxu0
        %5845 = vmatprep.mubr.f32.mxu0 0.0
        %5846 = vmatmul.mubr.f32.gmra.mrb[0].mxu0 %v5732
        %v5847 = vpop.f32.mrb[0].mxu0
        %v5848 = vadd.f32 0.0, %v5847
        %v5849 = vpop.f32.mrb[0].mxu0
        %5850 = vmatprep.mubr.f32.mxu0 0.0
        %5851 = vmatmul.mubr.f32.gmra.mrb[0].mxu0 %v5735
        %v5852 = vpop.f32.mrb[0].mxu0
        %v5853 = vadd.f32 0.0, %v5852
        %v5854 = vpop.f32.mrb[0].mxu0
        %5855 = vmatprep.mubr.f32.mxu0 0.0
        %5856 = vmatmul.mubr.f32.gmra.mrb[0].mxu0 %v5738
        %v5857 = vpop.f32.mrb[0].mxu0
        %v5858 = vadd.f32 0.0, %v5857
        %v5859 = vpop.f32.mrb[0].mxu0
        %5860 = vmatprep.mubr.f32.mxu0 0.0
        %5861 = vmatmul.mubr.f32.gmra.mrb[0].mxu0 %v5741
        %v5862 = vpop.f32.mrb[0].mxu0
        %v5863 = vadd.f32 0.0, %v5862
        %v5864 = vpop.f32.mrb[0].mxu0
        %5865 = vmatprep.mubr.f32.mxu0 0.0
        %5866 = vmatmul.mubr.f32.gmra.mrb[0].mxu0 %v5744
        %v5867 = vpop.f32.mrb[0].mxu0
        %v5868 = vadd.f32 0.0, %v5867
        %v5869 = vpop.f32.mrb[0].mxu0
        %5870 = vmatprep.mubr.f32.mxu0 0.0
        %5871 = vmatmul.mubr.f32.gmra.mrb[0].mxu0 %v5747
        %v5872 = vpop.f32.mrb[0].mxu0
        %v5873 = vadd.f32 0.0, %v5872
        %v5874 = vpop.f32.mrb[0].mxu0
        %5875 = vmatprep.mubr.f32.mxu0 0.0
        %5876 = vmatmul.mubr.f32.gmra.mrb[0].mxu0 %v5750
        %v5877 = vpop.f32.mrb[0].mxu0
        %v5878 = vadd.f32 0.0, %v5877
        %v5879 = vpop.f32.mrb[0].mxu0
        %5880 = vmatprep.mubr.f32.mxu0 0.0
        %5881 = vmatmul.mubr.f32.gmra.mrb[0].mxu0 %v5753
        %v5882 = vpop.f32.mrb[0].mxu0
        %v5883 = vadd.f32 0.0, %v5882
        %v5884 = vpop.f32.mrb[0].mxu0
        %5885 = vmatprep.mubr.f32.mxu0 0.0
        %5886 = vmatmul.mubr.f32.gmra.mrb[0].mxu0 %v5756
        %v5887 = vpop.f32.mrb[0].mxu0
        %v5888 = vadd.f32 0.0, %v5887
        %v5889 = vpop.f32.mrb[0].mxu0
        %5890 = vmatprep.mubr.f32.mxu0 0.0
        %5891 = vmatmul.mubr.f32.gmra.mrb[0].mxu0 %v5759
        %v5892 = vpop.f32.mrb[0].mxu0
        %v5893 = vadd.f32 0.0, %v5892
        %v5894 = vpop.f32.mrb[0].mxu0
        %5895 = vmatprep.mubr.f32.mxu0 0.0
        %5896 = vmatmul.mubr.f32.gmra.mrb[0].mxu0 %v5762
        %v5897 = vpop.f32.mrb[0].mxu0
        %v5898 = vadd.f32 0.0, %v5897
        %v5899 = vpop.f32.mrb[0].mxu0
        %5900 = vmatprep.mubr.f32.mxu0 0.0
        %5901 = vmatmul.mubr.f32.gmra.mrb[0].mxu0 %v5765
        %v5902 = vpop.f32.mrb[0].mxu0
        %v5903 = vadd.f32 0.0, %v5902
        %v5904 = vpop.f32.mrb[0].mxu0
        %5905 = vmatprep.mubr.f32.mxu0 0.0
        %5906 = vmatmul.mubr.f32.gmra.mrb[0].mxu0 %v5768
        %v5907 = vpop.f32.mrb[0].mxu0
        %v5908 = vadd.f32 0.0, %v5907
        %v5909 = vpop.f32.mrb[0].mxu0
        %5910 = vmatprep.mubr.f32.mxu0 0.0
        %5911 = vmatmul.mubr.f32.gmra.mrb[0].mxu0 %v5771
        %v5912 = vpop.f32.mrb[0].mxu0
        %v5913 = vadd.f32 0.0, %v5912
        %v5914 = vpop.f32.mrb[0].mxu0
        %5915 = vmatprep.mubr.f32.mxu0 0.0
        %5916 = vmatmul.mubr.f32.gmra.mrb[0].mxu0 %v5774
        %v5917 = vpop.f32.mrb[0].mxu0
        %v5918 = vadd.f32 0.0, %v5917
        %v5919 = vpop.f32.mrb[0].mxu0
        %5920 = vdwg.mxu0
        %v5921 = vadd.f32 %v5647, %v5843
        %v5922 = vadd.f32 %v5648, %v5848
        %v5923 = vadd.f32 %v5649, %v5853
        %v5924 = vadd.f32 %v5650, %v5858
        %v5925 = vadd.f32 %v5651, %v5863
        %v5926 = vadd.f32 %v5652, %v5868
        %v5927 = vadd.f32 %v5653, %v5873
        %v5928 = vadd.f32 %v5654, %v5878
        %v5929 = vadd.f32 %v5655, %v5883
        %v5930 = vadd.f32 %v5656, %v5888
        %v5931 = vadd.f32 %v5657, %v5893
        %v5932 = vadd.f32 %v5658, %v5898
        %v5933 = vadd.f32 %v5659, %v5903
        %v5934 = vadd.f32 %v5660, %v5908
        %v5935 = vadd.f32 %v5661, %v5913
        %v5936 = vadd.f32 %v5662, %v5918
        %5937 = vrot.lane.b32.xlu0 %v5067, 47
        %v5938 = vpop.permute.xlu0 %5937
        %5939 = vrot.lane.b32.xlu0 %v5068, 47
        %v5940 = vpop.permute.xlu0 %5939
        %5941 = vrot.lane.b32.xlu0 %v5069, 47
        %v5942 = vpop.permute.xlu0 %5941
        %5943 = vrot.lane.b32.xlu0 %v5070, 47
        %v5944 = vpop.permute.xlu0 %5943
        %5945 = vrot.lane.b32.xlu0 %v5071, 47
        %v5946 = vpop.permute.xlu0 %5945
        %5947 = vrot.lane.b32.xlu0 %v5072, 47
        %v5948 = vpop.permute.xlu0 %5947
        %5949 = vrot.lane.b32.xlu0 %v5073, 47
        %v5950 = vpop.permute.xlu0 %5949
        %5951 = vrot.lane.b32.xlu0 %v5074, 47
        %v5952 = vpop.permute.xlu0 %5951
        %5953 = vrot.lane.b32.xlu0 %v5075, 47
        %v5954 = vpop.permute.xlu0 %5953
        %5955 = vrot.lane.b32.xlu0 %v5076, 47
        %v5956 = vpop.permute.xlu0 %5955
        %5957 = vrot.lane.b32.xlu0 %v5077, 47
        %v5958 = vpop.permute.xlu0 %5957
        %5959 = vrot.lane.b32.xlu0 %v5078, 47
        %v5960 = vpop.permute.xlu0 %5959
        %5961 = vrot.lane.b32.xlu0 %v5079, 47
        %v5962 = vpop.permute.xlu0 %5961
        %5963 = vrot.lane.b32.xlu0 %v5080, 47
        %v5964 = vpop.permute.xlu0 %5963
        %5965 = vrot.lane.b32.xlu0 %v5081, 47
        %v5966 = vpop.permute.xlu0 %5965
        %5967 = vrot.lane.b32.xlu0 %v5082, 47
        %v5968 = vpop.permute.xlu0 %5967
        %vm5969 = vcmask 384000
        %v5970 = vsel %vm5969, %v5938, %v5940
        %v5971 = vsel %vm5969, %v5942, %v5944
        %v5972 = vsel %vm5969, %v5946, %v5948
        %v5973 = vsel %vm5969, %v5950, %v5952
        %v5974 = vsel %vm5969, %v5954, %v5956
        %v5975 = vsel %vm5969, %v5958, %v5960
        %v5976 = vsel %vm5969, %v5962, %v5964
        %v5977 = vsel %vm5969, %v5966, %v5968
        %v5986 = vsel %vm1885, %v5970, 0.0
        %v5987 = vsel %vm1885, %v5971, 0.0
        %v5988 = vsel %vm1885, %v5972, 0.0
        %v5989 = vsel %vm1885, %v5973, 0.0
        %v5990 = vsel %vm1885, %v5974, 0.0
        %v5991 = vsel %vm1885, %v5975, 0.0
        %v5992 = vsel %vm1885, %v5976, 0.0
        %v5993 = vsel %vm1885, %v5977, 0.0
        %v5994 = vld [vmem:[%s3476] sm:$0xff]
        %v5995 = vld [vmem:[%s3476 + $0x8] sm:$0xff]
        %v5996 = vld [vmem:[%s3476 + $0x10] sm:$0xff]
        %v5997 = vld [vmem:[%s3476 + $0x18] sm:$0xff]
        %v5998 = vld [vmem:[%s3476 + $0x20] sm:$0xff]
        %v5999 = vld [vmem:[%s3476 + $0x28] sm:$0xff]
        %v6000 = vld [vmem:[%s3476 + $0x30] sm:$0xff]
        %v6001 = vld [vmem:[%s3476 + $0x38] sm:$0xff]
        %v6002 = vld [vmem:[%s3476 + $0x40] sm:$0xff]
        %v6003 = vld [vmem:[%s3476 + $0x48] sm:$0xff]
        %v6004 = vld [vmem:[%s3476 + $0x50] sm:$0xff]
        %v6005 = vld [vmem:[%s3476 + $0x58] sm:$0xff]
        %v6006 = vld [vmem:[%s3476 + $0x60] sm:$0xff]
        %v6007 = vld [vmem:[%s3476 + $0x68] sm:$0xff]
        %v6008 = vld [vmem:[%s3476 + $0x70] sm:$0xff]
        %v6009 = vld [vmem:[%s3476 + $0x78] sm:$0xff]
        %v6011 = vsel %vm1027, %v5994, 0
        %v6014 = vsel %vm1027, %v5995, 0
        %v6017 = vsel %vm1027, %v5996, 0
        %v6020 = vsel %vm1027, %v5997, 0
        %v6023 = vsel %vm1027, %v5998, 0
        %v6026 = vsel %vm1027, %v5999, 0
        %v6029 = vsel %vm1027, %v6000, 0
        %v6032 = vsel %vm1027, %v6001, 0
        %v6035 = vsel %vm1027, %v6002, 0
        %v6038 = vsel %vm1027, %v6003, 0
        %v6041 = vsel %vm1027, %v6004, 0
        %v6044 = vsel %vm1027, %v6005, 0
        %v6047 = vsel %vm1027, %v6006, 0
        %v6050 = vsel %vm1027, %v6007, 0
        %v6053 = vsel %vm1027, %v6008, 0
        %v6056 = vsel %vm1027, %v6009, 0
        %6058 = vmatprep.subr.mxu0 0.0
        %6059 = vmatpush1.msra.mxu0 %v5986
        %6060 = vmatprep.subr.mxu0 0.0
        %6061 = vmatpush1.msra.mxu0 %v5987
        %6062 = vmatprep.subr.mxu0 0.0
        %6063 = vmatpush1.msra.mxu0 %v5988
        %6064 = vmatprep.subr.mxu0 0.0
        %6065 = vmatpush1.msra.mxu0 %v5989
        %6066 = vmatprep.subr.mxu0 0.0
        %6067 = vmatpush1.msra.mxu0 %v5990
        %6068 = vmatprep.subr.mxu0 0.0
        %6069 = vmatpush1.msra.mxu0 %v5991
        %6070 = vmatprep.subr.mxu0 0.0
        %6071 = vmatpush1.msra.mxu0 %v5992
        %6072 = vmatprep.subr.mxu0 0.0
        %6073 = vmatpush1.msra.mxu0 %v5993
        %6074 = vmatprep.subr.mxu0 0.0
        %6075 = vmatpush1.msra.mxu0 0.0
        %6076 = vmatprep.subr.mxu0 0.0
        %6077 = vmatpush1.msra.mxu0 0.0
        %6078 = vmatprep.subr.mxu0 0.0
        %6079 = vmatpush1.msra.mxu0 0.0
        %6080 = vmatprep.subr.mxu0 0.0
        %6081 = vmatpush1.msra.mxu0 0.0
        %6082 = vmatprep.subr.mxu0 0.0
        %6083 = vmatpush1.msra.mxu0 0.0
        %6084 = vmatprep.subr.mxu0 0.0
        %6085 = vmatpush1.msra.mxu0 0.0
        %6086 = vmatprep.subr.mxu0 0.0
        %6087 = vmatpush1.msra.mxu0 0.0
        %6088 = vmatprep.subr.mxu0 0.0
        %6089 = vmatpush1.msra.mxu0 0.0
        %6090 = vmatprep.subr.mxu0 0.0
        %6091 = vmatpush1.msra.mxu0 0.0
        %6092 = vmatprep.subr.mxu0 0.0
        %6093 = vmatpush1.msra.mxu0 0.0
        %6094 = vmatprep.subr.mxu0 0.0
        %6095 = vmatpush1.msra.mxu0 0.0
        %6096 = vmatprep.subr.mxu0 0.0
        %6097 = vmatpush1.msra.mxu0 0.0
        %6098 = vmatprep.subr.mxu0 0.0
        %6099 = vmatpush1.msra.mxu0 0.0
        %6100 = vmatprep.subr.mxu0 0.0
        %6101 = vmatpush1.msra.mxu0 0.0
        %6102 = vmatprep.subr.mxu0 0.0
        %6103 = vmatpush1.msra.mxu0 0.0
        %6104 = vmatprep.subr.mxu0 0.0
        %6105 = vmatpush1.msra.mxu0 0.0
        %6106 = vmatprep.subr.mxu0 0.0
        %6107 = vmatpush1.msra.mxu0 0.0
        %6108 = vmatprep.subr.mxu0 0.0
        %6109 = vmatpush1.msra.mxu0 0.0
        %6110 = vmatprep.subr.mxu0 0.0
        %6111 = vmatpush1.msra.mxu0 0.0
        %6112 = vmatprep.subr.mxu0 0.0
        %6113 = vmatpush1.msra.mxu0 0.0
        %6114 = vmatprep.subr.mxu0 0.0
        %6115 = vmatpush1.msra.mxu0 0.0
        %6116 = vmatprep.subr.mxu0 0.0
        %6117 = vmatpush1.msra.mxu0 0.0
        %6118 = vmatprep.subr.mxu0 0.0
        %6119 = vmatpush1.msra.mxu0 0.0
        %6120 = vmatprep.subr.mxu0 0.0
        %6121 = vmatpush1.msra.mxu0 0.0
        %6122 = vmatprep.mubr.f32.mxu0 0.0
        %6123 = vmatmul.mubr.f32.gmra.mrb[0].mxu0 %v6011
        %v6124 = vpop.f32.mrb[0].mxu0
        %v6125 = vadd.f32 0.0, %v6124
        %v6126 = vpop.f32.mrb[0].mxu0
        %6127 = vmatprep.mubr.f32.mxu0 0.0
        %6128 = vmatmul.mubr.f32.gmra.mrb[0].mxu0 %v6014
        %v6129 = vpop.f32.mrb[0].mxu0
        %v6130 = vadd.f32 0.0, %v6129
        %v6131 = vpop.f32.mrb[0].mxu0
        %6132 = vmatprep.mubr.f32.mxu0 0.0
        %6133 = vmatmul.mubr.f32.gmra.mrb[0].mxu0 %v6017
        %v6134 = vpop.f32.mrb[0].mxu0
        %v6135 = vadd.f32 0.0, %v6134
        %v6136 = vpop.f32.mrb[0].mxu0
        %6137 = vmatprep.mubr.f32.mxu0 0.0
        %6138 = vmatmul.mubr.f32.gmra.mrb[0].mxu0 %v6020
        %v6139 = vpop.f32.mrb[0].mxu0
        %v6140 = vadd.f32 0.0, %v6139
        %v6141 = vpop.f32.mrb[0].mxu0
        %6142 = vmatprep.mubr.f32.mxu0 0.0
        %6143 = vmatmul.mubr.f32.gmra.mrb[0].mxu0 %v6023
        %v6144 = vpop.f32.mrb[0].mxu0
        %v6145 = vadd.f32 0.0, %v6144
        %v6146 = vpop.f32.mrb[0].mxu0
        %6147 = vmatprep.mubr.f32.mxu0 0.0
        %6148 = vmatmul.mubr.f32.gmra.mrb[0].mxu0 %v6026
        %v6149 = vpop.f32.mrb[0].mxu0
        %v6150 = vadd.f32 0.0, %v6149
        %v6151 = vpop.f32.mrb[0].mxu0
        %6152 = vmatprep.mubr.f32.mxu0 0.0
        %6153 = vmatmul.mubr.f32.gmra.mrb[0].mxu0 %v6029
        %v6154 = vpop.f32.mrb[0].mxu0
        %v6155 = vadd.f32 0.0, %v6154
        %v6156 = vpop.f32.mrb[0].mxu0
        %6157 = vmatprep.mubr.f32.mxu0 0.0
        %6158 = vmatmul.mubr.f32.gmra.mrb[0].mxu0 %v6032
        %v6159 = vpop.f32.mrb[0].mxu0
        %v6160 = vadd.f32 0.0, %v6159
        %v6161 = vpop.f32.mrb[0].mxu0
        %6162 = vmatprep.mubr.f32.mxu0 0.0
        %6163 = vmatmul.mubr.f32.gmra.mrb[0].mxu0 %v6035
        %v6164 = vpop.f32.mrb[0].mxu0
        %v6165 = vadd.f32 0.0, %v6164
        %v6166 = vpop.f32.mrb[0].mxu0
        %6167 = vmatprep.mubr.f32.mxu0 0.0
        %6168 = vmatmul.mubr.f32.gmra.mrb[0].mxu0 %v6038
        %v6169 = vpop.f32.mrb[0].mxu0
        %v6170 = vadd.f32 0.0, %v6169
        %v6171 = vpop.f32.mrb[0].mxu0
        %6172 = vmatprep.mubr.f32.mxu0 0.0
        %6173 = vmatmul.mubr.f32.gmra.mrb[0].mxu0 %v6041
        %v6174 = vpop.f32.mrb[0].mxu0
        %v6175 = vadd.f32 0.0, %v6174
        %v6176 = vpop.f32.mrb[0].mxu0
        %6177 = vmatprep.mubr.f32.mxu0 0.0
        %6178 = vmatmul.mubr.f32.gmra.mrb[0].mxu0 %v6044
        %v6179 = vpop.f32.mrb[0].mxu0
        %v6180 = vadd.f32 0.0, %v6179
        %v6181 = vpop.f32.mrb[0].mxu0
        %6182 = vmatprep.mubr.f32.mxu0 0.0
        %6183 = vmatmul.mubr.f32.gmra.mrb[0].mxu0 %v6047
        %v6184 = vpop.f32.mrb[0].mxu0
        %v6185 = vadd.f32 0.0, %v6184
        %v6186 = vpop.f32.mrb[0].mxu0
        %6187 = vmatprep.mubr.f32.mxu0 0.0
        %6188 = vmatmul.mubr.f32.gmra.mrb[0].mxu0 %v6050
        %v6189 = vpop.f32.mrb[0].mxu0
        %v6190 = vadd.f32 0.0, %v6189
        %v6191 = vpop.f32.mrb[0].mxu0
        %6192 = vmatprep.mubr.f32.mxu0 0.0
        %6193 = vmatmul.mubr.f32.gmra.mrb[0].mxu0 %v6053
        %v6194 = vpop.f32.mrb[0].mxu0
        %v6195 = vadd.f32 0.0, %v6194
        %v6196 = vpop.f32.mrb[0].mxu0
        %6197 = vmatprep.mubr.f32.mxu0 0.0
        %6198 = vmatmul.mubr.f32.gmra.mrb[0].mxu0 %v6056
        %v6199 = vpop.f32.mrb[0].mxu0
        %v6200 = vadd.f32 0.0, %v6199
        %v6201 = vpop.f32.mrb[0].mxu0
        %6202 = vdwg.mxu0
        %v6203 = vadd.f32 %v5921, %v6125
        %v6204 = vadd.f32 %v5922, %v6130
        %v6205 = vadd.f32 %v5923, %v6135
        %v6206 = vadd.f32 %v5924, %v6140
        %v6207 = vadd.f32 %v5925, %v6145
        %v6208 = vadd.f32 %v5926, %v6150
        %v6209 = vadd.f32 %v5927, %v6155
        %v6210 = vadd.f32 %v5928, %v6160
        %v6211 = vadd.f32 %v5929, %v6165
        %v6212 = vadd.f32 %v5930, %v6170
        %v6213 = vadd.f32 %v5931, %v6175
        %v6214 = vadd.f32 %v5932, %v6180
        %v6215 = vadd.f32 %v5933, %v6185
        %v6216 = vadd.f32 %v5934, %v6190
        %v6217 = vadd.f32 %v5935, %v6195
        %v6218 = vadd.f32 %v5936, %v6200
        %v6219 = vmul.f32 %v6203, 0.1
        %v6220 = vmul.f32 %v6204, 0.1
        %v6221 = vmul.f32 %v6205, 0.1
        %v6222 = vmul.f32 %v6206, 0.1
        %v6223 = vmul.f32 %v6207, 0.1
        %v6224 = vmul.f32 %v6208, 0.1
        %v6225 = vmul.f32 %v6209, 0.1
        %v6226 = vmul.f32 %v6210, 0.1
        %v6227 = vmul.f32 %v6211, 0.1
        %v6228 = vmul.f32 %v6212, 0.1
        %v6229 = vmul.f32 %v6213, 0.1
        %v6230 = vmul.f32 %v6214, 0.1
        %v6231 = vmul.f32 %v6215, 0.1
        %v6232 = vmul.f32 %v6216, 0.1
        %v6233 = vmul.f32 %v6217, 0.1
        %v6234 = vmul.f32 %v6218, 0.1
        %v6235 = vmax.f32 %v6203, %v6219
        %v6236 = vmax.f32 %v6204, %v6220
        %v6237 = vmax.f32 %v6205, %v6221
        %v6238 = vmax.f32 %v6206, %v6222
        %v6239 = vmax.f32 %v6207, %v6223
        %v6240 = vmax.f32 %v6208, %v6224
        %v6241 = vmax.f32 %v6209, %v6225
        %v6242 = vmax.f32 %v6210, %v6226
        %v6243 = vmax.f32 %v6211, %v6227
        %v6244 = vmax.f32 %v6212, %v6228
        %v6245 = vmax.f32 %v6213, %v6229
        %v6246 = vmax.f32 %v6214, %v6230
        %v6247 = vmax.f32 %v6215, %v6231
        %v6248 = vmax.f32 %v6216, %v6232
        %v6249 = vmax.f32 %v6217, %v6233
        %v6250 = vmax.f32 %v6218, %v6234
        %v6251 = vld [vmem:[%s330] sm:$0xff]
        %v6252 = vld [vmem:[%s330 + $0x8] sm:$0xff]
        %v6253 = vld [vmem:[%s330 + $0x10] sm:$0xff]
        %v6254 = vld [vmem:[%s330 + $0x18] sm:$0xff]
        %v6255 = vld [vmem:[%s330 + $0x20] sm:$0xff]
        %v6256 = vld [vmem:[%s330 + $0x28] sm:$0xff]
        %v6257 = vld [vmem:[%s330 + $0x30] sm:$0xff]
        %v6258 = vld [vmem:[%s330 + $0x38] sm:$0xff]
        %v6259 = vld [vmem:[%s330 + $0x40] sm:$0xff]
        %v6260 = vld [vmem:[%s330 + $0x48] sm:$0xff]
        %v6261 = vld [vmem:[%s330 + $0x50] sm:$0xff]
        %v6262 = vld [vmem:[%s330 + $0x58] sm:$0xff]
        %v6263 = vld [vmem:[%s330 + $0x60] sm:$0xff]
        %v6264 = vld [vmem:[%s330 + $0x68] sm:$0xff]
        %v6265 = vld [vmem:[%s330 + $0x70] sm:$0xff]
        %v6266 = vld [vmem:[%s330 + $0x78] sm:$0xff]
        %6283 = vrot.lane.b32.xlu0 %v6235, 64
        %v6284 = vpop.permute.xlu0 %6283
        %6285 = vrot.lane.b32.xlu0 %v6236, 64
        %v6286 = vpop.permute.xlu0 %6285
        %6287 = vrot.lane.b32.xlu0 %v6237, 64
        %v6288 = vpop.permute.xlu0 %6287
        %6289 = vrot.lane.b32.xlu0 %v6238, 64
        %v6290 = vpop.permute.xlu0 %6289
        %6291 = vrot.lane.b32.xlu0 %v6239, 64
        %v6292 = vpop.permute.xlu0 %6291
        %6293 = vrot.lane.b32.xlu0 %v6240, 64
        %v6294 = vpop.permute.xlu0 %6293
        %6295 = vrot.lane.b32.xlu0 %v6241, 64
        %v6296 = vpop.permute.xlu0 %6295
        %6297 = vrot.lane.b32.xlu0 %v6242, 64
        %v6298 = vpop.permute.xlu0 %6297
        %6299 = vrot.lane.b32.xlu0 %v6243, 64
        %v6300 = vpop.permute.xlu0 %6299
        %6301 = vrot.lane.b32.xlu0 %v6244, 64
        %v6302 = vpop.permute.xlu0 %6301
        %6303 = vrot.lane.b32.xlu0 %v6245, 64
        %v6304 = vpop.permute.xlu0 %6303
        %6305 = vrot.lane.b32.xlu0 %v6246, 64
        %v6306 = vpop.permute.xlu0 %6305
        %6307 = vrot.lane.b32.xlu0 %v6247, 64
        %v6308 = vpop.permute.xlu0 %6307
        %6309 = vrot.lane.b32.xlu0 %v6248, 64
        %v6310 = vpop.permute.xlu0 %6309
        %6311 = vrot.lane.b32.xlu0 %v6249, 64
        %v6312 = vpop.permute.xlu0 %6311
        %6313 = vrot.lane.b32.xlu0 %v6250, 64
        %v6314 = vpop.permute.xlu0 %6313
        %v6331 = vadd.f32 %v6251, %v6284
        %v6332 = vadd.f32 %v6252, %v6286
        %v6333 = vadd.f32 %v6253, %v6288
        %v6334 = vadd.f32 %v6254, %v6290
        %v6335 = vadd.f32 %v6255, %v6292
        %v6336 = vadd.f32 %v6256, %v6294
        %v6337 = vadd.f32 %v6257, %v6296
        %v6338 = vadd.f32 %v6258, %v6298
        %v6339 = vadd.f32 %v6259, %v6300
        %v6340 = vadd.f32 %v6260, %v6302
        %v6341 = vadd.f32 %v6261, %v6304
        %v6342 = vadd.f32 %v6262, %v6306
        %v6343 = vadd.f32 %v6263, %v6308
        %v6344 = vadd.f32 %v6264, %v6310
        %v6345 = vadd.f32 %v6265, %v6312
        %v6346 = vadd.f32 %v6266, %v6314
        %6347 = vst.msk [vmem:[%s388] sm:$0xff] %vm1269, %v6331
        %6348 = vst.msk [vmem:[%s388 + $0x8] sm:$0xff] %vm1269, %v6332
        %6349 = vst.msk [vmem:[%s388 + $0x10] sm:$0xff] %vm1269, %v6333
        %6350 = vst.msk [vmem:[%s388 + $0x18] sm:$0xff] %vm1269, %v6334
        %6351 = vst.msk [vmem:[%s388 + $0x20] sm:$0xff] %vm1269, %v6335
        %6352 = vst.msk [vmem:[%s388 + $0x28] sm:$0xff] %vm1269, %v6336
        %6353 = vst.msk [vmem:[%s388 + $0x30] sm:$0xff] %vm1269, %v6337
        %6354 = vst.msk [vmem:[%s388 + $0x38] sm:$0xff] %vm1269, %v6338
        %6355 = vst.msk [vmem:[%s388 + $0x40] sm:$0xff] %vm1269, %v6339
        %6356 = vst.msk [vmem:[%s388 + $0x48] sm:$0xff] %vm1269, %v6340
        %6357 = vst.msk [vmem:[%s388 + $0x50] sm:$0xff] %vm1269, %v6341
        %6358 = vst.msk [vmem:[%s388 + $0x58] sm:$0xff] %vm1269, %v6342
        %6359 = vst.msk [vmem:[%s388 + $0x60] sm:$0xff] %vm1269, %v6343
        %6360 = vst.msk [vmem:[%s388 + $0x68] sm:$0xff] %vm1269, %v6344
        %6361 = vst.msk [vmem:[%s388 + $0x70] sm:$0xff] %vm1269, %v6345
        %6362 = vst.msk [vmem:[%s388 + $0x78] sm:$0xff] %vm1269, %v6346
        %s6363 = sand.u32 %s190, 1
        %s6364 = scalar_lea.sflag [#allocation5], %s6363
        %s6365 = sand.u32 %s190, 1
        %s6366 = smul.addr %s6365, 128
        %s6367 = scalar_lea.vmem [#allocation14], %s6366
        // Predicated region
        $region69: #{resblock2_child_pallas.1} parent=43 // pred_check
          %p6368 = pneg %p200
        $region70: #{resblock2_child_pallas.1} parent=43 // pred_check_branch
          %6370 = sbr.rel (%p6368) target = $region72
        $region71: #{resblock2_child_pallas.1} parent=43 // pred_region
          %s6372 = ssub.s32 2048, 2048
          %6373 = vsyncadd %s6364, %s6372
          %s6374 = smul.addr %s32, 32
          %s6375 = sadd.s32 %s33, %s6374
          %s6376 = smul.addr %s6375, 128
          %s6377 = scalar_lea.hbm %s6, %s6376
          %s6378 = sshll.u32 %s6367, 4
          %s6379 = int_to_ptr.vmem [resolvable:$true] %s6378
          %6384 = dma.vmem_to_hbm [thread:$0]  %s6379, 2048, %s6377, %s6364, 128, 256, 8
        $region72: #{resblock2_child_pallas.1} parent=43 // pred_fallthru
          _
      $region44: #{resblock2_child_pallas.1} parent=5 // pred_fallthru
        _
      %p6385 = scmp.le.s32.totalorder 2, %s23
      // Predicated region
      $region73: #{resblock2_child_pallas.1} parent=5 // pred_check
        %p6386 = pneg %p6385
      $region74: #{resblock2_child_pallas.1} parent=5 // pred_check_branch
        %6388 = sbr.rel (%p6386) target = $region76
      $region75: #{resblock2_child_pallas.1} parent=5 // pred_region
        %s6389 = ssub.s32 %s23, 2
        // Predicated region
        $region77: #{resblock2_child_pallas.1} parent=75 // pred_check
          %p6390 = pneg %p206
        $region78: #{resblock2_child_pallas.1} parent=75 // pred_check_branch
          %6392 = sbr.rel (%p6390) target = $region80
        $region79: #{resblock2_child_pallas.1} parent=75 // pred_region
          %s6393 = sand.u32 %s191, 1
          %s6394 = scalar_lea.sflag [#allocation5], %s6393
          %s6395 = sand.u32 %s191, 1
          %s6396 = smul.addr %s6395, 128
          %s6397 = scalar_lea.vmem [#allocation14], %s6396
          %6398 = dma.done %s6394, 2048
        $region80: #{resblock2_child_pallas.1} parent=75 // pred_fallthru
          _
      $region76: #{resblock2_child_pallas.1} parent=5 // pred_fallthru
        _
    $region6: #{resblock2_child_pallas.1} parent=1 // loop_footer
      %s27 = sadd.s32 1, %s23
    $region7: #{resblock2_child_pallas.1} parent=1 // loop_footer_branch
      %22 = sbr.rel target = $region3
    $region8: #{resblock2_child_pallas.1} parent=1 // loop_exit
      _
    %6399 = vsyncpa [#allocation4], 1
    %s6400 = scalar_lea.sflag [#allocation4], 1
    %6401 = vsyncpa %s6400, 1
    %6402 = vsyncpa [#allocation7], 1
    %s6403 = scalar_lea.sflag [#allocation7], 1
    %6404 = vsyncpa %s6403, 1
    %6405 = vsyncpa [#allocation10], 1
    %6406 = vsyncpa [#allocation13], 1
    %6407 = vsyncpa [#allocation5], 1
    %s6408 = scalar_lea.sflag [#allocation5], 1
    %6409 = vsyncpa %s6408, 1

</llo_original>
